<compile_context>
chip_gen: v7x
topology: tpu7x:2x2x1
jax: 0.10.0
libtpu: 0.0.40
codegen_flags: <defaults>
</compile_context>

<pallas_src>
import math
from functools import partial

import jax
import jax.numpy as jnp
from jax.experimental import pallas as pl
from jax.experimental.pallas import tpu as pltpu

_BN_EPS = 1e-5
_LN_EPS = 1e-6


def _ln(x, g, b, eps):
    """Annotated-transformer LayerNorm: g*(x-mean)/(std_unbiased+eps)+b."""
    n = x.shape[-1]
    mu = jnp.mean(x, axis=-1, keepdims=True)
    var = jnp.sum((x - mu) ** 2, axis=-1, keepdims=True) / (n - 1)
    return g * (x - mu) / (jnp.sqrt(var) + eps) + b


# --------------------------- K-A: fused TDNN front-end -----------------------
#
# p1 rows are frame-major: row = l*n_seg + s  (l = conv1 output frame, s = segment).
# With that layout the dilation-2 conv2 tap j is the contiguous row block
# [j*2*n_seg, j*2*n_seg + l_out*n_seg) -> pure 2-D aligned slices, no gather.

def _tdnn_kernel(p1_ref, w1_ref, w2_ref, w3_ref, b_ref, o_ref, *,
                 scale, n_seg, l_out, dil):
    f32, bf16 = jnp.float32, jnp.bfloat16
    k2 = w2_ref.shape[0]
    c_mid = w2_ref.shape[-1]

    # tdnn1 + ReLU + BN1 (folded scale)
    h1 = jnp.dot(p1_ref[...].astype(bf16), w1_ref[...], preferred_element_type=f32)
    h1 = (jnp.maximum(h1 + b_ref[0:1, :], 0.0) * scale).astype(bf16)     # (L1*S, 512)

    # tdnn2 (k=5, dilation=2): im2col folded into 5 shifted row-slice matmuls
    rows = l_out * n_seg
    acc = jnp.zeros((rows, c_mid), f32)
    for j in range(k2):
        start = j * dil * n_seg                                          # 8-aligned
        acc = acc + jnp.dot(h1[start:start + rows, :], w2_ref[j],
                            preferred_element_type=f32)
    y2 = (jnp.maximum(acc + b_ref[1:2, :], 0.0) * scale).astype(bf16)

    # tdnn3 (1x1) + ReLU + BN3
    y3 = jnp.dot(y2, w3_ref[...], preferred_element_type=f32)
    o_ref[...] = jnp.maximum(y3 + b_ref[2:3, :], 0.0) * scale


def tdnn_frontend(p1, params, bn_scale, n_seg, l_out):
    c_out = params["w_tdnn3"].shape[-1]
    return pl.pallas_call(
        partial(_tdnn_kernel, scale=bn_scale, n_seg=n_seg, l_out=l_out, dil=2),
        out_shape=jax.ShapeDtypeStruct((l_out * n_seg, c_out), jnp.float32),
    )(p1, params["w_tdnn1"], params["w_tdnn2"], params["w_tdnn3"], params["tdnn_b"])


# ------------------ K-B: fused transformer back half + classifier ------------
#
# Packed-vector row map (params["vec"], one (24, 384) f32 array):
#   0 b_xv | 1 ln1_g | 2 ln1_b | 3 ln2_g | 4 ln2_b
#   per block b (base = 5 + 8*b):
#     +0 bqkv | +1 bo | +2 blk_ln1_g | +3 blk_ln1_b | +4 b_ff1 | +5 b_ff2
#     +6 blk_ln2_g | +7 blk_ln2_b
#   21 b_fc1 | 22 b_fc2 | 23 b_fc3

def _backend_kernel(y_ref, m_ref, pe_ref, wxv_ref, wqkv_ref, wo_ref,
                    wff1_ref, wff2_ref, wfc1_ref, wfc2_ref, wfc3_ref, vec_ref,
                    o_ref, *, n_heads, d_k, d_v, eps):
    f32, bf16 = jnp.float32, jnp.bfloat16
    L2, T = y_ref.shape[0], y_ref.shape[2]
    feat = pe_ref.shape[-1]
    d_model = wo_ref.shape[-1]
    d_ff = wff1_ref.shape[-1]
    n_lang = wfc3_ref.shape[-1]
    hdk = n_heads * d_k
    nblk = wqkv_ref.shape[0]

    vec = vec_ref[...]

    def row(r, w):
        return vec[r:r + 1, :w]                                  # (1, w), offset-0 lanes

    # -------- frame-level stats pooling (reduce over the OUTER frame axis) ----
    y = y_ref[...][:, 0]                                         # (L2, T, 512)
    mu = jnp.mean(y, axis=0)                                     # (T, 512)
    var = jnp.sum((y - mu[None]) ** 2, axis=0) / (L2 - 1)        # unbiased (torch.std)
    stats = jnp.concatenate([mu, jnp.sqrt(var)], axis=-1)        # (T, 1024)

    # -------- x-vector + LN1 + positional encoding + LN2 + head tiling --------
    emb = jnp.dot(stats.astype(bf16), wxv_ref[...], preferred_element_type=f32) + row(0, feat)
    emb = _ln(emb, row(1, feat), row(2, feat), eps)
    emb = emb + pe_ref[...]
    emb = _ln(emb, row(3, feat), row(4, feat), eps)
    x = jnp.concatenate([emb] * n_heads, axis=-1)                # (T, d_model)

    # ------------------------- encoder blocks ---------------------------------
    att_scale = 1.0 / math.sqrt(d_k)
    mask = m_ref[0]                                              # (T, T) additive
    for blk in range(nblk):
        base = 5 + 8 * blk
        wqkv = wqkv_ref[blk]
        wo = wo_ref[blk]

        qkv = jnp.dot(x.astype(bf16), wqkv,
                      preferred_element_type=f32) + row(base, 2 * hdk + n_heads * d_v)
        # head-batched Q/K/V: (H, T, d)
        q3 = jnp.stack([qkv[:, h * d_k:(h + 1) * d_k] for h in range(n_heads)], axis=0)
        k3 = jnp.stack([qkv[:, hdk + h * d_k:hdk + (h + 1) * d_k] for h in range(n_heads)], axis=0)
        v3 = jnp.stack([qkv[:, 2 * hdk + h * d_v:2 * hdk + (h + 1) * d_v] for h in range(n_heads)], axis=0)

        s = jnp.einsum('htd,hsd->hts', q3.astype(bf16), k3.astype(bf16),
                       preferred_element_type=f32) * att_scale + mask[None]
        s = s - jnp.max(s, axis=-1, keepdims=True)
        p = jnp.exp(s)
        p = p / jnp.sum(p, axis=-1, keepdims=True)
        ctx = jnp.einsum('hts,hsd->htd', p.astype(bf16), v3.astype(bf16),
                         preferred_element_type=f32)             # (H, T, d_v)

        # fold head-concat into Wo: accumulate per-head (T,d_v)@(d_v,d_model)
        attn = row(base + 1, d_model)                            # bo bias
        for h in range(n_heads):
            attn = attn + jnp.dot(ctx[h].astype(bf16), wo[h * d_v:(h + 1) * d_v, :],
                                  preferred_element_type=f32)

        x1 = _ln(x + attn, row(base + 2, d_model), row(base + 3, d_model), eps)
        ff = jnp.maximum(jnp.dot(x1.astype(bf16), wff1_ref[blk],
                                 preferred_element_type=f32) + row(base + 4, d_ff), 0.0)
        ff = jnp.dot(ff.astype(bf16), wff2_ref[blk],
                     preferred_element_type=f32) + row(base + 5, d_model)
        x = _ln(x1 + ff, row(base + 6, d_model), row(base + 7, d_model), eps)

    # --------------- utterance stats pooling + fc1/fc2/fc3 head ---------------
    fc_base = 5 + 8 * nblk
    mu2 = jnp.mean(x, axis=0, keepdims=True)                     # (1, d_model)
    var2 = jnp.sum((x - mu2) ** 2, axis=0, keepdims=True) / (T - 1)
    pooled = jnp.concatenate([mu2, jnp.sqrt(var2)], axis=-1)     # (1, 2*d_model)
    h1 = jnp.maximum(jnp.dot(pooled.astype(bf16), wfc1_ref[...],
                             preferred_element_type=f32) + row(fc_base, d_model), 0.0)
    h2 = jnp.maximum(jnp.dot(h1.astype(bf16), wfc2_ref[...],
                             preferred_element_type=f32) + row(fc_base + 1, d_model), 0.0)
    logits = jnp.dot(h2.astype(bf16), wfc3_ref[...],
                     preferred_element_type=f32) + row(fc_base + 2, n_lang)   # (1, n_lang)
    o_ref[0] = jnp.broadcast_to(logits, (o_ref.shape[1], n_lang))


def transformer_backend(y3, mask, pe, params, n_heads, d_k, d_v, eps=_LN_EPS):
    L2, B, T, C = y3.shape
    n_lang = params["w_fc3"].shape[-1]

    def full(a):
        return pl.BlockSpec(a.shape, lambda b, _nd=a.ndim: (0,) * _nd)

    out = pl.pallas_call(
        partial(_backend_kernel, n_heads=n_heads, d_k=d_k, d_v=d_v, eps=eps),
        grid=(B,),
        in_specs=[
            pl.BlockSpec((L2, 1, T, C), lambda b: (0, b, 0, 0)),   # y3 per utterance
            pl.BlockSpec((1, T, T), lambda b: (b, 0, 0)),          # additive attn mask
            full(pe), full(params["w_xv"]),
            full(params["wqkv"]), full(params["wo"]),
            full(params["w_ff1"]), full(params["w_ff2"]),
            full(params["w_fc1"]), full(params["w_fc2"]), full(params["w_fc3"]),
            full(params["vec"]),
        ],
        out_specs=pl.BlockSpec((1, 8, n_lang), lambda b: (b, 0, 0)),
        out_shape=jax.ShapeDtypeStruct((B, 8, n_lang), jnp.float32),
        compiler_params=pltpu.CompilerParams(dimension_semantics=("parallel",)),
    )(y3, mask, pe, params["w_xv"], params["wqkv"], params["wo"],
      params["w_ff1"], params["w_ff2"], params["w_fc1"], params["w_fc2"],
      params["w_fc3"], params["vec"])
    return out[:, 0, :]                                           # (B, n_lang)


# ------------------------------- glue (JAX) ----------------------------------

def sinusoidal_pe(max_len, dim):
    pos = jnp.arange(max_len, dtype=jnp.float32)[:, None]
    i = jnp.arange(0, dim, 2, dtype=jnp.float32)
    div = jnp.exp(-i * (math.log(10000.0) / dim))
    pe = jnp.zeros((max_len, dim), jnp.float32)
    pe = pe.at[:, 0::2].set(jnp.sin(pos * div))
    pe = pe.at[:, 1::2].set(jnp.cos(pos * div))
    return pe


def x_transformer_e2e_lid_forward(params, x, seq_len, atten_mask, cfg):
    # TODO(synk): seq_len (per-utterance lengths) is not applied to the stats
    #             pooling / positional encoding; masking is carried by atten_mask.
    B, T, _ = x.shape
    input_dim = cfg["input_dim"]
    H, d_k, d_v = cfg["n_heads"], cfg["d_k"], cfg["d_v"]
    bn_scale = 1.0 / math.sqrt(1.0 + _BN_EPS)   # BN(affine=False), eval, default stats

    S = B * T
    seg = x.shape[-1] // input_dim
    L1 = seg - (5 - 1)           # tdnn1: k=5, d=1
    L2 = L1 - 2 * (5 - 1)        # tdnn2: k=5, d=2
    kpad = params["w_tdnn1"].shape[0]

    # Dropout = identity (eval).  Channels-last im2col for tdnn1, frame-major
    # (l, s) rows, contraction zero-padded 120 -> 128 for aligned lane loads.
    xr = x.reshape(S, seg, input_dim)
    cols = [xr[:, j:j + L1, :] for j in range(5)]                 # (S, L1, C) each
    p1 = jnp.stack(cols, axis=-1)                                 # (S, L1, C, 5)
    p1 = p1.transpose(1, 0, 2, 3).reshape(L1, S, input_dim * 5)   # frame-major rows
    p1 = jnp.pad(p1, ((0, 0), (0, 0), (0, kpad - input_dim * 5)))
    p1 = p1.reshape(L1 * S, kpad)

    # K-A: tdnn1/2/3 + ReLU + BN, fully fused (dilated im2col done in-kernel).
    y3 = tdnn_frontend(p1, params, bn_scale, n_seg=S, l_out=L2)   # (L2*S, 512)
    y3 = y3.reshape(L2, B, T, y3.shape[-1])                       # metadata-only reshape

    # K-B: stats-pool + fc_xv + LN1 + PE + LN2 + head tiling + 2 encoder blocks
    #      + utterance pooling + fc1/fc2/fc3, one call, grid parallel over batch.
    return transformer_backend(y3, atten_mask, params["pe"][:T], params, H, d_k, d_v)


# ------------------------------- parameters ----------------------------------

def init_params(key, cfg):
    input_dim, feat_dim = cfg["input_dim"], cfg["feat_dim"]
    d_k, d_v, d_ff, H = cfg["d_k"], cfg["d_v"], cfg["d_ff"], cfg["n_heads"]
    d_model = feat_dim * H
    n_lang = cfg["n_lang"]
    qkv_w = H * (2 * d_k + d_v)
    k1 = input_dim * 5
    k1pad = ((k1 + 127) // 128) * 128
    vec_w = max(qkv_w, d_model, d_ff, feat_dim, n_lang)

    keys = iter(jax.random.split(key, 64))

    def w(shape, scale=0.05):                                     # bf16 matmul weights
        return (scale * jax.random.normal(next(keys), shape, jnp.float32)).astype(jnp.bfloat16)

    def b(n, scale=0.02):                                         # f32 bias vectors
        return scale * jax.random.normal(next(keys), (n,), jnp.float32)

    def rowpad(v):
        v = jnp.asarray(v, jnp.float32).reshape(-1)
        return jnp.pad(v, (0, vec_w - v.shape[0]))

    # Conv weights stored matmul-ready (torch (C_out,C_in,k) -> (C_in*k / tap, C_out)).
    w_tdnn1 = jnp.pad(w((k1, 512)), ((0, k1pad - k1), (0, 0)))
    w_tdnn2 = w((5, 512, 512))                                    # (tap, C_in, C_out)
    w_tdnn3 = w((512, 512))
    tdnn_b = jnp.stack([b(512), b(512), b(512)], axis=0)

    w_xv = w((1024, feat_dim))
    wqkv = jnp.stack([w((d_model, qkv_w)) for _ in range(2)], axis=0)
    wo = jnp.stack([w((H * d_v, d_model)) for _ in range(2)], axis=0)
    w_ff1 = jnp.stack([w((d_model, d_ff)) for _ in range(2)], axis=0)
    w_ff2 = jnp.stack([w((d_ff, d_model)) for _ in range(2)], axis=0)
    w_fc1 = w((2 * d_model, d_model))
    w_fc2 = w((d_model, d_model))
    w_fc3 = w((d_model, n_lang))

    # Packed small-vector array (see row map above _backend_kernel).
    rows = [b(feat_dim),
            jnp.ones((feat_dim,)), b(feat_dim),
            jnp.ones((feat_dim,)), b(feat_dim)]
    for _ in range(2):
        rows += [b(qkv_w), b(d_model),
                 jnp.ones((d_model,)), b(d_model),
                 b(d_ff), b(d_model),
                 jnp.ones((d_model,)), b(d_model)]
    rows += [b(d_model), b(d_model), b(n_lang)]
    vec = jnp.stack([rowpad(r) for r in rows], axis=0)            # (24, 384) f32

    return dict(w_tdnn1=w_tdnn1, w_tdnn2=w_tdnn2, w_tdnn3=w_tdnn3, tdnn_b=tdnn_b,
                w_xv=w_xv, wqkv=wqkv, wo=wo, w_ff1=w_ff1, w_ff2=w_ff2,
                w_fc1=w_fc1, w_fc2=w_fc2, w_fc3=w_fc3, vec=vec,
                pe=sinusoidal_pe(cfg["max_seq_len"], feat_dim))


# ---------------------------------- main --------------------------------------

if __name__ == "__main__":
    cfg = dict(input_dim=24, feat_dim=32, d_k=32, d_v=32, d_ff=64,
               n_heads=4, n_lang=3, max_seq_len=140, seg_len=16)
    B, T = 2, 8

    key = jax.random.PRNGKey(0)
    kx, kp = jax.random.split(key)
    # x: (B, T, seg_len * input_dim) -- matches x.view(B*T, -1, input_dim) in the module
    x = jax.random.normal(kx, (B, T, cfg["seg_len"] * cfg["input_dim"]), jnp.float32)
    seq_len = jnp.full((B,), T, dtype=jnp.int32)
    atten_mask = jnp.zeros((B, T, T), jnp.float32)   # additive attention mask (no masking)

    params = init_params(kp, cfg)
    fwd = jax.jit(lambda p, xx, sl, am: x_transformer_e2e_lid_forward(p, xx, sl, am, cfg))
    out = jax.block_until_ready(fwd(params, x, seq_len, atten_mask))
    assert out.shape == (B, cfg["n_lang"]) and out.dtype == jnp.float32
    assert bool(jnp.all(jnp.isfinite(out)))
    print("KERNEL_OK")
</pallas_src>

<mosaic_0001>
module attributes {stable_mosaic.version = 11 : i64} {
  func.func @_tdnn_kernel(%arg0: memref<192x128xf32, #tpu.memory_space<vmem>>, %arg1: memref<128x512xbf16, #tpu.memory_space<vmem>>, %arg2: memref<5x512x512xbf16, #tpu.memory_space<vmem>>, %arg3: memref<512x512xbf16, #tpu.memory_space<vmem>>, %arg4: memref<3x512xf32, #tpu.memory_space<vmem>>, %arg5: memref<64x512xf32, #tpu.memory_space<vmem>>) attributes {dimension_semantics = [], scalar_prefetch = 0 : i64, scratch_operands = 0 : i64, tpu.core_type = #tpu.core_type<tc>} {
    %c0 = arith.constant 0 : index
    %c0_0 = arith.constant 0 : index
    %0 = vector.load %arg0[%c0, %c0_0] : memref<192x128xf32, #tpu.memory_space<vmem>>, vector<192x128xf32>
    %1 = arith.truncf %0 : vector<192x128xf32> to vector<192x128xbf16>
    %c0_1 = arith.constant 0 : index
    %c0_2 = arith.constant 0 : index
    %2 = vector.load %arg1[%c0_1, %c0_2] : memref<128x512xbf16, #tpu.memory_space<vmem>>, vector<128x512xbf16>
    %cst = arith.constant dense<0.000000e+00> : vector<192x512xf32>
    %3 = tpu.matmul %1, %2, %cst {dimension_numbers = #tpu.dot_dimension_numbers<[1], [0], [0], [1], [0, 0, 1, 1], [], []>} : vector<192x128xbf16>, vector<128x512xbf16>, vector<192x512xf32> -> vector<192x512xf32>
    %c0_3 = arith.constant 0 : index
    %c0_4 = arith.constant 0 : index
    %4 = vector.load %arg4[%c0_3, %c0_4] : memref<3x512xf32, #tpu.memory_space<vmem>>, vector<1x512xf32>
    %5 = vector.broadcast %4 : vector<1x512xf32> to vector<192x512xf32>
    %6 = arith.addf %3, %5 : vector<192x512xf32>
    %cst_5 = arith.constant 0.000000e+00 : f32
    %7 = vector.broadcast %cst_5 : f32 to vector<192x512xf32>
    %8 = arith.maximumf %6, %7 : vector<192x512xf32>
    %cst_6 = arith.constant 0.999994993 : f32
    %9 = vector.broadcast %cst_6 : f32 to vector<192x512xf32>
    %10 = arith.mulf %8, %9 : vector<192x512xf32>
    %11 = arith.truncf %10 : vector<192x512xf32> to vector<192x512xbf16>
    %cst_7 = arith.constant 0.000000e+00 : f32
    %12 = vector.broadcast %cst_7 : f32 to vector<64x512xf32>
    %13 = vector.extract_strided_slice %11 {offsets = [0, 0], sizes = [64, 512], strides = [1, 1]} : vector<192x512xbf16> to vector<64x512xbf16>
    %c0_8 = arith.constant 0 : index
    %c0_9 = arith.constant 0 : index
    %c0_10 = arith.constant 0 : index
    %14 = vector.load %arg2[%c0_8, %c0_9, %c0_10] : memref<5x512x512xbf16, #tpu.memory_space<vmem>>, vector<1x512x512xbf16>
    %15 = vector.shape_cast %14 : vector<1x512x512xbf16> to vector<512x512xbf16>
    %cst_11 = arith.constant dense<0.000000e+00> : vector<64x512xf32>
    %16 = tpu.matmul %13, %15, %cst_11 {dimension_numbers = #tpu.dot_dimension_numbers<[1], [0], [0], [1], [0, 0, 1, 1], [], []>} : vector<64x512xbf16>, vector<512x512xbf16>, vector<64x512xf32> -> vector<64x512xf32>
    %17 = arith.addf %12, %16 : vector<64x512xf32>
    %18 = vector.extract_strided_slice %11 {offsets = [32, 0], sizes = [64, 512], strides = [1, 1]} : vector<192x512xbf16> to vector<64x512xbf16>
    %c1 = arith.constant 1 : index
    %c0_12 = arith.constant 0 : index
    %c0_13 = arith.constant 0 : index
    %19 = vector.load %arg2[%c1, %c0_12, %c0_13] : memref<5x512x512xbf16, #tpu.memory_space<vmem>>, vector<1x512x512xbf16>
    %20 = vector.shape_cast %19 : vector<1x512x512xbf16> to vector<512x512xbf16>
    %cst_14 = arith.constant dense<0.000000e+00> : vector<64x512xf32>
    %21 = tpu.matmul %18, %20, %cst_14 {dimension_numbers = #tpu.dot_dimension_numbers<[1], [0], [0], [1], [0, 0, 1, 1], [], []>} : vector<64x512xbf16>, vector<512x512xbf16>, vector<64x512xf32> -> vector<64x512xf32>
    %22 = arith.addf %17, %21 : vector<64x512xf32>
    %23 = vector.extract_strided_slice %11 {offsets = [64, 0], sizes = [64, 512], strides = [1, 1]} : vector<192x512xbf16> to vector<64x512xbf16>
    %c2 = arith.constant 2 : index
    %c0_15 = arith.constant 0 : index
    %c0_16 = arith.constant 0 : index
    %24 = vector.load %arg2[%c2, %c0_15, %c0_16] : memref<5x512x512xbf16, #tpu.memory_space<vmem>>, vector<1x512x512xbf16>
    %25 = vector.shape_cast %24 : vector<1x512x512xbf16> to vector<512x512xbf16>
    %cst_17 = arith.constant dense<0.000000e+00> : vector<64x512xf32>
    %26 = tpu.matmul %23, %25, %cst_17 {dimension_numbers = #tpu.dot_dimension_numbers<[1], [0], [0], [1], [0, 0, 1, 1], [], []>} : vector<64x512xbf16>, vector<512x512xbf16>, vector<64x512xf32> -> vector<64x512xf32>
    %27 = arith.addf %22, %26 : vector<64x512xf32>
    %28 = vector.extract_strided_slice %11 {offsets = [96, 0], sizes = [64, 512], strides = [1, 1]} : vector<192x512xbf16> to vector<64x512xbf16>
    %c3 = arith.constant 3 : index
    %c0_18 = arith.constant 0 : index
    %c0_19 = arith.constant 0 : index
    %29 = vector.load %arg2[%c3, %c0_18, %c0_19] : memref<5x512x512xbf16, #tpu.memory_space<vmem>>, vector<1x512x512xbf16>
    %30 = vector.shape_cast %29 : vector<1x512x512xbf16> to vector<512x512xbf16>
    %cst_20 = arith.constant dense<0.000000e+00> : vector<64x512xf32>
    %31 = tpu.matmul %28, %30, %cst_20 {dimension_numbers = #tpu.dot_dimension_numbers<[1], [0], [0], [1], [0, 0, 1, 1], [], []>} : vector<64x512xbf16>, vector<512x512xbf16>, vector<64x512xf32> -> vector<64x512xf32>
    %32 = arith.addf %27, %31 : vector<64x512xf32>
    %33 = vector.extract_strided_slice %11 {offsets = [128, 0], sizes = [64, 512], strides = [1, 1]} : vector<192x512xbf16> to vector<64x512xbf16>
    %c4 = arith.constant 4 : index
    %c0_21 = arith.constant 0 : index
    %c0_22 = arith.constant 0 : index
    %34 = vector.load %arg2[%c4, %c0_21, %c0_22] : memref<5x512x512xbf16, #tpu.memory_space<vmem>>, vector<1x512x512xbf16>
    %35 = vector.shape_cast %34 : vector<1x512x512xbf16> to vector<512x512xbf16>
    %cst_23 = arith.constant dense<0.000000e+00> : vector<64x512xf32>
    %36 = tpu.matmul %33, %35, %cst_23 {dimension_numbers = #tpu.dot_dimension_numbers<[1], [0], [0], [1], [0, 0, 1, 1], [], []>} : vector<64x512xbf16>, vector<512x512xbf16>, vector<64x512xf32> -> vector<64x512xf32>
    %37 = arith.addf %32, %36 : vector<64x512xf32>
    %c1_24 = arith.constant 1 : index
    %c0_25 = arith.constant 0 : index
    %38 = vector.load %arg4[%c1_24, %c0_25] : memref<3x512xf32, #tpu.memory_space<vmem>>, vector<1x512xf32>
    %39 = vector.broadcast %38 : vector<1x512xf32> to vector<64x512xf32>
    %40 = arith.addf %37, %39 : vector<64x512xf32>
    %cst_26 = arith.constant 0.000000e+00 : f32
    %41 = vector.broadcast %cst_26 : f32 to vector<64x512xf32>
    %42 = arith.maximumf %40, %41 : vector<64x512xf32>
    %cst_27 = arith.constant 0.999994993 : f32
    %43 = vector.broadcast %cst_27 : f32 to vector<64x512xf32>
    %44 = arith.mulf %42, %43 : vector<64x512xf32>
    %45 = arith.truncf %44 : vector<64x512xf32> to vector<64x512xbf16>
    %c0_28 = arith.constant 0 : index
    %c0_29 = arith.constant 0 : index
    %46 = vector.load %arg3[%c0_28, %c0_29] : memref<512x512xbf16, #tpu.memory_space<vmem>>, vector<512x512xbf16>
    %cst_30 = arith.constant dense<0.000000e+00> : vector<64x512xf32>
    %47 = tpu.matmul %45, %46, %cst_30 {dimension_numbers = #tpu.dot_dimension_numbers<[1], [0], [0], [1], [0, 0, 1, 1], [], []>} : vector<64x512xbf16>, vector<512x512xbf16>, vector<64x512xf32> -> vector<64x512xf32>
    %c2_31 = arith.constant 2 : index
    %c0_32 = arith.constant 0 : index
    %48 = vector.load %arg4[%c2_31, %c0_32] : memref<3x512xf32, #tpu.memory_space<vmem>>, vector<1x512xf32>
    %49 = vector.broadcast %48 : vector<1x512xf32> to vector<64x512xf32>
    %50 = arith.addf %47, %49 : vector<64x512xf32>
    %cst_33 = arith.constant 0.000000e+00 : f32
    %51 = vector.broadcast %cst_33 : f32 to vector<64x512xf32>
    %52 = arith.maximumf %50, %51 : vector<64x512xf32>
    %cst_34 = arith.constant 0.999994993 : f32
    %53 = vector.broadcast %cst_34 : f32 to vector<64x512xf32>
    %54 = arith.mulf %52, %53 : vector<64x512xf32>
    %c0_35 = arith.constant 0 : index
    %c0_36 = arith.constant 0 : index
    %55 = vector.load %arg5[%c0_35, %c0_36] : memref<64x512xf32, #tpu.memory_space<vmem>>, vector<64x512xf32>
    tpu.vector_store %arg5[%c0_35, %c0_36], %54 {strides = array<i32>} : memref<64x512xf32, #tpu.memory_space<vmem>>, vector<64x512xf32>,
    return
  }
}

module attributes {stable_mosaic.version = 11 : i64} {
  func.func @_backend_kernel(%arg0: i32, %arg1: memref<4x1x8x512xf32, #tpu.memory_space<vmem>>, %arg2: memref<1x8x8xf32, #tpu.memory_space<vmem>>, %arg3: memref<8x32xf32, #tpu.memory_space<vmem>>, %arg4: memref<1024x32xbf16, #tpu.memory_space<vmem>>, %arg5: memref<2x128x384xbf16, #tpu.memory_space<vmem>>, %arg6: memref<2x128x128xbf16, #tpu.memory_space<vmem>>, %arg7: memref<2x128x64xbf16, #tpu.memory_space<vmem>>, %arg8: memref<2x64x128xbf16, #tpu.memory_space<vmem>>, %arg9: memref<256x128xbf16, #tpu.memory_space<vmem>>, %arg10: memref<128x128xbf16, #tpu.memory_space<vmem>>, %arg11: memref<128x3xbf16, #tpu.memory_space<vmem>>, %arg12: memref<24x384xf32, #tpu.memory_space<vmem>>, %arg13: memref<1x8x3xf32, #tpu.memory_space<vmem>>) attributes {dimension_semantics = [#tpu.dimension_semantics<parallel>], iteration_bounds = array<i64: 2>, scalar_prefetch = 0 : i64, scratch_operands = 0 : i64, tpu.core_type = #tpu.core_type<tc>, window_params = [{transform_indices = @transform_0, window_bounds = array<i64: 4, 1, 8, 512>}, {transform_indices = @transform_1, window_bounds = array<i64: 1, 8, 8>}, {pipeline_mode = #tpu.pipeline_mode<synchronous>, transform_indices = @transform_2, window_bounds = array<i64: 8, 32>}, {pipeline_mode = #tpu.pipeline_mode<synchronous>, transform_indices = @transform_3, window_bounds = array<i64: 1024, 32>}, {pipeline_mode = #tpu.pipeline_mode<synchronous>, transform_indices = @transform_4, window_bounds = array<i64: 2, 128, 384>}, {pipeline_mode = #tpu.pipeline_mode<synchronous>, transform_indices = @transform_5, window_bounds = array<i64: 2, 128, 128>}, {pipeline_mode = #tpu.pipeline_mode<synchronous>, transform_indices = @transform_6, window_bounds = array<i64: 2, 128, 64>}, {pipeline_mode = #tpu.pipeline_mode<synchronous>, transform_indices = @transform_7, window_bounds = array<i64: 2, 64, 128>}, {pipeline_mode = #tpu.pipeline_mode<synchronous>, transform_indices = @transform_8, window_bounds = array<i64: 256, 128>}, {pipeline_mode = #tpu.pipeline_mode<synchronous>, transform_indices = @transform_9, window_bounds = array<i64: 128, 128>}, {pipeline_mode = #tpu.pipeline_mode<synchronous>, transform_indices = @transform_10, window_bounds = array<i64: 128, 3>}, {pipeline_mode = #tpu.pipeline_mode<synchronous>, transform_indices = @transform_11, window_bounds = array<i64: 24, 384>}, {transform_indices = @transform_12, window_bounds = array<i64: 1, 8, 3>}]} {
    %c0 = arith.constant 0 : index
    %c0_0 = arith.constant 0 : index
    %0 = vector.load %arg12[%c0, %c0_0] : memref<24x384xf32, #tpu.memory_space<vmem>>, vector<24x384xf32>
    %c0_1 = arith.constant 0 : index
    %c0_2 = arith.constant 0 : index
    %c0_3 = arith.constant 0 : index
    %c0_4 = arith.constant 0 : index
    %1 = vector.load %arg1[%c0_1, %c0_2, %c0_3, %c0_4] : memref<4x1x8x512xf32, #tpu.memory_space<vmem>>, vector<4x1x8x512xf32>
    %2 = vector.shape_cast %1 : vector<4x1x8x512xf32> to vector<4x8x512xf32>
    %cst = arith.constant dense<0.000000e+00> : vector<8x512xf32>
    %3 = vector.multi_reduction <add>, %2, %cst [0] : vector<4x8x512xf32> to vector<8x512xf32>
    %cst_5 = arith.constant 4.000000e+00 : f32
    %4 = vector.broadcast %cst_5 : f32 to vector<8x512xf32>
    %5 = arith.divf %3, %4 : vector<8x512xf32>
    %6 = vector.shape_cast %5 : vector<8x512xf32> to vector<1x8x512xf32>
    %7 = vector.broadcast %6 : vector<1x8x512xf32> to vector<4x8x512xf32>
    %8 = arith.subf %2, %7 : vector<4x8x512xf32>
    %9 = arith.mulf %8, %8 : vector<4x8x512xf32>
    %cst_6 = arith.constant dense<0.000000e+00> : vector<8x512xf32>
    %10 = vector.multi_reduction <add>, %9, %cst_6 [0] : vector<4x8x512xf32> to vector<8x512xf32>
    %cst_7 = arith.constant 3.000000e+00 : f32
    %11 = vector.broadcast %cst_7 : f32 to vector<8x512xf32>
    %12 = arith.divf %10, %11 : vector<8x512xf32>
    %13 = math.sqrt %12 : vector<8x512xf32>
    %14 = tpu.concatenate %5, %13 in 1 : vector<8x512xf32>, vector<8x512xf32> -> vector<8x1024xf32>
    %15 = arith.truncf %14 : vector<8x1024xf32> to vector<8x1024xbf16>
    %c0_8 = arith.constant 0 : index
    %c0_9 = arith.constant 0 : index
    %16 = vector.load %arg4[%c0_8, %c0_9] : memref<1024x32xbf16, #tpu.memory_space<vmem>>, vector<1024x32xbf16>
    %cst_10 = arith.constant dense<0.000000e+00> : vector<8x32xf32>
    %17 = tpu.matmul %15, %16, %cst_10 {dimension_numbers = #tpu.dot_dimension_numbers<[1], [0], [0], [1], [0, 0, 1, 1], [], []>} : vector<8x1024xbf16>, vector<1024x32xbf16>, vector<8x32xf32> -> vector<8x32xf32>
    %18 = vector.extract_strided_slice %0 {offsets = [0, 0], sizes = [1, 32], strides = [1, 1]} : vector<24x384xf32> to vector<1x32xf32>
    %19 = vector.broadcast %18 : vector<1x32xf32> to vector<8x32xf32>
    %20 = arith.addf %17, %19 : vector<8x32xf32>
    %21 = vector.extract_strided_slice %0 {offsets = [1, 0], sizes = [1, 32], strides = [1, 1]} : vector<24x384xf32> to vector<1x32xf32>
    %22 = vector.extract_strided_slice %0 {offsets = [2, 0], sizes = [1, 32], strides = [1, 1]} : vector<24x384xf32> to vector<1x32xf32>
    %cst_11 = arith.constant dense<0.000000e+00> : vector<8xf32>
    %23 = vector.multi_reduction <add>, %20, %cst_11 [1] : vector<8x32xf32> to vector<8xf32>
    %24 = vector.shape_cast %23 : vector<8xf32> to vector<8x1xf32>
    %cst_12 = arith.constant 3.200000e+01 : f32
    %25 = vector.broadcast %cst_12 : f32 to vector<8x1xf32>
    %26 = arith.divf %24, %25 : vector<8x1xf32>
    %27 = vector.broadcast %26 : vector<8x1xf32> to vector<8x32xf32>
    %28 = arith.subf %20, %27 : vector<8x32xf32>
    %29 = arith.mulf %28, %28 : vector<8x32xf32>
    %cst_13 = arith.constant dense<0.000000e+00> : vector<8xf32>
    %30 = vector.multi_reduction <add>, %29, %cst_13 [1] : vector<8x32xf32> to vector<8xf32>
    %31 = vector.shape_cast %30 : vector<8xf32> to vector<8x1xf32>
    %cst_14 = arith.constant 3.100000e+01 : f32
    %32 = vector.broadcast %cst_14 : f32 to vector<8x1xf32>
    %33 = arith.divf %31, %32 : vector<8x1xf32>
    %34 = vector.broadcast %26 : vector<8x1xf32> to vector<8x32xf32>
    %35 = arith.subf %20, %34 : vector<8x32xf32>
    %36 = vector.broadcast %21 : vector<1x32xf32> to vector<8x32xf32>
    %37 = arith.mulf %36, %35 : vector<8x32xf32>
    %38 = math.sqrt %33 : vector<8x1xf32>
    %cst_15 = arith.constant 9.99999997E-7 : f32
    %39 = vector.broadcast %cst_15 : f32 to vector<8x1xf32>
    %40 = arith.addf %38, %39 : vector<8x1xf32>
    %41 = vector.broadcast %40 : vector<8x1xf32> to vector<8x32xf32>
    %42 = arith.divf %37, %41 : vector<8x32xf32>
    %43 = vector.broadcast %22 : vector<1x32xf32> to vector<8x32xf32>
    %44 = arith.addf %42, %43 : vector<8x32xf32>
    %c0_16 = arith.constant 0 : index
    %c0_17 = arith.constant 0 : index
    %45 = vector.load %arg3[%c0_16, %c0_17] : memref<8x32xf32, #tpu.memory_space<vmem>>, vector<8x32xf32>
    %46 = arith.addf %44, %45 : vector<8x32xf32>
    %47 = vector.extract_strided_slice %0 {offsets = [3, 0], sizes = [1, 32], strides = [1, 1]} : vector<24x384xf32> to vector<1x32xf32>
    %48 = vector.extract_strided_slice %0 {offsets = [4, 0], sizes = [1, 32], strides = [1, 1]} : vector<24x384xf32> to vector<1x32xf32>
    %cst_18 = arith.constant dense<0.000000e+00> : vector<8xf32>
    %49 = vector.multi_reduction <add>, %46, %cst_18 [1] : vector<8x32xf32> to vector<8xf32>
    %50 = vector.shape_cast %49 : vector<8xf32> to vector<8x1xf32>
    %cst_19 = arith.constant 3.200000e+01 : f32
    %51 = vector.broadcast %cst_19 : f32 to vector<8x1xf32>
    %52 = arith.divf %50, %51 : vector<8x1xf32>
    %53 = vector.broadcast %52 : vector<8x1xf32> to vector<8x32xf32>
    %54 = arith.subf %46, %53 : vector<8x32xf32>
    %55 = arith.mulf %54, %54 : vector<8x32xf32>
    %cst_20 = arith.constant dense<0.000000e+00> : vector<8xf32>
    %56 = vector.multi_reduction <add>, %55, %cst_20 [1] : vector<8x32xf32> to vector<8xf32>
    %57 = vector.shape_cast %56 : vector<8xf32> to vector<8x1xf32>
    %cst_21 = arith.constant 3.100000e+01 : f32
    %58 = vector.broadcast %cst_21 : f32 to vector<8x1xf32>
    %59 = arith.divf %57, %58 : vector<8x1xf32>
    %60 = vector.broadcast %52 : vector<8x1xf32> to vector<8x32xf32>
    %61 = arith.subf %46, %60 : vector<8x32xf32>
    %62 = vector.broadcast %47 : vector<1x32xf32> to vector<8x32xf32>
    %63 = arith.mulf %62, %61 : vector<8x32xf32>
    %64 = math.sqrt %59 : vector<8x1xf32>
    %cst_22 = arith.constant 9.99999997E-7 : f32
    %65 = vector.broadcast %cst_22 : f32 to vector<8x1xf32>
    %66 = arith.addf %64, %65 : vector<8x1xf32>
    %67 = vector.broadcast %66 : vector<8x1xf32> to vector<8x32xf32>
    %68 = arith.divf %63, %67 : vector<8x32xf32>
    %69 = vector.broadcast %48 : vector<1x32xf32> to vector<8x32xf32>
    %70 = arith.addf %68, %69 : vector<8x32xf32>
    %71 = tpu.concatenate %70, %70, %70, %70 in 1 : vector<8x32xf32>, vector<8x32xf32>, vector<8x32xf32>, vector<8x32xf32> -> vector<8x128xf32>
    %c0_23 = arith.constant 0 : index
    %c0_24 = arith.constant 0 : index
    %c0_25 = arith.constant 0 : index
    %72 = vector.load %arg2[%c0_23, %c0_24, %c0_25] : memref<1x8x8xf32, #tpu.memory_space<vmem>>, vector<1x8x8xf32>
    %73 = vector.shape_cast %72 : vector<1x8x8xf32> to vector<8x8xf32>
    %c0_26 = arith.constant 0 : index
    %c0_27 = arith.constant 0 : index
    %c0_28 = arith.constant 0 : index
    %74 = vector.load %arg5[%c0_26, %c0_27, %c0_28] : memref<2x128x384xbf16, #tpu.memory_space<vmem>>, vector<1x128x384xbf16>
    %75 = vector.shape_cast %74 : vector<1x128x384xbf16> to vector<128x384xbf16>
    %c0_29 = arith.constant 0 : index
    %c0_30 = arith.constant 0 : index
    %c0_31 = arith.constant 0 : index
    %76 = vector.load %arg6[%c0_29, %c0_30, %c0_31] : memref<2x128x128xbf16, #tpu.memory_space<vmem>>, vector<1x128x128xbf16>
    %77 = vector.shape_cast %76 : vector<1x128x128xbf16> to vector<128x128xbf16>
    %78 = arith.truncf %71 : vector<8x128xf32> to vector<8x128xbf16>
    %cst_32 = arith.constant dense<0.000000e+00> : vector<8x384xf32>
    %79 = tpu.matmul %78, %75, %cst_32 {dimension_numbers = #tpu.dot_dimension_numbers<[1], [0], [0], [1], [0, 0, 1, 1], [], []>} : vector<8x128xbf16>, vector<128x384xbf16>, vector<8x384xf32> -> vector<8x384xf32>
    %80 = vector.extract_strided_slice %0 {offsets = [5, 0], sizes = [1, 384], strides = [1, 1]} : vector<24x384xf32> to vector<1x384xf32>
    %81 = vector.broadcast %80 : vector<1x384xf32> to vector<8x384xf32>
    %82 = arith.addf %79, %81 : vector<8x384xf32>
    %83 = vector.extract_strided_slice %82 {offsets = [0, 0], sizes = [8, 32], strides = [1, 1]} : vector<8x384xf32> to vector<8x32xf32>
    %84 = vector.extract_strided_slice %82 {offsets = [0, 32], sizes = [8, 32], strides = [1, 1]} : vector<8x384xf32> to vector<8x32xf32>
    %85 = vector.extract_strided_slice %82 {offsets = [0, 64], sizes = [8, 32], strides = [1, 1]} : vector<8x384xf32> to vector<8x32xf32>
    %86 = vector.extract_strided_slice %82 {offsets = [0, 96], sizes = [8, 32], strides = [1, 1]} : vector<8x384xf32> to vector<8x32xf32>
    %87 = vector.shape_cast %83 : vector<8x32xf32> to vector<1x8x32xf32>
    %88 = vector.shape_cast %84 : vector<8x32xf32> to vector<1x8x32xf32>
    %89 = vector.shape_cast %85 : vector<8x32xf32> to vector<1x8x32xf32>
    %90 = vector.shape_cast %86 : vector<8x32xf32> to vector<1x8x32xf32>
    %91 = tpu.concatenate %87, %88, %89, %90 in 0 : vector<1x8x32xf32>, vector<1x8x32xf32>, vector<1x8x32xf32>, vector<1x8x32xf32> -> vector<4x8x32xf32>
    %92 = vector.extract_strided_slice %82 {offsets = [0, 128], sizes = [8, 32], strides = [1, 1]} : vector<8x384xf32> to vector<8x32xf32>
    %93 = vector.extract_strided_slice %82 {offsets = [0, 160], sizes = [8, 32], strides = [1, 1]} : vector<8x384xf32> to vector<8x32xf32>
    %94 = vector.extract_strided_slice %82 {offsets = [0, 192], sizes = [8, 32], strides = [1, 1]} : vector<8x384xf32> to vector<8x32xf32>
    %95 = vector.extract_strided_slice %82 {offsets = [0, 224], sizes = [8, 32], strides = [1, 1]} : vector<8x384xf32> to vector<8x32xf32>
    %96 = vector.shape_cast %92 : vector<8x32xf32> to vector<1x8x32xf32>
    %97 = vector.shape_cast %93 : vector<8x32xf32> to vector<1x8x32xf32>
    %98 = vector.shape_cast %94 : vector<8x32xf32> to vector<1x8x32xf32>
    %99 = vector.shape_cast %95 : vector<8x32xf32> to vector<1x8x32xf32>
    %100 = tpu.concatenate %96, %97, %98, %99 in 0 : vector<1x8x32xf32>, vector<1x8x32xf32>, vector<1x8x32xf32>, vector<1x8x32xf32> -> vector<4x8x32xf32>
    %101 = vector.extract_strided_slice %82 {offsets = [0, 256], sizes = [8, 32], strides = [1, 1]} : vector<8x384xf32> to vector<8x32xf32>
    %102 = vector.extract_strided_slice %82 {offsets = [0, 288], sizes = [8, 32], strides = [1, 1]} : vector<8x384xf32> to vector<8x32xf32>
    %103 = vector.extract_strided_slice %82 {offsets = [0, 320], sizes = [8, 32], strides = [1, 1]} : vector<8x384xf32> to vector<8x32xf32>
    %104 = vector.extract_strided_slice %82 {offsets = [0, 352], sizes = [8, 32], strides = [1, 1]} : vector<8x384xf32> to vector<8x32xf32>
    %105 = vector.shape_cast %101 : vector<8x32xf32> to vector<1x8x32xf32>
    %106 = vector.shape_cast %102 : vector<8x32xf32> to vector<1x8x32xf32>
    %107 = vector.shape_cast %103 : vector<8x32xf32> to vector<1x8x32xf32>
    %108 = vector.shape_cast %104 : vector<8x32xf32> to vector<1x8x32xf32>
    %109 = tpu.concatenate %105, %106, %107, %108 in 0 : vector<1x8x32xf32>, vector<1x8x32xf32>, vector<1x8x32xf32>, vector<1x8x32xf32> -> vector<4x8x32xf32>
    %110 = arith.truncf %91 : vector<4x8x32xf32> to vector<4x8x32xbf16>
    %111 = arith.truncf %100 : vector<4x8x32xf32> to vector<4x8x32xbf16>
    "tpu.trace_start"() <{level = 10 : i32, message = "htd,hsd->hts"}> : () -> ()
    %cst_33 = arith.constant dense<0.000000e+00> : vector<4x8x8xf32>
    %112 = tpu.matmul %110, %111, %cst_33 {dimension_numbers = #tpu.dot_dimension_numbers<[2], [2], [1], [1], [0, 0, 0, 1, 1, 1], [0], [0]>} : vector<4x8x32xbf16>, vector<4x8x32xbf16>, vector<4x8x8xf32> -> vector<4x8x8xf32>
    "tpu.trace_stop"() : () -> ()
    %cst_34 = arith.constant 0.176776692 : f32
    %113 = vector.broadcast %cst_34 : f32 to vector<4x8x8xf32>
    %114 = arith.mulf %112, %113 : vector<4x8x8xf32>
    %115 = vector.shape_cast %73 : vector<8x8xf32> to vector<1x8x8xf32>
    %116 = vector.broadcast %115 : vector<1x8x8xf32> to vector<4x8x8xf32>
    %117 = arith.addf %114, %116 : vector<4x8x8xf32>
    %cst_35 = arith.constant dense<0xFF800000> : vector<4x8xf32>
    %118 = vector.multi_reduction <maximumf>, %117, %cst_35 [2] : vector<4x8x8xf32> to vector<4x8xf32>
    %119 = vector.shape_cast %118 : vector<4x8xf32> to vector<4x8x1xf32>
    %120 = vector.broadcast %119 : vector<4x8x1xf32> to vector<4x8x8xf32>
    %121 = arith.subf %117, %120 : vector<4x8x8xf32>
    %122 = math.exp %121 : vector<4x8x8xf32>
    %cst_36 = arith.constant dense<0.000000e+00> : vector<4x8xf32>
    %123 = vector.multi_reduction <add>, %122, %cst_36 [2] : vector<4x8x8xf32> to vector<4x8xf32>
    %124 = vector.shape_cast %123 : vector<4x8xf32> to vector<4x8x1xf32>
    %125 = vector.broadcast %124 : vector<4x8x1xf32> to vector<4x8x8xf32>
    %126 = arith.divf %122, %125 : vector<4x8x8xf32>
    %127 = arith.truncf %126 : vector<4x8x8xf32> to vector<4x8x8xbf16>
    %128 = arith.truncf %109 : vector<4x8x32xf32> to vector<4x8x32xbf16>
    "tpu.trace_start"() <{level = 10 : i32, message = "hts,hsd->htd"}> : () -> ()
    %cst_37 = arith.constant dense<0.000000e+00> : vector<4x8x32xf32>
    %129 = tpu.matmul %127, %128, %cst_37 {dimension_numbers = #tpu.dot_dimension_numbers<[2], [1], [1], [2], [0, 0, 0, 1, 1, 2], [0], [0]>} : vector<4x8x8xbf16>, vector<4x8x32xbf16>, vector<4x8x32xf32> -> vector<4x8x32xf32>
    "tpu.trace_stop"() : () -> ()
    %130 = vector.extract_strided_slice %0 {offsets = [6, 0], sizes = [1, 128], strides = [1, 1]} : vector<24x384xf32> to vector<1x128xf32>
    %131 = vector.extract_strided_slice %129 {offsets = [0, 0, 0], sizes = [1, 8, 32], strides = [1, 1, 1]} : vector<4x8x32xf32> to vector<1x8x32xf32>
    %132 = vector.shape_cast %131 : vector<1x8x32xf32> to vector<8x32xf32>
    %133 = arith.truncf %132 : vector<8x32xf32> to vector<8x32xbf16>
    %134 = vector.extract_strided_slice %77 {offsets = [0, 0], sizes = [32, 128], strides = [1, 1]} : vector<128x128xbf16> to vector<32x128xbf16>
    %cst_38 = arith.constant dense<0.000000e+00> : vector<8x128xf32>
    %135 = tpu.matmul %133, %134, %cst_38 {dimension_numbers = #tpu.dot_dimension_numbers<[1], [0], [0], [1], [0, 0, 1, 1], [], []>} : vector<8x32xbf16>, vector<32x128xbf16>, vector<8x128xf32> -> vector<8x128xf32>
    %136 = vector.broadcast %130 : vector<1x128xf32> to vector<8x128xf32>
    %137 = arith.addf %136, %135 : vector<8x128xf32>
    %138 = vector.extract_strided_slice %129 {offsets = [1, 0, 0], sizes = [1, 8, 32], strides = [1, 1, 1]} : vector<4x8x32xf32> to vector<1x8x32xf32>
    %139 = vector.shape_cast %138 : vector<1x8x32xf32> to vector<8x32xf32>
    %140 = arith.truncf %139 : vector<8x32xf32> to vector<8x32xbf16>
    %141 = vector.extract_strided_slice %77 {offsets = [32, 0], sizes = [32, 128], strides = [1, 1]} : vector<128x128xbf16> to vector<32x128xbf16>
    %cst_39 = arith.constant dense<0.000000e+00> : vector<8x128xf32>
    %142 = tpu.matmul %140, %141, %cst_39 {dimension_numbers = #tpu.dot_dimension_numbers<[1], [0], [0], [1], [0, 0, 1, 1], [], []>} : vector<8x32xbf16>, vector<32x128xbf16>, vector<8x128xf32> -> vector<8x128xf32>
    %143 = arith.addf %137, %142 : vector<8x128xf32>
    %144 = vector.extract_strided_slice %129 {offsets = [2, 0, 0], sizes = [1, 8, 32], strides = [1, 1, 1]} : vector<4x8x32xf32> to vector<1x8x32xf32>
    %145 = vector.shape_cast %144 : vector<1x8x32xf32> to vector<8x32xf32>
    %146 = arith.truncf %145 : vector<8x32xf32> to vector<8x32xbf16>
    %147 = vector.extract_strided_slice %77 {offsets = [64, 0], sizes = [32, 128], strides = [1, 1]} : vector<128x128xbf16> to vector<32x128xbf16>
    %cst_40 = arith.constant dense<0.000000e+00> : vector<8x128xf32>
    %148 = tpu.matmul %146, %147, %cst_40 {dimension_numbers = #tpu.dot_dimension_numbers<[1], [0], [0], [1], [0, 0, 1, 1], [], []>} : vector<8x32xbf16>, vector<32x128xbf16>, vector<8x128xf32> -> vector<8x128xf32>
    %149 = arith.addf %143, %148 : vector<8x128xf32>
    %150 = vector.extract_strided_slice %129 {offsets = [3, 0, 0], sizes = [1, 8, 32], strides = [1, 1, 1]} : vector<4x8x32xf32> to vector<1x8x32xf32>
    %151 = vector.shape_cast %150 : vector<1x8x32xf32> to vector<8x32xf32>
    %152 = arith.truncf %151 : vector<8x32xf32> to vector<8x32xbf16>
    %153 = vector.extract_strided_slice %77 {offsets = [96, 0], sizes = [32, 128], strides = [1, 1]} : vector<128x128xbf16> to vector<32x128xbf16>
    %cst_41 = arith.constant dense<0.000000e+00> : vector<8x128xf32>
    %154 = tpu.matmul %152, %153, %cst_41 {dimension_numbers = #tpu.dot_dimension_numbers<[1], [0], [0], [1], [0, 0, 1, 1], [], []>} : vector<8x32xbf16>, vector<32x128xbf16>, vector<8x128xf32> -> vector<8x128xf32>
    %155 = arith.addf %149, %154 : vector<8x128xf32>
    %156 = arith.addf %71, %155 : vector<8x128xf32>
    %157 = vector.extract_strided_slice %0 {offsets = [7, 0], sizes = [1, 128], strides = [1, 1]} : vector<24x384xf32> to vector<1x128xf32>
    %158 = vector.extract_strided_slice %0 {offsets = [8, 0], sizes = [1, 128], strides = [1, 1]} : vector<24x384xf32> to vector<1x128xf32>
    %cst_42 = arith.constant dense<0.000000e+00> : vector<8xf32>
    %159 = vector.multi_reduction <add>, %156, %cst_42 [1] : vector<8x128xf32> to vector<8xf32>
    %160 = vector.shape_cast %159 : vector<8xf32> to vector<8x1xf32>
    %cst_43 = arith.constant 1.280000e+02 : f32
    %161 = vector.broadcast %cst_43 : f32 to vector<8x1xf32>
    %162 = arith.divf %160, %161 : vector<8x1xf32>
    %163 = vector.broadcast %162 : vector<8x1xf32> to vector<8x128xf32>
    %164 = arith.subf %156, %163 : vector<8x128xf32>
    %165 = arith.mulf %164, %164 : vector<8x128xf32>
    %cst_44 = arith.constant dense<0.000000e+00> : vector<8xf32>
    %166 = vector.multi_reduction <add>, %165, %cst_44 [1] : vector<8x128xf32> to vector<8xf32>
    %167 = vector.shape_cast %166 : vector<8xf32> to vector<8x1xf32>
    %cst_45 = arith.constant 1.270000e+02 : f32
    %168 = vector.broadcast %cst_45 : f32 to vector<8x1xf32>
    %169 = arith.divf %167, %168 : vector<8x1xf32>
    %170 = vector.broadcast %162 : vector<8x1xf32> to vector<8x128xf32>
    %171 = arith.subf %156, %170 : vector<8x128xf32>
    %172 = vector.broadcast %157 : vector<1x128xf32> to vector<8x128xf32>
    %173 = arith.mulf %172, %171 : vector<8x128xf32>
    %174 = math.sqrt %169 : vector<8x1xf32>
    %cst_46 = arith.constant 9.99999997E-7 : f32
    %175 = vector.broadcast %cst_46 : f32 to vector<8x1xf32>
    %176 = arith.addf %174, %175 : vector<8x1xf32>
    %177 = vector.broadcast %176 : vector<8x1xf32> to vector<8x128xf32>
    %178 = arith.divf %173, %177 : vector<8x128xf32>
    %179 = vector.broadcast %158 : vector<1x128xf32> to vector<8x128xf32>
    %180 = arith.addf %178, %179 : vector<8x128xf32>
    %181 = arith.truncf %180 : vector<8x128xf32> to vector<8x128xbf16>
    %c0_47 = arith.constant 0 : index
    %c0_48 = arith.constant 0 : index
    %c0_49 = arith.constant 0 : index
    %182 = vector.load %arg7[%c0_47, %c0_48, %c0_49] : memref<2x128x64xbf16, #tpu.memory_space<vmem>>, vector<1x128x64xbf16>
    %183 = vector.shape_cast %182 : vector<1x128x64xbf16> to vector<128x64xbf16>
    %cst_50 = arith.constant dense<0.000000e+00> : vector<8x64xf32>
    %184 = tpu.matmul %181, %183, %cst_50 {dimension_numbers = #tpu.dot_dimension_numbers<[1], [0], [0], [1], [0, 0, 1, 1], [], []>} : vector<8x128xbf16>, vector<128x64xbf16>, vector<8x64xf32> -> vector<8x64xf32>
    %185 = vector.extract_strided_slice %0 {offsets = [9, 0], sizes = [1, 64], strides = [1, 1]} : vector<24x384xf32> to vector<1x64xf32>
    %186 = vector.broadcast %185 : vector<1x64xf32> to vector<8x64xf32>
    %187 = arith.addf %184, %186 : vector<8x64xf32>
    %cst_51 = arith.constant 0.000000e+00 : f32
    %188 = vector.broadcast %cst_51 : f32 to vector<8x64xf32>
    %189 = arith.maximumf %187, %188 : vector<8x64xf32>
    %190 = arith.truncf %189 : vector<8x64xf32> to vector<8x64xbf16>
    %c0_52 = arith.constant 0 : index
    %c0_53 = arith.constant 0 : index
    %c0_54 = arith.constant 0 : index
    %191 = vector.load %arg8[%c0_52, %c0_53, %c0_54] : memref<2x64x128xbf16, #tpu.memory_space<vmem>>, vector<1x64x128xbf16>
    %192 = vector.shape_cast %191 : vector<1x64x128xbf16> to vector<64x128xbf16>
    %cst_55 = arith.constant dense<0.000000e+00> : vector<8x128xf32>
    %193 = tpu.matmul %190, %192, %cst_55 {dimension_numbers = #tpu.dot_dimension_numbers<[1], [0], [0], [1], [0, 0, 1, 1], [], []>} : vector<8x64xbf16>, vector<64x128xbf16>, vector<8x128xf32> -> vector<8x128xf32>
    %194 = vector.extract_strided_slice %0 {offsets = [10, 0], sizes = [1, 128], strides = [1, 1]} : vector<24x384xf32> to vector<1x128xf32>
    %195 = vector.broadcast %194 : vector<1x128xf32> to vector<8x128xf32>
    %196 = arith.addf %193, %195 : vector<8x128xf32>
    %197 = arith.addf %180, %196 : vector<8x128xf32>
    %198 = vector.extract_strided_slice %0 {offsets = [11, 0], sizes = [1, 128], strides = [1, 1]} : vector<24x384xf32> to vector<1x128xf32>
    %199 = vector.extract_strided_slice %0 {offsets = [12, 0], sizes = [1, 128], strides = [1, 1]} : vector<24x384xf32> to vector<1x128xf32>
    %cst_56 = arith.constant dense<0.000000e+00> : vector<8xf32>
    %200 = vector.multi_reduction <add>, %197, %cst_56 [1] : vector<8x128xf32> to vector<8xf32>
    %201 = vector.shape_cast %200 : vector<8xf32> to vector<8x1xf32>
    %cst_57 = arith.constant 1.280000e+02 : f32
    %202 = vector.broadcast %cst_57 : f32 to vector<8x1xf32>
    %203 = arith.divf %201, %202 : vector<8x1xf32>
    %204 = vector.broadcast %203 : vector<8x1xf32> to vector<8x128xf32>
    %205 = arith.subf %197, %204 : vector<8x128xf32>
    %206 = arith.mulf %205, %205 : vector<8x128xf32>
    %cst_58 = arith.constant dense<0.000000e+00> : vector<8xf32>
    %207 = vector.multi_reduction <add>, %206, %cst_58 [1] : vector<8x128xf32> to vector<8xf32>
    %208 = vector.shape_cast %207 : vector<8xf32> to vector<8x1xf32>
    %cst_59 = arith.constant 1.270000e+02 : f32
    %209 = vector.broadcast %cst_59 : f32 to vector<8x1xf32>
    %210 = arith.divf %208, %209 : vector<8x1xf32>
    %211 = vector.broadcast %203 : vector<8x1xf32> to vector<8x128xf32>
    %212 = arith.subf %197, %211 : vector<8x128xf32>
    %213 = vector.broadcast %198 : vector<1x128xf32> to vector<8x128xf32>
    %214 = arith.mulf %213, %212 : vector<8x128xf32>
    %215 = math.sqrt %210 : vector<8x1xf32>
    %cst_60 = arith.constant 9.99999997E-7 : f32
    %216 = vector.broadcast %cst_60 : f32 to vector<8x1xf32>
    %217 = arith.addf %215, %216 : vector<8x1xf32>
    %218 = vector.broadcast %217 : vector<8x1xf32> to vector<8x128xf32>
    %219 = arith.divf %214, %218 : vector<8x128xf32>
    %220 = vector.broadcast %199 : vector<1x128xf32> to vector<8x128xf32>
    %221 = arith.addf %219, %220 : vector<8x128xf32>
    %c1 = arith.constant 1 : index
    %c0_61 = arith.constant 0 : index
    %c0_62 = arith.constant 0 : index
    %222 = vector.load %arg5[%c1, %c0_61, %c0_62] : memref<2x128x384xbf16, #tpu.memory_space<vmem>>, vector<1x128x384xbf16>
    %223 = vector.shape_cast %222 : vector<1x128x384xbf16> to vector<128x384xbf16>
    %c1_63 = arith.constant 1 : index
    %c0_64 = arith.constant 0 : index
    %c0_65 = arith.constant 0 : index
    %224 = vector.load %arg6[%c1_63, %c0_64, %c0_65] : memref<2x128x128xbf16, #tpu.memory_space<vmem>>, vector<1x128x128xbf16>
    %225 = vector.shape_cast %224 : vector<1x128x128xbf16> to vector<128x128xbf16>
    %226 = arith.truncf %221 : vector<8x128xf32> to vector<8x128xbf16>
    %cst_66 = arith.constant dense<0.000000e+00> : vector<8x384xf32>
    %227 = tpu.matmul %226, %223, %cst_66 {dimension_numbers = #tpu.dot_dimension_numbers<[1], [0], [0], [1], [0, 0, 1, 1], [], []>} : vector<8x128xbf16>, vector<128x384xbf16>, vector<8x384xf32> -> vector<8x384xf32>
    %228 = vector.extract_strided_slice %0 {offsets = [13, 0], sizes = [1, 384], strides = [1, 1]} : vector<24x384xf32> to vector<1x384xf32>
    %229 = vector.broadcast %228 : vector<1x384xf32> to vector<8x384xf32>
    %230 = arith.addf %227, %229 : vector<8x384xf32>
    %231 = vector.extract_strided_slice %230 {offsets = [0, 0], sizes = [8, 32], strides = [1, 1]} : vector<8x384xf32> to vector<8x32xf32>
    %232 = vector.extract_strided_slice %230 {offsets = [0, 32], sizes = [8, 32], strides = [1, 1]} : vector<8x384xf32> to vector<8x32xf32>
    %233 = vector.extract_strided_slice %230 {offsets = [0, 64], sizes = [8, 32], strides = [1, 1]} : vector<8x384xf32> to vector<8x32xf32>
    %234 = vector.extract_strided_slice %230 {offsets = [0, 96], sizes = [8, 32], strides = [1, 1]} : vector<8x384xf32> to vector<8x32xf32>
    %235 = vector.shape_cast %231 : vector<8x32xf32> to vector<1x8x32xf32>
    %236 = vector.shape_cast %232 : vector<8x32xf32> to vector<1x8x32xf32>
    %237 = vector.shape_cast %233 : vector<8x32xf32> to vector<1x8x32xf32>
    %238 = vector.shape_cast %234 : vector<8x32xf32> to vector<1x8x32xf32>
    %239 = tpu.concatenate %235, %236, %237, %238 in 0 : vector<1x8x32xf32>, vector<1x8x32xf32>, vector<1x8x32xf32>, vector<1x8x32xf32> -> vector<4x8x32xf32>
    %240 = vector.extract_strided_slice %230 {offsets = [0, 128], sizes = [8, 32], strides = [1, 1]} : vector<8x384xf32> to vector<8x32xf32>
    %241 = vector.extract_strided_slice %230 {offsets = [0, 160], sizes = [8, 32], strides = [1, 1]} : vector<8x384xf32> to vector<8x32xf32>
    %242 = vector.extract_strided_slice %230 {offsets = [0, 192], sizes = [8, 32], strides = [1, 1]} : vector<8x384xf32> to vector<8x32xf32>
    %243 = vector.extract_strided_slice %230 {offsets = [0, 224], sizes = [8, 32], strides = [1, 1]} : vector<8x384xf32> to vector<8x32xf32>
    %244 = vector.shape_cast %240 : vector<8x32xf32> to vector<1x8x32xf32>
    %245 = vector.shape_cast %241 : vector<8x32xf32> to vector<1x8x32xf32>
    %246 = vector.shape_cast %242 : vector<8x32xf32> to vector<1x8x32xf32>
    %247 = vector.shape_cast %243 : vector<8x32xf32> to vector<1x8x32xf32>
    %248 = tpu.concatenate %244, %245, %246, %247 in 0 : vector<1x8x32xf32>, vector<1x8x32xf32>, vector<1x8x32xf32>, vector<1x8x32xf32> -> vector<4x8x32xf32>
    %249 = vector.extract_strided_slice %230 {offsets = [0, 256], sizes = [8, 32], strides = [1, 1]} : vector<8x384xf32> to vector<8x32xf32>
    %250 = vector.extract_strided_slice %230 {offsets = [0, 288], sizes = [8, 32], strides = [1, 1]} : vector<8x384xf32> to vector<8x32xf32>
    %251 = vector.extract_strided_slice %230 {offsets = [0, 320], sizes = [8, 32], strides = [1, 1]} : vector<8x384xf32> to vector<8x32xf32>
    %252 = vector.extract_strided_slice %230 {offsets = [0, 352], sizes = [8, 32], strides = [1, 1]} : vector<8x384xf32> to vector<8x32xf32>
    %253 = vector.shape_cast %249 : vector<8x32xf32> to vector<1x8x32xf32>
    %254 = vector.shape_cast %250 : vector<8x32xf32> to vector<1x8x32xf32>
    %255 = vector.shape_cast %251 : vector<8x32xf32> to vector<1x8x32xf32>
    %256 = vector.shape_cast %252 : vector<8x32xf32> to vector<1x8x32xf32>
    %257 = tpu.concatenate %253, %254, %255, %256 in 0 : vector<1x8x32xf32>, vector<1x8x32xf32>, vector<1x8x32xf32>, vector<1x8x32xf32> -> vector<4x8x32xf32>
    %258 = arith.truncf %239 : vector<4x8x32xf32> to vector<4x8x32xbf16>
    %259 = arith.truncf %248 : vector<4x8x32xf32> to vector<4x8x32xbf16>
    "tpu.trace_start"() <{level = 10 : i32, message = "htd,hsd->hts"}> : () -> ()
    %cst_67 = arith.constant dense<0.000000e+00> : vector<4x8x8xf32>
    %260 = tpu.matmul %258, %259, %cst_67 {dimension_numbers = #tpu.dot_dimension_numbers<[2], [2], [1], [1], [0, 0, 0, 1, 1, 1], [0], [0]>} : vector<4x8x32xbf16>, vector<4x8x32xbf16>, vector<4x8x8xf32> -> vector<4x8x8xf32>
    "tpu.trace_stop"() : () -> ()
    %cst_68 = arith.constant 0.176776692 : f32
    %261 = vector.broadcast %cst_68 : f32 to vector<4x8x8xf32>
    %262 = arith.mulf %260, %261 : vector<4x8x8xf32>
    %263 = vector.shape_cast %73 : vector<8x8xf32> to vector<1x8x8xf32>
    %264 = vector.broadcast %263 : vector<1x8x8xf32> to vector<4x8x8xf32>
    %265 = arith.addf %262, %264 : vector<4x8x8xf32>
    %cst_69 = arith.constant dense<0xFF800000> : vector<4x8xf32>
    %266 = vector.multi_reduction <maximumf>, %265, %cst_69 [2] : vector<4x8x8xf32> to vector<4x8xf32>
    %267 = vector.shape_cast %266 : vector<4x8xf32> to vector<4x8x1xf32>
    %268 = vector.broadcast %267 : vector<4x8x1xf32> to vector<4x8x8xf32>
    %269 = arith.subf %265, %268 : vector<4x8x8xf32>
    %270 = math.exp %269 : vector<4x8x8xf32>
    %cst_70 = arith.constant dense<0.000000e+00> : vector<4x8xf32>
    %271 = vector.multi_reduction <add>, %270, %cst_70 [2] : vector<4x8x8xf32> to vector<4x8xf32>
    %272 = vector.shape_cast %271 : vector<4x8xf32> to vector<4x8x1xf32>
    %273 = vector.broadcast %272 : vector<4x8x1xf32> to vector<4x8x8xf32>
    %274 = arith.divf %270, %273 : vector<4x8x8xf32>
    %275 = arith.truncf %274 : vector<4x8x8xf32> to vector<4x8x8xbf16>
    %276 = arith.truncf %257 : vector<4x8x32xf32> to vector<4x8x32xbf16>
    "tpu.trace_start"() <{level = 10 : i32, message = "hts,hsd->htd"}> : () -> ()
    %cst_71 = arith.constant dense<0.000000e+00> : vector<4x8x32xf32>
    %277 = tpu.matmul %275, %276, %cst_71 {dimension_numbers = #tpu.dot_dimension_numbers<[2], [1], [1], [2], [0, 0, 0, 1, 1, 2], [0], [0]>} : vector<4x8x8xbf16>, vector<4x8x32xbf16>, vector<4x8x32xf32> -> vector<4x8x32xf32>
    "tpu.trace_stop"() : () -> ()
    %278 = vector.extract_strided_slice %0 {offsets = [14, 0], sizes = [1, 128], strides = [1, 1]} : vector<24x384xf32> to vector<1x128xf32>
    %279 = vector.extract_strided_slice %277 {offsets = [0, 0, 0], sizes = [1, 8, 32], strides = [1, 1, 1]} : vector<4x8x32xf32> to vector<1x8x32xf32>
    %280 = vector.shape_cast %279 : vector<1x8x32xf32> to vector<8x32xf32>
    %281 = arith.truncf %280 : vector<8x32xf32> to vector<8x32xbf16>
    %282 = vector.extract_strided_slice %225 {offsets = [0, 0], sizes = [32, 128], strides = [1, 1]} : vector<128x128xbf16> to vector<32x128xbf16>
    %cst_72 = arith.constant dense<0.000000e+00> : vector<8x128xf32>
    %283 = tpu.matmul %281, %282, %cst_72 {dimension_numbers = #tpu.dot_dimension_numbers<[1], [0], [0], [1], [0, 0, 1, 1], [], []>} : vector<8x32xbf16>, vector<32x128xbf16>, vector<8x128xf32> -> vector<8x128xf32>
    %284 = vector.broadcast %278 : vector<1x128xf32> to vector<8x128xf32>
    %285 = arith.addf %284, %283 : vector<8x128xf32>
    %286 = vector.extract_strided_slice %277 {offsets = [1, 0, 0], sizes = [1, 8, 32], strides = [1, 1, 1]} : vector<4x8x32xf32> to vector<1x8x32xf32>
    %287 = vector.shape_cast %286 : vector<1x8x32xf32> to vector<8x32xf32>
    %288 = arith.truncf %287 : vector<8x32xf32> to vector<8x32xbf16>
    %289 = vector.extract_strided_slice %225 {offsets = [32, 0], sizes = [32, 128], strides = [1, 1]} : vector<128x128xbf16> to vector<32x128xbf16>
    %cst_73 = arith.constant dense<0.000000e+00> : vector<8x128xf32>
    %290 = tpu.matmul %288, %289, %cst_73 {dimension_numbers = #tpu.dot_dimension_numbers<[1], [0], [0], [1], [0, 0, 1, 1], [], []>} : vector<8x32xbf16>, vector<32x128xbf16>, vector<8x128xf32> -> vector<8x128xf32>
    %291 = arith.addf %285, %290 : vector<8x128xf32>
    %292 = vector.extract_strided_slice %277 {offsets = [2, 0, 0], sizes = [1, 8, 32], strides = [1, 1, 1]} : vector<4x8x32xf32> to vector<1x8x32xf32>
    %293 = vector.shape_cast %292 : vector<1x8x32xf32> to vector<8x32xf32>
    %294 = arith.truncf %293 : vector<8x32xf32> to vector<8x32xbf16>
    %295 = vector.extract_strided_slice %225 {offsets = [64, 0], sizes = [32, 128], strides = [1, 1]} : vector<128x128xbf16> to vector<32x128xbf16>
    %cst_74 = arith.constant dense<0.000000e+00> : vector<8x128xf32>
    %296 = tpu.matmul %294, %295, %cst_74 {dimension_numbers = #tpu.dot_dimension_numbers<[1], [0], [0], [1], [0, 0, 1, 1], [], []>} : vector<8x32xbf16>, vector<32x128xbf16>, vector<8x128xf32> -> vector<8x128xf32>
    %297 = arith.addf %291, %296 : vector<8x128xf32>
    %298 = vector.extract_strided_slice %277 {offsets = [3, 0, 0], sizes = [1, 8, 32], strides = [1, 1, 1]} : vector<4x8x32xf32> to vector<1x8x32xf32>
    %299 = vector.shape_cast %298 : vector<1x8x32xf32> to vector<8x32xf32>
    %300 = arith.truncf %299 : vector<8x32xf32> to vector<8x32xbf16>
    %301 = vector.extract_strided_slice %225 {offsets = [96, 0], sizes = [32, 128], strides = [1, 1]} : vector<128x128xbf16> to vector<32x128xbf16>
    %cst_75 = arith.constant dense<0.000000e+00> : vector<8x128xf32>
    %302 = tpu.matmul %300, %301, %cst_75 {dimension_numbers = #tpu.dot_dimension_numbers<[1], [0], [0], [1], [0, 0, 1, 1], [], []>} : vector<8x32xbf16>, vector<32x128xbf16>, vector<8x128xf32> -> vector<8x128xf32>
    %303 = arith.addf %297, %302 : vector<8x128xf32>
    %304 = arith.addf %221, %303 : vector<8x128xf32>
    %305 = vector.extract_strided_slice %0 {offsets = [15, 0], sizes = [1, 128], strides = [1, 1]} : vector<24x384xf32> to vector<1x128xf32>
    %306 = vector.extract_strided_slice %0 {offsets = [16, 0], sizes = [1, 128], strides = [1, 1]} : vector<24x384xf32> to vector<1x128xf32>
    %cst_76 = arith.constant dense<0.000000e+00> : vector<8xf32>
    %307 = vector.multi_reduction <add>, %304, %cst_76 [1] : vector<8x128xf32> to vector<8xf32>
    %308 = vector.shape_cast %307 : vector<8xf32> to vector<8x1xf32>
    %cst_77 = arith.constant 1.280000e+02 : f32
    %309 = vector.broadcast %cst_77 : f32 to vector<8x1xf32>
    %310 = arith.divf %308, %309 : vector<8x1xf32>
    %311 = vector.broadcast %310 : vector<8x1xf32> to vector<8x128xf32>
    %312 = arith.subf %304, %311 : vector<8x128xf32>
    %313 = arith.mulf %312, %312 : vector<8x128xf32>
    %cst_78 = arith.constant dense<0.000000e+00> : vector<8xf32>
    %314 = vector.multi_reduction <add>, %313, %cst_78 [1] : vector<8x128xf32> to vector<8xf32>
    %315 = vector.shape_cast %314 : vector<8xf32> to vector<8x1xf32>
    %cst_79 = arith.constant 1.270000e+02 : f32
    %316 = vector.broadcast %cst_79 : f32 to vector<8x1xf32>
    %317 = arith.divf %315, %316 : vector<8x1xf32>
    %318 = vector.broadcast %310 : vector<8x1xf32> to vector<8x128xf32>
    %319 = arith.subf %304, %318 : vector<8x128xf32>
    %320 = vector.broadcast %305 : vector<1x128xf32> to vector<8x128xf32>
    %321 = arith.mulf %320, %319 : vector<8x128xf32>
    %322 = math.sqrt %317 : vector<8x1xf32>
    %cst_80 = arith.constant 9.99999997E-7 : f32
    %323 = vector.broadcast %cst_80 : f32 to vector<8x1xf32>
    %324 = arith.addf %322, %323 : vector<8x1xf32>
    %325 = vector.broadcast %324 : vector<8x1xf32> to vector<8x128xf32>
    %326 = arith.divf %321, %325 : vector<8x128xf32>
    %327 = vector.broadcast %306 : vector<1x128xf32> to vector<8x128xf32>
    %328 = arith.addf %326, %327 : vector<8x128xf32>
    %329 = arith.truncf %328 : vector<8x128xf32> to vector<8x128xbf16>
    %c1_81 = arith.constant 1 : index
    %c0_82 = arith.constant 0 : index
    %c0_83 = arith.constant 0 : index
    %330 = vector.load %arg7[%c1_81, %c0_82, %c0_83] : memref<2x128x64xbf16, #tpu.memory_space<vmem>>, vector<1x128x64xbf16>
    %331 = vector.shape_cast %330 : vector<1x128x64xbf16> to vector<128x64xbf16>
    %cst_84 = arith.constant dense<0.000000e+00> : vector<8x64xf32>
    %332 = tpu.matmul %329, %331, %cst_84 {dimension_numbers = #tpu.dot_dimension_numbers<[1], [0], [0], [1], [0, 0, 1, 1], [], []>} : vector<8x128xbf16>, vector<128x64xbf16>, vector<8x64xf32> -> vector<8x64xf32>
    %333 = vector.extract_strided_slice %0 {offsets = [17, 0], sizes = [1, 64], strides = [1, 1]} : vector<24x384xf32> to vector<1x64xf32>
    %334 = vector.broadcast %333 : vector<1x64xf32> to vector<8x64xf32>
    %335 = arith.addf %332, %334 : vector<8x64xf32>
    %cst_85 = arith.constant 0.000000e+00 : f32
    %336 = vector.broadcast %cst_85 : f32 to vector<8x64xf32>
    %337 = arith.maximumf %335, %336 : vector<8x64xf32>
    %338 = arith.truncf %337 : vector<8x64xf32> to vector<8x64xbf16>
    %c1_86 = arith.constant 1 : index
    %c0_87 = arith.constant 0 : index
    %c0_88 = arith.constant 0 : index
    %339 = vector.load %arg8[%c1_86, %c0_87, %c0_88] : memref<2x64x128xbf16, #tpu.memory_space<vmem>>, vector<1x64x128xbf16>
    %340 = vector.shape_cast %339 : vector<1x64x128xbf16> to vector<64x128xbf16>
    %cst_89 = arith.constant dense<0.000000e+00> : vector<8x128xf32>
    %341 = tpu.matmul %338, %340, %cst_89 {dimension_numbers = #tpu.dot_dimension_numbers<[1], [0], [0], [1], [0, 0, 1, 1], [], []>} : vector<8x64xbf16>, vector<64x128xbf16>, vector<8x128xf32> -> vector<8x128xf32>
    %342 = vector.extract_strided_slice %0 {offsets = [18, 0], sizes = [1, 128], strides = [1, 1]} : vector<24x384xf32> to vector<1x128xf32>
    %343 = vector.broadcast %342 : vector<1x128xf32> to vector<8x128xf32>
    %344 = arith.addf %341, %343 : vector<8x128xf32>
    %345 = arith.addf %328, %344 : vector<8x128xf32>
    %346 = vector.extract_strided_slice %0 {offsets = [19, 0], sizes = [1, 128], strides = [1, 1]} : vector<24x384xf32> to vector<1x128xf32>
    %347 = vector.extract_strided_slice %0 {offsets = [20, 0], sizes = [1, 128], strides = [1, 1]} : vector<24x384xf32> to vector<1x128xf32>
    %cst_90 = arith.constant dense<0.000000e+00> : vector<8xf32>
    %348 = vector.multi_reduction <add>, %345, %cst_90 [1] : vector<8x128xf32> to vector<8xf32>
    %349 = vector.shape_cast %348 : vector<8xf32> to vector<8x1xf32>
    %cst_91 = arith.constant 1.280000e+02 : f32
    %350 = vector.broadcast %cst_91 : f32 to vector<8x1xf32>
    %351 = arith.divf %349, %350 : vector<8x1xf32>
    %352 = vector.broadcast %351 : vector<8x1xf32> to vector<8x128xf32>
    %353 = arith.subf %345, %352 : vector<8x128xf32>
    %354 = arith.mulf %353, %353 : vector<8x128xf32>
    %cst_92 = arith.constant dense<0.000000e+00> : vector<8xf32>
    %355 = vector.multi_reduction <add>, %354, %cst_92 [1] : vector<8x128xf32> to vector<8xf32>
    %356 = vector.shape_cast %355 : vector<8xf32> to vector<8x1xf32>
    %cst_93 = arith.constant 1.270000e+02 : f32
    %357 = vector.broadcast %cst_93 : f32 to vector<8x1xf32>
    %358 = arith.divf %356, %357 : vector<8x1xf32>
    %359 = vector.broadcast %351 : vector<8x1xf32> to vector<8x128xf32>
    %360 = arith.subf %345, %359 : vector<8x128xf32>
    %361 = vector.broadcast %346 : vector<1x128xf32> to vector<8x128xf32>
    %362 = arith.mulf %361, %360 : vector<8x128xf32>
    %363 = math.sqrt %358 : vector<8x1xf32>
    %cst_94 = arith.constant 9.99999997E-7 : f32
    %364 = vector.broadcast %cst_94 : f32 to vector<8x1xf32>
    %365 = arith.addf %363, %364 : vector<8x1xf32>
    %366 = vector.broadcast %365 : vector<8x1xf32> to vector<8x128xf32>
    %367 = arith.divf %362, %366 : vector<8x128xf32>
    %368 = vector.broadcast %347 : vector<1x128xf32> to vector<8x128xf32>
    %369 = arith.addf %367, %368 : vector<8x128xf32>
    %cst_95 = arith.constant dense<0.000000e+00> : vector<128xf32>
    %370 = vector.multi_reduction <add>, %369, %cst_95 [0] : vector<8x128xf32> to vector<128xf32>
    %371 = vector.shape_cast %370 : vector<128xf32> to vector<1x128xf32>
    %cst_96 = arith.constant 8.000000e+00 : f32
    %372 = vector.broadcast %cst_96 : f32 to vector<1x128xf32>
    %373 = arith.divf %371, %372 : vector<1x128xf32>
    %374 = vector.broadcast %373 : vector<1x128xf32> to vector<8x128xf32>
    %375 = arith.subf %369, %374 : vector<8x128xf32>
    %376 = arith.mulf %375, %375 : vector<8x128xf32>
    %cst_97 = arith.constant dense<0.000000e+00> : vector<128xf32>
    %377 = vector.multi_reduction <add>, %376, %cst_97 [0] : vector<8x128xf32> to vector<128xf32>
    %378 = vector.shape_cast %377 : vector<128xf32> to vector<1x128xf32>
    %cst_98 = arith.constant 7.000000e+00 : f32
    %379 = vector.broadcast %cst_98 : f32 to vector<1x128xf32>
    %380 = arith.divf %378, %379 : vector<1x128xf32>
    %381 = math.sqrt %380 : vector<1x128xf32>
    %382 = tpu.concatenate %373, %381 in 1 : vector<1x128xf32>, vector<1x128xf32> -> vector<1x256xf32>
    %383 = arith.truncf %382 : vector<1x256xf32> to vector<1x256xbf16>
    %c0_99 = arith.constant 0 : index
    %c0_100 = arith.constant 0 : index
    %384 = vector.load %arg9[%c0_99, %c0_100] : memref<256x128xbf16, #tpu.memory_space<vmem>>, vector<256x128xbf16>
    %cst_101 = arith.constant dense<0.000000e+00> : vector<1x128xf32>
    %385 = tpu.matmul %383, %384, %cst_101 {dimension_numbers = #tpu.dot_dimension_numbers<[1], [0], [0], [1], [0, 0, 1, 1], [], []>} : vector<1x256xbf16>, vector<256x128xbf16>, vector<1x128xf32> -> vector<1x128xf32>
    %386 = vector.extract_strided_slice %0 {offsets = [21, 0], sizes = [1, 128], strides = [1, 1]} : vector<24x384xf32> to vector<1x128xf32>
    %387 = arith.addf %385, %386 : vector<1x128xf32>
    %cst_102 = arith.constant 0.000000e+00 : f32
    %388 = vector.broadcast %cst_102 : f32 to vector<1x128xf32>
    %389 = arith.maximumf %387, %388 : vector<1x128xf32>
    %390 = arith.truncf %389 : vector<1x128xf32> to vector<1x128xbf16>
    %c0_103 = arith.constant 0 : index
    %c0_104 = arith.constant 0 : index
    %391 = vector.load %arg10[%c0_103, %c0_104] : memref<128x128xbf16, #tpu.memory_space<vmem>>, vector<128x128xbf16>
    %cst_105 = arith.constant dense<0.000000e+00> : vector<1x128xf32>
    %392 = tpu.matmul %390, %391, %cst_105 {dimension_numbers = #tpu.dot_dimension_numbers<[1], [0], [0], [1], [0, 0, 1, 1], [], []>} : vector<1x128xbf16>, vector<128x128xbf16>, vector<1x128xf32> -> vector<1x128xf32>
    %393 = vector.extract_strided_slice %0 {offsets = [22, 0], sizes = [1, 128], strides = [1, 1]} : vector<24x384xf32> to vector<1x128xf32>
    %394 = arith.addf %392, %393 : vector<1x128xf32>
    %cst_106 = arith.constant 0.000000e+00 : f32
    %395 = vector.broadcast %cst_106 : f32 to vector<1x128xf32>
    %396 = arith.maximumf %394, %395 : vector<1x128xf32>
    %397 = arith.truncf %396 : vector<1x128xf32> to vector<1x128xbf16>
    %c0_107 = arith.constant 0 : index
    %c0_108 = arith.constant 0 : index
    %398 = vector.load %arg11[%c0_107, %c0_108] : memref<128x3xbf16, #tpu.memory_space<vmem>>, vector<128x3xbf16>
    %cst_109 = arith.constant dense<0.000000e+00> : vector<1x3xf32>
    %399 = tpu.matmul %397, %398, %cst_109 {dimension_numbers = #tpu.dot_dimension_numbers<[1], [0], [0], [1], [0, 0, 1, 1], [], []>} : vector<1x128xbf16>, vector<128x3xbf16>, vector<1x3xf32> -> vector<1x3xf32>
    %400 = vector.extract_strided_slice %0 {offsets = [23, 0], sizes = [1, 3], strides = [1, 1]} : vector<24x384xf32> to vector<1x3xf32>
    %401 = arith.addf %399, %400 : vector<1x3xf32>
    %402 = vector.shape_cast %401 : vector<1x3xf32> to vector<1x3xf32>
    %403 = vector.broadcast %402 : vector<1x3xf32> to vector<8x3xf32>
    %c0_110 = arith.constant 0 : index
    %c0_111 = arith.constant 0 : index
    %c0_112 = arith.constant 0 : index
    %404 = vector.load %arg13[%c0_110, %c0_111, %c0_112] : memref<1x8x3xf32, #tpu.memory_space<vmem>>, vector<1x8x3xf32>
    %405 = vector.shape_cast %404 : vector<1x8x3xf32> to vector<8x3xf32>
    %406 = vector.shape_cast %403 : vector<8x3xf32> to vector<1x8x3xf32>
    tpu.vector_store %arg13[%c0_110, %c0_111, %c0_112], %406 {strides = array<i32>} : memref<1x8x3xf32, #tpu.memory_space<vmem>>, vector<1x8x3xf32>,
    return
  }
  func.func @transform_0(%arg0: i32) -> (i32, i32, i32, i32) {
    %c0_i32 = arith.constant 0 : i32
    %c0_i32_0 = arith.constant 0 : i32
    %c0_i32_1 = arith.constant 0 : i32
    %c0_i32_2 = arith.constant 0 : i32
    return %c0_i32, %arg0, %c0_i32_0, %c0_i32_1 : i32, i32, i32, i32
  }
  func.func @transform_1(%arg0: i32) -> (i32, i32, i32) {
    %c0_i32 = arith.constant 0 : i32
    %c0_i32_0 = arith.constant 0 : i32
    %c0_i32_1 = arith.constant 0 : i32
    return %arg0, %c0_i32, %c0_i32_0 : i32, i32, i32
  }
  func.func @transform_2(%arg0: i32) -> (i32, i32) {
    %c0_i32 = arith.constant 0 : i32
    %c0_i32_0 = arith.constant 0 : i32
    %c0_i32_1 = arith.constant 0 : i32
    return %c0_i32, %c0_i32_0 : i32, i32
  }
  func.func @transform_3(%arg0: i32) -> (i32, i32) {
    %c0_i32 = arith.constant 0 : i32
    %c0_i32_0 = arith.constant 0 : i32
    %c0_i32_1 = arith.constant 0 : i32
    return %c0_i32, %c0_i32_0 : i32, i32
  }
  func.func @transform_4(%arg0: i32) -> (i32, i32, i32) {
    %c0_i32 = arith.constant 0 : i32
    %c0_i32_0 = arith.constant 0 : i32
    %c0_i32_1 = arith.constant 0 : i32
    %c0_i32_2 = arith.constant 0 : i32
    return %c0_i32, %c0_i32_0, %c0_i32_1 : i32, i32, i32
  }
  func.func @transform_5(%arg0: i32) -> (i32, i32, i32) {
    %c0_i32 = arith.constant 0 : i32
    %c0_i32_0 = arith.constant 0 : i32
    %c0_i32_1 = arith.constant 0 : i32
    %c0_i32_2 = arith.constant 0 : i32
    return %c0_i32, %c0_i32_0, %c0_i32_1 : i32, i32, i32
  }
  func.func @transform_6(%arg0: i32) -> (i32, i32, i32) {
    %c0_i32 = arith.constant 0 : i32
    %c0_i32_0 = arith.constant 0 : i32
    %c0_i32_1 = arith.constant 0 : i32
    %c0_i32_2 = arith.constant 0 : i32
    return %c0_i32, %c0_i32_0, %c0_i32_1 : i32, i32, i32
  }
  func.func @transform_7(%arg0: i32) -> (i32, i32, i32) {
    %c0_i32 = arith.constant 0 : i32
    %c0_i32_0 = arith.constant 0 : i32
    %c0_i32_1 = arith.constant 0 : i32
    %c0_i32_2 = arith.constant 0 : i32
    return %c0_i32, %c0_i32_0, %c0_i32_1 : i32, i32, i32
  }
  func.func @transform_8(%arg0: i32) -> (i32, i32) {
    %c0_i32 = arith.constant 0 : i32
    %c0_i32_0 = arith.constant 0 : i32
    %c0_i32_1 = arith.constant 0 : i32
    return %c0_i32, %c0_i32_0 : i32, i32
  }
  func.func @transform_9(%arg0: i32) -> (i32, i32) {
    %c0_i32 = arith.constant 0 : i32
    %c0_i32_0 = arith.constant 0 : i32
    %c0_i32_1 = arith.constant 0 : i32
    return %c0_i32, %c0_i32_0 : i32, i32
  }
  func.func @transform_10(%arg0: i32) -> (i32, i32) {
    %c0_i32 = arith.constant 0 : i32
    %c0_i32_0 = arith.constant 0 : i32
    %c0_i32_1 = arith.constant 0 : i32
    return %c0_i32, %c0_i32_0 : i32, i32
  }
  func.func @transform_11(%arg0: i32) -> (i32, i32) {
    %c0_i32 = arith.constant 0 : i32
    %c0_i32_0 = arith.constant 0 : i32
    %c0_i32_1 = arith.constant 0 : i32
    return %c0_i32, %c0_i32_0 : i32, i32
  }
  func.func @transform_12(%arg0: i32) -> (i32, i32, i32) {
    %c0_i32 = arith.constant 0 : i32
    %c0_i32_0 = arith.constant 0 : i32
    %c0_i32_1 = arith.constant 0 : i32
    return %arg0, %c0_i32, %c0_i32_0 : i32, i32, i32
  }
}

</mosaic_0001>

<llo_original>
// kernel: _lambda_.3
$region0: #{_lambda_.3}
  #allocation0 [shape = 'u32[]', space=smem, size = 0x4, offset = 0x4, fixed_abs, tag = 'smem constant byte address 0x4 - core index']
  #allocation1 [shape = 'u32[144,128]{1,0:T(1,128)}', space=vmem, size = 0x12000, scoped, tag = 'internal scratch']
  %s0 = inlined_call_operand.vmem [shape: f32[4,2,8,512], index: 0, kind: input, shape index: {}]
  %s1 = inlined_call_operand.vmem [shape: f32[2,8,8], index: 1, kind: input, shape index: {}]
  %s2 = inlined_call_operand.vmem [shape: f32[8,32], index: 2, kind: input, shape index: {}]
  %s3 = inlined_call_operand.vmem [shape: bf16[1024,32], index: 3, kind: input, shape index: {}]
  %s4 = inlined_call_operand.vmem [shape: bf16[2,128,384], index: 4, kind: input, shape index: {}]
  %s5 = inlined_call_operand.vmem [shape: bf16[2,128,128], index: 5, kind: input, shape index: {}]
  %s6 = inlined_call_operand.vmem [shape: bf16[2,128,64], index: 6, kind: input, shape index: {}]
  %s7 = inlined_call_operand.vmem [shape: bf16[2,64,128], index: 7, kind: input, shape index: {}]
  %s8 = inlined_call_operand.vmem [shape: bf16[256,128], index: 8, kind: input, shape index: {}]
  %s9 = inlined_call_operand.vmem [shape: bf16[128,128], index: 9, kind: input, shape index: {}]
  %s10 = inlined_call_operand.vmem [shape: bf16[128,3], index: 10, kind: input, shape index: {}]
  %s11 = inlined_call_operand.vmem [shape: f32[24,384], index: 11, kind: input, shape index: {}]
  %s12 = inlined_call_operand.vmem [shape: f32[2,8,3], index: 12, kind: output, shape index: {}]
  %s13 = sld [smem:[#allocation0]]
  $region104: #{_lambda_.3} parent=0
    _
  %s15 = ssub.s32 1, %s13
  %s16 = scalar_select 0, %s15, %s13
  $region1: #{_lambda_.3} parent=0
    #allocation2 [shape = 'u8[131072]{0}', space=vmem, size = 0x20000, scoped, tag = 'input window, operand 0']
    loop: start=0, step=1, limit=4
    $region2: #{_lambda_.3} parent=1 // loop_pre_header
      _
    $region3: #{_lambda_.3} parent=1 // loop_header
      %s18 = sphi 0, %s22
      %p19 = scmp.ge.s32.totalorder %s18, 4
      %s28 = sphi 0, %s30
      %s31 = sphi 0, %s28
      %s32 = sphi 0, %s31
      %s48 = sphi 0, %s32
      %s54 = sphi 0, %s56
      %s57 = sphi 0, %s54
      %s58 = sphi 0, %s57
      %s74 = sphi 0, %s58
      %s78 = sphi 0, %s78
      %s80 = sphi 0, %s78
      %s81 = sphi 0, %s80
      %s95 = sphi 0, %s81
      %s99 = sphi 0, %s99
      %s101 = sphi 0, %s99
      %s102 = sphi 0, %s101
      %s116 = sphi 0, %s102
      %s120 = sphi 0, %s120
      %s122 = sphi 0, %s120
      %s123 = sphi 0, %s122
      %s137 = sphi 0, %s123
      %s141 = sphi 0, %s141
      %s143 = sphi 0, %s141
      %s144 = sphi 0, %s143
      %s158 = sphi 0, %s144
      %s162 = sphi 0, %s162
      %s164 = sphi 0, %s162
      %s165 = sphi 0, %s164
      %s179 = sphi 0, %s165
      %s183 = sphi 0, %s183
      %s185 = sphi 0, %s183
      %s186 = sphi 0, %s185
      %s200 = sphi 0, %s186
      %s204 = sphi 0, %s204
      %s206 = sphi 0, %s204
      %s207 = sphi 0, %s206
      %s221 = sphi 0, %s207
      %s225 = sphi 0, %s225
      %s227 = sphi 0, %s225
      %s228 = sphi 0, %s227
      %s242 = sphi 0, %s228
      %s246 = sphi 0, %s246
      %s248 = sphi 0, %s246
      %s249 = sphi 0, %s248
      %s263 = sphi 0, %s249
      %s267 = sphi 0, %s267
      %s269 = sphi 0, %s267
      %s270 = sphi 0, %s269
      %s284 = sphi 0, %s270
      %s290 = sphi 0, %s292
      %s293 = sphi 0, %s290
      %s294 = sphi 0, %s293
      %s310 = sphi 0, %s294
    $region4: #{_lambda_.3} parent=1 // loop_header_branch
      %21 = sbr.rel (%p19) target = $region8
    $region5: #{_lambda_.3} parent=1 // loop_body
      %s23 = ssub.s32 %s18, 1
      %s24 = ssub.s32 %s18, 2
      %s25 = sadd.s32 %s18, 1
      %s26 = ssub.s32 %s18, %s25
      %p27 = scmp.eq.s32.totalorder %s26, 0
      %s29 = sadd.s32 %s28, 1
      %s30 = scalar_select %p27, %s28, %s29
      %p33 = pneg %p27
      %p34 = scmp.eq.s32.totalorder %s18, 1
      %p35 = por %p33, %p34
      %p36 = scmp.ne.s32.totalorder %s28, %s31
      %p37 = scmp.eq.s32.totalorder %s18, 0
      %p38 = por %p36, %p37
      %p39 = scmp.ne.s32.totalorder %s28, %s31
      %p40 = scmp.eq.s32.totalorder %s23, 1
      %p41 = por %p39, %p40
      %p42 = scmp.ne.s32.totalorder %s31, %s32
      %p43 = scmp.eq.s32.totalorder %s23, 0
      %p44 = por %p42, %p43
      %p45 = scmp.ne.s32.totalorder %s31, %s32
      %p46 = scmp.eq.s32.totalorder %s24, 1
      %p47 = por %p45, %p46
      %p49 = scmp.ne.s32.totalorder %s32, %s48
      %p50 = scmp.eq.s32.totalorder %s24, 0
      %p51 = por %p49, %p50
      %s52 = ssub.s32 %s18, %s25
      %p53 = scmp.eq.s32.totalorder %s52, 0
      %s55 = sadd.s32 %s54, 1
      %s56 = scalar_select %p53, %s54, %s55
      %p59 = pneg %p53
      %p60 = scmp.eq.s32.totalorder %s18, 1
      %p61 = por %p59, %p60
      %p62 = scmp.ne.s32.totalorder %s54, %s57
      %p63 = scmp.eq.s32.totalorder %s18, 0
      %p64 = por %p62, %p63
      %p65 = scmp.ne.s32.totalorder %s54, %s57
      %p66 = scmp.eq.s32.totalorder %s23, 1
      %p67 = por %p65, %p66
      %p68 = scmp.ne.s32.totalorder %s57, %s58
      %p69 = scmp.eq.s32.totalorder %s23, 0
      %p70 = por %p68, %p69
      %p71 = scmp.ne.s32.totalorder %s57, %s58
      %p72 = scmp.eq.s32.totalorder %s24, 1
      %p73 = por %p71, %p72
      %p75 = scmp.ne.s32.totalorder %s58, %s74
      %p76 = scmp.eq.s32.totalorder %s24, 0
      %p77 = por %p75, %p76
      %s79 = sadd.s32 %s78, 1
      %p82 = scmp.eq.s32.totalorder %s18, 1
      %p83 = scmp.ne.s32.totalorder %s78, %s80
      %p84 = scmp.eq.s32.totalorder %s18, 0
      %p85 = por %p83, %p84
      %p86 = scmp.ne.s32.totalorder %s78, %s80
      %p87 = scmp.eq.s32.totalorder %s23, 1
      %p88 = por %p86, %p87
      %p89 = scmp.ne.s32.totalorder %s80, %s81
      %p90 = scmp.eq.s32.totalorder %s23, 0
      %p91 = por %p89, %p90
      %p92 = scmp.ne.s32.totalorder %s80, %s81
      %p93 = scmp.eq.s32.totalorder %s24, 1
      %p94 = por %p92, %p93
      %p96 = scmp.ne.s32.totalorder %s81, %s95
      %p97 = scmp.eq.s32.totalorder %s24, 0
      %p98 = por %p96, %p97
      %s100 = sadd.s32 %s99, 1
      %p103 = scmp.eq.s32.totalorder %s18, 1
      %p104 = scmp.ne.s32.totalorder %s99, %s101
      %p105 = scmp.eq.s32.totalorder %s18, 0
      %p106 = por %p104, %p105
      %p107 = scmp.ne.s32.totalorder %s99, %s101
      %p108 = scmp.eq.s32.totalorder %s23, 1
      %p109 = por %p107, %p108
      %p110 = scmp.ne.s32.totalorder %s101, %s102
      %p111 = scmp.eq.s32.totalorder %s23, 0
      %p112 = por %p110, %p111
      %p113 = scmp.ne.s32.totalorder %s101, %s102
      %p114 = scmp.eq.s32.totalorder %s24, 1
      %p115 = por %p113, %p114
      %p117 = scmp.ne.s32.totalorder %s102, %s116
      %p118 = scmp.eq.s32.totalorder %s24, 0
      %p119 = por %p117, %p118
      %s121 = sadd.s32 %s120, 1
      %p124 = scmp.eq.s32.totalorder %s18, 1
      %p125 = scmp.ne.s32.totalorder %s120, %s122
      %p126 = scmp.eq.s32.totalorder %s18, 0
      %p127 = por %p125, %p126
      %p128 = scmp.ne.s32.totalorder %s120, %s122
      %p129 = scmp.eq.s32.totalorder %s23, 1
      %p130 = por %p128, %p129
      %p131 = scmp.ne.s32.totalorder %s122, %s123
      %p132 = scmp.eq.s32.totalorder %s23, 0
      %p133 = por %p131, %p132
      %p134 = scmp.ne.s32.totalorder %s122, %s123
      %p135 = scmp.eq.s32.totalorder %s24, 1
      %p136 = por %p134, %p135
      %p138 = scmp.ne.s32.totalorder %s123, %s137
      %p139 = scmp.eq.s32.totalorder %s24, 0
      %p140 = por %p138, %p139
      %s142 = sadd.s32 %s141, 1
      %p145 = scmp.eq.s32.totalorder %s18, 1
      %p146 = scmp.ne.s32.totalorder %s141, %s143
      %p147 = scmp.eq.s32.totalorder %s18, 0
      %p148 = por %p146, %p147
      %p149 = scmp.ne.s32.totalorder %s141, %s143
      %p150 = scmp.eq.s32.totalorder %s23, 1
      %p151 = por %p149, %p150
      %p152 = scmp.ne.s32.totalorder %s143, %s144
      %p153 = scmp.eq.s32.totalorder %s23, 0
      %p154 = por %p152, %p153
      %p155 = scmp.ne.s32.totalorder %s143, %s144
      %p156 = scmp.eq.s32.totalorder %s24, 1
      %p157 = por %p155, %p156
      %p159 = scmp.ne.s32.totalorder %s144, %s158
      %p160 = scmp.eq.s32.totalorder %s24, 0
      %p161 = por %p159, %p160
      %s163 = sadd.s32 %s162, 1
      %p166 = scmp.eq.s32.totalorder %s18, 1
      %p167 = scmp.ne.s32.totalorder %s162, %s164
      %p168 = scmp.eq.s32.totalorder %s18, 0
      %p169 = por %p167, %p168
      %p170 = scmp.ne.s32.totalorder %s162, %s164
      %p171 = scmp.eq.s32.totalorder %s23, 1
      %p172 = por %p170, %p171
      %p173 = scmp.ne.s32.totalorder %s164, %s165
      %p174 = scmp.eq.s32.totalorder %s23, 0
      %p175 = por %p173, %p174
      %p176 = scmp.ne.s32.totalorder %s164, %s165
      %p177 = scmp.eq.s32.totalorder %s24, 1
      %p178 = por %p176, %p177
      %p180 = scmp.ne.s32.totalorder %s165, %s179
      %p181 = scmp.eq.s32.totalorder %s24, 0
      %p182 = por %p180, %p181
      %s184 = sadd.s32 %s183, 1
      %p187 = scmp.eq.s32.totalorder %s18, 1
      %p188 = scmp.ne.s32.totalorder %s183, %s185
      %p189 = scmp.eq.s32.totalorder %s18, 0
      %p190 = por %p188, %p189
      %p191 = scmp.ne.s32.totalorder %s183, %s185
      %p192 = scmp.eq.s32.totalorder %s23, 1
      %p193 = por %p191, %p192
      %p194 = scmp.ne.s32.totalorder %s185, %s186
      %p195 = scmp.eq.s32.totalorder %s23, 0
      %p196 = por %p194, %p195
      %p197 = scmp.ne.s32.totalorder %s185, %s186
      %p198 = scmp.eq.s32.totalorder %s24, 1
      %p199 = por %p197, %p198
      %p201 = scmp.ne.s32.totalorder %s186, %s200
      %p202 = scmp.eq.s32.totalorder %s24, 0
      %p203 = por %p201, %p202
      %s205 = sadd.s32 %s204, 1
      %p208 = scmp.eq.s32.totalorder %s18, 1
      %p209 = scmp.ne.s32.totalorder %s204, %s206
      %p210 = scmp.eq.s32.totalorder %s18, 0
      %p211 = por %p209, %p210
      %p212 = scmp.ne.s32.totalorder %s204, %s206
      %p213 = scmp.eq.s32.totalorder %s23, 1
      %p214 = por %p212, %p213
      %p215 = scmp.ne.s32.totalorder %s206, %s207
      %p216 = scmp.eq.s32.totalorder %s23, 0
      %p217 = por %p215, %p216
      %p218 = scmp.ne.s32.totalorder %s206, %s207
      %p219 = scmp.eq.s32.totalorder %s24, 1
      %p220 = por %p218, %p219
      %p222 = scmp.ne.s32.totalorder %s207, %s221
      %p223 = scmp.eq.s32.totalorder %s24, 0
      %p224 = por %p222, %p223
      %s226 = sadd.s32 %s225, 1
      %p229 = scmp.eq.s32.totalorder %s18, 1
      %p230 = scmp.ne.s32.totalorder %s225, %s227
      %p231 = scmp.eq.s32.totalorder %s18, 0
      %p232 = por %p230, %p231
      %p233 = scmp.ne.s32.totalorder %s225, %s227
      %p234 = scmp.eq.s32.totalorder %s23, 1
      %p235 = por %p233, %p234
      %p236 = scmp.ne.s32.totalorder %s227, %s228
      %p237 = scmp.eq.s32.totalorder %s23, 0
      %p238 = por %p236, %p237
      %p239 = scmp.ne.s32.totalorder %s227, %s228
      %p240 = scmp.eq.s32.totalorder %s24, 1
      %p241 = por %p239, %p240
      %p243 = scmp.ne.s32.totalorder %s228, %s242
      %p244 = scmp.eq.s32.totalorder %s24, 0
      %p245 = por %p243, %p244
      %s247 = sadd.s32 %s246, 1
      %p250 = scmp.eq.s32.totalorder %s18, 1
      %p251 = scmp.ne.s32.totalorder %s246, %s248
      %p252 = scmp.eq.s32.totalorder %s18, 0
      %p253 = por %p251, %p252
      %p254 = scmp.ne.s32.totalorder %s246, %s248
      %p255 = scmp.eq.s32.totalorder %s23, 1
      %p256 = por %p254, %p255
      %p257 = scmp.ne.s32.totalorder %s248, %s249
      %p258 = scmp.eq.s32.totalorder %s23, 0
      %p259 = por %p257, %p258
      %p260 = scmp.ne.s32.totalorder %s248, %s249
      %p261 = scmp.eq.s32.totalorder %s24, 1
      %p262 = por %p260, %p261
      %p264 = scmp.ne.s32.totalorder %s249, %s263
      %p265 = scmp.eq.s32.totalorder %s24, 0
      %p266 = por %p264, %p265
      %s268 = sadd.s32 %s267, 1
      %p271 = scmp.eq.s32.totalorder %s18, 1
      %p272 = scmp.ne.s32.totalorder %s267, %s269
      %p273 = scmp.eq.s32.totalorder %s18, 0
      %p274 = por %p272, %p273
      %p275 = scmp.ne.s32.totalorder %s267, %s269
      %p276 = scmp.eq.s32.totalorder %s23, 1
      %p277 = por %p275, %p276
      %p278 = scmp.ne.s32.totalorder %s269, %s270
      %p279 = scmp.eq.s32.totalorder %s23, 0
      %p280 = por %p278, %p279
      %p281 = scmp.ne.s32.totalorder %s269, %s270
      %p282 = scmp.eq.s32.totalorder %s24, 1
      %p283 = por %p281, %p282
      %p285 = scmp.ne.s32.totalorder %s270, %s284
      %p286 = scmp.eq.s32.totalorder %s24, 0
      %p287 = por %p285, %p286
      %s288 = ssub.s32 %s18, %s25
      %p289 = scmp.eq.s32.totalorder %s288, 0
      %s291 = sadd.s32 %s290, 1
      %s292 = scalar_select %p289, %s290, %s291
      %p295 = pneg %p289
      %p296 = scmp.eq.s32.totalorder %s18, 1
      %p297 = por %p295, %p296
      %p298 = scmp.ne.s32.totalorder %s290, %s293
      %p299 = scmp.eq.s32.totalorder %s18, 0
      %p300 = por %p298, %p299
      %p301 = scmp.ne.s32.totalorder %s290, %s293
      %p302 = scmp.eq.s32.totalorder %s23, 1
      %p303 = por %p301, %p302
      %p304 = scmp.ne.s32.totalorder %s293, %s294
      %p305 = scmp.eq.s32.totalorder %s23, 0
      %p306 = por %p304, %p305
      %p307 = scmp.ne.s32.totalorder %s293, %s294
      %p308 = scmp.eq.s32.totalorder %s24, 1
      %p309 = por %p307, %p308
      %p311 = scmp.ne.s32.totalorder %s294, %s310
      %p312 = scmp.eq.s32.totalorder %s24, 0
      %p313 = por %p311, %p312
      %p314 = scmp.le.s32.totalorder 1, %s18
      %p315 = scmp.lt.s32.totalorder %s18, 3
      %p316 = pnand %p314, %p315
      %p317 = pneg %p316
      // Predicated region
      $region9: #{_lambda_.3} parent=5 // pred_check
        _
      $region10: #{_lambda_.3} parent=5 // pred_check_branch
        %319 = sbr.rel (%p316) target = $region12
      $region11: #{_lambda_.3} parent=5 // pred_region
        %s320 = ssub.s32 %s18, 1
        // Predicated region
        $region13: #{_lambda_.3} parent=11 // pred_check
          %p321 = pneg %p91
        $region14: #{_lambda_.3} parent=11 // pred_check_branch
          %323 = sbr.rel (%p321) target = $region16
        $region15: #{_lambda_.3} parent=11 // pred_region
          _
        $region16: #{_lambda_.3} parent=11 // pred_fallthru
          _
        // Predicated region
        $region17: #{_lambda_.3} parent=11 // pred_check
          %p324 = pneg %p112
        $region18: #{_lambda_.3} parent=11 // pred_check_branch
          %326 = sbr.rel (%p324) target = $region20
        $region19: #{_lambda_.3} parent=11 // pred_region
          _
        $region20: #{_lambda_.3} parent=11 // pred_fallthru
          _
        // Predicated region
        $region21: #{_lambda_.3} parent=11 // pred_check
          %p327 = pneg %p133
        $region22: #{_lambda_.3} parent=11 // pred_check_branch
          %329 = sbr.rel (%p327) target = $region24
        $region23: #{_lambda_.3} parent=11 // pred_region
          _
        $region24: #{_lambda_.3} parent=11 // pred_fallthru
          _
        // Predicated region
        $region25: #{_lambda_.3} parent=11 // pred_check
          %p330 = pneg %p154
        $region26: #{_lambda_.3} parent=11 // pred_check_branch
          %332 = sbr.rel (%p330) target = $region28
        $region27: #{_lambda_.3} parent=11 // pred_region
          _
        $region28: #{_lambda_.3} parent=11 // pred_fallthru
          _
        // Predicated region
        $region29: #{_lambda_.3} parent=11 // pred_check
          %p333 = pneg %p175
        $region30: #{_lambda_.3} parent=11 // pred_check_branch
          %335 = sbr.rel (%p333) target = $region32
        $region31: #{_lambda_.3} parent=11 // pred_region
          _
        $region32: #{_lambda_.3} parent=11 // pred_fallthru
          _
        // Predicated region
        $region33: #{_lambda_.3} parent=11 // pred_check
          %p336 = pneg %p196
        $region34: #{_lambda_.3} parent=11 // pred_check_branch
          %338 = sbr.rel (%p336) target = $region36
        $region35: #{_lambda_.3} parent=11 // pred_region
          _
        $region36: #{_lambda_.3} parent=11 // pred_fallthru
          _
        // Predicated region
        $region37: #{_lambda_.3} parent=11 // pred_check
          %p339 = pneg %p217
        $region38: #{_lambda_.3} parent=11 // pred_check_branch
          %341 = sbr.rel (%p339) target = $region40
        $region39: #{_lambda_.3} parent=11 // pred_region
          _
        $region40: #{_lambda_.3} parent=11 // pred_fallthru
          _
        // Predicated region
        $region41: #{_lambda_.3} parent=11 // pred_check
          %p342 = pneg %p238
        $region42: #{_lambda_.3} parent=11 // pred_check_branch
          %344 = sbr.rel (%p342) target = $region44
        $region43: #{_lambda_.3} parent=11 // pred_region
          _
        $region44: #{_lambda_.3} parent=11 // pred_fallthru
          _
        // Predicated region
        $region45: #{_lambda_.3} parent=11 // pred_check
          %p345 = pneg %p259
        $region46: #{_lambda_.3} parent=11 // pred_check_branch
          %347 = sbr.rel (%p345) target = $region48
        $region47: #{_lambda_.3} parent=11 // pred_region
          _
        $region48: #{_lambda_.3} parent=11 // pred_fallthru
          _
        // Predicated region
        $region49: #{_lambda_.3} parent=11 // pred_check
          %p348 = pneg %p280
        $region50: #{_lambda_.3} parent=11 // pred_check_branch
          %350 = sbr.rel (%p348) target = $region52
        $region51: #{_lambda_.3} parent=11 // pred_region
          _
        $region52: #{_lambda_.3} parent=11 // pred_fallthru
          _
      $region12: #{_lambda_.3} parent=5 // pred_fallthru
        _
      %p351 = scmp.lt.s32.totalorder %s18, 2
      // Predicated region
      $region53: #{_lambda_.3} parent=5 // pred_check
        %p352 = pneg %p351
      $region54: #{_lambda_.3} parent=5 // pred_check_branch
        %354 = sbr.rel (%p352) target = $region56
      $region55: #{_lambda_.3} parent=5 // pred_region
        // Predicated region
        $region57: #{_lambda_.3} parent=55 // pred_check
          %p355 = pneg %p38
        $region58: #{_lambda_.3} parent=55 // pred_check_branch
          %357 = sbr.rel (%p355) target = $region60
        $region59: #{_lambda_.3} parent=55 // pred_region
          %s358 = sand.u32 %s28, 1
          %s359 = sand.u32 %s28, 1
          %s360 = smul.addr %s359, 128
          %s361 = scalar_lea.vmem [#allocation2], %s360
          %s362 = smul.addr %s18, 4
          %s363 = smul.addr %s362, 8
          %s364 = scalar_lea.vmem %s0, %s363
          // Predicated region
          $region61: #{_lambda_.3} parent=59 // pred_check
            _
          $region62: #{_lambda_.3} parent=59 // pred_check_branch
            %366 = sbr.rel (0) target = $region64
          $region63: #{_lambda_.3} parent=59 // pred_region
            // Predicated region
            $region65: #{_lambda_.3} parent=63 // pred_check
              _
            $region66: #{_lambda_.3} parent=63 // pred_check_branch
              %368 = sbr.rel (0) target = $region68
            $region67: #{_lambda_.3} parent=63 // pred_region
              loop: start=0, step=1, limit=1
              $region69: #{_lambda_.3} parent=67 // loop_pre_header
                _
              $region70: #{_lambda_.3} parent=67 // loop_header
                %s370 = sphi 0, %s374
                %p371 = scmp.ge.s32.totalorder %s370, 1
                %s375 = sphi %s364, %s364
                %s376 = sphi %s361, %s361
              $region71: #{_lambda_.3} parent=67 // loop_header_branch
                %373 = sbr.rel (%p371) target = $region75
              $region72: #{_lambda_.3} parent=67 // loop_body
                %v377 = vld [vmem:[%s375] sm:$0xff]
                %378 = vst [vmem:[%s376] sm:$0xff] %v377
                %v379 = vld [vmem:[%s375 + $0x8] sm:$0xff]
                %380 = vst [vmem:[%s376 + $0x8] sm:$0xff] %v379
                %v381 = vld [vmem:[%s375 + $0x10] sm:$0xff]
                %382 = vst [vmem:[%s376 + $0x10] sm:$0xff] %v381
                %v383 = vld [vmem:[%s375 + $0x18] sm:$0xff]
                %384 = vst [vmem:[%s376 + $0x18] sm:$0xff] %v383
                %v385 = vld [vmem:[%s375 + $0x40] sm:$0xff]
                %386 = vst [vmem:[%s376 + $0x20] sm:$0xff] %v385
                %v387 = vld [vmem:[%s375 + $0x48] sm:$0xff]
                %388 = vst [vmem:[%s376 + $0x28] sm:$0xff] %v387
                %v389 = vld [vmem:[%s375 + $0x50] sm:$0xff]
                %390 = vst [vmem:[%s376 + $0x30] sm:$0xff] %v389
                %v391 = vld [vmem:[%s375 + $0x58] sm:$0xff]
                %392 = vst [vmem:[%s376 + $0x38] sm:$0xff] %v391
                %v393 = vld [vmem:[%s375 + $0x80] sm:$0xff]
                %394 = vst [vmem:[%s376 + $0x40] sm:$0xff] %v393
                %v395 = vld [vmem:[%s375 + $0x88] sm:$0xff]
                %396 = vst [vmem:[%s376 + $0x48] sm:$0xff] %v395
                %v397 = vld [vmem:[%s375 + $0x90] sm:$0xff]
                %398 = vst [vmem:[%s376 + $0x50] sm:$0xff] %v397
                %v399 = vld [vmem:[%s375 + $0x98] sm:$0xff]
                %400 = vst [vmem:[%s376 + $0x58] sm:$0xff] %v399
                %v401 = vld [vmem:[%s375 + $0xc0] sm:$0xff]
                %402 = vst [vmem:[%s376 + $0x60] sm:$0xff] %v401
                %v403 = vld [vmem:[%s375 + $0xc8] sm:$0xff]
                %404 = vst [vmem:[%s376 + $0x68] sm:$0xff] %v403
                %v405 = vld [vmem:[%s375 + $0xd0] sm:$0xff]
                %406 = vst [vmem:[%s376 + $0x70] sm:$0xff] %v405
                %v407 = vld [vmem:[%s375 + $0xd8] sm:$0xff]
                %408 = vst [vmem:[%s376 + $0x78] sm:$0xff] %v407
              $region73: #{_lambda_.3} parent=67 // loop_footer
                %s374 = sadd.s32 1, %s370
              $region74: #{_lambda_.3} parent=67 // loop_footer_branch
                %369 = sbr.rel target = $region70
              $region75: #{_lambda_.3} parent=67 // loop_exit
                _
            $region68: #{_lambda_.3} parent=63 // pred_fallthru
              _
            // Predicated region
            $region76: #{_lambda_.3} parent=63 // pred_check
              _
            $region77: #{_lambda_.3} parent=63 // pred_check_branch
              %410 = sbr.rel target = $region79
            $region78: #{_lambda_.3} parent=63 // pred_region
              _
            $region79: #{_lambda_.3} parent=63 // pred_fallthru
              _
          $region64: #{_lambda_.3} parent=59 // pred_fallthru
            _
          %411 = vnop
        $region60: #{_lambda_.3} parent=55 // pred_fallthru
          _
        // Predicated region
        $region80: #{_lambda_.3} parent=55 // pred_check
          %p412 = pneg %p64
        $region81: #{_lambda_.3} parent=55 // pred_check_branch
          %414 = sbr.rel (%p412) target = $region83
        $region82: #{_lambda_.3} parent=55 // pred_region
          %p415 = scmp.lt.s32.totalorder %s18, 1
          %s416 = scalar_select %p415, %s18, 1
          %s417 = smul.addr %s416, 8
          %s418 = scalar_lea.vmem %s1, %s417
        $region83: #{_lambda_.3} parent=55 // pred_fallthru
          _
      $region56: #{_lambda_.3} parent=5 // pred_fallthru
        _
      %p419 = scmp.le.s32.totalorder 1, %s18
      %p420 = scmp.lt.s32.totalorder %s18, 3
      %p421 = pnand %p419, %p420
      %p422 = pneg %p421
      // Predicated region
      $region84: #{_lambda_.3} parent=5 // pred_check
        _
      $region85: #{_lambda_.3} parent=5 // pred_check_branch
        %424 = sbr.rel (%p421) target = $region87
      $region86: #{_lambda_.3} parent=5 // pred_region
        %s425 = ssub.s32 %s18, 1
        %s426 = sand.u32 %s31, 1
        %s427 = sand.u32 %s31, 1
        %s428 = smul.addr %s427, 128
        %s429 = scalar_lea.vmem [#allocation2], %s428
        // Predicated region
        $region88: #{_lambda_.3} parent=86 // pred_check
          %p430 = pneg %p44
        $region89: #{_lambda_.3} parent=86 // pred_check_branch
          %432 = sbr.rel (%p430) target = $region91
        $region90: #{_lambda_.3} parent=86 // pred_region
          _
        $region91: #{_lambda_.3} parent=86 // pred_fallthru
          _
        %s433 = sand.u32 %s31, 1
        %s434 = sand.u32 %s31, 1
        %s435 = smul.addr %s434, 128
        %s436 = scalar_lea.vmem [#allocation2], %s435
        %p437 = pneg %p44
        %p438 = pneg %p41
        %p439 = scmp.lt.s32.totalorder %s23, 1
        %s440 = scalar_select %p439, %s23, 1
        %s441 = smul.addr %s440, 8
        %s442 = scalar_lea.vmem %s1, %s441
        %p443 = pneg %p70
        %p444 = pneg %p67
        %p445 = pneg %p91
        %p446 = pneg %p88
        %p447 = pneg %p112
        %p448 = pneg %p109
        %p449 = pneg %p133
        %p450 = pneg %p130
        %p451 = pneg %p154
        %p452 = pneg %p151
        %p453 = pneg %p175
        %p454 = pneg %p172
        %p455 = pneg %p196
        %p456 = pneg %p193
        %p457 = pneg %p217
        %p458 = pneg %p214
        %p459 = pneg %p238
        %p460 = pneg %p235
        %p461 = pneg %p259
        %p462 = pneg %p256
        %p463 = pneg %p280
        %p464 = pneg %p277
        %p465 = pneg %p306
        %p466 = pneg %p303
        %p467 = scmp.lt.s32.totalorder %s23, 1
        %s468 = scalar_select %p467, %s23, 1
        %s469 = smul.addr %s468, 8
        %s470 = scalar_lea.vmem %s12, %s469
        %p471 = scmp.lt.s32.totalorder %s23, 1
        %s472 = scalar_select %p471, %s23, 1
        %s473 = smul.addr %s472, 8
        %s474 = scalar_lea.vmem %s1, %s473
        %p475 = scmp.lt.s32.totalorder %s23, 1
        %s476 = scalar_select %p475, %s23, 1
        %s477 = smul.addr %s476, 8
        %s478 = scalar_lea.vmem %s12, %s477
        %v480 = vld [vmem:[%s11] sm:$0xff]
        %v481 = vld [vmem:[%s11 + $0x8] sm:$0xff]
        %v482 = vld [vmem:[%s11 + $0x10] sm:$0xff]
        %v483 = vld [vmem:[%s11 + $0x18] sm:$0xff]
        %v484 = vld [vmem:[%s11 + $0x20] sm:$0xff]
        %v485 = vld [vmem:[%s11 + $0x28] sm:$0xff]
        %v486 = vld [vmem:[%s11 + $0x30] sm:$0xff]
        %v487 = vld [vmem:[%s429] sm:$0xff]
        %v488 = vld [vmem:[%s429 + $0x8] sm:$0xff]
        %v489 = vld [vmem:[%s429 + $0x10] sm:$0xff]
        %v490 = vld [vmem:[%s429 + $0x18] sm:$0xff]
        %v491 = vld [vmem:[%s429 + $0x20] sm:$0xff]
        %v492 = vld [vmem:[%s429 + $0x28] sm:$0xff]
        %v493 = vld [vmem:[%s429 + $0x30] sm:$0xff]
        %v494 = vld [vmem:[%s429 + $0x38] sm:$0xff]
        %v495 = vld [vmem:[%s429 + $0x40] sm:$0xff]
        %v496 = vld [vmem:[%s429 + $0x48] sm:$0xff]
        %v497 = vld [vmem:[%s429 + $0x50] sm:$0xff]
        %v498 = vld [vmem:[%s429 + $0x58] sm:$0xff]
        %v499 = vld [vmem:[%s429 + $0x60] sm:$0xff]
        %v500 = vld [vmem:[%s429 + $0x68] sm:$0xff]
        %v501 = vld [vmem:[%s429 + $0x70] sm:$0xff]
        %v502 = vld [vmem:[%s429 + $0x78] sm:$0xff]
        %v503 = vadd.f32 %v487, %v491
        %v504 = vadd.f32 %v503, %v495
        %v505 = vadd.f32 %v504, %v499
        %v506 = vadd.f32 %v488, %v492
        %v507 = vadd.f32 %v506, %v496
        %v508 = vadd.f32 %v507, %v500
        %v509 = vadd.f32 %v489, %v493
        %v510 = vadd.f32 %v509, %v497
        %v511 = vadd.f32 %v510, %v501
        %v512 = vadd.f32 %v490, %v494
        %v513 = vadd.f32 %v512, %v498
        %v514 = vadd.f32 %v513, %v502
        %v515 = vrcp.pop 4.0
        %v516 = vmul.f32 %v505, %v515
        %v517 = vmul.f32 %v508, %v515
        %v518 = vmul.f32 %v511, %v515
        %v519 = vmul.f32 %v514, %v515
        %v520 = vsub.f32 %v487, %v516
        %v521 = vsub.f32 %v488, %v517
        %v522 = vsub.f32 %v489, %v518
        %v523 = vsub.f32 %v490, %v519
        %v524 = vsub.f32 %v491, %v516
        %v525 = vsub.f32 %v492, %v517
        %v526 = vsub.f32 %v493, %v518
        %v527 = vsub.f32 %v494, %v519
        %v528 = vsub.f32 %v495, %v516
        %v529 = vsub.f32 %v496, %v517
        %v530 = vsub.f32 %v497, %v518
        %v531 = vsub.f32 %v498, %v519
        %v532 = vsub.f32 %v499, %v516
        %v533 = vsub.f32 %v500, %v517
        %v534 = vsub.f32 %v501, %v518
        %v535 = vsub.f32 %v502, %v519
        %v536 = vmul.f32 %v520, %v520
        %v537 = vmul.f32 %v521, %v521
        %v538 = vmul.f32 %v522, %v522
        %v539 = vmul.f32 %v523, %v523
        %v540 = vmul.f32 %v524, %v524
        %v541 = vmul.f32 %v525, %v525
        %v542 = vmul.f32 %v526, %v526
        %v543 = vmul.f32 %v527, %v527
        %v544 = vmul.f32 %v528, %v528
        %v545 = vmul.f32 %v529, %v529
        %v546 = vmul.f32 %v530, %v530
        %v547 = vmul.f32 %v531, %v531
        %v548 = vmul.f32 %v532, %v532
        %v549 = vmul.f32 %v533, %v533
        %v550 = vmul.f32 %v534, %v534
        %v551 = vmul.f32 %v535, %v535
        %v552 = vadd.f32 %v536, %v540
        %v553 = vadd.f32 %v552, %v544
        %v554 = vadd.f32 %v553, %v548
        %v555 = vadd.f32 %v537, %v541
        %v556 = vadd.f32 %v555, %v545
        %v557 = vadd.f32 %v556, %v549
        %v558 = vadd.f32 %v538, %v542
        %v559 = vadd.f32 %v558, %v546
        %v560 = vadd.f32 %v559, %v550
        %v561 = vadd.f32 %v539, %v543
        %v562 = vadd.f32 %v561, %v547
        %v563 = vadd.f32 %v562, %v551
        %v564 = vrcp.pop 3.0
        %v565 = vmul.f32 %v554, %v564
        %v566 = vmul.f32 %v557, %v564
        %v567 = vmul.f32 %v560, %v564
        %v568 = vmul.f32 %v563, %v564
        %v569 = vrsqrt.pop %v565
        %v570 = vmul.f32 %v565, %v569
        %vm571 = vcmp.eq.f32.partialorder %v565, inf
        %v572 = vsel %vm571, %v565, %v570
        %vm573 = vcmp.eq.f32.partialorder %v565, 0.0
        %v574 = vand.u32 %v565, 2147483648
        %v575 = vsel %vm573, %v574, %v572
        %v576 = vrsqrt.pop %v566
        %v577 = vmul.f32 %v566, %v576
        %vm578 = vcmp.eq.f32.partialorder %v566, inf
        %v579 = vsel %vm578, %v566, %v577
        %vm580 = vcmp.eq.f32.partialorder %v566, 0.0
        %v581 = vand.u32 %v566, 2147483648
        %v582 = vsel %vm580, %v581, %v579
        %v583 = vrsqrt.pop %v567
        %v584 = vmul.f32 %v567, %v583
        %vm585 = vcmp.eq.f32.partialorder %v567, inf
        %v586 = vsel %vm585, %v567, %v584
        %vm587 = vcmp.eq.f32.partialorder %v567, 0.0
        %v588 = vand.u32 %v567, 2147483648
        %v589 = vsel %vm587, %v588, %v586
        %v590 = vrsqrt.pop %v568
        %v591 = vmul.f32 %v568, %v590
        %vm592 = vcmp.eq.f32.partialorder %v568, inf
        %v593 = vsel %vm592, %v568, %v591
        %vm594 = vcmp.eq.f32.partialorder %v568, 0.0
        %v595 = vand.u32 %v568, 2147483648
        %v596 = vsel %vm594, %v595, %v593
        %v597 = vpack.c.bf16 %v516, %v516
        %v598 = vpack.c.bf16 %v517, %v517
        %v599 = vpack.c.bf16 %v518, %v518
        %v600 = vpack.c.bf16 %v519, %v519
        %v601 = vpack.c.bf16 %v575, %v575
        %v602 = vpack.c.bf16 %v582, %v582
        %v603 = vpack.c.bf16 %v589, %v589
        %v604 = vpack.c.bf16 %v596, %v596
        %v605 = vld [vmem:[%s3] sm:$0xf]
        %v606 = vld [vmem:[%s3 + $0x4] sm:$0xf]
        %v607 = vld [vmem:[%s3 + $0x8] sm:$0xf]
        %v608 = vld [vmem:[%s3 + $0xc] sm:$0xf]
        %v609 = vld [vmem:[%s3 + $0x10] sm:$0xf]
        %v610 = vld [vmem:[%s3 + $0x14] sm:$0xf]
        %v611 = vld [vmem:[%s3 + $0x18] sm:$0xf]
        %v612 = vld [vmem:[%s3 + $0x1c] sm:$0xf]
        %v613 = vld [vmem:[%s3 + $0x20] sm:$0xf]
        %v614 = vld [vmem:[%s3 + $0x24] sm:$0xf]
        %v615 = vld [vmem:[%s3 + $0x28] sm:$0xf]
        %v616 = vld [vmem:[%s3 + $0x2c] sm:$0xf]
        %v617 = vld [vmem:[%s3 + $0x30] sm:$0xf]
        %v618 = vld [vmem:[%s3 + $0x34] sm:$0xf]
        %v619 = vld [vmem:[%s3 + $0x38] sm:$0xf]
        %v620 = vld [vmem:[%s3 + $0x3c] sm:$0xf]
        %v621 = vld [vmem:[%s3 + $0x40] sm:$0xf]
        %v622 = vld [vmem:[%s3 + $0x44] sm:$0xf]
        %v623 = vld [vmem:[%s3 + $0x48] sm:$0xf]
        %v624 = vld [vmem:[%s3 + $0x4c] sm:$0xf]
        %v625 = vld [vmem:[%s3 + $0x50] sm:$0xf]
        %v626 = vld [vmem:[%s3 + $0x54] sm:$0xf]
        %v627 = vld [vmem:[%s3 + $0x58] sm:$0xf]
        %v628 = vld [vmem:[%s3 + $0x5c] sm:$0xf]
        %v629 = vld [vmem:[%s3 + $0x60] sm:$0xf]
        %v630 = vld [vmem:[%s3 + $0x64] sm:$0xf]
        %v631 = vld [vmem:[%s3 + $0x68] sm:$0xf]
        %v632 = vld [vmem:[%s3 + $0x6c] sm:$0xf]
        %v633 = vld [vmem:[%s3 + $0x70] sm:$0xf]
        %v634 = vld [vmem:[%s3 + $0x74] sm:$0xf]
        %v635 = vld [vmem:[%s3 + $0x78] sm:$0xf]
        %v636 = vld [vmem:[%s3 + $0x7c] sm:$0xf]
        %v637 = vld [vmem:[%s3 + $0x80] sm:$0xf]
        %v638 = vld [vmem:[%s3 + $0x84] sm:$0xf]
        %v639 = vld [vmem:[%s3 + $0x88] sm:$0xf]
        %v640 = vld [vmem:[%s3 + $0x8c] sm:$0xf]
        %v641 = vld [vmem:[%s3 + $0x90] sm:$0xf]
        %v642 = vld [vmem:[%s3 + $0x94] sm:$0xf]
        %v643 = vld [vmem:[%s3 + $0x98] sm:$0xf]
        %v644 = vld [vmem:[%s3 + $0x9c] sm:$0xf]
        %v645 = vld [vmem:[%s3 + $0xa0] sm:$0xf]
        %v646 = vld [vmem:[%s3 + $0xa4] sm:$0xf]
        %v647 = vld [vmem:[%s3 + $0xa8] sm:$0xf]
        %v648 = vld [vmem:[%s3 + $0xac] sm:$0xf]
        %v649 = vld [vmem:[%s3 + $0xb0] sm:$0xf]
        %v650 = vld [vmem:[%s3 + $0xb4] sm:$0xf]
        %v651 = vld [vmem:[%s3 + $0xb8] sm:$0xf]
        %v652 = vld [vmem:[%s3 + $0xbc] sm:$0xf]
        %v653 = vld [vmem:[%s3 + $0xc0] sm:$0xf]
        %v654 = vld [vmem:[%s3 + $0xc4] sm:$0xf]
        %v655 = vld [vmem:[%s3 + $0xc8] sm:$0xf]
        %v656 = vld [vmem:[%s3 + $0xcc] sm:$0xf]
        %v657 = vld [vmem:[%s3 + $0xd0] sm:$0xf]
        %v658 = vld [vmem:[%s3 + $0xd4] sm:$0xf]
        %v659 = vld [vmem:[%s3 + $0xd8] sm:$0xf]
        %v660 = vld [vmem:[%s3 + $0xdc] sm:$0xf]
        %v661 = vld [vmem:[%s3 + $0xe0] sm:$0xf]
        %v662 = vld [vmem:[%s3 + $0xe4] sm:$0xf]
        %v663 = vld [vmem:[%s3 + $0xe8] sm:$0xf]
        %v664 = vld [vmem:[%s3 + $0xec] sm:$0xf]
        %v665 = vld [vmem:[%s3 + $0xf0] sm:$0xf]
        %v666 = vld [vmem:[%s3 + $0xf4] sm:$0xf]
        %v667 = vld [vmem:[%s3 + $0xf8] sm:$0xf]
        %v668 = vld [vmem:[%s3 + $0xfc] sm:$0xf]
        %v669 = vld [vmem:[%s3 + $0x100] sm:$0xf]
        %v670 = vld [vmem:[%s3 + $0x104] sm:$0xf]
        %v671 = vld [vmem:[%s3 + $0x108] sm:$0xf]
        %v672 = vld [vmem:[%s3 + $0x10c] sm:$0xf]
        %v673 = vld [vmem:[%s3 + $0x110] sm:$0xf]
        %v674 = vld [vmem:[%s3 + $0x114] sm:$0xf]
        %v675 = vld [vmem:[%s3 + $0x118] sm:$0xf]
        %v676 = vld [vmem:[%s3 + $0x11c] sm:$0xf]
        %v677 = vld [vmem:[%s3 + $0x120] sm:$0xf]
        %v678 = vld [vmem:[%s3 + $0x124] sm:$0xf]
        %v679 = vld [vmem:[%s3 + $0x128] sm:$0xf]
        %v680 = vld [vmem:[%s3 + $0x12c] sm:$0xf]
        %v681 = vld [vmem:[%s3 + $0x130] sm:$0xf]
        %v682 = vld [vmem:[%s3 + $0x134] sm:$0xf]
        %v683 = vld [vmem:[%s3 + $0x138] sm:$0xf]
        %v684 = vld [vmem:[%s3 + $0x13c] sm:$0xf]
        %v685 = vld [vmem:[%s3 + $0x140] sm:$0xf]
        %v686 = vld [vmem:[%s3 + $0x144] sm:$0xf]
        %v687 = vld [vmem:[%s3 + $0x148] sm:$0xf]
        %v688 = vld [vmem:[%s3 + $0x14c] sm:$0xf]
        %v689 = vld [vmem:[%s3 + $0x150] sm:$0xf]
        %v690 = vld [vmem:[%s3 + $0x154] sm:$0xf]
        %v691 = vld [vmem:[%s3 + $0x158] sm:$0xf]
        %v692 = vld [vmem:[%s3 + $0x15c] sm:$0xf]
        %v693 = vld [vmem:[%s3 + $0x160] sm:$0xf]
        %v694 = vld [vmem:[%s3 + $0x164] sm:$0xf]
        %v695 = vld [vmem:[%s3 + $0x168] sm:$0xf]
        %v696 = vld [vmem:[%s3 + $0x16c] sm:$0xf]
        %v697 = vld [vmem:[%s3 + $0x170] sm:$0xf]
        %v698 = vld [vmem:[%s3 + $0x174] sm:$0xf]
        %v699 = vld [vmem:[%s3 + $0x178] sm:$0xf]
        %v700 = vld [vmem:[%s3 + $0x17c] sm:$0xf]
        %v701 = vld [vmem:[%s3 + $0x180] sm:$0xf]
        %v702 = vld [vmem:[%s3 + $0x184] sm:$0xf]
        %v703 = vld [vmem:[%s3 + $0x188] sm:$0xf]
        %v704 = vld [vmem:[%s3 + $0x18c] sm:$0xf]
        %v705 = vld [vmem:[%s3 + $0x190] sm:$0xf]
        %v706 = vld [vmem:[%s3 + $0x194] sm:$0xf]
        %v707 = vld [vmem:[%s3 + $0x198] sm:$0xf]
        %v708 = vld [vmem:[%s3 + $0x19c] sm:$0xf]
        %v709 = vld [vmem:[%s3 + $0x1a0] sm:$0xf]
        %v710 = vld [vmem:[%s3 + $0x1a4] sm:$0xf]
        %v711 = vld [vmem:[%s3 + $0x1a8] sm:$0xf]
        %v712 = vld [vmem:[%s3 + $0x1ac] sm:$0xf]
        %v713 = vld [vmem:[%s3 + $0x1b0] sm:$0xf]
        %v714 = vld [vmem:[%s3 + $0x1b4] sm:$0xf]
        %v715 = vld [vmem:[%s3 + $0x1b8] sm:$0xf]
        %v716 = vld [vmem:[%s3 + $0x1bc] sm:$0xf]
        %v717 = vld [vmem:[%s3 + $0x1c0] sm:$0xf]
        %v718 = vld [vmem:[%s3 + $0x1c4] sm:$0xf]
        %v719 = vld [vmem:[%s3 + $0x1c8] sm:$0xf]
        %v720 = vld [vmem:[%s3 + $0x1cc] sm:$0xf]
        %v721 = vld [vmem:[%s3 + $0x1d0] sm:$0xf]
        %v722 = vld [vmem:[%s3 + $0x1d4] sm:$0xf]
        %v723 = vld [vmem:[%s3 + $0x1d8] sm:$0xf]
        %v724 = vld [vmem:[%s3 + $0x1dc] sm:$0xf]
        %v725 = vld [vmem:[%s3 + $0x1e0] sm:$0xf]
        %v726 = vld [vmem:[%s3 + $0x1e4] sm:$0xf]
        %v727 = vld [vmem:[%s3 + $0x1e8] sm:$0xf]
        %v728 = vld [vmem:[%s3 + $0x1ec] sm:$0xf]
        %v729 = vld [vmem:[%s3 + $0x1f0] sm:$0xf]
        %v730 = vld [vmem:[%s3 + $0x1f4] sm:$0xf]
        %v731 = vld [vmem:[%s3 + $0x1f8] sm:$0xf]
        %v732 = vld [vmem:[%s3 + $0x1fc] sm:$0xf]
        %v733 = vlaneseq
        %v734 = vshrl.u32 %v733, 7
        %v735 = vsub.s32 0, %v734
        %v736 = vrot.slane %v480, %v735
        %v865 = vunpack.c.l.b16 %v605
        %v866 = vunpack.c.l.b16 %v606
        %v867 = vunpack.c.l.b16 %v607
        %v868 = vunpack.c.l.b16 %v608
        %v869 = vunpack.c.l.b16 %v609
        %v870 = vunpack.c.l.b16 %v610
        %v871 = vunpack.c.l.b16 %v611
        %v872 = vunpack.c.l.b16 %v612
        %v873 = vunpack.c.l.b16 %v613
        %v874 = vunpack.c.l.b16 %v614
        %v875 = vunpack.c.l.b16 %v615
        %v876 = vunpack.c.l.b16 %v616
        %v877 = vunpack.c.l.b16 %v617
        %v878 = vunpack.c.l.b16 %v618
        %v879 = vunpack.c.l.b16 %v619
        %v880 = vunpack.c.l.b16 %v620
        %v881 = vunpack.c.l.b16 %v621
        %v882 = vunpack.c.l.b16 %v622
        %v883 = vunpack.c.l.b16 %v623
        %v884 = vunpack.c.l.b16 %v624
        %v885 = vunpack.c.l.b16 %v625
        %v886 = vunpack.c.l.b16 %v626
        %v887 = vunpack.c.l.b16 %v627
        %v888 = vunpack.c.l.b16 %v628
        %v889 = vunpack.c.l.b16 %v629
        %v890 = vunpack.c.l.b16 %v630
        %v891 = vunpack.c.l.b16 %v631
        %v892 = vunpack.c.l.b16 %v632
        %v893 = vunpack.c.l.b16 %v633
        %v894 = vunpack.c.l.b16 %v634
        %v895 = vunpack.c.l.b16 %v635
        %v896 = vunpack.c.l.b16 %v636
        %v897 = vunpack.c.l.b16 %v637
        %v898 = vunpack.c.l.b16 %v638
        %v899 = vunpack.c.l.b16 %v639
        %v900 = vunpack.c.l.b16 %v640
        %v901 = vunpack.c.l.b16 %v641
        %v902 = vunpack.c.l.b16 %v642
        %v903 = vunpack.c.l.b16 %v643
        %v904 = vunpack.c.l.b16 %v644
        %v905 = vunpack.c.l.b16 %v645
        %v906 = vunpack.c.l.b16 %v646
        %v907 = vunpack.c.l.b16 %v647
        %v908 = vunpack.c.l.b16 %v648
        %v909 = vunpack.c.l.b16 %v649
        %v910 = vunpack.c.l.b16 %v650
        %v911 = vunpack.c.l.b16 %v651
        %v912 = vunpack.c.l.b16 %v652
        %v913 = vunpack.c.l.b16 %v653
        %v914 = vunpack.c.l.b16 %v654
        %v915 = vunpack.c.l.b16 %v655
        %v916 = vunpack.c.l.b16 %v656
        %v917 = vunpack.c.l.b16 %v657
        %v918 = vunpack.c.l.b16 %v658
        %v919 = vunpack.c.l.b16 %v659
        %v920 = vunpack.c.l.b16 %v660
        %v921 = vunpack.c.l.b16 %v661
        %v922 = vunpack.c.l.b16 %v662
        %v923 = vunpack.c.l.b16 %v663
        %v924 = vunpack.c.l.b16 %v664
        %v925 = vunpack.c.l.b16 %v665
        %v926 = vunpack.c.l.b16 %v666
        %v927 = vunpack.c.l.b16 %v667
        %v928 = vunpack.c.l.b16 %v668
        %v929 = vunpack.c.l.b16 %v669
        %v930 = vunpack.c.l.b16 %v670
        %v931 = vunpack.c.l.b16 %v671
        %v932 = vunpack.c.l.b16 %v672
        %v933 = vunpack.c.l.b16 %v673
        %v934 = vunpack.c.l.b16 %v674
        %v935 = vunpack.c.l.b16 %v675
        %v936 = vunpack.c.l.b16 %v676
        %v937 = vunpack.c.l.b16 %v677
        %v938 = vunpack.c.l.b16 %v678
        %v939 = vunpack.c.l.b16 %v679
        %v940 = vunpack.c.l.b16 %v680
        %v941 = vunpack.c.l.b16 %v681
        %v942 = vunpack.c.l.b16 %v682
        %v943 = vunpack.c.l.b16 %v683
        %v944 = vunpack.c.l.b16 %v684
        %v945 = vunpack.c.l.b16 %v685
        %v946 = vunpack.c.l.b16 %v686
        %v947 = vunpack.c.l.b16 %v687
        %v948 = vunpack.c.l.b16 %v688
        %v949 = vunpack.c.l.b16 %v689
        %v950 = vunpack.c.l.b16 %v690
        %v951 = vunpack.c.l.b16 %v691
        %v952 = vunpack.c.l.b16 %v692
        %v953 = vunpack.c.l.b16 %v693
        %v954 = vunpack.c.l.b16 %v694
        %v955 = vunpack.c.l.b16 %v695
        %v956 = vunpack.c.l.b16 %v696
        %v957 = vunpack.c.l.b16 %v697
        %v958 = vunpack.c.l.b16 %v698
        %v959 = vunpack.c.l.b16 %v699
        %v960 = vunpack.c.l.b16 %v700
        %v961 = vunpack.c.l.b16 %v701
        %v962 = vunpack.c.l.b16 %v702
        %v963 = vunpack.c.l.b16 %v703
        %v964 = vunpack.c.l.b16 %v704
        %v965 = vunpack.c.l.b16 %v705
        %v966 = vunpack.c.l.b16 %v706
        %v967 = vunpack.c.l.b16 %v707
        %v968 = vunpack.c.l.b16 %v708
        %v969 = vunpack.c.l.b16 %v709
        %v970 = vunpack.c.l.b16 %v710
        %v971 = vunpack.c.l.b16 %v711
        %v972 = vunpack.c.l.b16 %v712
        %v973 = vunpack.c.l.b16 %v713
        %v974 = vunpack.c.l.b16 %v714
        %v975 = vunpack.c.l.b16 %v715
        %v976 = vunpack.c.l.b16 %v716
        %v977 = vunpack.c.l.b16 %v717
        %v978 = vunpack.c.l.b16 %v718
        %v979 = vunpack.c.l.b16 %v719
        %v980 = vunpack.c.l.b16 %v720
        %v981 = vunpack.c.l.b16 %v721
        %v982 = vunpack.c.l.b16 %v722
        %v983 = vunpack.c.l.b16 %v723
        %v984 = vunpack.c.l.b16 %v724
        %v985 = vunpack.c.l.b16 %v725
        %v986 = vunpack.c.l.b16 %v726
        %v987 = vunpack.c.l.b16 %v727
        %v988 = vunpack.c.l.b16 %v728
        %v989 = vunpack.c.l.b16 %v729
        %v990 = vunpack.c.l.b16 %v730
        %v991 = vunpack.c.l.b16 %v731
        %v992 = vunpack.c.l.b16 %v732
        %v993 = vpack.c.b16 %v866, %v865
        %v994 = vpack.c.b16 %v868, %v867
        %v995 = vpack.c.b16 %v870, %v869
        %v996 = vpack.c.b16 %v872, %v871
        %v997 = vpack.c.b16 %v874, %v873
        %v998 = vpack.c.b16 %v876, %v875
        %v999 = vpack.c.b16 %v878, %v877
        %v1000 = vpack.c.b16 %v880, %v879
        %v1001 = vpack.c.b16 %v882, %v881
        %v1002 = vpack.c.b16 %v884, %v883
        %v1003 = vpack.c.b16 %v886, %v885
        %v1004 = vpack.c.b16 %v888, %v887
        %v1005 = vpack.c.b16 %v890, %v889
        %v1006 = vpack.c.b16 %v892, %v891
        %v1007 = vpack.c.b16 %v894, %v893
        %v1008 = vpack.c.b16 %v896, %v895
        %v1009 = vpack.c.b16 %v898, %v897
        %v1010 = vpack.c.b16 %v900, %v899
        %v1011 = vpack.c.b16 %v902, %v901
        %v1012 = vpack.c.b16 %v904, %v903
        %v1013 = vpack.c.b16 %v906, %v905
        %v1014 = vpack.c.b16 %v908, %v907
        %v1015 = vpack.c.b16 %v910, %v909
        %v1016 = vpack.c.b16 %v912, %v911
        %v1017 = vpack.c.b16 %v914, %v913
        %v1018 = vpack.c.b16 %v916, %v915
        %v1019 = vpack.c.b16 %v918, %v917
        %v1020 = vpack.c.b16 %v920, %v919
        %v1021 = vpack.c.b16 %v922, %v921
        %v1022 = vpack.c.b16 %v924, %v923
        %v1023 = vpack.c.b16 %v926, %v925
        %v1024 = vpack.c.b16 %v928, %v927
        %v1025 = vpack.c.b16 %v930, %v929
        %v1026 = vpack.c.b16 %v932, %v931
        %v1027 = vpack.c.b16 %v934, %v933
        %v1028 = vpack.c.b16 %v936, %v935
        %v1029 = vpack.c.b16 %v938, %v937
        %v1030 = vpack.c.b16 %v940, %v939
        %v1031 = vpack.c.b16 %v942, %v941
        %v1032 = vpack.c.b16 %v944, %v943
        %v1033 = vpack.c.b16 %v946, %v945
        %v1034 = vpack.c.b16 %v948, %v947
        %v1035 = vpack.c.b16 %v950, %v949
        %v1036 = vpack.c.b16 %v952, %v951
        %v1037 = vpack.c.b16 %v954, %v953
        %v1038 = vpack.c.b16 %v956, %v955
        %v1039 = vpack.c.b16 %v958, %v957
        %v1040 = vpack.c.b16 %v960, %v959
        %v1041 = vpack.c.b16 %v962, %v961
        %v1042 = vpack.c.b16 %v964, %v963
        %v1043 = vpack.c.b16 %v966, %v965
        %v1044 = vpack.c.b16 %v968, %v967
        %v1045 = vpack.c.b16 %v970, %v969
        %v1046 = vpack.c.b16 %v972, %v971
        %v1047 = vpack.c.b16 %v974, %v973
        %v1048 = vpack.c.b16 %v976, %v975
        %v1049 = vpack.c.b16 %v978, %v977
        %v1050 = vpack.c.b16 %v980, %v979
        %v1051 = vpack.c.b16 %v982, %v981
        %v1052 = vpack.c.b16 %v984, %v983
        %v1053 = vpack.c.b16 %v986, %v985
        %v1054 = vpack.c.b16 %v988, %v987
        %v1055 = vpack.c.b16 %v990, %v989
        %v1056 = vpack.c.b16 %v992, %v991
        %1121 = vmatprep.subr.bf16.mxu0 0
        %1122 = vmatpush1.bf16.msra.mxu0 %v993
        %1123 = vmatprep.subr.bf16.mxu0 0
        %1124 = vmatpush1.bf16.msra.mxu0 %v994
        %1125 = vmatprep.subr.bf16.mxu0 0
        %1126 = vmatpush1.bf16.msra.mxu0 %v995
        %1127 = vmatprep.subr.bf16.mxu0 0
        %1128 = vmatpush1.bf16.msra.mxu0 %v996
        %1129 = vmatprep.subr.bf16.mxu0 0
        %1130 = vmatpush1.bf16.msra.mxu0 %v997
        %1131 = vmatprep.subr.bf16.mxu0 0
        %1132 = vmatpush1.bf16.msra.mxu0 %v998
        %1133 = vmatprep.subr.bf16.mxu0 0
        %1134 = vmatpush1.bf16.msra.mxu0 %v999
        %1135 = vmatprep.subr.bf16.mxu0 0
        %1136 = vmatpush1.bf16.msra.mxu0 %v1000
        %1137 = vmatprep.subr.bf16.mxu0 0
        %1138 = vmatpush1.bf16.msra.mxu0 %v1001
        %1139 = vmatprep.subr.bf16.mxu0 0
        %1140 = vmatpush1.bf16.msra.mxu0 %v1002
        %1141 = vmatprep.subr.bf16.mxu0 0
        %1142 = vmatpush1.bf16.msra.mxu0 %v1003
        %1143 = vmatprep.subr.bf16.mxu0 0
        %1144 = vmatpush1.bf16.msra.mxu0 %v1004
        %1145 = vmatprep.subr.bf16.mxu0 0
        %1146 = vmatpush1.bf16.msra.mxu0 %v1005
        %1147 = vmatprep.subr.bf16.mxu0 0
        %1148 = vmatpush1.bf16.msra.mxu0 %v1006
        %1149 = vmatprep.subr.bf16.mxu0 0
        %1150 = vmatpush1.bf16.msra.mxu0 %v1007
        %1151 = vmatprep.subr.bf16.mxu0 0
        %1152 = vmatpush1.bf16.msra.mxu0 %v1008
        %1153 = vmatprep.mubr.bf16.mxu0 %v598
        %1154 = vmatmul.mubr.bf16.gmra.mrb[0].mxu0 %v597
        %v1155 = vpop.f32.mrb[0].mxu0
        %v1156 = vadd.f32 %v736, %v1155
        %v1157 = vpop.f32.mrb[0].mxu0
        %v1158 = vpop.f32.mrb[0].mxu0
        %v1159 = vpop.f32.mrb[0].mxu0
        %1160 = vdwg.mxu0
        %1161 = vmatprep.subr.bf16.mxu0 0
        %1162 = vmatpush1.bf16.msra.mxu0 %v1009
        %1163 = vmatprep.subr.bf16.mxu0 0
        %1164 = vmatpush1.bf16.msra.mxu0 %v1010
        %1165 = vmatprep.subr.bf16.mxu0 0
        %1166 = vmatpush1.bf16.msra.mxu0 %v1011
        %1167 = vmatprep.subr.bf16.mxu0 0
        %1168 = vmatpush1.bf16.msra.mxu0 %v1012
        %1169 = vmatprep.subr.bf16.mxu0 0
        %1170 = vmatpush1.bf16.msra.mxu0 %v1013
        %1171 = vmatprep.subr.bf16.mxu0 0
        %1172 = vmatpush1.bf16.msra.mxu0 %v1014
        %1173 = vmatprep.subr.bf16.mxu0 0
        %1174 = vmatpush1.bf16.msra.mxu0 %v1015
        %1175 = vmatprep.subr.bf16.mxu0 0
        %1176 = vmatpush1.bf16.msra.mxu0 %v1016
        %1177 = vmatprep.subr.bf16.mxu0 0
        %1178 = vmatpush1.bf16.msra.mxu0 %v1017
        %1179 = vmatprep.subr.bf16.mxu0 0
        %1180 = vmatpush1.bf16.msra.mxu0 %v1018
        %1181 = vmatprep.subr.bf16.mxu0 0
        %1182 = vmatpush1.bf16.msra.mxu0 %v1019
        %1183 = vmatprep.subr.bf16.mxu0 0
        %1184 = vmatpush1.bf16.msra.mxu0 %v1020
        %1185 = vmatprep.subr.bf16.mxu0 0
        %1186 = vmatpush1.bf16.msra.mxu0 %v1021
        %1187 = vmatprep.subr.bf16.mxu0 0
        %1188 = vmatpush1.bf16.msra.mxu0 %v1022
        %1189 = vmatprep.subr.bf16.mxu0 0
        %1190 = vmatpush1.bf16.msra.mxu0 %v1023
        %1191 = vmatprep.subr.bf16.mxu0 0
        %1192 = vmatpush1.bf16.msra.mxu0 %v1024
        %1193 = vmatprep.mubr.bf16.mxu0 %v600
        %1194 = vmatmul.mubr.bf16.gmra.mrb[0].mxu0 %v599
        %v1195 = vpop.f32.mrb[0].mxu0
        %v1196 = vadd.f32 %v1156, %v1195
        %v1197 = vpop.f32.mrb[0].mxu0
        %v1198 = vpop.f32.mrb[0].mxu0
        %v1199 = vpop.f32.mrb[0].mxu0
        %1200 = vdwg.mxu0
        %1201 = vmatprep.subr.bf16.mxu0 0
        %1202 = vmatpush1.bf16.msra.mxu0 %v1025
        %1203 = vmatprep.subr.bf16.mxu0 0
        %1204 = vmatpush1.bf16.msra.mxu0 %v1026
        %1205 = vmatprep.subr.bf16.mxu0 0
        %1206 = vmatpush1.bf16.msra.mxu0 %v1027
        %1207 = vmatprep.subr.bf16.mxu0 0
        %1208 = vmatpush1.bf16.msra.mxu0 %v1028
        %1209 = vmatprep.subr.bf16.mxu0 0
        %1210 = vmatpush1.bf16.msra.mxu0 %v1029
        %1211 = vmatprep.subr.bf16.mxu0 0
        %1212 = vmatpush1.bf16.msra.mxu0 %v1030
        %1213 = vmatprep.subr.bf16.mxu0 0
        %1214 = vmatpush1.bf16.msra.mxu0 %v1031
        %1215 = vmatprep.subr.bf16.mxu0 0
        %1216 = vmatpush1.bf16.msra.mxu0 %v1032
        %1217 = vmatprep.subr.bf16.mxu0 0
        %1218 = vmatpush1.bf16.msra.mxu0 %v1033
        %1219 = vmatprep.subr.bf16.mxu0 0
        %1220 = vmatpush1.bf16.msra.mxu0 %v1034
        %1221 = vmatprep.subr.bf16.mxu0 0
        %1222 = vmatpush1.bf16.msra.mxu0 %v1035
        %1223 = vmatprep.subr.bf16.mxu0 0
        %1224 = vmatpush1.bf16.msra.mxu0 %v1036
        %1225 = vmatprep.subr.bf16.mxu0 0
        %1226 = vmatpush1.bf16.msra.mxu0 %v1037
        %1227 = vmatprep.subr.bf16.mxu0 0
        %1228 = vmatpush1.bf16.msra.mxu0 %v1038
        %1229 = vmatprep.subr.bf16.mxu0 0
        %1230 = vmatpush1.bf16.msra.mxu0 %v1039
        %1231 = vmatprep.subr.bf16.mxu0 0
        %1232 = vmatpush1.bf16.msra.mxu0 %v1040
        %1233 = vmatprep.mubr.bf16.mxu0 %v602
        %1234 = vmatmul.mubr.bf16.gmra.mrb[0].mxu0 %v601
        %v1235 = vpop.f32.mrb[0].mxu0
        %v1236 = vadd.f32 %v1196, %v1235
        %v1237 = vpop.f32.mrb[0].mxu0
        %v1238 = vpop.f32.mrb[0].mxu0
        %v1239 = vpop.f32.mrb[0].mxu0
        %1240 = vdwg.mxu0
        %1241 = vmatprep.subr.bf16.mxu0 0
        %1242 = vmatpush1.bf16.msra.mxu0 %v1041
        %1243 = vmatprep.subr.bf16.mxu0 0
        %1244 = vmatpush1.bf16.msra.mxu0 %v1042
        %1245 = vmatprep.subr.bf16.mxu0 0
        %1246 = vmatpush1.bf16.msra.mxu0 %v1043
        %1247 = vmatprep.subr.bf16.mxu0 0
        %1248 = vmatpush1.bf16.msra.mxu0 %v1044
        %1249 = vmatprep.subr.bf16.mxu0 0
        %1250 = vmatpush1.bf16.msra.mxu0 %v1045
        %1251 = vmatprep.subr.bf16.mxu0 0
        %1252 = vmatpush1.bf16.msra.mxu0 %v1046
        %1253 = vmatprep.subr.bf16.mxu0 0
        %1254 = vmatpush1.bf16.msra.mxu0 %v1047
        %1255 = vmatprep.subr.bf16.mxu0 0
        %1256 = vmatpush1.bf16.msra.mxu0 %v1048
        %1257 = vmatprep.subr.bf16.mxu0 0
        %1258 = vmatpush1.bf16.msra.mxu0 %v1049
        %1259 = vmatprep.subr.bf16.mxu0 0
        %1260 = vmatpush1.bf16.msra.mxu0 %v1050
        %1261 = vmatprep.subr.bf16.mxu0 0
        %1262 = vmatpush1.bf16.msra.mxu0 %v1051
        %1263 = vmatprep.subr.bf16.mxu0 0
        %1264 = vmatpush1.bf16.msra.mxu0 %v1052
        %1265 = vmatprep.subr.bf16.mxu0 0
        %1266 = vmatpush1.bf16.msra.mxu0 %v1053
        %1267 = vmatprep.subr.bf16.mxu0 0
        %1268 = vmatpush1.bf16.msra.mxu0 %v1054
        %1269 = vmatprep.subr.bf16.mxu0 0
        %1270 = vmatpush1.bf16.msra.mxu0 %v1055
        %1271 = vmatprep.subr.bf16.mxu0 0
        %1272 = vmatpush1.bf16.msra.mxu0 %v1056
        %1273 = vmatprep.mubr.bf16.mxu0 %v604
        %1274 = vmatmul.mubr.bf16.gmra.mrb[0].mxu0 %v603
        %v1275 = vpop.f32.mrb[0].mxu0
        %v1276 = vadd.f32 %v1236, %v1275
        %v1277 = vpop.f32.mrb[0].mxu0
        %v1278 = vpop.f32.mrb[0].mxu0
        %v1279 = vpop.f32.mrb[0].mxu0
        %1280 = vdwg.mxu0
        %vm1281 = vcmask 261120
        %v1282 = vsel %vm1281, %v1276, 0.0
        %1283 = vadd.xlane.f32.xlu0 %v1282
        %v1284 = vpop.xlane.xlu0 %1283
        %v1285 = vrcp.pop 32.0
        %v1286 = vmul.f32 %v1284, %v1285
        %v1287 = vsub.f32 %v1276, %v1286
        %v1288 = vmul.f32 %v1287, %v1287
        %v1289 = vsel %vm1281, %v1288, 0.0
        %1290 = vadd.xlane.f32.xlu0 %v1289
        %v1291 = vpop.xlane.xlu0 %1290
        %v1292 = vrcp.pop 31.0
        %v1293 = vmul.f32 %v1291, %v1292
        %v1294 = vlaneseq
        %v1295 = vshrl.u32 %v1294, 7
        %v1296 = vsub.s32 1, %v1295
        %v1297 = vrot.slane %v480, %v1296
        %v1298 = vmul.f32 %v1297, %v1287
        %v1299 = vrsqrt.pop %v1293
        %v1300 = vmul.f32 %v1293, %v1299
        %vm1301 = vcmp.eq.f32.partialorder %v1293, inf
        %v1302 = vsel %vm1301, %v1293, %v1300
        %vm1303 = vcmp.eq.f32.partialorder %v1293, 0.0
        %v1304 = vand.u32 %v1293, 2147483648
        %v1305 = vsel %vm1303, %v1304, %v1302
        %v1306 = vadd.f32 %v1305, 1e-06
        %v1307 = vrcp.pop %v1306
        %v1308 = vmul.f32 %v1298, %v1307
        %v1309 = vlaneseq
        %v1310 = vshrl.u32 %v1309, 7
        %v1311 = vsub.s32 2, %v1310
        %v1312 = vrot.slane %v480, %v1311
        %v1313 = vadd.f32 %v1308, %v1312
        %v1314 = vld [vmem:[%s2] sm:$0xff]
        %v1315 = vadd.f32 %v1313, %v1314
        %v1316 = vsel %vm1281, %v1315, 0.0
        %1317 = vadd.xlane.f32.xlu0 %v1316
        %v1318 = vpop.xlane.xlu0 %1317
        %v1319 = vmul.f32 %v1318, %v1285
        %v1320 = vsub.f32 %v1315, %v1319
        %v1321 = vmul.f32 %v1320, %v1320
        %v1322 = vsel %vm1281, %v1321, 0.0
        %1323 = vadd.xlane.f32.xlu0 %v1322
        %v1324 = vpop.xlane.xlu0 %1323
        %v1325 = vmul.f32 %v1324, %v1292
        %v1326 = vlaneseq
        %v1327 = vshrl.u32 %v1326, 7
        %v1328 = vsub.s32 3, %v1327
        %v1329 = vrot.slane %v480, %v1328
        %v1330 = vmul.f32 %v1329, %v1320
        %v1331 = vrsqrt.pop %v1325
        %v1332 = vmul.f32 %v1325, %v1331
        %vm1333 = vcmp.eq.f32.partialorder %v1325, inf
        %v1334 = vsel %vm1333, %v1325, %v1332
        %vm1335 = vcmp.eq.f32.partialorder %v1325, 0.0
        %v1336 = vand.u32 %v1325, 2147483648
        %v1337 = vsel %vm1335, %v1336, %v1334
        %v1338 = vadd.f32 %v1337, 1e-06
        %v1339 = vrcp.pop %v1338
        %v1340 = vmul.f32 %v1330, %v1339
        %v1341 = vlaneseq
        %v1342 = vshrl.u32 %v1341, 7
        %v1343 = vsub.s32 4, %v1342
        %v1344 = vrot.slane %v480, %v1343
        %v1345 = vadd.f32 %v1340, %v1344
        %1347 = vrot.lane.b32.xlu0 %v1345, 32
        %v1348 = vpop.permute.xlu0 %1347
        %1350 = vrot.lane.b32.xlu0 %v1345, 64
        %v1351 = vpop.permute.xlu0 %1350
        %1353 = vrot.lane.b32.xlu0 %v1345, 96
        %v1354 = vpop.permute.xlu0 %1353
        %v1356 = vsel %vm1281, %v1345, %v1348
        %vm1357 = vcmask 523264
        %v1358 = vsel %vm1357, %v1356, %v1351
        %vm1359 = vcmask 785408
        %v1360 = vsel %vm1359, %v1358, %v1354
        %v1361 = vld [vmem:[%s474] sm:$0xff]
        %v1362 = vld [vmem:[%s4] sm:$0xff]
        %v1363 = vld [vmem:[%s4 + $0x8] sm:$0xf]
        %v1364 = vld [vmem:[%s4 + $0xc] sm:$0xff]
        %v1365 = vld [vmem:[%s4 + $0x14] sm:$0xf]
        %v1366 = vld [vmem:[%s4 + $0x18] sm:$0xff]
        %v1367 = vld [vmem:[%s4 + $0x20] sm:$0xf]
        %v1368 = vld [vmem:[%s4 + $0x24] sm:$0xff]
        %v1369 = vld [vmem:[%s4 + $0x2c] sm:$0xf]
        %v1370 = vld [vmem:[%s4 + $0x30] sm:$0xff]
        %v1371 = vld [vmem:[%s4 + $0x38] sm:$0xf]
        %v1372 = vld [vmem:[%s4 + $0x3c] sm:$0xff]
        %v1373 = vld [vmem:[%s4 + $0x44] sm:$0xf]
        %v1374 = vld [vmem:[%s4 + $0x48] sm:$0xff]
        %v1375 = vld [vmem:[%s4 + $0x50] sm:$0xf]
        %v1376 = vld [vmem:[%s4 + $0x54] sm:$0xff]
        %v1377 = vld [vmem:[%s4 + $0x5c] sm:$0xf]
        %v1378 = vld [vmem:[%s4 + $0x60] sm:$0xff]
        %v1379 = vld [vmem:[%s4 + $0x68] sm:$0xf]
        %v1380 = vld [vmem:[%s4 + $0x6c] sm:$0xff]
        %v1381 = vld [vmem:[%s4 + $0x74] sm:$0xf]
        %v1382 = vld [vmem:[%s4 + $0x78] sm:$0xff]
        %v1383 = vld [vmem:[%s4 + $0x80] sm:$0xf]
        %v1384 = vld [vmem:[%s4 + $0x84] sm:$0xff]
        %v1385 = vld [vmem:[%s4 + $0x8c] sm:$0xf]
        %v1386 = vld [vmem:[%s4 + $0x90] sm:$0xff]
        %v1387 = vld [vmem:[%s4 + $0x98] sm:$0xf]
        %v1388 = vld [vmem:[%s4 + $0x9c] sm:$0xff]
        %v1389 = vld [vmem:[%s4 + $0xa4] sm:$0xf]
        %v1390 = vld [vmem:[%s4 + $0xa8] sm:$0xff]
        %v1391 = vld [vmem:[%s4 + $0xb0] sm:$0xf]
        %v1392 = vld [vmem:[%s4 + $0xb4] sm:$0xff]
        %v1393 = vld [vmem:[%s4 + $0xbc] sm:$0xf]
        %v1394 = vld [vmem:[%s5] sm:$0xf]
        %v1395 = vld [vmem:[%s5 + $0x4] sm:$0xf]
        %v1396 = vld [vmem:[%s5 + $0x8] sm:$0xf]
        %v1397 = vld [vmem:[%s5 + $0xc] sm:$0xf]
        %v1398 = vld [vmem:[%s5 + $0x10] sm:$0xf]
        %v1399 = vld [vmem:[%s5 + $0x14] sm:$0xf]
        %v1400 = vld [vmem:[%s5 + $0x18] sm:$0xf]
        %v1401 = vld [vmem:[%s5 + $0x1c] sm:$0xf]
        %v1402 = vld [vmem:[%s5 + $0x20] sm:$0xf]
        %v1403 = vld [vmem:[%s5 + $0x24] sm:$0xf]
        %v1404 = vld [vmem:[%s5 + $0x28] sm:$0xf]
        %v1405 = vld [vmem:[%s5 + $0x2c] sm:$0xf]
        %v1406 = vld [vmem:[%s5 + $0x30] sm:$0xf]
        %v1407 = vld [vmem:[%s5 + $0x34] sm:$0xf]
        %v1408 = vld [vmem:[%s5 + $0x38] sm:$0xf]
        %v1409 = vld [vmem:[%s5 + $0x3c] sm:$0xf]
        %v1410 = vpack.c.bf16 %v1360, %v1360
        %v1411 = vlaneseq
        %v1412 = vshrl.u32 %v1411, 7
        %v1413 = vsub.s32 5, %v1412
        %v1414 = vrot.slane %v480, %v1413
        %v1415 = vlaneseq
        %v1416 = vshrl.u32 %v1415, 7
        %v1417 = vsub.s32 5, %v1416
        %v1418 = vrot.slane %v481, %v1417
        %v1419 = vlaneseq
        %v1420 = vshrl.u32 %v1419, 7
        %v1421 = vsub.s32 5, %v1420
        %v1422 = vrot.slane %v482, %v1421
        %v1455 = vunpack.c.l.b16 %v1362
        %v1456 = vunpack.c.h.b16 %v1362
        %v1457 = vunpack.c.l.b16 %v1363
        %v1458 = vunpack.c.l.b16 %v1364
        %v1459 = vunpack.c.h.b16 %v1364
        %v1460 = vunpack.c.l.b16 %v1365
        %v1461 = vunpack.c.l.b16 %v1366
        %v1462 = vunpack.c.h.b16 %v1366
        %v1463 = vunpack.c.l.b16 %v1367
        %v1464 = vunpack.c.l.b16 %v1368
        %v1465 = vunpack.c.h.b16 %v1368
        %v1466 = vunpack.c.l.b16 %v1369
        %v1467 = vunpack.c.l.b16 %v1370
        %v1468 = vunpack.c.h.b16 %v1370
        %v1469 = vunpack.c.l.b16 %v1371
        %v1470 = vunpack.c.l.b16 %v1372
        %v1471 = vunpack.c.h.b16 %v1372
        %v1472 = vunpack.c.l.b16 %v1373
        %v1473 = vunpack.c.l.b16 %v1374
        %v1474 = vunpack.c.h.b16 %v1374
        %v1475 = vunpack.c.l.b16 %v1375
        %v1476 = vunpack.c.l.b16 %v1376
        %v1477 = vunpack.c.h.b16 %v1376
        %v1478 = vunpack.c.l.b16 %v1377
        %v1479 = vunpack.c.l.b16 %v1378
        %v1480 = vunpack.c.h.b16 %v1378
        %v1481 = vunpack.c.l.b16 %v1379
        %v1482 = vunpack.c.l.b16 %v1380
        %v1483 = vunpack.c.h.b16 %v1380
        %v1484 = vunpack.c.l.b16 %v1381
        %v1485 = vunpack.c.l.b16 %v1382
        %v1486 = vunpack.c.h.b16 %v1382
        %v1487 = vunpack.c.l.b16 %v1383
        %v1488 = vunpack.c.l.b16 %v1384
        %v1489 = vunpack.c.h.b16 %v1384
        %v1490 = vunpack.c.l.b16 %v1385
        %v1491 = vunpack.c.l.b16 %v1386
        %v1492 = vunpack.c.h.b16 %v1386
        %v1493 = vunpack.c.l.b16 %v1387
        %v1494 = vunpack.c.l.b16 %v1388
        %v1495 = vunpack.c.h.b16 %v1388
        %v1496 = vunpack.c.l.b16 %v1389
        %v1497 = vunpack.c.l.b16 %v1390
        %v1498 = vunpack.c.h.b16 %v1390
        %v1499 = vunpack.c.l.b16 %v1391
        %v1500 = vunpack.c.l.b16 %v1392
        %v1501 = vunpack.c.h.b16 %v1392
        %v1502 = vunpack.c.l.b16 %v1393
        %v1503 = vpack.c.b16 %v1458, %v1455
        %v1504 = vpack.c.b16 %v1459, %v1456
        %v1505 = vpack.c.b16 %v1460, %v1457
        %v1506 = vpack.c.b16 %v1464, %v1461
        %v1507 = vpack.c.b16 %v1465, %v1462
        %v1508 = vpack.c.b16 %v1466, %v1463
        %v1509 = vpack.c.b16 %v1470, %v1467
        %v1510 = vpack.c.b16 %v1471, %v1468
        %v1511 = vpack.c.b16 %v1472, %v1469
        %v1512 = vpack.c.b16 %v1476, %v1473
        %v1513 = vpack.c.b16 %v1477, %v1474
        %v1514 = vpack.c.b16 %v1478, %v1475
        %v1515 = vpack.c.b16 %v1482, %v1479
        %v1516 = vpack.c.b16 %v1483, %v1480
        %v1517 = vpack.c.b16 %v1484, %v1481
        %v1518 = vpack.c.b16 %v1488, %v1485
        %v1519 = vpack.c.b16 %v1489, %v1486
        %v1520 = vpack.c.b16 %v1490, %v1487
        %v1521 = vpack.c.b16 %v1494, %v1491
        %v1522 = vpack.c.b16 %v1495, %v1492
        %v1523 = vpack.c.b16 %v1496, %v1493
        %v1524 = vpack.c.b16 %v1500, %v1497
        %v1525 = vpack.c.b16 %v1501, %v1498
        %v1526 = vpack.c.b16 %v1502, %v1499
        %1551 = vmatprep.subr.bf16.mxu0 %v1504
        %1552 = vmatpush1.bf16.msra.mxu0 %v1503
        %1553 = vmatprep.subr.bf16.mxu0 %v1507
        %1554 = vmatpush1.bf16.msra.mxu0 %v1506
        %1555 = vmatprep.subr.bf16.mxu0 %v1510
        %1556 = vmatpush1.bf16.msra.mxu0 %v1509
        %1557 = vmatprep.subr.bf16.mxu0 %v1513
        %1558 = vmatpush1.bf16.msra.mxu0 %v1512
        %1559 = vmatprep.subr.bf16.mxu0 %v1516
        %1560 = vmatpush1.bf16.msra.mxu0 %v1515
        %1561 = vmatprep.subr.bf16.mxu0 %v1519
        %1562 = vmatpush1.bf16.msra.mxu0 %v1518
        %1563 = vmatprep.subr.bf16.mxu0 %v1522
        %1564 = vmatpush1.bf16.msra.mxu0 %v1521
        %1565 = vmatprep.subr.bf16.mxu0 %v1525
        %1566 = vmatpush1.bf16.msra.mxu0 %v1524
        %1567 = vmatprep.subr.bf16.mxu0 0
        %1568 = vmatpush1.bf16.msra.mxu0 0
        %1569 = vmatprep.subr.bf16.mxu0 0
        %1570 = vmatpush1.bf16.msra.mxu0 0
        %1571 = vmatprep.subr.bf16.mxu0 0
        %1572 = vmatpush1.bf16.msra.mxu0 0
        %1573 = vmatprep.subr.bf16.mxu0 0
        %1574 = vmatpush1.bf16.msra.mxu0 0
        %1575 = vmatprep.subr.bf16.mxu0 0
        %1576 = vmatpush1.bf16.msra.mxu0 0
        %1577 = vmatprep.subr.bf16.mxu0 0
        %1578 = vmatpush1.bf16.msra.mxu0 0
        %1579 = vmatprep.subr.bf16.mxu0 0
        %1580 = vmatpush1.bf16.msra.mxu0 0
        %1581 = vmatprep.subr.bf16.mxu0 0
        %1582 = vmatpush1.bf16.msra.mxu0 0
        %1583 = vmatprep.mubr.bf16.mxu0 0
        %1584 = vmatmul.mubr.bf16.gmra.mrb[0].mxu0 %v1410
        %v1585 = vpop.f32.mrb[0].mxu0
        %v1586 = vadd.f32 %v1414, %v1585
        %v1587 = vpop.f32.mrb[0].mxu0
        %v1588 = vadd.f32 %v1418, %v1587
        %v1589 = vpop.f32.mrb[0].mxu0
        %v1590 = vpop.f32.mrb[0].mxu0
        %1591 = vdwg.mxu0
        %1592 = vmatprep.subr.bf16.mxu0 0
        %1593 = vmatpush1.bf16.msra.mxu0 %v1505
        %1594 = vmatprep.subr.bf16.mxu0 0
        %1595 = vmatpush1.bf16.msra.mxu0 %v1508
        %1596 = vmatprep.subr.bf16.mxu0 0
        %1597 = vmatpush1.bf16.msra.mxu0 %v1511
        %1598 = vmatprep.subr.bf16.mxu0 0
        %1599 = vmatpush1.bf16.msra.mxu0 %v1514
        %1600 = vmatprep.subr.bf16.mxu0 0
        %1601 = vmatpush1.bf16.msra.mxu0 %v1517
        %1602 = vmatprep.subr.bf16.mxu0 0
        %1603 = vmatpush1.bf16.msra.mxu0 %v1520
        %1604 = vmatprep.subr.bf16.mxu0 0
        %1605 = vmatpush1.bf16.msra.mxu0 %v1523
        %1606 = vmatprep.subr.bf16.mxu0 0
        %1607 = vmatpush1.bf16.msra.mxu0 %v1526
        %1608 = vmatprep.subr.bf16.mxu0 0
        %1609 = vmatpush1.bf16.msra.mxu0 0
        %1610 = vmatprep.subr.bf16.mxu0 0
        %1611 = vmatpush1.bf16.msra.mxu0 0
        %1612 = vmatprep.subr.bf16.mxu0 0
        %1613 = vmatpush1.bf16.msra.mxu0 0
        %1614 = vmatprep.subr.bf16.mxu0 0
        %1615 = vmatpush1.bf16.msra.mxu0 0
        %1616 = vmatprep.subr.bf16.mxu0 0
        %1617 = vmatpush1.bf16.msra.mxu0 0
        %1618 = vmatprep.subr.bf16.mxu0 0
        %1619 = vmatpush1.bf16.msra.mxu0 0
        %1620 = vmatprep.subr.bf16.mxu0 0
        %1621 = vmatpush1.bf16.msra.mxu0 0
        %1622 = vmatprep.subr.bf16.mxu0 0
        %1623 = vmatpush1.bf16.msra.mxu0 0
        %1624 = vmatprep.mubr.bf16.mxu0 0
        %1625 = vmatmul.mubr.bf16.gmra.mrb[0].mxu0 %v1410
        %v1626 = vpop.f32.mrb[0].mxu0
        %v1627 = vadd.f32 %v1422, %v1626
        %v1628 = vpop.f32.mrb[0].mxu0
        %v1629 = vpop.f32.mrb[0].mxu0
        %v1630 = vpop.f32.mrb[0].mxu0
        %1631 = vdwg.mxu0
        %1633 = vrot.lane.b32.xlu0 %v1586, 96
        %v1634 = vpop.permute.xlu0 %1633
        %1636 = vrot.lane.b32.xlu0 %v1586, 64
        %v1637 = vpop.permute.xlu0 %1636
        %1639 = vrot.lane.b32.xlu0 %v1586, 32
        %v1640 = vpop.permute.xlu0 %1639
        %1643 = vrot.lane.b32.xlu0 %v1588, 96
        %v1644 = vpop.permute.xlu0 %1643
        %1646 = vrot.lane.b32.xlu0 %v1588, 64
        %v1647 = vpop.permute.xlu0 %1646
        %1649 = vrot.lane.b32.xlu0 %v1588, 32
        %v1650 = vpop.permute.xlu0 %1649
        %1653 = vrot.lane.b32.xlu0 %v1627, 96
        %v1654 = vpop.permute.xlu0 %1653
        %1656 = vrot.lane.b32.xlu0 %v1627, 64
        %v1657 = vpop.permute.xlu0 %1656
        %1659 = vrot.lane.b32.xlu0 %v1627, 32
        %v1660 = vpop.permute.xlu0 %1659
        %v1662 = vpack.c.bf16 %v1586, %v1586
        %v1663 = vpack.c.bf16 %v1634, %v1634
        %v1664 = vpack.c.bf16 %v1637, %v1637
        %v1665 = vpack.c.bf16 %v1640, %v1640
        %v1666 = vpack.c.bf16 %v1588, %v1588
        %v1667 = vpack.c.bf16 %v1644, %v1644
        %v1668 = vpack.c.bf16 %v1647, %v1647
        %v1669 = vpack.c.bf16 %v1650, %v1650
        %v1671 = vsel %vm1281, %v1662, 0
        %v1674 = vsel %vm1281, %v1666, 0
        %1676 = vmatprep.subr.bf16.mxu0 0
        %1677 = vmatpush1.bf16.xpose.msra.mxu0 %v1674
        %1678 = vmatprep.subr.bf16.mxu0 0
        %1679 = vmatpush1.bf16.xpose.msra.mxu0 0
        %1680 = vmatprep.subr.bf16.mxu0 0
        %1681 = vmatpush1.bf16.xpose.msra.mxu0 0
        %1682 = vmatprep.subr.bf16.mxu0 0
        %1683 = vmatpush1.bf16.xpose.msra.mxu0 0
        %1684 = vmatprep.subr.bf16.mxu0 0
        %1685 = vmatpush1.bf16.xpose.msra.mxu0 0
        %1686 = vmatprep.subr.bf16.mxu0 0
        %1687 = vmatpush1.bf16.xpose.msra.mxu0 0
        %1688 = vmatprep.subr.bf16.mxu0 0
        %1689 = vmatpush1.bf16.xpose.msra.mxu0 0
        %1690 = vmatprep.subr.bf16.mxu0 0
        %1691 = vmatpush1.bf16.xpose.msra.mxu0 0
        %1692 = vmatprep.subr.bf16.mxu0 0
        %1693 = vmatpush1.bf16.xpose.msra.mxu0 0
        %1694 = vmatprep.subr.bf16.mxu0 0
        %1695 = vmatpush1.bf16.xpose.msra.mxu0 0
        %1696 = vmatprep.subr.bf16.mxu0 0
        %1697 = vmatpush1.bf16.xpose.msra.mxu0 0
        %1698 = vmatprep.subr.bf16.mxu0 0
        %1699 = vmatpush1.bf16.xpose.msra.mxu0 0
        %1700 = vmatprep.subr.bf16.mxu0 0
        %1701 = vmatpush1.bf16.xpose.msra.mxu0 0
        %1702 = vmatprep.subr.bf16.mxu0 0
        %1703 = vmatpush1.bf16.xpose.msra.mxu0 0
        %1704 = vmatprep.subr.bf16.mxu0 0
        %1705 = vmatpush1.bf16.xpose.msra.mxu0 0
        %1706 = vmatprep.subr.bf16.mxu0 0
        %1707 = vmatpush1.bf16.xpose.msra.mxu0 0
        %1708 = vmatprep.mubr.bf16.mxu0 0
        %1709 = vmatmul.mubr.bf16.gmra.mrb[0].mxu0 %v1671
        %v1710 = vpop.f32.mrb[0].mxu0
        %v1711 = vadd.f32 0.0, %v1710
        %v1712 = vpop.f32.mrb[0].mxu0
        %v1713 = vpop.f32.mrb[0].mxu0
        %v1714 = vpop.f32.mrb[0].mxu0
        %1715 = vdwg.mxu0
        %v1717 = vsel %vm1281, %v1663, 0
        %v1720 = vsel %vm1281, %v1667, 0
        %1722 = vmatprep.subr.bf16.mxu0 0
        %1723 = vmatpush1.bf16.xpose.msra.mxu0 %v1720
        %1724 = vmatprep.subr.bf16.mxu0 0
        %1725 = vmatpush1.bf16.xpose.msra.mxu0 0
        %1726 = vmatprep.subr.bf16.mxu0 0
        %1727 = vmatpush1.bf16.xpose.msra.mxu0 0
        %1728 = vmatprep.subr.bf16.mxu0 0
        %1729 = vmatpush1.bf16.xpose.msra.mxu0 0
        %1730 = vmatprep.subr.bf16.mxu0 0
        %1731 = vmatpush1.bf16.xpose.msra.mxu0 0
        %1732 = vmatprep.subr.bf16.mxu0 0
        %1733 = vmatpush1.bf16.xpose.msra.mxu0 0
        %1734 = vmatprep.subr.bf16.mxu0 0
        %1735 = vmatpush1.bf16.xpose.msra.mxu0 0
        %1736 = vmatprep.subr.bf16.mxu0 0
        %1737 = vmatpush1.bf16.xpose.msra.mxu0 0
        %1738 = vmatprep.subr.bf16.mxu0 0
        %1739 = vmatpush1.bf16.xpose.msra.mxu0 0
        %1740 = vmatprep.subr.bf16.mxu0 0
        %1741 = vmatpush1.bf16.xpose.msra.mxu0 0
        %1742 = vmatprep.subr.bf16.mxu0 0
        %1743 = vmatpush1.bf16.xpose.msra.mxu0 0
        %1744 = vmatprep.subr.bf16.mxu0 0
        %1745 = vmatpush1.bf16.xpose.msra.mxu0 0
        %1746 = vmatprep.subr.bf16.mxu0 0
        %1747 = vmatpush1.bf16.xpose.msra.mxu0 0
        %1748 = vmatprep.subr.bf16.mxu0 0
        %1749 = vmatpush1.bf16.xpose.msra.mxu0 0
        %1750 = vmatprep.subr.bf16.mxu0 0
        %1751 = vmatpush1.bf16.xpose.msra.mxu0 0
        %1752 = vmatprep.subr.bf16.mxu0 0
        %1753 = vmatpush1.bf16.xpose.msra.mxu0 0
        %1754 = vmatprep.mubr.bf16.mxu0 0
        %1755 = vmatmul.mubr.bf16.gmra.mrb[0].mxu0 %v1717
        %v1756 = vpop.f32.mrb[0].mxu0
        %v1757 = vadd.f32 0.0, %v1756
        %v1758 = vpop.f32.mrb[0].mxu0
        %v1759 = vpop.f32.mrb[0].mxu0
        %v1760 = vpop.f32.mrb[0].mxu0
        %1761 = vdwg.mxu0
        %v1763 = vsel %vm1281, %v1664, 0
        %v1766 = vsel %vm1281, %v1668, 0
        %1768 = vmatprep.subr.bf16.mxu0 0
        %1769 = vmatpush1.bf16.xpose.msra.mxu0 %v1766
        %1770 = vmatprep.subr.bf16.mxu0 0
        %1771 = vmatpush1.bf16.xpose.msra.mxu0 0
        %1772 = vmatprep.subr.bf16.mxu0 0
        %1773 = vmatpush1.bf16.xpose.msra.mxu0 0
        %1774 = vmatprep.subr.bf16.mxu0 0
        %1775 = vmatpush1.bf16.xpose.msra.mxu0 0
        %1776 = vmatprep.subr.bf16.mxu0 0
        %1777 = vmatpush1.bf16.xpose.msra.mxu0 0
        %1778 = vmatprep.subr.bf16.mxu0 0
        %1779 = vmatpush1.bf16.xpose.msra.mxu0 0
        %1780 = vmatprep.subr.bf16.mxu0 0
        %1781 = vmatpush1.bf16.xpose.msra.mxu0 0
        %1782 = vmatprep.subr.bf16.mxu0 0
        %1783 = vmatpush1.bf16.xpose.msra.mxu0 0
        %1784 = vmatprep.subr.bf16.mxu0 0
        %1785 = vmatpush1.bf16.xpose.msra.mxu0 0
        %1786 = vmatprep.subr.bf16.mxu0 0
        %1787 = vmatpush1.bf16.xpose.msra.mxu0 0
        %1788 = vmatprep.subr.bf16.mxu0 0
        %1789 = vmatpush1.bf16.xpose.msra.mxu0 0
        %1790 = vmatprep.subr.bf16.mxu0 0
        %1791 = vmatpush1.bf16.xpose.msra.mxu0 0
        %1792 = vmatprep.subr.bf16.mxu0 0
        %1793 = vmatpush1.bf16.xpose.msra.mxu0 0
        %1794 = vmatprep.subr.bf16.mxu0 0
        %1795 = vmatpush1.bf16.xpose.msra.mxu0 0
        %1796 = vmatprep.subr.bf16.mxu0 0
        %1797 = vmatpush1.bf16.xpose.msra.mxu0 0
        %1798 = vmatprep.subr.bf16.mxu0 0
        %1799 = vmatpush1.bf16.xpose.msra.mxu0 0
        %1800 = vmatprep.mubr.bf16.mxu0 0
        %1801 = vmatmul.mubr.bf16.gmra.mrb[0].mxu0 %v1763
        %v1802 = vpop.f32.mrb[0].mxu0
        %v1803 = vadd.f32 0.0, %v1802
        %v1804 = vpop.f32.mrb[0].mxu0
        %v1805 = vpop.f32.mrb[0].mxu0
        %v1806 = vpop.f32.mrb[0].mxu0
        %1807 = vdwg.mxu0
        %v1809 = vsel %vm1281, %v1665, 0
        %v1812 = vsel %vm1281, %v1669, 0
        %1814 = vmatprep.subr.bf16.mxu0 0
        %1815 = vmatpush1.bf16.xpose.msra.mxu0 %v1812
        %1816 = vmatprep.subr.bf16.mxu0 0
        %1817 = vmatpush1.bf16.xpose.msra.mxu0 0
        %1818 = vmatprep.subr.bf16.mxu0 0
        %1819 = vmatpush1.bf16.xpose.msra.mxu0 0
        %1820 = vmatprep.subr.bf16.mxu0 0
        %1821 = vmatpush1.bf16.xpose.msra.mxu0 0
        %1822 = vmatprep.subr.bf16.mxu0 0
        %1823 = vmatpush1.bf16.xpose.msra.mxu0 0
        %1824 = vmatprep.subr.bf16.mxu0 0
        %1825 = vmatpush1.bf16.xpose.msra.mxu0 0
        %1826 = vmatprep.subr.bf16.mxu0 0
        %1827 = vmatpush1.bf16.xpose.msra.mxu0 0
        %1828 = vmatprep.subr.bf16.mxu0 0
        %1829 = vmatpush1.bf16.xpose.msra.mxu0 0
        %1830 = vmatprep.subr.bf16.mxu0 0
        %1831 = vmatpush1.bf16.xpose.msra.mxu0 0
        %1832 = vmatprep.subr.bf16.mxu0 0
        %1833 = vmatpush1.bf16.xpose.msra.mxu0 0
        %1834 = vmatprep.subr.bf16.mxu0 0
        %1835 = vmatpush1.bf16.xpose.msra.mxu0 0
        %1836 = vmatprep.subr.bf16.mxu0 0
        %1837 = vmatpush1.bf16.xpose.msra.mxu0 0
        %1838 = vmatprep.subr.bf16.mxu0 0
        %1839 = vmatpush1.bf16.xpose.msra.mxu0 0
        %1840 = vmatprep.subr.bf16.mxu0 0
        %1841 = vmatpush1.bf16.xpose.msra.mxu0 0
        %1842 = vmatprep.subr.bf16.mxu0 0
        %1843 = vmatpush1.bf16.xpose.msra.mxu0 0
        %1844 = vmatprep.subr.bf16.mxu0 0
        %1845 = vmatpush1.bf16.xpose.msra.mxu0 0
        %1846 = vmatprep.mubr.bf16.mxu0 0
        %1847 = vmatmul.mubr.bf16.gmra.mrb[0].mxu0 %v1809
        %v1848 = vpop.f32.mrb[0].mxu0
        %v1849 = vadd.f32 0.0, %v1848
        %v1850 = vpop.f32.mrb[0].mxu0
        %v1851 = vpop.f32.mrb[0].mxu0
        %v1852 = vpop.f32.mrb[0].mxu0
        %1853 = vdwg.mxu0
        %v1854 = vmul.f32 %v1711, 0.17677669
        %v1855 = vmul.f32 %v1757, 0.17677669
        %v1856 = vmul.f32 %v1803, 0.17677669
        %v1857 = vmul.f32 %v1849, 0.17677669
        %v1858 = vadd.f32 %v1854, %v1361
        %v1859 = vadd.f32 %v1855, %v1361
        %v1860 = vadd.f32 %v1856, %v1361
        %v1861 = vadd.f32 %v1857, %v1361
        %vm1862 = vcmask 64512
        %v1863 = vsel %vm1862, %v1858, -inf
        %1864 = vmax.xlane.f32.xlu0 %v1863
        %v1865 = vpop.xlane.xlu0 %1864
        %v1866 = vsel %vm1862, %v1859, -inf
        %1867 = vmax.xlane.f32.xlu0 %v1866
        %v1868 = vpop.xlane.xlu0 %1867
        %v1869 = vsel %vm1862, %v1860, -inf
        %1870 = vmax.xlane.f32.xlu0 %v1869
        %v1871 = vpop.xlane.xlu0 %1870
        %v1872 = vsel %vm1862, %v1861, -inf
        %1873 = vmax.xlane.f32.xlu0 %v1872
        %v1874 = vpop.xlane.xlu0 %1873
        %v1875 = vsub.f32 %v1858, %v1865
        %v1876 = vsub.f32 %v1859, %v1868
        %v1877 = vsub.f32 %v1860, %v1871
        %v1878 = vsub.f32 %v1861, %v1874
        %v1879 = vmul.f32 %v1875, 1.442695
        %v1880 = vpow.pop %v1879
        %v1881 = vmul.f32 %v1876, 1.442695
        %v1882 = vpow.pop %v1881
        %v1883 = vmul.f32 %v1877, 1.442695
        %v1884 = vpow.pop %v1883
        %v1885 = vmul.f32 %v1878, 1.442695
        %v1886 = vpow.pop %v1885
        %v1887 = vsel %vm1862, %v1880, 0.0
        %1888 = vadd.xlane.f32.xlu0 %v1887
        %v1889 = vpop.xlane.xlu0 %1888
        %v1890 = vsel %vm1862, %v1882, 0.0
        %1891 = vadd.xlane.f32.xlu0 %v1890
        %v1892 = vpop.xlane.xlu0 %1891
        %v1893 = vsel %vm1862, %v1884, 0.0
        %1894 = vadd.xlane.f32.xlu0 %v1893
        %v1895 = vpop.xlane.xlu0 %1894
        %v1896 = vsel %vm1862, %v1886, 0.0
        %1897 = vadd.xlane.f32.xlu0 %v1896
        %v1898 = vpop.xlane.xlu0 %1897
        %v1899 = vrcp.pop %v1889
        %v1900 = vmul.f32 %v1880, %v1899
        %v1901 = vrcp.pop %v1892
        %v1902 = vmul.f32 %v1882, %v1901
        %v1903 = vrcp.pop %v1895
        %v1904 = vmul.f32 %v1884, %v1903
        %v1905 = vrcp.pop %v1898
        %v1906 = vmul.f32 %v1886, %v1905
        %v1907 = vpack.c.bf16 %v1900, %v1900
        %v1908 = vpack.c.bf16 %v1902, %v1902
        %v1909 = vpack.c.bf16 %v1904, %v1904
        %v1910 = vpack.c.bf16 %v1906, %v1906
        %v1911 = vpack.c.bf16 %v1627, %v1627
        %v1912 = vpack.c.bf16 %v1654, %v1654
        %v1913 = vpack.c.bf16 %v1657, %v1657
        %v1914 = vpack.c.bf16 %v1660, %v1660
        %v1916 = vsel %vm1862, %v1907, 0
        %vm1918 = vcmask 1043456
        %v1920 = vsel %vm1918, %v1911, 0
        %1922 = vmatprep.subr.bf16.mxu0 0
        %1923 = vmatpush1.bf16.msra.mxu0 %v1920
        %1924 = vmatprep.subr.bf16.mxu0 0
        %1925 = vmatpush1.bf16.msra.mxu0 0
        %1926 = vmatprep.subr.bf16.mxu0 0
        %1927 = vmatpush1.bf16.msra.mxu0 0
        %1928 = vmatprep.subr.bf16.mxu0 0
        %1929 = vmatpush1.bf16.msra.mxu0 0
        %1930 = vmatprep.subr.bf16.mxu0 0
        %1931 = vmatpush1.bf16.msra.mxu0 0
        %1932 = vmatprep.subr.bf16.mxu0 0
        %1933 = vmatpush1.bf16.msra.mxu0 0
        %1934 = vmatprep.subr.bf16.mxu0 0
        %1935 = vmatpush1.bf16.msra.mxu0 0
        %1936 = vmatprep.subr.bf16.mxu0 0
        %1937 = vmatpush1.bf16.msra.mxu0 0
        %1938 = vmatprep.subr.bf16.mxu0 0
        %1939 = vmatpush1.bf16.msra.mxu0 0
        %1940 = vmatprep.subr.bf16.mxu0 0
        %1941 = vmatpush1.bf16.msra.mxu0 0
        %1942 = vmatprep.subr.bf16.mxu0 0
        %1943 = vmatpush1.bf16.msra.mxu0 0
        %1944 = vmatprep.subr.bf16.mxu0 0
        %1945 = vmatpush1.bf16.msra.mxu0 0
        %1946 = vmatprep.subr.bf16.mxu0 0
        %1947 = vmatpush1.bf16.msra.mxu0 0
        %1948 = vmatprep.subr.bf16.mxu0 0
        %1949 = vmatpush1.bf16.msra.mxu0 0
        %1950 = vmatprep.subr.bf16.mxu0 0
        %1951 = vmatpush1.bf16.msra.mxu0 0
        %1952 = vmatprep.subr.bf16.mxu0 0
        %1953 = vmatpush1.bf16.msra.mxu0 0
        %1954 = vmatprep.mubr.bf16.mxu0 0
        %1955 = vmatmul.mubr.bf16.gmra.mrb[0].mxu0 %v1916
        %v1956 = vpop.f32.mrb[0].mxu0
        %v1957 = vadd.f32 0.0, %v1956
        %v1958 = vpop.f32.mrb[0].mxu0
        %v1959 = vpop.f32.mrb[0].mxu0
        %v1960 = vpop.f32.mrb[0].mxu0
        %1961 = vdwg.mxu0
        %v1963 = vsel %vm1862, %v1908, 0
        %v1966 = vsel %vm1918, %v1912, 0
        %1968 = vmatprep.subr.bf16.mxu0 0
        %1969 = vmatpush1.bf16.msra.mxu0 %v1966
        %1970 = vmatprep.subr.bf16.mxu0 0
        %1971 = vmatpush1.bf16.msra.mxu0 0
        %1972 = vmatprep.subr.bf16.mxu0 0
        %1973 = vmatpush1.bf16.msra.mxu0 0
        %1974 = vmatprep.subr.bf16.mxu0 0
        %1975 = vmatpush1.bf16.msra.mxu0 0
        %1976 = vmatprep.subr.bf16.mxu0 0
        %1977 = vmatpush1.bf16.msra.mxu0 0
        %1978 = vmatprep.subr.bf16.mxu0 0
        %1979 = vmatpush1.bf16.msra.mxu0 0
        %1980 = vmatprep.subr.bf16.mxu0 0
        %1981 = vmatpush1.bf16.msra.mxu0 0
        %1982 = vmatprep.subr.bf16.mxu0 0
        %1983 = vmatpush1.bf16.msra.mxu0 0
        %1984 = vmatprep.subr.bf16.mxu0 0
        %1985 = vmatpush1.bf16.msra.mxu0 0
        %1986 = vmatprep.subr.bf16.mxu0 0
        %1987 = vmatpush1.bf16.msra.mxu0 0
        %1988 = vmatprep.subr.bf16.mxu0 0
        %1989 = vmatpush1.bf16.msra.mxu0 0
        %1990 = vmatprep.subr.bf16.mxu0 0
        %1991 = vmatpush1.bf16.msra.mxu0 0
        %1992 = vmatprep.subr.bf16.mxu0 0
        %1993 = vmatpush1.bf16.msra.mxu0 0
        %1994 = vmatprep.subr.bf16.mxu0 0
        %1995 = vmatpush1.bf16.msra.mxu0 0
        %1996 = vmatprep.subr.bf16.mxu0 0
        %1997 = vmatpush1.bf16.msra.mxu0 0
        %1998 = vmatprep.subr.bf16.mxu0 0
        %1999 = vmatpush1.bf16.msra.mxu0 0
        %2000 = vmatprep.mubr.bf16.mxu0 0
        %2001 = vmatmul.mubr.bf16.gmra.mrb[0].mxu0 %v1963
        %v2002 = vpop.f32.mrb[0].mxu0
        %v2003 = vadd.f32 0.0, %v2002
        %v2004 = vpop.f32.mrb[0].mxu0
        %v2005 = vpop.f32.mrb[0].mxu0
        %v2006 = vpop.f32.mrb[0].mxu0
        %2007 = vdwg.mxu0
        %v2009 = vsel %vm1862, %v1909, 0
        %v2012 = vsel %vm1918, %v1913, 0
        %2014 = vmatprep.subr.bf16.mxu0 0
        %2015 = vmatpush1.bf16.msra.mxu0 %v2012
        %2016 = vmatprep.subr.bf16.mxu0 0
        %2017 = vmatpush1.bf16.msra.mxu0 0
        %2018 = vmatprep.subr.bf16.mxu0 0
        %2019 = vmatpush1.bf16.msra.mxu0 0
        %2020 = vmatprep.subr.bf16.mxu0 0
        %2021 = vmatpush1.bf16.msra.mxu0 0
        %2022 = vmatprep.subr.bf16.mxu0 0
        %2023 = vmatpush1.bf16.msra.mxu0 0
        %2024 = vmatprep.subr.bf16.mxu0 0
        %2025 = vmatpush1.bf16.msra.mxu0 0
        %2026 = vmatprep.subr.bf16.mxu0 0
        %2027 = vmatpush1.bf16.msra.mxu0 0
        %2028 = vmatprep.subr.bf16.mxu0 0
        %2029 = vmatpush1.bf16.msra.mxu0 0
        %2030 = vmatprep.subr.bf16.mxu0 0
        %2031 = vmatpush1.bf16.msra.mxu0 0
        %2032 = vmatprep.subr.bf16.mxu0 0
        %2033 = vmatpush1.bf16.msra.mxu0 0
        %2034 = vmatprep.subr.bf16.mxu0 0
        %2035 = vmatpush1.bf16.msra.mxu0 0
        %2036 = vmatprep.subr.bf16.mxu0 0
        %2037 = vmatpush1.bf16.msra.mxu0 0
        %2038 = vmatprep.subr.bf16.mxu0 0
        %2039 = vmatpush1.bf16.msra.mxu0 0
        %2040 = vmatprep.subr.bf16.mxu0 0
        %2041 = vmatpush1.bf16.msra.mxu0 0
        %2042 = vmatprep.subr.bf16.mxu0 0
        %2043 = vmatpush1.bf16.msra.mxu0 0
        %2044 = vmatprep.subr.bf16.mxu0 0
        %2045 = vmatpush1.bf16.msra.mxu0 0
        %2046 = vmatprep.mubr.bf16.mxu0 0
        %2047 = vmatmul.mubr.bf16.gmra.mrb[0].mxu0 %v2009
        %v2048 = vpop.f32.mrb[0].mxu0
        %v2049 = vadd.f32 0.0, %v2048
        %v2050 = vpop.f32.mrb[0].mxu0
        %v2051 = vpop.f32.mrb[0].mxu0
        %v2052 = vpop.f32.mrb[0].mxu0
        %2053 = vdwg.mxu0
        %v2055 = vsel %vm1862, %v1910, 0
        %v2058 = vsel %vm1918, %v1914, 0
        %2060 = vmatprep.subr.bf16.mxu0 0
        %2061 = vmatpush1.bf16.msra.mxu0 %v2058
        %2062 = vmatprep.subr.bf16.mxu0 0
        %2063 = vmatpush1.bf16.msra.mxu0 0
        %2064 = vmatprep.subr.bf16.mxu0 0
        %2065 = vmatpush1.bf16.msra.mxu0 0
        %2066 = vmatprep.subr.bf16.mxu0 0
        %2067 = vmatpush1.bf16.msra.mxu0 0
        %2068 = vmatprep.subr.bf16.mxu0 0
        %2069 = vmatpush1.bf16.msra.mxu0 0
        %2070 = vmatprep.subr.bf16.mxu0 0
        %2071 = vmatpush1.bf16.msra.mxu0 0
        %2072 = vmatprep.subr.bf16.mxu0 0
        %2073 = vmatpush1.bf16.msra.mxu0 0
        %2074 = vmatprep.subr.bf16.mxu0 0
        %2075 = vmatpush1.bf16.msra.mxu0 0
        %2076 = vmatprep.subr.bf16.mxu0 0
        %2077 = vmatpush1.bf16.msra.mxu0 0
        %2078 = vmatprep.subr.bf16.mxu0 0
        %2079 = vmatpush1.bf16.msra.mxu0 0
        %2080 = vmatprep.subr.bf16.mxu0 0
        %2081 = vmatpush1.bf16.msra.mxu0 0
        %2082 = vmatprep.subr.bf16.mxu0 0
        %2083 = vmatpush1.bf16.msra.mxu0 0
        %2084 = vmatprep.subr.bf16.mxu0 0
        %2085 = vmatpush1.bf16.msra.mxu0 0
        %2086 = vmatprep.subr.bf16.mxu0 0
        %2087 = vmatpush1.bf16.msra.mxu0 0
        %2088 = vmatprep.subr.bf16.mxu0 0
        %2089 = vmatpush1.bf16.msra.mxu0 0
        %2090 = vmatprep.subr.bf16.mxu0 0
        %2091 = vmatpush1.bf16.msra.mxu0 0
        %2092 = vmatprep.mubr.bf16.mxu0 0
        %2093 = vmatmul.mubr.bf16.gmra.mrb[0].mxu0 %v2055
        %v2094 = vpop.f32.mrb[0].mxu0
        %v2095 = vadd.f32 0.0, %v2094
        %v2096 = vpop.f32.mrb[0].mxu0
        %v2097 = vpop.f32.mrb[0].mxu0
        %v2098 = vpop.f32.mrb[0].mxu0
        %2099 = vdwg.mxu0
        %v2100 = vpack.c.bf16 %v1957, %v1957
        %v2105 = vunpack.c.l.b16 %v1394
        %v2106 = vunpack.c.l.b16 %v1395
        %v2107 = vunpack.c.l.b16 %v1396
        %v2108 = vunpack.c.l.b16 %v1397
        %v2109 = vpack.c.b16 %v2106, %v2105
        %v2110 = vpack.c.b16 %v2108, %v2107
        %v2114 = vsel %vm1281, %v2100, 0
        %2116 = vmatprep.subr.bf16.mxu0 0
        %2117 = vmatpush1.bf16.msra.mxu0 %v2109
        %2118 = vmatprep.subr.bf16.mxu0 0
        %2119 = vmatpush1.bf16.msra.mxu0 %v2110
        %2120 = vmatprep.subr.bf16.mxu0 0
        %2121 = vmatpush1.bf16.msra.mxu0 0
        %2122 = vmatprep.subr.bf16.mxu0 0
        %2123 = vmatpush1.bf16.msra.mxu0 0
        %2124 = vmatprep.subr.bf16.mxu0 0
        %2125 = vmatpush1.bf16.msra.mxu0 0
        %2126 = vmatprep.subr.bf16.mxu0 0
        %2127 = vmatpush1.bf16.msra.mxu0 0
        %2128 = vmatprep.subr.bf16.mxu0 0
        %2129 = vmatpush1.bf16.msra.mxu0 0
        %2130 = vmatprep.subr.bf16.mxu0 0
        %2131 = vmatpush1.bf16.msra.mxu0 0
        %2132 = vmatprep.subr.bf16.mxu0 0
        %2133 = vmatpush1.bf16.msra.mxu0 0
        %2134 = vmatprep.subr.bf16.mxu0 0
        %2135 = vmatpush1.bf16.msra.mxu0 0
        %2136 = vmatprep.subr.bf16.mxu0 0
        %2137 = vmatpush1.bf16.msra.mxu0 0
        %2138 = vmatprep.subr.bf16.mxu0 0
        %2139 = vmatpush1.bf16.msra.mxu0 0
        %2140 = vmatprep.subr.bf16.mxu0 0
        %2141 = vmatpush1.bf16.msra.mxu0 0
        %2142 = vmatprep.subr.bf16.mxu0 0
        %2143 = vmatpush1.bf16.msra.mxu0 0
        %2144 = vmatprep.subr.bf16.mxu0 0
        %2145 = vmatpush1.bf16.msra.mxu0 0
        %2146 = vmatprep.subr.bf16.mxu0 0
        %2147 = vmatpush1.bf16.msra.mxu0 0
        %2148 = vmatprep.mubr.bf16.mxu0 0
        %2149 = vmatmul.mubr.bf16.gmra.mrb[0].mxu0 %v2114
        %v2150 = vpop.f32.mrb[0].mxu0
        %v2151 = vadd.f32 0.0, %v2150
        %v2152 = vpop.f32.mrb[0].mxu0
        %v2153 = vpop.f32.mrb[0].mxu0
        %v2154 = vpop.f32.mrb[0].mxu0
        %2155 = vdwg.mxu0
        %v2156 = vlaneseq
        %v2157 = vshrl.u32 %v2156, 7
        %v2158 = vsub.s32 6, %v2157
        %v2159 = vrot.slane %v480, %v2158
        %v2160 = vadd.f32 %v2159, %v2151
        %v2161 = vpack.c.bf16 %v2003, %v2003
        %v2166 = vunpack.c.l.b16 %v1398
        %v2167 = vunpack.c.l.b16 %v1399
        %v2168 = vunpack.c.l.b16 %v1400
        %v2169 = vunpack.c.l.b16 %v1401
        %v2170 = vpack.c.b16 %v2167, %v2166
        %v2171 = vpack.c.b16 %v2169, %v2168
        %v2175 = vsel %vm1281, %v2161, 0
        %2177 = vmatprep.subr.bf16.mxu0 0
        %2178 = vmatpush1.bf16.msra.mxu0 %v2170
        %2179 = vmatprep.subr.bf16.mxu0 0
        %2180 = vmatpush1.bf16.msra.mxu0 %v2171
        %2181 = vmatprep.subr.bf16.mxu0 0
        %2182 = vmatpush1.bf16.msra.mxu0 0
        %2183 = vmatprep.subr.bf16.mxu0 0
        %2184 = vmatpush1.bf16.msra.mxu0 0
        %2185 = vmatprep.subr.bf16.mxu0 0
        %2186 = vmatpush1.bf16.msra.mxu0 0
        %2187 = vmatprep.subr.bf16.mxu0 0
        %2188 = vmatpush1.bf16.msra.mxu0 0
        %2189 = vmatprep.subr.bf16.mxu0 0
        %2190 = vmatpush1.bf16.msra.mxu0 0
        %2191 = vmatprep.subr.bf16.mxu0 0
        %2192 = vmatpush1.bf16.msra.mxu0 0
        %2193 = vmatprep.subr.bf16.mxu0 0
        %2194 = vmatpush1.bf16.msra.mxu0 0
        %2195 = vmatprep.subr.bf16.mxu0 0
        %2196 = vmatpush1.bf16.msra.mxu0 0
        %2197 = vmatprep.subr.bf16.mxu0 0
        %2198 = vmatpush1.bf16.msra.mxu0 0
        %2199 = vmatprep.subr.bf16.mxu0 0
        %2200 = vmatpush1.bf16.msra.mxu0 0
        %2201 = vmatprep.subr.bf16.mxu0 0
        %2202 = vmatpush1.bf16.msra.mxu0 0
        %2203 = vmatprep.subr.bf16.mxu0 0
        %2204 = vmatpush1.bf16.msra.mxu0 0
        %2205 = vmatprep.subr.bf16.mxu0 0
        %2206 = vmatpush1.bf16.msra.mxu0 0
        %2207 = vmatprep.subr.bf16.mxu0 0
        %2208 = vmatpush1.bf16.msra.mxu0 0
        %2209 = vmatprep.mubr.bf16.mxu0 0
        %2210 = vmatmul.mubr.bf16.gmra.mrb[0].mxu0 %v2175
        %v2211 = vpop.f32.mrb[0].mxu0
        %v2212 = vadd.f32 0.0, %v2211
        %v2213 = vpop.f32.mrb[0].mxu0
        %v2214 = vpop.f32.mrb[0].mxu0
        %v2215 = vpop.f32.mrb[0].mxu0
        %2216 = vdwg.mxu0
        %v2217 = vadd.f32 %v2160, %v2212
        %v2218 = vpack.c.bf16 %v2049, %v2049
        %v2223 = vunpack.c.l.b16 %v1402
        %v2224 = vunpack.c.l.b16 %v1403
        %v2225 = vunpack.c.l.b16 %v1404
        %v2226 = vunpack.c.l.b16 %v1405
        %v2227 = vpack.c.b16 %v2224, %v2223
        %v2228 = vpack.c.b16 %v2226, %v2225
        %v2232 = vsel %vm1281, %v2218, 0
        %2234 = vmatprep.subr.bf16.mxu0 0
        %2235 = vmatpush1.bf16.msra.mxu0 %v2227
        %2236 = vmatprep.subr.bf16.mxu0 0
        %2237 = vmatpush1.bf16.msra.mxu0 %v2228
        %2238 = vmatprep.subr.bf16.mxu0 0
        %2239 = vmatpush1.bf16.msra.mxu0 0
        %2240 = vmatprep.subr.bf16.mxu0 0
        %2241 = vmatpush1.bf16.msra.mxu0 0
        %2242 = vmatprep.subr.bf16.mxu0 0
        %2243 = vmatpush1.bf16.msra.mxu0 0
        %2244 = vmatprep.subr.bf16.mxu0 0
        %2245 = vmatpush1.bf16.msra.mxu0 0
        %2246 = vmatprep.subr.bf16.mxu0 0
        %2247 = vmatpush1.bf16.msra.mxu0 0
        %2248 = vmatprep.subr.bf16.mxu0 0
        %2249 = vmatpush1.bf16.msra.mxu0 0
        %2250 = vmatprep.subr.bf16.mxu0 0
        %2251 = vmatpush1.bf16.msra.mxu0 0
        %2252 = vmatprep.subr.bf16.mxu0 0
        %2253 = vmatpush1.bf16.msra.mxu0 0
        %2254 = vmatprep.subr.bf16.mxu0 0
        %2255 = vmatpush1.bf16.msra.mxu0 0
        %2256 = vmatprep.subr.bf16.mxu0 0
        %2257 = vmatpush1.bf16.msra.mxu0 0
        %2258 = vmatprep.subr.bf16.mxu0 0
        %2259 = vmatpush1.bf16.msra.mxu0 0
        %2260 = vmatprep.subr.bf16.mxu0 0
        %2261 = vmatpush1.bf16.msra.mxu0 0
        %2262 = vmatprep.subr.bf16.mxu0 0
        %2263 = vmatpush1.bf16.msra.mxu0 0
        %2264 = vmatprep.subr.bf16.mxu0 0
        %2265 = vmatpush1.bf16.msra.mxu0 0
        %2266 = vmatprep.mubr.bf16.mxu0 0
        %2267 = vmatmul.mubr.bf16.gmra.mrb[0].mxu0 %v2232
        %v2268 = vpop.f32.mrb[0].mxu0
        %v2269 = vadd.f32 0.0, %v2268
        %v2270 = vpop.f32.mrb[0].mxu0
        %v2271 = vpop.f32.mrb[0].mxu0
        %v2272 = vpop.f32.mrb[0].mxu0
        %2273 = vdwg.mxu0
        %v2274 = vadd.f32 %v2217, %v2269
        %v2275 = vpack.c.bf16 %v2095, %v2095
        %v2280 = vunpack.c.l.b16 %v1406
        %v2281 = vunpack.c.l.b16 %v1407
        %v2282 = vunpack.c.l.b16 %v1408
        %v2283 = vunpack.c.l.b16 %v1409
        %v2284 = vpack.c.b16 %v2281, %v2280
        %v2285 = vpack.c.b16 %v2283, %v2282
        %v2289 = vsel %vm1281, %v2275, 0
        %2291 = vmatprep.subr.bf16.mxu0 0
        %2292 = vmatpush1.bf16.msra.mxu0 %v2284
        %2293 = vmatprep.subr.bf16.mxu0 0
        %2294 = vmatpush1.bf16.msra.mxu0 %v2285
        %2295 = vmatprep.subr.bf16.mxu0 0
        %2296 = vmatpush1.bf16.msra.mxu0 0
        %2297 = vmatprep.subr.bf16.mxu0 0
        %2298 = vmatpush1.bf16.msra.mxu0 0
        %2299 = vmatprep.subr.bf16.mxu0 0
        %2300 = vmatpush1.bf16.msra.mxu0 0
        %2301 = vmatprep.subr.bf16.mxu0 0
        %2302 = vmatpush1.bf16.msra.mxu0 0
        %2303 = vmatprep.subr.bf16.mxu0 0
        %2304 = vmatpush1.bf16.msra.mxu0 0
        %2305 = vmatprep.subr.bf16.mxu0 0
        %2306 = vmatpush1.bf16.msra.mxu0 0
        %2307 = vmatprep.subr.bf16.mxu0 0
        %2308 = vmatpush1.bf16.msra.mxu0 0
        %2309 = vmatprep.subr.bf16.mxu0 0
        %2310 = vmatpush1.bf16.msra.mxu0 0
        %2311 = vmatprep.subr.bf16.mxu0 0
        %2312 = vmatpush1.bf16.msra.mxu0 0
        %2313 = vmatprep.subr.bf16.mxu0 0
        %2314 = vmatpush1.bf16.msra.mxu0 0
        %2315 = vmatprep.subr.bf16.mxu0 0
        %2316 = vmatpush1.bf16.msra.mxu0 0
        %2317 = vmatprep.subr.bf16.mxu0 0
        %2318 = vmatpush1.bf16.msra.mxu0 0
        %2319 = vmatprep.subr.bf16.mxu0 0
        %2320 = vmatpush1.bf16.msra.mxu0 0
        %2321 = vmatprep.subr.bf16.mxu0 0
        %2322 = vmatpush1.bf16.msra.mxu0 0
        %2323 = vmatprep.mubr.bf16.mxu0 0
        %2324 = vmatmul.mubr.bf16.gmra.mrb[0].mxu0 %v2289
        %v2325 = vpop.f32.mrb[0].mxu0
        %v2326 = vadd.f32 0.0, %v2325
        %v2327 = vpop.f32.mrb[0].mxu0
        %v2328 = vpop.f32.mrb[0].mxu0
        %v2329 = vpop.f32.mrb[0].mxu0
        %2330 = vdwg.mxu0
        %v2331 = vadd.f32 %v2274, %v2326
        %v2332 = vadd.f32 %v1360, %v2331
        %2333 = vadd.xlane.f32.xlu0 %v2332
        %v2334 = vpop.xlane.xlu0 %2333
        %v2335 = vrcp.pop 128.0
        %v2336 = vmul.f32 %v2334, %v2335
        %v2337 = vsub.f32 %v2332, %v2336
        %v2338 = vmul.f32 %v2337, %v2337
        %2339 = vadd.xlane.f32.xlu0 %v2338
        %v2340 = vpop.xlane.xlu0 %2339
        %v2341 = vrcp.pop 127.0
        %v2342 = vmul.f32 %v2340, %v2341
        %v2343 = vlaneseq
        %v2344 = vshrl.u32 %v2343, 7
        %v2345 = vsub.s32 7, %v2344
        %v2346 = vrot.slane %v480, %v2345
        %v2347 = vmul.f32 %v2346, %v2337
        %v2348 = vrsqrt.pop %v2342
        %v2349 = vmul.f32 %v2342, %v2348
        %vm2350 = vcmp.eq.f32.partialorder %v2342, inf
        %v2351 = vsel %vm2350, %v2342, %v2349
        %vm2352 = vcmp.eq.f32.partialorder %v2342, 0.0
        %v2353 = vand.u32 %v2342, 2147483648
        %v2354 = vsel %vm2352, %v2353, %v2351
        %v2355 = vadd.f32 %v2354, 1e-06
        %v2356 = vrcp.pop %v2355
        %v2357 = vmul.f32 %v2347, %v2356
        %v2358 = vlaneseq
        %v2359 = vshrl.u32 %v2358, 7
        %v2360 = vsub.s32 0, %v2359
        %v2361 = vrot.slane %v483, %v2360
        %v2362 = vadd.f32 %v2357, %v2361
        %v2363 = vpack.c.bf16 %v2362, %v2362
        %v2364 = vld [vmem:[%s6] sm:$0xf]
        %v2365 = vld [vmem:[%s6 + $0x4] sm:$0xf]
        %v2366 = vld [vmem:[%s6 + $0x8] sm:$0xf]
        %v2367 = vld [vmem:[%s6 + $0xc] sm:$0xf]
        %v2368 = vld [vmem:[%s6 + $0x10] sm:$0xf]
        %v2369 = vld [vmem:[%s6 + $0x14] sm:$0xf]
        %v2370 = vld [vmem:[%s6 + $0x18] sm:$0xf]
        %v2371 = vld [vmem:[%s6 + $0x1c] sm:$0xf]
        %v2372 = vld [vmem:[%s6 + $0x20] sm:$0xf]
        %v2373 = vld [vmem:[%s6 + $0x24] sm:$0xf]
        %v2374 = vld [vmem:[%s6 + $0x28] sm:$0xf]
        %v2375 = vld [vmem:[%s6 + $0x2c] sm:$0xf]
        %v2376 = vld [vmem:[%s6 + $0x30] sm:$0xf]
        %v2377 = vld [vmem:[%s6 + $0x34] sm:$0xf]
        %v2378 = vld [vmem:[%s6 + $0x38] sm:$0xf]
        %v2379 = vld [vmem:[%s6 + $0x3c] sm:$0xf]
        %v2380 = vlaneseq
        %v2381 = vshrl.u32 %v2380, 7
        %v2382 = vsub.s32 1, %v2381
        %v2383 = vrot.slane %v483, %v2382
        %v2400 = vunpack.c.l.b16 %v2364
        %v2401 = vunpack.c.l.b16 %v2365
        %v2402 = vunpack.c.l.b16 %v2366
        %v2403 = vunpack.c.l.b16 %v2367
        %v2404 = vunpack.c.l.b16 %v2368
        %v2405 = vunpack.c.l.b16 %v2369
        %v2406 = vunpack.c.l.b16 %v2370
        %v2407 = vunpack.c.l.b16 %v2371
        %v2408 = vunpack.c.l.b16 %v2372
        %v2409 = vunpack.c.l.b16 %v2373
        %v2410 = vunpack.c.l.b16 %v2374
        %v2411 = vunpack.c.l.b16 %v2375
        %v2412 = vunpack.c.l.b16 %v2376
        %v2413 = vunpack.c.l.b16 %v2377
        %v2414 = vunpack.c.l.b16 %v2378
        %v2415 = vunpack.c.l.b16 %v2379
        %v2416 = vpack.c.b16 %v2401, %v2400
        %v2417 = vpack.c.b16 %v2403, %v2402
        %v2418 = vpack.c.b16 %v2405, %v2404
        %v2419 = vpack.c.b16 %v2407, %v2406
        %v2420 = vpack.c.b16 %v2409, %v2408
        %v2421 = vpack.c.b16 %v2411, %v2410
        %v2422 = vpack.c.b16 %v2413, %v2412
        %v2423 = vpack.c.b16 %v2415, %v2414
        %2432 = vmatprep.subr.bf16.mxu0 0
        %2433 = vmatpush1.bf16.msra.mxu0 %v2416
        %2434 = vmatprep.subr.bf16.mxu0 0
        %2435 = vmatpush1.bf16.msra.mxu0 %v2417
        %2436 = vmatprep.subr.bf16.mxu0 0
        %2437 = vmatpush1.bf16.msra.mxu0 %v2418
        %2438 = vmatprep.subr.bf16.mxu0 0
        %2439 = vmatpush1.bf16.msra.mxu0 %v2419
        %2440 = vmatprep.subr.bf16.mxu0 0
        %2441 = vmatpush1.bf16.msra.mxu0 %v2420
        %2442 = vmatprep.subr.bf16.mxu0 0
        %2443 = vmatpush1.bf16.msra.mxu0 %v2421
        %2444 = vmatprep.subr.bf16.mxu0 0
        %2445 = vmatpush1.bf16.msra.mxu0 %v2422
        %2446 = vmatprep.subr.bf16.mxu0 0
        %2447 = vmatpush1.bf16.msra.mxu0 %v2423
        %2448 = vmatprep.subr.bf16.mxu0 0
        %2449 = vmatpush1.bf16.msra.mxu0 0
        %2450 = vmatprep.subr.bf16.mxu0 0
        %2451 = vmatpush1.bf16.msra.mxu0 0
        %2452 = vmatprep.subr.bf16.mxu0 0
        %2453 = vmatpush1.bf16.msra.mxu0 0
        %2454 = vmatprep.subr.bf16.mxu0 0
        %2455 = vmatpush1.bf16.msra.mxu0 0
        %2456 = vmatprep.subr.bf16.mxu0 0
        %2457 = vmatpush1.bf16.msra.mxu0 0
        %2458 = vmatprep.subr.bf16.mxu0 0
        %2459 = vmatpush1.bf16.msra.mxu0 0
        %2460 = vmatprep.subr.bf16.mxu0 0
        %2461 = vmatpush1.bf16.msra.mxu0 0
        %2462 = vmatprep.subr.bf16.mxu0 0
        %2463 = vmatpush1.bf16.msra.mxu0 0
        %2464 = vmatprep.mubr.bf16.mxu0 0
        %2465 = vmatmul.mubr.bf16.gmra.mrb[0].mxu0 %v2363
        %v2466 = vpop.f32.mrb[0].mxu0
        %v2467 = vadd.f32 %v2383, %v2466
        %v2468 = vpop.f32.mrb[0].mxu0
        %v2469 = vpop.f32.mrb[0].mxu0
        %v2470 = vpop.f32.mrb[0].mxu0
        %2471 = vdwg.mxu0
        %v2472 = vmax.f32 %v2467, 0.0
        %v2473 = vpack.c.bf16 %v2472, %v2472
        %v2474 = vld [vmem:[%s7] sm:$0xf]
        %v2475 = vld [vmem:[%s7 + $0x4] sm:$0xf]
        %v2476 = vld [vmem:[%s7 + $0x8] sm:$0xf]
        %v2477 = vld [vmem:[%s7 + $0xc] sm:$0xf]
        %v2478 = vld [vmem:[%s7 + $0x10] sm:$0xf]
        %v2479 = vld [vmem:[%s7 + $0x14] sm:$0xf]
        %v2480 = vld [vmem:[%s7 + $0x18] sm:$0xf]
        %v2481 = vld [vmem:[%s7 + $0x1c] sm:$0xf]
        %v2482 = vlaneseq
        %v2483 = vshrl.u32 %v2482, 7
        %v2484 = vsub.s32 2, %v2483
        %v2485 = vrot.slane %v483, %v2484
        %v2494 = vunpack.c.l.b16 %v2474
        %v2495 = vunpack.c.l.b16 %v2475
        %v2496 = vunpack.c.l.b16 %v2476
        %v2497 = vunpack.c.l.b16 %v2477
        %v2498 = vunpack.c.l.b16 %v2478
        %v2499 = vunpack.c.l.b16 %v2479
        %v2500 = vunpack.c.l.b16 %v2480
        %v2501 = vunpack.c.l.b16 %v2481
        %v2502 = vpack.c.b16 %v2495, %v2494
        %v2503 = vpack.c.b16 %v2497, %v2496
        %v2504 = vpack.c.b16 %v2499, %v2498
        %v2505 = vpack.c.b16 %v2501, %v2500
        %v2511 = vsel %vm1357, %v2473, 0
        %2513 = vmatprep.subr.bf16.mxu0 0
        %2514 = vmatpush1.bf16.msra.mxu0 %v2502
        %2515 = vmatprep.subr.bf16.mxu0 0
        %2516 = vmatpush1.bf16.msra.mxu0 %v2503
        %2517 = vmatprep.subr.bf16.mxu0 0
        %2518 = vmatpush1.bf16.msra.mxu0 %v2504
        %2519 = vmatprep.subr.bf16.mxu0 0
        %2520 = vmatpush1.bf16.msra.mxu0 %v2505
        %2521 = vmatprep.subr.bf16.mxu0 0
        %2522 = vmatpush1.bf16.msra.mxu0 0
        %2523 = vmatprep.subr.bf16.mxu0 0
        %2524 = vmatpush1.bf16.msra.mxu0 0
        %2525 = vmatprep.subr.bf16.mxu0 0
        %2526 = vmatpush1.bf16.msra.mxu0 0
        %2527 = vmatprep.subr.bf16.mxu0 0
        %2528 = vmatpush1.bf16.msra.mxu0 0
        %2529 = vmatprep.subr.bf16.mxu0 0
        %2530 = vmatpush1.bf16.msra.mxu0 0
        %2531 = vmatprep.subr.bf16.mxu0 0
        %2532 = vmatpush1.bf16.msra.mxu0 0
        %2533 = vmatprep.subr.bf16.mxu0 0
        %2534 = vmatpush1.bf16.msra.mxu0 0
        %2535 = vmatprep.subr.bf16.mxu0 0
        %2536 = vmatpush1.bf16.msra.mxu0 0
        %2537 = vmatprep.subr.bf16.mxu0 0
        %2538 = vmatpush1.bf16.msra.mxu0 0
        %2539 = vmatprep.subr.bf16.mxu0 0
        %2540 = vmatpush1.bf16.msra.mxu0 0
        %2541 = vmatprep.subr.bf16.mxu0 0
        %2542 = vmatpush1.bf16.msra.mxu0 0
        %2543 = vmatprep.subr.bf16.mxu0 0
        %2544 = vmatpush1.bf16.msra.mxu0 0
        %2545 = vmatprep.mubr.bf16.mxu0 0
        %2546 = vmatmul.mubr.bf16.gmra.mrb[0].mxu0 %v2511
        %v2547 = vpop.f32.mrb[0].mxu0
        %v2548 = vadd.f32 %v2485, %v2547
        %v2549 = vpop.f32.mrb[0].mxu0
        %v2550 = vpop.f32.mrb[0].mxu0
        %v2551 = vpop.f32.mrb[0].mxu0
        %2552 = vdwg.mxu0
        %v2553 = vadd.f32 %v2362, %v2548
        %2554 = vadd.xlane.f32.xlu0 %v2553
        %v2555 = vpop.xlane.xlu0 %2554
        %v2556 = vmul.f32 %v2555, %v2335
        %v2557 = vsub.f32 %v2553, %v2556
        %v2558 = vmul.f32 %v2557, %v2557
        %2559 = vadd.xlane.f32.xlu0 %v2558
        %v2560 = vpop.xlane.xlu0 %2559
        %v2561 = vmul.f32 %v2560, %v2341
        %v2562 = vlaneseq
        %v2563 = vshrl.u32 %v2562, 7
        %v2564 = vsub.s32 3, %v2563
        %v2565 = vrot.slane %v483, %v2564
        %v2566 = vmul.f32 %v2565, %v2557
        %v2567 = vrsqrt.pop %v2561
        %v2568 = vmul.f32 %v2561, %v2567
        %vm2569 = vcmp.eq.f32.partialorder %v2561, inf
        %v2570 = vsel %vm2569, %v2561, %v2568
        %vm2571 = vcmp.eq.f32.partialorder %v2561, 0.0
        %v2572 = vand.u32 %v2561, 2147483648
        %v2573 = vsel %vm2571, %v2572, %v2570
        %v2574 = vadd.f32 %v2573, 1e-06
        %v2575 = vrcp.pop %v2574
        %v2576 = vmul.f32 %v2566, %v2575
        %v2577 = vlaneseq
        %v2578 = vshrl.u32 %v2577, 7
        %v2579 = vsub.s32 4, %v2578
        %v2580 = vrot.slane %v483, %v2579
        %v2581 = vadd.f32 %v2576, %v2580
        %s2582 = scalar_lea.vmem %s4, 192
        %v2583 = vld [vmem:[%s2582] sm:$0xff]
        %v2584 = vld [vmem:[%s2582 + $0x8] sm:$0xf]
        %v2585 = vld [vmem:[%s2582 + $0xc] sm:$0xff]
        %v2586 = vld [vmem:[%s2582 + $0x14] sm:$0xf]
        %v2587 = vld [vmem:[%s2582 + $0x18] sm:$0xff]
        %v2588 = vld [vmem:[%s2582 + $0x20] sm:$0xf]
        %v2589 = vld [vmem:[%s2582 + $0x24] sm:$0xff]
        %v2590 = vld [vmem:[%s2582 + $0x2c] sm:$0xf]
        %v2591 = vld [vmem:[%s2582 + $0x30] sm:$0xff]
        %v2592 = vld [vmem:[%s2582 + $0x38] sm:$0xf]
        %v2593 = vld [vmem:[%s2582 + $0x3c] sm:$0xff]
        %v2594 = vld [vmem:[%s2582 + $0x44] sm:$0xf]
        %v2595 = vld [vmem:[%s2582 + $0x48] sm:$0xff]
        %v2596 = vld [vmem:[%s2582 + $0x50] sm:$0xf]
        %v2597 = vld [vmem:[%s2582 + $0x54] sm:$0xff]
        %v2598 = vld [vmem:[%s2582 + $0x5c] sm:$0xf]
        %v2599 = vld [vmem:[%s2582 + $0x60] sm:$0xff]
        %v2600 = vld [vmem:[%s2582 + $0x68] sm:$0xf]
        %v2601 = vld [vmem:[%s2582 + $0x6c] sm:$0xff]
        %v2602 = vld [vmem:[%s2582 + $0x74] sm:$0xf]
        %v2603 = vld [vmem:[%s2582 + $0x78] sm:$0xff]
        %v2604 = vld [vmem:[%s2582 + $0x80] sm:$0xf]
        %v2605 = vld [vmem:[%s2582 + $0x84] sm:$0xff]
        %v2606 = vld [vmem:[%s2582 + $0x8c] sm:$0xf]
        %v2607 = vld [vmem:[%s2582 + $0x90] sm:$0xff]
        %v2608 = vld [vmem:[%s2582 + $0x98] sm:$0xf]
        %v2609 = vld [vmem:[%s2582 + $0x9c] sm:$0xff]
        %v2610 = vld [vmem:[%s2582 + $0xa4] sm:$0xf]
        %v2611 = vld [vmem:[%s2582 + $0xa8] sm:$0xff]
        %v2612 = vld [vmem:[%s2582 + $0xb0] sm:$0xf]
        %v2613 = vld [vmem:[%s2582 + $0xb4] sm:$0xff]
        %v2614 = vld [vmem:[%s2582 + $0xbc] sm:$0xf]
        %s2615 = scalar_lea.vmem %s5, 64
        %v2616 = vld [vmem:[%s2615] sm:$0xf]
        %v2617 = vld [vmem:[%s2615 + $0x4] sm:$0xf]
        %v2618 = vld [vmem:[%s2615 + $0x8] sm:$0xf]
        %v2619 = vld [vmem:[%s2615 + $0xc] sm:$0xf]
        %v2620 = vld [vmem:[%s2615 + $0x10] sm:$0xf]
        %v2621 = vld [vmem:[%s2615 + $0x14] sm:$0xf]
        %v2622 = vld [vmem:[%s2615 + $0x18] sm:$0xf]
        %v2623 = vld [vmem:[%s2615 + $0x1c] sm:$0xf]
        %v2624 = vld [vmem:[%s2615 + $0x20] sm:$0xf]
        %v2625 = vld [vmem:[%s2615 + $0x24] sm:$0xf]
        %v2626 = vld [vmem:[%s2615 + $0x28] sm:$0xf]
        %v2627 = vld [vmem:[%s2615 + $0x2c] sm:$0xf]
        %v2628 = vld [vmem:[%s2615 + $0x30] sm:$0xf]
        %v2629 = vld [vmem:[%s2615 + $0x34] sm:$0xf]
        %v2630 = vld [vmem:[%s2615 + $0x38] sm:$0xf]
        %v2631 = vld [vmem:[%s2615 + $0x3c] sm:$0xf]
        %v2632 = vpack.c.bf16 %v2581, %v2581
        %v2633 = vlaneseq
        %v2634 = vshrl.u32 %v2633, 7
        %v2635 = vsub.s32 5, %v2634
        %v2636 = vrot.slane %v483, %v2635
        %v2637 = vlaneseq
        %v2638 = vshrl.u32 %v2637, 7
        %v2639 = vsub.s32 5, %v2638
        %v2640 = vrot.slane %v484, %v2639
        %v2641 = vlaneseq
        %v2642 = vshrl.u32 %v2641, 7
        %v2643 = vsub.s32 5, %v2642
        %v2644 = vrot.slane %v485, %v2643
        %v2677 = vunpack.c.l.b16 %v2583
        %v2678 = vunpack.c.h.b16 %v2583
        %v2679 = vunpack.c.l.b16 %v2584
        %v2680 = vunpack.c.l.b16 %v2585
        %v2681 = vunpack.c.h.b16 %v2585
        %v2682 = vunpack.c.l.b16 %v2586
        %v2683 = vunpack.c.l.b16 %v2587
        %v2684 = vunpack.c.h.b16 %v2587
        %v2685 = vunpack.c.l.b16 %v2588
        %v2686 = vunpack.c.l.b16 %v2589
        %v2687 = vunpack.c.h.b16 %v2589
        %v2688 = vunpack.c.l.b16 %v2590
        %v2689 = vunpack.c.l.b16 %v2591
        %v2690 = vunpack.c.h.b16 %v2591
        %v2691 = vunpack.c.l.b16 %v2592
        %v2692 = vunpack.c.l.b16 %v2593
        %v2693 = vunpack.c.h.b16 %v2593
        %v2694 = vunpack.c.l.b16 %v2594
        %v2695 = vunpack.c.l.b16 %v2595
        %v2696 = vunpack.c.h.b16 %v2595
        %v2697 = vunpack.c.l.b16 %v2596
        %v2698 = vunpack.c.l.b16 %v2597
        %v2699 = vunpack.c.h.b16 %v2597
        %v2700 = vunpack.c.l.b16 %v2598
        %v2701 = vunpack.c.l.b16 %v2599
        %v2702 = vunpack.c.h.b16 %v2599
        %v2703 = vunpack.c.l.b16 %v2600
        %v2704 = vunpack.c.l.b16 %v2601
        %v2705 = vunpack.c.h.b16 %v2601
        %v2706 = vunpack.c.l.b16 %v2602
        %v2707 = vunpack.c.l.b16 %v2603
        %v2708 = vunpack.c.h.b16 %v2603
        %v2709 = vunpack.c.l.b16 %v2604
        %v2710 = vunpack.c.l.b16 %v2605
        %v2711 = vunpack.c.h.b16 %v2605
        %v2712 = vunpack.c.l.b16 %v2606
        %v2713 = vunpack.c.l.b16 %v2607
        %v2714 = vunpack.c.h.b16 %v2607
        %v2715 = vunpack.c.l.b16 %v2608
        %v2716 = vunpack.c.l.b16 %v2609
        %v2717 = vunpack.c.h.b16 %v2609
        %v2718 = vunpack.c.l.b16 %v2610
        %v2719 = vunpack.c.l.b16 %v2611
        %v2720 = vunpack.c.h.b16 %v2611
        %v2721 = vunpack.c.l.b16 %v2612
        %v2722 = vunpack.c.l.b16 %v2613
        %v2723 = vunpack.c.h.b16 %v2613
        %v2724 = vunpack.c.l.b16 %v2614
        %v2725 = vpack.c.b16 %v2680, %v2677
        %v2726 = vpack.c.b16 %v2681, %v2678
        %v2727 = vpack.c.b16 %v2682, %v2679
        %v2728 = vpack.c.b16 %v2686, %v2683
        %v2729 = vpack.c.b16 %v2687, %v2684
        %v2730 = vpack.c.b16 %v2688, %v2685
        %v2731 = vpack.c.b16 %v2692, %v2689
        %v2732 = vpack.c.b16 %v2693, %v2690
        %v2733 = vpack.c.b16 %v2694, %v2691
        %v2734 = vpack.c.b16 %v2698, %v2695
        %v2735 = vpack.c.b16 %v2699, %v2696
        %v2736 = vpack.c.b16 %v2700, %v2697
        %v2737 = vpack.c.b16 %v2704, %v2701
        %v2738 = vpack.c.b16 %v2705, %v2702
        %v2739 = vpack.c.b16 %v2706, %v2703
        %v2740 = vpack.c.b16 %v2710, %v2707
        %v2741 = vpack.c.b16 %v2711, %v2708
        %v2742 = vpack.c.b16 %v2712, %v2709
        %v2743 = vpack.c.b16 %v2716, %v2713
        %v2744 = vpack.c.b16 %v2717, %v2714
        %v2745 = vpack.c.b16 %v2718, %v2715
        %v2746 = vpack.c.b16 %v2722, %v2719
        %v2747 = vpack.c.b16 %v2723, %v2720
        %v2748 = vpack.c.b16 %v2724, %v2721
        %2773 = vmatprep.subr.bf16.mxu0 %v2726
        %2774 = vmatpush1.bf16.msra.mxu0 %v2725
        %2775 = vmatprep.subr.bf16.mxu0 %v2729
        %2776 = vmatpush1.bf16.msra.mxu0 %v2728
        %2777 = vmatprep.subr.bf16.mxu0 %v2732
        %2778 = vmatpush1.bf16.msra.mxu0 %v2731
        %2779 = vmatprep.subr.bf16.mxu0 %v2735
        %2780 = vmatpush1.bf16.msra.mxu0 %v2734
        %2781 = vmatprep.subr.bf16.mxu0 %v2738
        %2782 = vmatpush1.bf16.msra.mxu0 %v2737
        %2783 = vmatprep.subr.bf16.mxu0 %v2741
        %2784 = vmatpush1.bf16.msra.mxu0 %v2740
        %2785 = vmatprep.subr.bf16.mxu0 %v2744
        %2786 = vmatpush1.bf16.msra.mxu0 %v2743
        %2787 = vmatprep.subr.bf16.mxu0 %v2747
        %2788 = vmatpush1.bf16.msra.mxu0 %v2746
        %2789 = vmatprep.subr.bf16.mxu0 0
        %2790 = vmatpush1.bf16.msra.mxu0 0
        %2791 = vmatprep.subr.bf16.mxu0 0
        %2792 = vmatpush1.bf16.msra.mxu0 0
        %2793 = vmatprep.subr.bf16.mxu0 0
        %2794 = vmatpush1.bf16.msra.mxu0 0
        %2795 = vmatprep.subr.bf16.mxu0 0
        %2796 = vmatpush1.bf16.msra.mxu0 0
        %2797 = vmatprep.subr.bf16.mxu0 0
        %2798 = vmatpush1.bf16.msra.mxu0 0
        %2799 = vmatprep.subr.bf16.mxu0 0
        %2800 = vmatpush1.bf16.msra.mxu0 0
        %2801 = vmatprep.subr.bf16.mxu0 0
        %2802 = vmatpush1.bf16.msra.mxu0 0
        %2803 = vmatprep.subr.bf16.mxu0 0
        %2804 = vmatpush1.bf16.msra.mxu0 0
        %2805 = vmatprep.mubr.bf16.mxu0 0
        %2806 = vmatmul.mubr.bf16.gmra.mrb[0].mxu0 %v2632
        %v2807 = vpop.f32.mrb[0].mxu0
        %v2808 = vadd.f32 %v2636, %v2807
        %v2809 = vpop.f32.mrb[0].mxu0
        %v2810 = vadd.f32 %v2640, %v2809
        %v2811 = vpop.f32.mrb[0].mxu0
        %v2812 = vpop.f32.mrb[0].mxu0
        %2813 = vdwg.mxu0
        %2814 = vmatprep.subr.bf16.mxu0 0
        %2815 = vmatpush1.bf16.msra.mxu0 %v2727
        %2816 = vmatprep.subr.bf16.mxu0 0
        %2817 = vmatpush1.bf16.msra.mxu0 %v2730
        %2818 = vmatprep.subr.bf16.mxu0 0
        %2819 = vmatpush1.bf16.msra.mxu0 %v2733
        %2820 = vmatprep.subr.bf16.mxu0 0
        %2821 = vmatpush1.bf16.msra.mxu0 %v2736
        %2822 = vmatprep.subr.bf16.mxu0 0
        %2823 = vmatpush1.bf16.msra.mxu0 %v2739
        %2824 = vmatprep.subr.bf16.mxu0 0
        %2825 = vmatpush1.bf16.msra.mxu0 %v2742
        %2826 = vmatprep.subr.bf16.mxu0 0
        %2827 = vmatpush1.bf16.msra.mxu0 %v2745
        %2828 = vmatprep.subr.bf16.mxu0 0
        %2829 = vmatpush1.bf16.msra.mxu0 %v2748
        %2830 = vmatprep.subr.bf16.mxu0 0
        %2831 = vmatpush1.bf16.msra.mxu0 0
        %2832 = vmatprep.subr.bf16.mxu0 0
        %2833 = vmatpush1.bf16.msra.mxu0 0
        %2834 = vmatprep.subr.bf16.mxu0 0
        %2835 = vmatpush1.bf16.msra.mxu0 0
        %2836 = vmatprep.subr.bf16.mxu0 0
        %2837 = vmatpush1.bf16.msra.mxu0 0
        %2838 = vmatprep.subr.bf16.mxu0 0
        %2839 = vmatpush1.bf16.msra.mxu0 0
        %2840 = vmatprep.subr.bf16.mxu0 0
        %2841 = vmatpush1.bf16.msra.mxu0 0
        %2842 = vmatprep.subr.bf16.mxu0 0
        %2843 = vmatpush1.bf16.msra.mxu0 0
        %2844 = vmatprep.subr.bf16.mxu0 0
        %2845 = vmatpush1.bf16.msra.mxu0 0
        %2846 = vmatprep.mubr.bf16.mxu0 0
        %2847 = vmatmul.mubr.bf16.gmra.mrb[0].mxu0 %v2632
        %v2848 = vpop.f32.mrb[0].mxu0
        %v2849 = vadd.f32 %v2644, %v2848
        %v2850 = vpop.f32.mrb[0].mxu0
        %v2851 = vpop.f32.mrb[0].mxu0
        %v2852 = vpop.f32.mrb[0].mxu0
        %2853 = vdwg.mxu0
        %2855 = vrot.lane.b32.xlu0 %v2808, 96
        %v2856 = vpop.permute.xlu0 %2855
        %2858 = vrot.lane.b32.xlu0 %v2808, 64
        %v2859 = vpop.permute.xlu0 %2858
        %2861 = vrot.lane.b32.xlu0 %v2808, 32
        %v2862 = vpop.permute.xlu0 %2861
        %2865 = vrot.lane.b32.xlu0 %v2810, 96
        %v2866 = vpop.permute.xlu0 %2865
        %2868 = vrot.lane.b32.xlu0 %v2810, 64
        %v2869 = vpop.permute.xlu0 %2868
        %2871 = vrot.lane.b32.xlu0 %v2810, 32
        %v2872 = vpop.permute.xlu0 %2871
        %2875 = vrot.lane.b32.xlu0 %v2849, 96
        %v2876 = vpop.permute.xlu0 %2875
        %2878 = vrot.lane.b32.xlu0 %v2849, 64
        %v2879 = vpop.permute.xlu0 %2878
        %2881 = vrot.lane.b32.xlu0 %v2849, 32
        %v2882 = vpop.permute.xlu0 %2881
        %v2884 = vpack.c.bf16 %v2808, %v2808
        %v2885 = vpack.c.bf16 %v2856, %v2856
        %v2886 = vpack.c.bf16 %v2859, %v2859
        %v2887 = vpack.c.bf16 %v2862, %v2862
        %v2888 = vpack.c.bf16 %v2810, %v2810
        %v2889 = vpack.c.bf16 %v2866, %v2866
        %v2890 = vpack.c.bf16 %v2869, %v2869
        %v2891 = vpack.c.bf16 %v2872, %v2872
        %v2893 = vsel %vm1281, %v2884, 0
        %v2896 = vsel %vm1281, %v2888, 0
        %2898 = vmatprep.subr.bf16.mxu0 0
        %2899 = vmatpush1.bf16.xpose.msra.mxu0 %v2896
        %2900 = vmatprep.subr.bf16.mxu0 0
        %2901 = vmatpush1.bf16.xpose.msra.mxu0 0
        %2902 = vmatprep.subr.bf16.mxu0 0
        %2903 = vmatpush1.bf16.xpose.msra.mxu0 0
        %2904 = vmatprep.subr.bf16.mxu0 0
        %2905 = vmatpush1.bf16.xpose.msra.mxu0 0
        %2906 = vmatprep.subr.bf16.mxu0 0
        %2907 = vmatpush1.bf16.xpose.msra.mxu0 0
        %2908 = vmatprep.subr.bf16.mxu0 0
        %2909 = vmatpush1.bf16.xpose.msra.mxu0 0
        %2910 = vmatprep.subr.bf16.mxu0 0
        %2911 = vmatpush1.bf16.xpose.msra.mxu0 0
        %2912 = vmatprep.subr.bf16.mxu0 0
        %2913 = vmatpush1.bf16.xpose.msra.mxu0 0
        %2914 = vmatprep.subr.bf16.mxu0 0
        %2915 = vmatpush1.bf16.xpose.msra.mxu0 0
        %2916 = vmatprep.subr.bf16.mxu0 0
        %2917 = vmatpush1.bf16.xpose.msra.mxu0 0
        %2918 = vmatprep.subr.bf16.mxu0 0
        %2919 = vmatpush1.bf16.xpose.msra.mxu0 0
        %2920 = vmatprep.subr.bf16.mxu0 0
        %2921 = vmatpush1.bf16.xpose.msra.mxu0 0
        %2922 = vmatprep.subr.bf16.mxu0 0
        %2923 = vmatpush1.bf16.xpose.msra.mxu0 0
        %2924 = vmatprep.subr.bf16.mxu0 0
        %2925 = vmatpush1.bf16.xpose.msra.mxu0 0
        %2926 = vmatprep.subr.bf16.mxu0 0
        %2927 = vmatpush1.bf16.xpose.msra.mxu0 0
        %2928 = vmatprep.subr.bf16.mxu0 0
        %2929 = vmatpush1.bf16.xpose.msra.mxu0 0
        %2930 = vmatprep.mubr.bf16.mxu0 0
        %2931 = vmatmul.mubr.bf16.gmra.mrb[0].mxu0 %v2893
        %v2932 = vpop.f32.mrb[0].mxu0
        %v2933 = vadd.f32 0.0, %v2932
        %v2934 = vpop.f32.mrb[0].mxu0
        %v2935 = vpop.f32.mrb[0].mxu0
        %v2936 = vpop.f32.mrb[0].mxu0
        %2937 = vdwg.mxu0
        %v2939 = vsel %vm1281, %v2885, 0
        %v2942 = vsel %vm1281, %v2889, 0
        %2944 = vmatprep.subr.bf16.mxu0 0
        %2945 = vmatpush1.bf16.xpose.msra.mxu0 %v2942
        %2946 = vmatprep.subr.bf16.mxu0 0
        %2947 = vmatpush1.bf16.xpose.msra.mxu0 0
        %2948 = vmatprep.subr.bf16.mxu0 0
        %2949 = vmatpush1.bf16.xpose.msra.mxu0 0
        %2950 = vmatprep.subr.bf16.mxu0 0
        %2951 = vmatpush1.bf16.xpose.msra.mxu0 0
        %2952 = vmatprep.subr.bf16.mxu0 0
        %2953 = vmatpush1.bf16.xpose.msra.mxu0 0
        %2954 = vmatprep.subr.bf16.mxu0 0
        %2955 = vmatpush1.bf16.xpose.msra.mxu0 0
        %2956 = vmatprep.subr.bf16.mxu0 0
        %2957 = vmatpush1.bf16.xpose.msra.mxu0 0
        %2958 = vmatprep.subr.bf16.mxu0 0
        %2959 = vmatpush1.bf16.xpose.msra.mxu0 0
        %2960 = vmatprep.subr.bf16.mxu0 0
        %2961 = vmatpush1.bf16.xpose.msra.mxu0 0
        %2962 = vmatprep.subr.bf16.mxu0 0
        %2963 = vmatpush1.bf16.xpose.msra.mxu0 0
        %2964 = vmatprep.subr.bf16.mxu0 0
        %2965 = vmatpush1.bf16.xpose.msra.mxu0 0
        %2966 = vmatprep.subr.bf16.mxu0 0
        %2967 = vmatpush1.bf16.xpose.msra.mxu0 0
        %2968 = vmatprep.subr.bf16.mxu0 0
        %2969 = vmatpush1.bf16.xpose.msra.mxu0 0
        %2970 = vmatprep.subr.bf16.mxu0 0
        %2971 = vmatpush1.bf16.xpose.msra.mxu0 0
        %2972 = vmatprep.subr.bf16.mxu0 0
        %2973 = vmatpush1.bf16.xpose.msra.mxu0 0
        %2974 = vmatprep.subr.bf16.mxu0 0
        %2975 = vmatpush1.bf16.xpose.msra.mxu0 0
        %2976 = vmatprep.mubr.bf16.mxu0 0
        %2977 = vmatmul.mubr.bf16.gmra.mrb[0].mxu0 %v2939
        %v2978 = vpop.f32.mrb[0].mxu0
        %v2979 = vadd.f32 0.0, %v2978
        %v2980 = vpop.f32.mrb[0].mxu0
        %v2981 = vpop.f32.mrb[0].mxu0
        %v2982 = vpop.f32.mrb[0].mxu0
        %2983 = vdwg.mxu0
        %v2985 = vsel %vm1281, %v2886, 0
        %v2988 = vsel %vm1281, %v2890, 0
        %2990 = vmatprep.subr.bf16.mxu0 0
        %2991 = vmatpush1.bf16.xpose.msra.mxu0 %v2988
        %2992 = vmatprep.subr.bf16.mxu0 0
        %2993 = vmatpush1.bf16.xpose.msra.mxu0 0
        %2994 = vmatprep.subr.bf16.mxu0 0
        %2995 = vmatpush1.bf16.xpose.msra.mxu0 0
        %2996 = vmatprep.subr.bf16.mxu0 0
        %2997 = vmatpush1.bf16.xpose.msra.mxu0 0
        %2998 = vmatprep.subr.bf16.mxu0 0
        %2999 = vmatpush1.bf16.xpose.msra.mxu0 0
        %3000 = vmatprep.subr.bf16.mxu0 0
        %3001 = vmatpush1.bf16.xpose.msra.mxu0 0
        %3002 = vmatprep.subr.bf16.mxu0 0
        %3003 = vmatpush1.bf16.xpose.msra.mxu0 0
        %3004 = vmatprep.subr.bf16.mxu0 0
        %3005 = vmatpush1.bf16.xpose.msra.mxu0 0
        %3006 = vmatprep.subr.bf16.mxu0 0
        %3007 = vmatpush1.bf16.xpose.msra.mxu0 0
        %3008 = vmatprep.subr.bf16.mxu0 0
        %3009 = vmatpush1.bf16.xpose.msra.mxu0 0
        %3010 = vmatprep.subr.bf16.mxu0 0
        %3011 = vmatpush1.bf16.xpose.msra.mxu0 0
        %3012 = vmatprep.subr.bf16.mxu0 0
        %3013 = vmatpush1.bf16.xpose.msra.mxu0 0
        %3014 = vmatprep.subr.bf16.mxu0 0
        %3015 = vmatpush1.bf16.xpose.msra.mxu0 0
        %3016 = vmatprep.subr.bf16.mxu0 0
        %3017 = vmatpush1.bf16.xpose.msra.mxu0 0
        %3018 = vmatprep.subr.bf16.mxu0 0
        %3019 = vmatpush1.bf16.xpose.msra.mxu0 0
        %3020 = vmatprep.subr.bf16.mxu0 0
        %3021 = vmatpush1.bf16.xpose.msra.mxu0 0
        %3022 = vmatprep.mubr.bf16.mxu0 0
        %3023 = vmatmul.mubr.bf16.gmra.mrb[0].mxu0 %v2985
        %v3024 = vpop.f32.mrb[0].mxu0
        %v3025 = vadd.f32 0.0, %v3024
        %v3026 = vpop.f32.mrb[0].mxu0
        %v3027 = vpop.f32.mrb[0].mxu0
        %v3028 = vpop.f32.mrb[0].mxu0
        %3029 = vdwg.mxu0
        %v3031 = vsel %vm1281, %v2887, 0
        %v3034 = vsel %vm1281, %v2891, 0
        %3036 = vmatprep.subr.bf16.mxu0 0
        %3037 = vmatpush1.bf16.xpose.msra.mxu0 %v3034
        %3038 = vmatprep.subr.bf16.mxu0 0
        %3039 = vmatpush1.bf16.xpose.msra.mxu0 0
        %3040 = vmatprep.subr.bf16.mxu0 0
        %3041 = vmatpush1.bf16.xpose.msra.mxu0 0
        %3042 = vmatprep.subr.bf16.mxu0 0
        %3043 = vmatpush1.bf16.xpose.msra.mxu0 0
        %3044 = vmatprep.subr.bf16.mxu0 0
        %3045 = vmatpush1.bf16.xpose.msra.mxu0 0
        %3046 = vmatprep.subr.bf16.mxu0 0
        %3047 = vmatpush1.bf16.xpose.msra.mxu0 0
        %3048 = vmatprep.subr.bf16.mxu0 0
        %3049 = vmatpush1.bf16.xpose.msra.mxu0 0
        %3050 = vmatprep.subr.bf16.mxu0 0
        %3051 = vmatpush1.bf16.xpose.msra.mxu0 0
        %3052 = vmatprep.subr.bf16.mxu0 0
        %3053 = vmatpush1.bf16.xpose.msra.mxu0 0
        %3054 = vmatprep.subr.bf16.mxu0 0
        %3055 = vmatpush1.bf16.xpose.msra.mxu0 0
        %3056 = vmatprep.subr.bf16.mxu0 0
        %3057 = vmatpush1.bf16.xpose.msra.mxu0 0
        %3058 = vmatprep.subr.bf16.mxu0 0
        %3059 = vmatpush1.bf16.xpose.msra.mxu0 0
        %3060 = vmatprep.subr.bf16.mxu0 0
        %3061 = vmatpush1.bf16.xpose.msra.mxu0 0
        %3062 = vmatprep.subr.bf16.mxu0 0
        %3063 = vmatpush1.bf16.xpose.msra.mxu0 0
        %3064 = vmatprep.subr.bf16.mxu0 0
        %3065 = vmatpush1.bf16.xpose.msra.mxu0 0
        %3066 = vmatprep.subr.bf16.mxu0 0
        %3067 = vmatpush1.bf16.xpose.msra.mxu0 0
        %3068 = vmatprep.mubr.bf16.mxu0 0
        %3069 = vmatmul.mubr.bf16.gmra.mrb[0].mxu0 %v3031
        %v3070 = vpop.f32.mrb[0].mxu0
        %v3071 = vadd.f32 0.0, %v3070
        %v3072 = vpop.f32.mrb[0].mxu0
        %v3073 = vpop.f32.mrb[0].mxu0
        %v3074 = vpop.f32.mrb[0].mxu0
        %3075 = vdwg.mxu0
        %v3076 = vmul.f32 %v2933, 0.17677669
        %v3077 = vmul.f32 %v2979, 0.17677669
        %v3078 = vmul.f32 %v3025, 0.17677669
        %v3079 = vmul.f32 %v3071, 0.17677669
        %v3080 = vadd.f32 %v3076, %v1361
        %v3081 = vadd.f32 %v3077, %v1361
        %v3082 = vadd.f32 %v3078, %v1361
        %v3083 = vadd.f32 %v3079, %v1361
        %v3084 = vsel %vm1862, %v3080, -inf
        %3085 = vmax.xlane.f32.xlu0 %v3084
        %v3086 = vpop.xlane.xlu0 %3085
        %v3087 = vsel %vm1862, %v3081, -inf
        %3088 = vmax.xlane.f32.xlu0 %v3087
        %v3089 = vpop.xlane.xlu0 %3088
        %v3090 = vsel %vm1862, %v3082, -inf
        %3091 = vmax.xlane.f32.xlu0 %v3090
        %v3092 = vpop.xlane.xlu0 %3091
        %v3093 = vsel %vm1862, %v3083, -inf
        %3094 = vmax.xlane.f32.xlu0 %v3093
        %v3095 = vpop.xlane.xlu0 %3094
        %v3096 = vsub.f32 %v3080, %v3086
        %v3097 = vsub.f32 %v3081, %v3089
        %v3098 = vsub.f32 %v3082, %v3092
        %v3099 = vsub.f32 %v3083, %v3095
        %v3100 = vmul.f32 %v3096, 1.442695
        %v3101 = vpow.pop %v3100
        %v3102 = vmul.f32 %v3097, 1.442695
        %v3103 = vpow.pop %v3102
        %v3104 = vmul.f32 %v3098, 1.442695
        %v3105 = vpow.pop %v3104
        %v3106 = vmul.f32 %v3099, 1.442695
        %v3107 = vpow.pop %v3106
        %v3108 = vsel %vm1862, %v3101, 0.0
        %3109 = vadd.xlane.f32.xlu0 %v3108
        %v3110 = vpop.xlane.xlu0 %3109
        %v3111 = vsel %vm1862, %v3103, 0.0
        %3112 = vadd.xlane.f32.xlu0 %v3111
        %v3113 = vpop.xlane.xlu0 %3112
        %v3114 = vsel %vm1862, %v3105, 0.0
        %3115 = vadd.xlane.f32.xlu0 %v3114
        %v3116 = vpop.xlane.xlu0 %3115
        %v3117 = vsel %vm1862, %v3107, 0.0
        %3118 = vadd.xlane.f32.xlu0 %v3117
        %v3119 = vpop.xlane.xlu0 %3118
        %v3120 = vrcp.pop %v3110
        %v3121 = vmul.f32 %v3101, %v3120
        %v3122 = vrcp.pop %v3113
        %v3123 = vmul.f32 %v3103, %v3122
        %v3124 = vrcp.pop %v3116
        %v3125 = vmul.f32 %v3105, %v3124
        %v3126 = vrcp.pop %v3119
        %v3127 = vmul.f32 %v3107, %v3126
        %v3128 = vpack.c.bf16 %v3121, %v3121
        %v3129 = vpack.c.bf16 %v3123, %v3123
        %v3130 = vpack.c.bf16 %v3125, %v3125
        %v3131 = vpack.c.bf16 %v3127, %v3127
        %v3132 = vpack.c.bf16 %v2849, %v2849
        %v3133 = vpack.c.bf16 %v2876, %v2876
        %v3134 = vpack.c.bf16 %v2879, %v2879
        %v3135 = vpack.c.bf16 %v2882, %v2882
        %v3137 = vsel %vm1862, %v3128, 0
        %v3140 = vsel %vm1918, %v3132, 0
        %3142 = vmatprep.subr.bf16.mxu0 0
        %3143 = vmatpush1.bf16.msra.mxu0 %v3140
        %3144 = vmatprep.subr.bf16.mxu0 0
        %3145 = vmatpush1.bf16.msra.mxu0 0
        %3146 = vmatprep.subr.bf16.mxu0 0
        %3147 = vmatpush1.bf16.msra.mxu0 0
        %3148 = vmatprep.subr.bf16.mxu0 0
        %3149 = vmatpush1.bf16.msra.mxu0 0
        %3150 = vmatprep.subr.bf16.mxu0 0
        %3151 = vmatpush1.bf16.msra.mxu0 0
        %3152 = vmatprep.subr.bf16.mxu0 0
        %3153 = vmatpush1.bf16.msra.mxu0 0
        %3154 = vmatprep.subr.bf16.mxu0 0
        %3155 = vmatpush1.bf16.msra.mxu0 0
        %3156 = vmatprep.subr.bf16.mxu0 0
        %3157 = vmatpush1.bf16.msra.mxu0 0
        %3158 = vmatprep.subr.bf16.mxu0 0
        %3159 = vmatpush1.bf16.msra.mxu0 0
        %3160 = vmatprep.subr.bf16.mxu0 0
        %3161 = vmatpush1.bf16.msra.mxu0 0
        %3162 = vmatprep.subr.bf16.mxu0 0
        %3163 = vmatpush1.bf16.msra.mxu0 0
        %3164 = vmatprep.subr.bf16.mxu0 0
        %3165 = vmatpush1.bf16.msra.mxu0 0
        %3166 = vmatprep.subr.bf16.mxu0 0
        %3167 = vmatpush1.bf16.msra.mxu0 0
        %3168 = vmatprep.subr.bf16.mxu0 0
        %3169 = vmatpush1.bf16.msra.mxu0 0
        %3170 = vmatprep.subr.bf16.mxu0 0
        %3171 = vmatpush1.bf16.msra.mxu0 0
        %3172 = vmatprep.subr.bf16.mxu0 0
        %3173 = vmatpush1.bf16.msra.mxu0 0
        %3174 = vmatprep.mubr.bf16.mxu0 0
        %3175 = vmatmul.mubr.bf16.gmra.mrb[0].mxu0 %v3137
        %v3176 = vpop.f32.mrb[0].mxu0
        %v3177 = vadd.f32 0.0, %v3176
        %v3178 = vpop.f32.mrb[0].mxu0
        %v3179 = vpop.f32.mrb[0].mxu0
        %v3180 = vpop.f32.mrb[0].mxu0
        %3181 = vdwg.mxu0
        %v3183 = vsel %vm1862, %v3129, 0
        %v3186 = vsel %vm1918, %v3133, 0
        %3188 = vmatprep.subr.bf16.mxu0 0
        %3189 = vmatpush1.bf16.msra.mxu0 %v3186
        %3190 = vmatprep.subr.bf16.mxu0 0
        %3191 = vmatpush1.bf16.msra.mxu0 0
        %3192 = vmatprep.subr.bf16.mxu0 0
        %3193 = vmatpush1.bf16.msra.mxu0 0
        %3194 = vmatprep.subr.bf16.mxu0 0
        %3195 = vmatpush1.bf16.msra.mxu0 0
        %3196 = vmatprep.subr.bf16.mxu0 0
        %3197 = vmatpush1.bf16.msra.mxu0 0
        %3198 = vmatprep.subr.bf16.mxu0 0
        %3199 = vmatpush1.bf16.msra.mxu0 0
        %3200 = vmatprep.subr.bf16.mxu0 0
        %3201 = vmatpush1.bf16.msra.mxu0 0
        %3202 = vmatprep.subr.bf16.mxu0 0
        %3203 = vmatpush1.bf16.msra.mxu0 0
        %3204 = vmatprep.subr.bf16.mxu0 0
        %3205 = vmatpush1.bf16.msra.mxu0 0
        %3206 = vmatprep.subr.bf16.mxu0 0
        %3207 = vmatpush1.bf16.msra.mxu0 0
        %3208 = vmatprep.subr.bf16.mxu0 0
        %3209 = vmatpush1.bf16.msra.mxu0 0
        %3210 = vmatprep.subr.bf16.mxu0 0
        %3211 = vmatpush1.bf16.msra.mxu0 0
        %3212 = vmatprep.subr.bf16.mxu0 0
        %3213 = vmatpush1.bf16.msra.mxu0 0
        %3214 = vmatprep.subr.bf16.mxu0 0
        %3215 = vmatpush1.bf16.msra.mxu0 0
        %3216 = vmatprep.subr.bf16.mxu0 0
        %3217 = vmatpush1.bf16.msra.mxu0 0
        %3218 = vmatprep.subr.bf16.mxu0 0
        %3219 = vmatpush1.bf16.msra.mxu0 0
        %3220 = vmatprep.mubr.bf16.mxu0 0
        %3221 = vmatmul.mubr.bf16.gmra.mrb[0].mxu0 %v3183
        %v3222 = vpop.f32.mrb[0].mxu0
        %v3223 = vadd.f32 0.0, %v3222
        %v3224 = vpop.f32.mrb[0].mxu0
        %v3225 = vpop.f32.mrb[0].mxu0
        %v3226 = vpop.f32.mrb[0].mxu0
        %3227 = vdwg.mxu0
        %v3229 = vsel %vm1862, %v3130, 0
        %v3232 = vsel %vm1918, %v3134, 0
        %3234 = vmatprep.subr.bf16.mxu0 0
        %3235 = vmatpush1.bf16.msra.mxu0 %v3232
        %3236 = vmatprep.subr.bf16.mxu0 0
        %3237 = vmatpush1.bf16.msra.mxu0 0
        %3238 = vmatprep.subr.bf16.mxu0 0
        %3239 = vmatpush1.bf16.msra.mxu0 0
        %3240 = vmatprep.subr.bf16.mxu0 0
        %3241 = vmatpush1.bf16.msra.mxu0 0
        %3242 = vmatprep.subr.bf16.mxu0 0
        %3243 = vmatpush1.bf16.msra.mxu0 0
        %3244 = vmatprep.subr.bf16.mxu0 0
        %3245 = vmatpush1.bf16.msra.mxu0 0
        %3246 = vmatprep.subr.bf16.mxu0 0
        %3247 = vmatpush1.bf16.msra.mxu0 0
        %3248 = vmatprep.subr.bf16.mxu0 0
        %3249 = vmatpush1.bf16.msra.mxu0 0
        %3250 = vmatprep.subr.bf16.mxu0 0
        %3251 = vmatpush1.bf16.msra.mxu0 0
        %3252 = vmatprep.subr.bf16.mxu0 0
        %3253 = vmatpush1.bf16.msra.mxu0 0
        %3254 = vmatprep.subr.bf16.mxu0 0
        %3255 = vmatpush1.bf16.msra.mxu0 0
        %3256 = vmatprep.subr.bf16.mxu0 0
        %3257 = vmatpush1.bf16.msra.mxu0 0
        %3258 = vmatprep.subr.bf16.mxu0 0
        %3259 = vmatpush1.bf16.msra.mxu0 0
        %3260 = vmatprep.subr.bf16.mxu0 0
        %3261 = vmatpush1.bf16.msra.mxu0 0
        %3262 = vmatprep.subr.bf16.mxu0 0
        %3263 = vmatpush1.bf16.msra.mxu0 0
        %3264 = vmatprep.subr.bf16.mxu0 0
        %3265 = vmatpush1.bf16.msra.mxu0 0
        %3266 = vmatprep.mubr.bf16.mxu0 0
        %3267 = vmatmul.mubr.bf16.gmra.mrb[0].mxu0 %v3229
        %v3268 = vpop.f32.mrb[0].mxu0
        %v3269 = vadd.f32 0.0, %v3268
        %v3270 = vpop.f32.mrb[0].mxu0
        %v3271 = vpop.f32.mrb[0].mxu0
        %v3272 = vpop.f32.mrb[0].mxu0
        %3273 = vdwg.mxu0
        %v3275 = vsel %vm1862, %v3131, 0
        %v3278 = vsel %vm1918, %v3135, 0
        %3280 = vmatprep.subr.bf16.mxu0 0
        %3281 = vmatpush1.bf16.msra.mxu0 %v3278
        %3282 = vmatprep.subr.bf16.mxu0 0
        %3283 = vmatpush1.bf16.msra.mxu0 0
        %3284 = vmatprep.subr.bf16.mxu0 0
        %3285 = vmatpush1.bf16.msra.mxu0 0
        %3286 = vmatprep.subr.bf16.mxu0 0
        %3287 = vmatpush1.bf16.msra.mxu0 0
        %3288 = vmatprep.subr.bf16.mxu0 0
        %3289 = vmatpush1.bf16.msra.mxu0 0
        %3290 = vmatprep.subr.bf16.mxu0 0
        %3291 = vmatpush1.bf16.msra.mxu0 0
        %3292 = vmatprep.subr.bf16.mxu0 0
        %3293 = vmatpush1.bf16.msra.mxu0 0
        %3294 = vmatprep.subr.bf16.mxu0 0
        %3295 = vmatpush1.bf16.msra.mxu0 0
        %3296 = vmatprep.subr.bf16.mxu0 0
        %3297 = vmatpush1.bf16.msra.mxu0 0
        %3298 = vmatprep.subr.bf16.mxu0 0
        %3299 = vmatpush1.bf16.msra.mxu0 0
        %3300 = vmatprep.subr.bf16.mxu0 0
        %3301 = vmatpush1.bf16.msra.mxu0 0
        %3302 = vmatprep.subr.bf16.mxu0 0
        %3303 = vmatpush1.bf16.msra.mxu0 0
        %3304 = vmatprep.subr.bf16.mxu0 0
        %3305 = vmatpush1.bf16.msra.mxu0 0
        %3306 = vmatprep.subr.bf16.mxu0 0
        %3307 = vmatpush1.bf16.msra.mxu0 0
        %3308 = vmatprep.subr.bf16.mxu0 0
        %3309 = vmatpush1.bf16.msra.mxu0 0
        %3310 = vmatprep.subr.bf16.mxu0 0
        %3311 = vmatpush1.bf16.msra.mxu0 0
        %3312 = vmatprep.mubr.bf16.mxu0 0
        %3313 = vmatmul.mubr.bf16.gmra.mrb[0].mxu0 %v3275
        %v3314 = vpop.f32.mrb[0].mxu0
        %v3315 = vadd.f32 0.0, %v3314
        %v3316 = vpop.f32.mrb[0].mxu0
        %v3317 = vpop.f32.mrb[0].mxu0
        %v3318 = vpop.f32.mrb[0].mxu0
        %3319 = vdwg.mxu0
        %v3320 = vpack.c.bf16 %v3177, %v3177
        %v3325 = vunpack.c.l.b16 %v2616
        %v3326 = vunpack.c.l.b16 %v2617
        %v3327 = vunpack.c.l.b16 %v2618
        %v3328 = vunpack.c.l.b16 %v2619
        %v3329 = vpack.c.b16 %v3326, %v3325
        %v3330 = vpack.c.b16 %v3328, %v3327
        %v3334 = vsel %vm1281, %v3320, 0
        %3336 = vmatprep.subr.bf16.mxu0 0
        %3337 = vmatpush1.bf16.msra.mxu0 %v3329
        %3338 = vmatprep.subr.bf16.mxu0 0
        %3339 = vmatpush1.bf16.msra.mxu0 %v3330
        %3340 = vmatprep.subr.bf16.mxu0 0
        %3341 = vmatpush1.bf16.msra.mxu0 0
        %3342 = vmatprep.subr.bf16.mxu0 0
        %3343 = vmatpush1.bf16.msra.mxu0 0
        %3344 = vmatprep.subr.bf16.mxu0 0
        %3345 = vmatpush1.bf16.msra.mxu0 0
        %3346 = vmatprep.subr.bf16.mxu0 0
        %3347 = vmatpush1.bf16.msra.mxu0 0
        %3348 = vmatprep.subr.bf16.mxu0 0
        %3349 = vmatpush1.bf16.msra.mxu0 0
        %3350 = vmatprep.subr.bf16.mxu0 0
        %3351 = vmatpush1.bf16.msra.mxu0 0
        %3352 = vmatprep.subr.bf16.mxu0 0
        %3353 = vmatpush1.bf16.msra.mxu0 0
        %3354 = vmatprep.subr.bf16.mxu0 0
        %3355 = vmatpush1.bf16.msra.mxu0 0
        %3356 = vmatprep.subr.bf16.mxu0 0
        %3357 = vmatpush1.bf16.msra.mxu0 0
        %3358 = vmatprep.subr.bf16.mxu0 0
        %3359 = vmatpush1.bf16.msra.mxu0 0
        %3360 = vmatprep.subr.bf16.mxu0 0
        %3361 = vmatpush1.bf16.msra.mxu0 0
        %3362 = vmatprep.subr.bf16.mxu0 0
        %3363 = vmatpush1.bf16.msra.mxu0 0
        %3364 = vmatprep.subr.bf16.mxu0 0
        %3365 = vmatpush1.bf16.msra.mxu0 0
        %3366 = vmatprep.subr.bf16.mxu0 0
        %3367 = vmatpush1.bf16.msra.mxu0 0
        %3368 = vmatprep.mubr.bf16.mxu0 0
        %3369 = vmatmul.mubr.bf16.gmra.mrb[0].mxu0 %v3334
        %v3370 = vpop.f32.mrb[0].mxu0
        %v3371 = vadd.f32 0.0, %v3370
        %v3372 = vpop.f32.mrb[0].mxu0
        %v3373 = vpop.f32.mrb[0].mxu0
        %v3374 = vpop.f32.mrb[0].mxu0
        %3375 = vdwg.mxu0
        %v3376 = vlaneseq
        %v3377 = vshrl.u32 %v3376, 7
        %v3378 = vsub.s32 6, %v3377
        %v3379 = vrot.slane %v483, %v3378
        %v3380 = vadd.f32 %v3379, %v3371
        %v3381 = vpack.c.bf16 %v3223, %v3223
        %v3386 = vunpack.c.l.b16 %v2620
        %v3387 = vunpack.c.l.b16 %v2621
        %v3388 = vunpack.c.l.b16 %v2622
        %v3389 = vunpack.c.l.b16 %v2623
        %v3390 = vpack.c.b16 %v3387, %v3386
        %v3391 = vpack.c.b16 %v3389, %v3388
        %v3395 = vsel %vm1281, %v3381, 0
        %3397 = vmatprep.subr.bf16.mxu0 0
        %3398 = vmatpush1.bf16.msra.mxu0 %v3390
        %3399 = vmatprep.subr.bf16.mxu0 0
        %3400 = vmatpush1.bf16.msra.mxu0 %v3391
        %3401 = vmatprep.subr.bf16.mxu0 0
        %3402 = vmatpush1.bf16.msra.mxu0 0
        %3403 = vmatprep.subr.bf16.mxu0 0
        %3404 = vmatpush1.bf16.msra.mxu0 0
        %3405 = vmatprep.subr.bf16.mxu0 0
        %3406 = vmatpush1.bf16.msra.mxu0 0
        %3407 = vmatprep.subr.bf16.mxu0 0
        %3408 = vmatpush1.bf16.msra.mxu0 0
        %3409 = vmatprep.subr.bf16.mxu0 0
        %3410 = vmatpush1.bf16.msra.mxu0 0
        %3411 = vmatprep.subr.bf16.mxu0 0
        %3412 = vmatpush1.bf16.msra.mxu0 0
        %3413 = vmatprep.subr.bf16.mxu0 0
        %3414 = vmatpush1.bf16.msra.mxu0 0
        %3415 = vmatprep.subr.bf16.mxu0 0
        %3416 = vmatpush1.bf16.msra.mxu0 0
        %3417 = vmatprep.subr.bf16.mxu0 0
        %3418 = vmatpush1.bf16.msra.mxu0 0
        %3419 = vmatprep.subr.bf16.mxu0 0
        %3420 = vmatpush1.bf16.msra.mxu0 0
        %3421 = vmatprep.subr.bf16.mxu0 0
        %3422 = vmatpush1.bf16.msra.mxu0 0
        %3423 = vmatprep.subr.bf16.mxu0 0
        %3424 = vmatpush1.bf16.msra.mxu0 0
        %3425 = vmatprep.subr.bf16.mxu0 0
        %3426 = vmatpush1.bf16.msra.mxu0 0
        %3427 = vmatprep.subr.bf16.mxu0 0
        %3428 = vmatpush1.bf16.msra.mxu0 0
        %3429 = vmatprep.mubr.bf16.mxu0 0
        %3430 = vmatmul.mubr.bf16.gmra.mrb[0].mxu0 %v3395
        %v3431 = vpop.f32.mrb[0].mxu0
        %v3432 = vadd.f32 0.0, %v3431
        %v3433 = vpop.f32.mrb[0].mxu0
        %v3434 = vpop.f32.mrb[0].mxu0
        %v3435 = vpop.f32.mrb[0].mxu0
        %3436 = vdwg.mxu0
        %v3437 = vadd.f32 %v3380, %v3432
        %v3438 = vpack.c.bf16 %v3269, %v3269
        %v3443 = vunpack.c.l.b16 %v2624
        %v3444 = vunpack.c.l.b16 %v2625
        %v3445 = vunpack.c.l.b16 %v2626
        %v3446 = vunpack.c.l.b16 %v2627
        %v3447 = vpack.c.b16 %v3444, %v3443
        %v3448 = vpack.c.b16 %v3446, %v3445
        %v3452 = vsel %vm1281, %v3438, 0
        %3454 = vmatprep.subr.bf16.mxu0 0
        %3455 = vmatpush1.bf16.msra.mxu0 %v3447
        %3456 = vmatprep.subr.bf16.mxu0 0
        %3457 = vmatpush1.bf16.msra.mxu0 %v3448
        %3458 = vmatprep.subr.bf16.mxu0 0
        %3459 = vmatpush1.bf16.msra.mxu0 0
        %3460 = vmatprep.subr.bf16.mxu0 0
        %3461 = vmatpush1.bf16.msra.mxu0 0
        %3462 = vmatprep.subr.bf16.mxu0 0
        %3463 = vmatpush1.bf16.msra.mxu0 0
        %3464 = vmatprep.subr.bf16.mxu0 0
        %3465 = vmatpush1.bf16.msra.mxu0 0
        %3466 = vmatprep.subr.bf16.mxu0 0
        %3467 = vmatpush1.bf16.msra.mxu0 0
        %3468 = vmatprep.subr.bf16.mxu0 0
        %3469 = vmatpush1.bf16.msra.mxu0 0
        %3470 = vmatprep.subr.bf16.mxu0 0
        %3471 = vmatpush1.bf16.msra.mxu0 0
        %3472 = vmatprep.subr.bf16.mxu0 0
        %3473 = vmatpush1.bf16.msra.mxu0 0
        %3474 = vmatprep.subr.bf16.mxu0 0
        %3475 = vmatpush1.bf16.msra.mxu0 0
        %3476 = vmatprep.subr.bf16.mxu0 0
        %3477 = vmatpush1.bf16.msra.mxu0 0
        %3478 = vmatprep.subr.bf16.mxu0 0
        %3479 = vmatpush1.bf16.msra.mxu0 0
        %3480 = vmatprep.subr.bf16.mxu0 0
        %3481 = vmatpush1.bf16.msra.mxu0 0
        %3482 = vmatprep.subr.bf16.mxu0 0
        %3483 = vmatpush1.bf16.msra.mxu0 0
        %3484 = vmatprep.subr.bf16.mxu0 0
        %3485 = vmatpush1.bf16.msra.mxu0 0
        %3486 = vmatprep.mubr.bf16.mxu0 0
        %3487 = vmatmul.mubr.bf16.gmra.mrb[0].mxu0 %v3452
        %v3488 = vpop.f32.mrb[0].mxu0
        %v3489 = vadd.f32 0.0, %v3488
        %v3490 = vpop.f32.mrb[0].mxu0
        %v3491 = vpop.f32.mrb[0].mxu0
        %v3492 = vpop.f32.mrb[0].mxu0
        %3493 = vdwg.mxu0
        %v3494 = vadd.f32 %v3437, %v3489
        %v3495 = vpack.c.bf16 %v3315, %v3315
        %v3500 = vunpack.c.l.b16 %v2628
        %v3501 = vunpack.c.l.b16 %v2629
        %v3502 = vunpack.c.l.b16 %v2630
        %v3503 = vunpack.c.l.b16 %v2631
        %v3504 = vpack.c.b16 %v3501, %v3500
        %v3505 = vpack.c.b16 %v3503, %v3502
        %v3509 = vsel %vm1281, %v3495, 0
        %3511 = vmatprep.subr.bf16.mxu0 0
        %3512 = vmatpush1.bf16.msra.mxu0 %v3504
        %3513 = vmatprep.subr.bf16.mxu0 0
        %3514 = vmatpush1.bf16.msra.mxu0 %v3505
        %3515 = vmatprep.subr.bf16.mxu0 0
        %3516 = vmatpush1.bf16.msra.mxu0 0
        %3517 = vmatprep.subr.bf16.mxu0 0
        %3518 = vmatpush1.bf16.msra.mxu0 0
        %3519 = vmatprep.subr.bf16.mxu0 0
        %3520 = vmatpush1.bf16.msra.mxu0 0
        %3521 = vmatprep.subr.bf16.mxu0 0
        %3522 = vmatpush1.bf16.msra.mxu0 0
        %3523 = vmatprep.subr.bf16.mxu0 0
        %3524 = vmatpush1.bf16.msra.mxu0 0
        %3525 = vmatprep.subr.bf16.mxu0 0
        %3526 = vmatpush1.bf16.msra.mxu0 0
        %3527 = vmatprep.subr.bf16.mxu0 0
        %3528 = vmatpush1.bf16.msra.mxu0 0
        %3529 = vmatprep.subr.bf16.mxu0 0
        %3530 = vmatpush1.bf16.msra.mxu0 0
        %3531 = vmatprep.subr.bf16.mxu0 0
        %3532 = vmatpush1.bf16.msra.mxu0 0
        %3533 = vmatprep.subr.bf16.mxu0 0
        %3534 = vmatpush1.bf16.msra.mxu0 0
        %3535 = vmatprep.subr.bf16.mxu0 0
        %3536 = vmatpush1.bf16.msra.mxu0 0
        %3537 = vmatprep.subr.bf16.mxu0 0
        %3538 = vmatpush1.bf16.msra.mxu0 0
        %3539 = vmatprep.subr.bf16.mxu0 0
        %3540 = vmatpush1.bf16.msra.mxu0 0
        %3541 = vmatprep.subr.bf16.mxu0 0
        %3542 = vmatpush1.bf16.msra.mxu0 0
        %3543 = vmatprep.mubr.bf16.mxu0 0
        %3544 = vmatmul.mubr.bf16.gmra.mrb[0].mxu0 %v3509
        %v3545 = vpop.f32.mrb[0].mxu0
        %v3546 = vadd.f32 0.0, %v3545
        %v3547 = vpop.f32.mrb[0].mxu0
        %v3548 = vpop.f32.mrb[0].mxu0
        %v3549 = vpop.f32.mrb[0].mxu0
        %3550 = vdwg.mxu0
        %v3551 = vadd.f32 %v3494, %v3546
        %v3552 = vadd.f32 %v2581, %v3551
        %3553 = vadd.xlane.f32.xlu0 %v3552
        %v3554 = vpop.xlane.xlu0 %3553
        %v3555 = vmul.f32 %v3554, %v2335
        %v3556 = vsub.f32 %v3552, %v3555
        %v3557 = vmul.f32 %v3556, %v3556
        %3558 = vadd.xlane.f32.xlu0 %v3557
        %v3559 = vpop.xlane.xlu0 %3558
        %v3560 = vmul.f32 %v3559, %v2341
        %v3561 = vlaneseq
        %v3562 = vshrl.u32 %v3561, 7
        %v3563 = vsub.s32 7, %v3562
        %v3564 = vrot.slane %v483, %v3563
        %v3565 = vmul.f32 %v3564, %v3556
        %v3566 = vrsqrt.pop %v3560
        %v3567 = vmul.f32 %v3560, %v3566
        %vm3568 = vcmp.eq.f32.partialorder %v3560, inf
        %v3569 = vsel %vm3568, %v3560, %v3567
        %vm3570 = vcmp.eq.f32.partialorder %v3560, 0.0
        %v3571 = vand.u32 %v3560, 2147483648
        %v3572 = vsel %vm3570, %v3571, %v3569
        %v3573 = vadd.f32 %v3572, 1e-06
        %v3574 = vrcp.pop %v3573
        %v3575 = vmul.f32 %v3565, %v3574
        %v3576 = vlaneseq
        %v3577 = vshrl.u32 %v3576, 7
        %v3578 = vsub.s32 0, %v3577
        %v3579 = vrot.slane %v486, %v3578
        %v3580 = vadd.f32 %v3575, %v3579
        %v3581 = vpack.c.bf16 %v3580, %v3580
        %s3582 = scalar_lea.vmem %s6, 64
        %v3583 = vld [vmem:[%s3582] sm:$0xf]
        %v3584 = vld [vmem:[%s3582 + $0x4] sm:$0xf]
        %v3585 = vld [vmem:[%s3582 + $0x8] sm:$0xf]
        %v3586 = vld [vmem:[%s3582 + $0xc] sm:$0xf]
        %v3587 = vld [vmem:[%s3582 + $0x10] sm:$0xf]
        %v3588 = vld [vmem:[%s3582 + $0x14] sm:$0xf]
        %v3589 = vld [vmem:[%s3582 + $0x18] sm:$0xf]
        %v3590 = vld [vmem:[%s3582 + $0x1c] sm:$0xf]
        %v3591 = vld [vmem:[%s3582 + $0x20] sm:$0xf]
        %v3592 = vld [vmem:[%s3582 + $0x24] sm:$0xf]
        %v3593 = vld [vmem:[%s3582 + $0x28] sm:$0xf]
        %v3594 = vld [vmem:[%s3582 + $0x2c] sm:$0xf]
        %v3595 = vld [vmem:[%s3582 + $0x30] sm:$0xf]
        %v3596 = vld [vmem:[%s3582 + $0x34] sm:$0xf]
        %v3597 = vld [vmem:[%s3582 + $0x38] sm:$0xf]
        %v3598 = vld [vmem:[%s3582 + $0x3c] sm:$0xf]
        %v3599 = vlaneseq
        %v3600 = vshrl.u32 %v3599, 7
        %v3601 = vsub.s32 1, %v3600
        %v3602 = vrot.slane %v486, %v3601
        %v3619 = vunpack.c.l.b16 %v3583
        %v3620 = vunpack.c.l.b16 %v3584
        %v3621 = vunpack.c.l.b16 %v3585
        %v3622 = vunpack.c.l.b16 %v3586
        %v3623 = vunpack.c.l.b16 %v3587
        %v3624 = vunpack.c.l.b16 %v3588
        %v3625 = vunpack.c.l.b16 %v3589
        %v3626 = vunpack.c.l.b16 %v3590
        %v3627 = vunpack.c.l.b16 %v3591
        %v3628 = vunpack.c.l.b16 %v3592
        %v3629 = vunpack.c.l.b16 %v3593
        %v3630 = vunpack.c.l.b16 %v3594
        %v3631 = vunpack.c.l.b16 %v3595
        %v3632 = vunpack.c.l.b16 %v3596
        %v3633 = vunpack.c.l.b16 %v3597
        %v3634 = vunpack.c.l.b16 %v3598
        %v3635 = vpack.c.b16 %v3620, %v3619
        %v3636 = vpack.c.b16 %v3622, %v3621
        %v3637 = vpack.c.b16 %v3624, %v3623
        %v3638 = vpack.c.b16 %v3626, %v3625
        %v3639 = vpack.c.b16 %v3628, %v3627
        %v3640 = vpack.c.b16 %v3630, %v3629
        %v3641 = vpack.c.b16 %v3632, %v3631
        %v3642 = vpack.c.b16 %v3634, %v3633
        %3651 = vmatprep.subr.bf16.mxu0 0
        %3652 = vmatpush1.bf16.msra.mxu0 %v3635
        %3653 = vmatprep.subr.bf16.mxu0 0
        %3654 = vmatpush1.bf16.msra.mxu0 %v3636
        %3655 = vmatprep.subr.bf16.mxu0 0
        %3656 = vmatpush1.bf16.msra.mxu0 %v3637
        %3657 = vmatprep.subr.bf16.mxu0 0
        %3658 = vmatpush1.bf16.msra.mxu0 %v3638
        %3659 = vmatprep.subr.bf16.mxu0 0
        %3660 = vmatpush1.bf16.msra.mxu0 %v3639
        %3661 = vmatprep.subr.bf16.mxu0 0
        %3662 = vmatpush1.bf16.msra.mxu0 %v3640
        %3663 = vmatprep.subr.bf16.mxu0 0
        %3664 = vmatpush1.bf16.msra.mxu0 %v3641
        %3665 = vmatprep.subr.bf16.mxu0 0
        %3666 = vmatpush1.bf16.msra.mxu0 %v3642
        %3667 = vmatprep.subr.bf16.mxu0 0
        %3668 = vmatpush1.bf16.msra.mxu0 0
        %3669 = vmatprep.subr.bf16.mxu0 0
        %3670 = vmatpush1.bf16.msra.mxu0 0
        %3671 = vmatprep.subr.bf16.mxu0 0
        %3672 = vmatpush1.bf16.msra.mxu0 0
        %3673 = vmatprep.subr.bf16.mxu0 0
        %3674 = vmatpush1.bf16.msra.mxu0 0
        %3675 = vmatprep.subr.bf16.mxu0 0
        %3676 = vmatpush1.bf16.msra.mxu0 0
        %3677 = vmatprep.subr.bf16.mxu0 0
        %3678 = vmatpush1.bf16.msra.mxu0 0
        %3679 = vmatprep.subr.bf16.mxu0 0
        %3680 = vmatpush1.bf16.msra.mxu0 0
        %3681 = vmatprep.subr.bf16.mxu0 0
        %3682 = vmatpush1.bf16.msra.mxu0 0
        %3683 = vmatprep.mubr.bf16.mxu0 0
        %3684 = vmatmul.mubr.bf16.gmra.mrb[0].mxu0 %v3581
        %v3685 = vpop.f32.mrb[0].mxu0
        %v3686 = vadd.f32 %v3602, %v3685
        %v3687 = vpop.f32.mrb[0].mxu0
        %v3688 = vpop.f32.mrb[0].mxu0
        %v3689 = vpop.f32.mrb[0].mxu0
        %3690 = vdwg.mxu0
        %v3691 = vmax.f32 %v3686, 0.0
        %v3692 = vpack.c.bf16 %v3691, %v3691
        %s3693 = scalar_lea.vmem %s7, 32
        %v3694 = vld [vmem:[%s3693] sm:$0xf]
        %v3695 = vld [vmem:[%s3693 + $0x4] sm:$0xf]
        %v3696 = vld [vmem:[%s3693 + $0x8] sm:$0xf]
        %v3697 = vld [vmem:[%s3693 + $0xc] sm:$0xf]
        %v3698 = vld [vmem:[%s3693 + $0x10] sm:$0xf]
        %v3699 = vld [vmem:[%s3693 + $0x14] sm:$0xf]
        %v3700 = vld [vmem:[%s3693 + $0x18] sm:$0xf]
        %v3701 = vld [vmem:[%s3693 + $0x1c] sm:$0xf]
        %v3702 = vlaneseq
        %v3703 = vshrl.u32 %v3702, 7
        %v3704 = vsub.s32 2, %v3703
        %v3705 = vrot.slane %v486, %v3704
        %v3714 = vunpack.c.l.b16 %v3694
        %v3715 = vunpack.c.l.b16 %v3695
        %v3716 = vunpack.c.l.b16 %v3696
        %v3717 = vunpack.c.l.b16 %v3697
        %v3718 = vunpack.c.l.b16 %v3698
        %v3719 = vunpack.c.l.b16 %v3699
        %v3720 = vunpack.c.l.b16 %v3700
        %v3721 = vunpack.c.l.b16 %v3701
        %v3722 = vpack.c.b16 %v3715, %v3714
        %v3723 = vpack.c.b16 %v3717, %v3716
        %v3724 = vpack.c.b16 %v3719, %v3718
        %v3725 = vpack.c.b16 %v3721, %v3720
        %v3731 = vsel %vm1357, %v3692, 0
        %3733 = vmatprep.subr.bf16.mxu0 0
        %3734 = vmatpush1.bf16.msra.mxu0 %v3722
        %3735 = vmatprep.subr.bf16.mxu0 0
        %3736 = vmatpush1.bf16.msra.mxu0 %v3723
        %3737 = vmatprep.subr.bf16.mxu0 0
        %3738 = vmatpush1.bf16.msra.mxu0 %v3724
        %3739 = vmatprep.subr.bf16.mxu0 0
        %3740 = vmatpush1.bf16.msra.mxu0 %v3725
        %3741 = vmatprep.subr.bf16.mxu0 0
        %3742 = vmatpush1.bf16.msra.mxu0 0
        %3743 = vmatprep.subr.bf16.mxu0 0
        %3744 = vmatpush1.bf16.msra.mxu0 0
        %3745 = vmatprep.subr.bf16.mxu0 0
        %3746 = vmatpush1.bf16.msra.mxu0 0
        %3747 = vmatprep.subr.bf16.mxu0 0
        %3748 = vmatpush1.bf16.msra.mxu0 0
        %3749 = vmatprep.subr.bf16.mxu0 0
        %3750 = vmatpush1.bf16.msra.mxu0 0
        %3751 = vmatprep.subr.bf16.mxu0 0
        %3752 = vmatpush1.bf16.msra.mxu0 0
        %3753 = vmatprep.subr.bf16.mxu0 0
        %3754 = vmatpush1.bf16.msra.mxu0 0
        %3755 = vmatprep.subr.bf16.mxu0 0
        %3756 = vmatpush1.bf16.msra.mxu0 0
        %3757 = vmatprep.subr.bf16.mxu0 0
        %3758 = vmatpush1.bf16.msra.mxu0 0
        %3759 = vmatprep.subr.bf16.mxu0 0
        %3760 = vmatpush1.bf16.msra.mxu0 0
        %3761 = vmatprep.subr.bf16.mxu0 0
        %3762 = vmatpush1.bf16.msra.mxu0 0
        %3763 = vmatprep.subr.bf16.mxu0 0
        %3764 = vmatpush1.bf16.msra.mxu0 0
        %3765 = vmatprep.mubr.bf16.mxu0 0
        %3766 = vmatmul.mubr.bf16.gmra.mrb[0].mxu0 %v3731
        %v3767 = vpop.f32.mrb[0].mxu0
        %v3768 = vadd.f32 %v3705, %v3767
        %v3769 = vpop.f32.mrb[0].mxu0
        %v3770 = vpop.f32.mrb[0].mxu0
        %v3771 = vpop.f32.mrb[0].mxu0
        %3772 = vdwg.mxu0
        %v3773 = vadd.f32 %v3580, %v3768
        %3774 = vadd.xlane.f32.xlu0 %v3773
        %v3775 = vpop.xlane.xlu0 %3774
        %v3776 = vmul.f32 %v3775, %v2335
        %v3777 = vsub.f32 %v3773, %v3776
        %v3778 = vmul.f32 %v3777, %v3777
        %3779 = vadd.xlane.f32.xlu0 %v3778
        %v3780 = vpop.xlane.xlu0 %3779
        %v3781 = vmul.f32 %v3780, %v2341
        %v3782 = vlaneseq
        %v3783 = vshrl.u32 %v3782, 7
        %v3784 = vsub.s32 3, %v3783
        %v3785 = vrot.slane %v486, %v3784
        %v3786 = vmul.f32 %v3785, %v3777
        %v3787 = vrsqrt.pop %v3781
        %v3788 = vmul.f32 %v3781, %v3787
        %vm3789 = vcmp.eq.f32.partialorder %v3781, inf
        %v3790 = vsel %vm3789, %v3781, %v3788
        %vm3791 = vcmp.eq.f32.partialorder %v3781, 0.0
        %v3792 = vand.u32 %v3781, 2147483648
        %v3793 = vsel %vm3791, %v3792, %v3790
        %v3794 = vadd.f32 %v3793, 1e-06
        %v3795 = vrcp.pop %v3794
        %v3796 = vmul.f32 %v3786, %v3795
        %v3797 = vlaneseq
        %v3798 = vshrl.u32 %v3797, 7
        %v3799 = vsub.s32 4, %v3798
        %v3800 = vrot.slane %v486, %v3799
        %v3801 = vadd.f32 %v3796, %v3800
        %v3802 = vrot.slane %v3801, 4
        %v3803 = vadd.f32 %v3801, %v3802
        %v3804 = vrot.slane %v3803, 2
        %v3805 = vadd.f32 %v3803, %v3804
        %v3806 = vrot.slane %v3805, 1
        %v3807 = vadd.f32 %v3805, %v3806
        %v3808 = vrcp.pop 8.0
        %v3809 = vmul.f32 %v3807, %v3808
        %v3810 = vsub.f32 %v3801, %v3809
        %v3811 = vmul.f32 %v3810, %v3810
        %v3812 = vrot.slane %v3811, 4
        %v3813 = vadd.f32 %v3811, %v3812
        %v3814 = vrot.slane %v3813, 2
        %v3815 = vadd.f32 %v3813, %v3814
        %v3816 = vrot.slane %v3815, 1
        %v3817 = vadd.f32 %v3815, %v3816
        %v3818 = vrcp.pop 7.0
        %v3819 = vmul.f32 %v3817, %v3818
        %v3820 = vrsqrt.pop %v3819
        %v3821 = vmul.f32 %v3819, %v3820
        %vm3822 = vcmp.eq.f32.partialorder %v3819, inf
        %v3823 = vsel %vm3822, %v3819, %v3821
        %vm3824 = vcmp.eq.f32.partialorder %v3819, 0.0
        %v3825 = vand.u32 %v3819, 2147483648
        %v3826 = vsel %vm3824, %v3825, %v3823
        %v3827 = vpack.c.bf16 %v3809, %v3809
        %v3828 = vpack.c.bf16 %v3826, %v3826
        %v3829 = vld [vmem:[%s8] sm:$0xf]
        %v3830 = vld [vmem:[%s8 + $0x4] sm:$0xf]
        %v3831 = vld [vmem:[%s8 + $0x8] sm:$0xf]
        %v3832 = vld [vmem:[%s8 + $0xc] sm:$0xf]
        %v3833 = vld [vmem:[%s8 + $0x10] sm:$0xf]
        %v3834 = vld [vmem:[%s8 + $0x14] sm:$0xf]
        %v3835 = vld [vmem:[%s8 + $0x18] sm:$0xf]
        %v3836 = vld [vmem:[%s8 + $0x1c] sm:$0xf]
        %v3837 = vld [vmem:[%s8 + $0x20] sm:$0xf]
        %v3838 = vld [vmem:[%s8 + $0x24] sm:$0xf]
        %v3839 = vld [vmem:[%s8 + $0x28] sm:$0xf]
        %v3840 = vld [vmem:[%s8 + $0x2c] sm:$0xf]
        %v3841 = vld [vmem:[%s8 + $0x30] sm:$0xf]
        %v3842 = vld [vmem:[%s8 + $0x34] sm:$0xf]
        %v3843 = vld [vmem:[%s8 + $0x38] sm:$0xf]
        %v3844 = vld [vmem:[%s8 + $0x3c] sm:$0xf]
        %v3845 = vld [vmem:[%s8 + $0x40] sm:$0xf]
        %v3846 = vld [vmem:[%s8 + $0x44] sm:$0xf]
        %v3847 = vld [vmem:[%s8 + $0x48] sm:$0xf]
        %v3848 = vld [vmem:[%s8 + $0x4c] sm:$0xf]
        %v3849 = vld [vmem:[%s8 + $0x50] sm:$0xf]
        %v3850 = vld [vmem:[%s8 + $0x54] sm:$0xf]
        %v3851 = vld [vmem:[%s8 + $0x58] sm:$0xf]
        %v3852 = vld [vmem:[%s8 + $0x5c] sm:$0xf]
        %v3853 = vld [vmem:[%s8 + $0x60] sm:$0xf]
        %v3854 = vld [vmem:[%s8 + $0x64] sm:$0xf]
        %v3855 = vld [vmem:[%s8 + $0x68] sm:$0xf]
        %v3856 = vld [vmem:[%s8 + $0x6c] sm:$0xf]
        %v3857 = vld [vmem:[%s8 + $0x70] sm:$0xf]
        %v3858 = vld [vmem:[%s8 + $0x74] sm:$0xf]
        %v3859 = vld [vmem:[%s8 + $0x78] sm:$0xf]
        %v3860 = vld [vmem:[%s8 + $0x7c] sm:$0xf]
        %v3893 = vunpack.c.l.b16 %v3829
        %v3894 = vunpack.c.l.b16 %v3830
        %v3895 = vunpack.c.l.b16 %v3831
        %v3896 = vunpack.c.l.b16 %v3832
        %v3897 = vunpack.c.l.b16 %v3833
        %v3898 = vunpack.c.l.b16 %v3834
        %v3899 = vunpack.c.l.b16 %v3835
        %v3900 = vunpack.c.l.b16 %v3836
        %v3901 = vunpack.c.l.b16 %v3837
        %v3902 = vunpack.c.l.b16 %v3838
        %v3903 = vunpack.c.l.b16 %v3839
        %v3904 = vunpack.c.l.b16 %v3840
        %v3905 = vunpack.c.l.b16 %v3841
        %v3906 = vunpack.c.l.b16 %v3842
        %v3907 = vunpack.c.l.b16 %v3843
        %v3908 = vunpack.c.l.b16 %v3844
        %v3909 = vunpack.c.l.b16 %v3845
        %v3910 = vunpack.c.l.b16 %v3846
        %v3911 = vunpack.c.l.b16 %v3847
        %v3912 = vunpack.c.l.b16 %v3848
        %v3913 = vunpack.c.l.b16 %v3849
        %v3914 = vunpack.c.l.b16 %v3850
        %v3915 = vunpack.c.l.b16 %v3851
        %v3916 = vunpack.c.l.b16 %v3852
        %v3917 = vunpack.c.l.b16 %v3853
        %v3918 = vunpack.c.l.b16 %v3854
        %v3919 = vunpack.c.l.b16 %v3855
        %v3920 = vunpack.c.l.b16 %v3856
        %v3921 = vunpack.c.l.b16 %v3857
        %v3922 = vunpack.c.l.b16 %v3858
        %v3923 = vunpack.c.l.b16 %v3859
        %v3924 = vunpack.c.l.b16 %v3860
        %v3925 = vpack.c.b16 %v3894, %v3893
        %v3926 = vpack.c.b16 %v3896, %v3895
        %v3927 = vpack.c.b16 %v3898, %v3897
        %v3928 = vpack.c.b16 %v3900, %v3899
        %v3929 = vpack.c.b16 %v3902, %v3901
        %v3930 = vpack.c.b16 %v3904, %v3903
        %v3931 = vpack.c.b16 %v3906, %v3905
        %v3932 = vpack.c.b16 %v3908, %v3907
        %v3933 = vpack.c.b16 %v3910, %v3909
        %v3934 = vpack.c.b16 %v3912, %v3911
        %v3935 = vpack.c.b16 %v3914, %v3913
        %v3936 = vpack.c.b16 %v3916, %v3915
        %v3937 = vpack.c.b16 %v3918, %v3917
        %v3938 = vpack.c.b16 %v3920, %v3919
        %v3939 = vpack.c.b16 %v3922, %v3921
        %v3940 = vpack.c.b16 %v3924, %v3923
        %v3958 = vrot.slane %v486, 5
        %3960 = vmatprep.subr.bf16.mxu0 0
        %3961 = vmatpush1.bf16.msra.mxu0 %v3925
        %3962 = vmatprep.subr.bf16.mxu0 0
        %3963 = vmatpush1.bf16.msra.mxu0 %v3926
        %3964 = vmatprep.subr.bf16.mxu0 0
        %3965 = vmatpush1.bf16.msra.mxu0 %v3927
        %3966 = vmatprep.subr.bf16.mxu0 0
        %3967 = vmatpush1.bf16.msra.mxu0 %v3928
        %3968 = vmatprep.subr.bf16.mxu0 0
        %3969 = vmatpush1.bf16.msra.mxu0 %v3929
        %3970 = vmatprep.subr.bf16.mxu0 0
        %3971 = vmatpush1.bf16.msra.mxu0 %v3930
        %3972 = vmatprep.subr.bf16.mxu0 0
        %3973 = vmatpush1.bf16.msra.mxu0 %v3931
        %3974 = vmatprep.subr.bf16.mxu0 0
        %3975 = vmatpush1.bf16.msra.mxu0 %v3932
        %3976 = vmatprep.subr.bf16.mxu0 0
        %3977 = vmatpush1.bf16.msra.mxu0 %v3933
        %3978 = vmatprep.subr.bf16.mxu0 0
        %3979 = vmatpush1.bf16.msra.mxu0 %v3934
        %3980 = vmatprep.subr.bf16.mxu0 0
        %3981 = vmatpush1.bf16.msra.mxu0 %v3935
        %3982 = vmatprep.subr.bf16.mxu0 0
        %3983 = vmatpush1.bf16.msra.mxu0 %v3936
        %3984 = vmatprep.subr.bf16.mxu0 0
        %3985 = vmatpush1.bf16.msra.mxu0 %v3937
        %3986 = vmatprep.subr.bf16.mxu0 0
        %3987 = vmatpush1.bf16.msra.mxu0 %v3938
        %3988 = vmatprep.subr.bf16.mxu0 0
        %3989 = vmatpush1.bf16.msra.mxu0 %v3939
        %3990 = vmatprep.subr.bf16.mxu0 0
        %3991 = vmatpush1.bf16.msra.mxu0 %v3940
        %3992 = vmatprep.mubr.bf16.mxu0 %v3828
        %3993 = vmatmul.mubr.bf16.gmra.mrb[0].mxu0 %v3827
        %v3994 = vpop.f32.mrb[0].mxu0
        %v3995 = vadd.f32 %v3958, %v3994
        %v3996 = vpop.f32.mrb[0].mxu0
        %v3997 = vpop.f32.mrb[0].mxu0
        %v3998 = vpop.f32.mrb[0].mxu0
        %3999 = vdwg.mxu0
        %v4000 = vmax.f32 %v3995, 0.0
        %v4001 = vpack.c.bf16 %v4000, %v4000
        %v4002 = vld [vmem:[%s9] sm:$0xf]
        %v4003 = vld [vmem:[%s9 + $0x4] sm:$0xf]
        %v4004 = vld [vmem:[%s9 + $0x8] sm:$0xf]
        %v4005 = vld [vmem:[%s9 + $0xc] sm:$0xf]
        %v4006 = vld [vmem:[%s9 + $0x10] sm:$0xf]
        %v4007 = vld [vmem:[%s9 + $0x14] sm:$0xf]
        %v4008 = vld [vmem:[%s9 + $0x18] sm:$0xf]
        %v4009 = vld [vmem:[%s9 + $0x1c] sm:$0xf]
        %v4010 = vld [vmem:[%s9 + $0x20] sm:$0xf]
        %v4011 = vld [vmem:[%s9 + $0x24] sm:$0xf]
        %v4012 = vld [vmem:[%s9 + $0x28] sm:$0xf]
        %v4013 = vld [vmem:[%s9 + $0x2c] sm:$0xf]
        %v4014 = vld [vmem:[%s9 + $0x30] sm:$0xf]
        %v4015 = vld [vmem:[%s9 + $0x34] sm:$0xf]
        %v4016 = vld [vmem:[%s9 + $0x38] sm:$0xf]
        %v4017 = vld [vmem:[%s9 + $0x3c] sm:$0xf]
        %v4034 = vunpack.c.l.b16 %v4002
        %v4035 = vunpack.c.l.b16 %v4003
        %v4036 = vunpack.c.l.b16 %v4004
        %v4037 = vunpack.c.l.b16 %v4005
        %v4038 = vunpack.c.l.b16 %v4006
        %v4039 = vunpack.c.l.b16 %v4007
        %v4040 = vunpack.c.l.b16 %v4008
        %v4041 = vunpack.c.l.b16 %v4009
        %v4042 = vunpack.c.l.b16 %v4010
        %v4043 = vunpack.c.l.b16 %v4011
        %v4044 = vunpack.c.l.b16 %v4012
        %v4045 = vunpack.c.l.b16 %v4013
        %v4046 = vunpack.c.l.b16 %v4014
        %v4047 = vunpack.c.l.b16 %v4015
        %v4048 = vunpack.c.l.b16 %v4016
        %v4049 = vunpack.c.l.b16 %v4017
        %v4050 = vpack.c.b16 %v4035, %v4034
        %v4051 = vpack.c.b16 %v4037, %v4036
        %v4052 = vpack.c.b16 %v4039, %v4038
        %v4053 = vpack.c.b16 %v4041, %v4040
        %v4054 = vpack.c.b16 %v4043, %v4042
        %v4055 = vpack.c.b16 %v4045, %v4044
        %v4056 = vpack.c.b16 %v4047, %v4046
        %v4057 = vpack.c.b16 %v4049, %v4048
        %v4066 = vrot.slane %v486, 6
        %4068 = vmatprep.subr.bf16.mxu0 0
        %4069 = vmatpush1.bf16.msra.mxu0 %v4050
        %4070 = vmatprep.subr.bf16.mxu0 0
        %4071 = vmatpush1.bf16.msra.mxu0 %v4051
        %4072 = vmatprep.subr.bf16.mxu0 0
        %4073 = vmatpush1.bf16.msra.mxu0 %v4052
        %4074 = vmatprep.subr.bf16.mxu0 0
        %4075 = vmatpush1.bf16.msra.mxu0 %v4053
        %4076 = vmatprep.subr.bf16.mxu0 0
        %4077 = vmatpush1.bf16.msra.mxu0 %v4054
        %4078 = vmatprep.subr.bf16.mxu0 0
        %4079 = vmatpush1.bf16.msra.mxu0 %v4055
        %4080 = vmatprep.subr.bf16.mxu0 0
        %4081 = vmatpush1.bf16.msra.mxu0 %v4056
        %4082 = vmatprep.subr.bf16.mxu0 0
        %4083 = vmatpush1.bf16.msra.mxu0 %v4057
        %4084 = vmatprep.subr.bf16.mxu0 0
        %4085 = vmatpush1.bf16.msra.mxu0 0
        %4086 = vmatprep.subr.bf16.mxu0 0
        %4087 = vmatpush1.bf16.msra.mxu0 0
        %4088 = vmatprep.subr.bf16.mxu0 0
        %4089 = vmatpush1.bf16.msra.mxu0 0
        %4090 = vmatprep.subr.bf16.mxu0 0
        %4091 = vmatpush1.bf16.msra.mxu0 0
        %4092 = vmatprep.subr.bf16.mxu0 0
        %4093 = vmatpush1.bf16.msra.mxu0 0
        %4094 = vmatprep.subr.bf16.mxu0 0
        %4095 = vmatpush1.bf16.msra.mxu0 0
        %4096 = vmatprep.subr.bf16.mxu0 0
        %4097 = vmatpush1.bf16.msra.mxu0 0
        %4098 = vmatprep.subr.bf16.mxu0 0
        %4099 = vmatpush1.bf16.msra.mxu0 0
        %4100 = vmatprep.mubr.bf16.mxu0 0
        %4101 = vmatmul.mubr.bf16.gmra.mrb[0].mxu0 %v4001
        %v4102 = vpop.f32.mrb[0].mxu0
        %v4103 = vadd.f32 %v4066, %v4102
        %v4104 = vpop.f32.mrb[0].mxu0
        %v4105 = vpop.f32.mrb[0].mxu0
        %v4106 = vpop.f32.mrb[0].mxu0
        %4107 = vdwg.mxu0
        %v4108 = vmax.f32 %v4103, 0.0
        %v4109 = vpack.c.bf16 %v4108, %v4108
        %v4110 = vld [vmem:[%s10] sm:$0xf]
        %v4111 = vld [vmem:[%s10 + $0x4] sm:$0xf]
        %v4112 = vld [vmem:[%s10 + $0x8] sm:$0xf]
        %v4113 = vld [vmem:[%s10 + $0xc] sm:$0xf]
        %v4114 = vld [vmem:[%s10 + $0x10] sm:$0xf]
        %v4115 = vld [vmem:[%s10 + $0x14] sm:$0xf]
        %v4116 = vld [vmem:[%s10 + $0x18] sm:$0xf]
        %v4117 = vld [vmem:[%s10 + $0x1c] sm:$0xf]
        %v4118 = vld [vmem:[%s10 + $0x20] sm:$0xf]
        %v4119 = vld [vmem:[%s10 + $0x24] sm:$0xf]
        %v4120 = vld [vmem:[%s10 + $0x28] sm:$0xf]
        %v4121 = vld [vmem:[%s10 + $0x2c] sm:$0xf]
        %v4122 = vld [vmem:[%s10 + $0x30] sm:$0xf]
        %v4123 = vld [vmem:[%s10 + $0x34] sm:$0xf]
        %v4124 = vld [vmem:[%s10 + $0x38] sm:$0xf]
        %v4125 = vld [vmem:[%s10 + $0x3c] sm:$0xf]
        %v4142 = vunpack.c.l.b16 %v4110
        %v4143 = vunpack.c.l.b16 %v4111
        %v4144 = vunpack.c.l.b16 %v4112
        %v4145 = vunpack.c.l.b16 %v4113
        %v4146 = vunpack.c.l.b16 %v4114
        %v4147 = vunpack.c.l.b16 %v4115
        %v4148 = vunpack.c.l.b16 %v4116
        %v4149 = vunpack.c.l.b16 %v4117
        %v4150 = vunpack.c.l.b16 %v4118
        %v4151 = vunpack.c.l.b16 %v4119
        %v4152 = vunpack.c.l.b16 %v4120
        %v4153 = vunpack.c.l.b16 %v4121
        %v4154 = vunpack.c.l.b16 %v4122
        %v4155 = vunpack.c.l.b16 %v4123
        %v4156 = vunpack.c.l.b16 %v4124
        %v4157 = vunpack.c.l.b16 %v4125
        %v4158 = vpack.c.b16 %v4143, %v4142
        %v4159 = vpack.c.b16 %v4145, %v4144
        %v4160 = vpack.c.b16 %v4147, %v4146
        %v4161 = vpack.c.b16 %v4149, %v4148
        %v4162 = vpack.c.b16 %v4151, %v4150
        %v4163 = vpack.c.b16 %v4153, %v4152
        %v4164 = vpack.c.b16 %v4155, %v4154
        %v4165 = vpack.c.b16 %v4157, %v4156
        %v4174 = vrot.slane %v486, 7
        %4176 = vmatprep.subr.bf16.mxu0 0
        %4177 = vmatpush1.bf16.msra.mxu0 %v4158
        %4178 = vmatprep.subr.bf16.mxu0 0
        %4179 = vmatpush1.bf16.msra.mxu0 %v4159
        %4180 = vmatprep.subr.bf16.mxu0 0
        %4181 = vmatpush1.bf16.msra.mxu0 %v4160
        %4182 = vmatprep.subr.bf16.mxu0 0
        %4183 = vmatpush1.bf16.msra.mxu0 %v4161
        %4184 = vmatprep.subr.bf16.mxu0 0
        %4185 = vmatpush1.bf16.msra.mxu0 %v4162
        %4186 = vmatprep.subr.bf16.mxu0 0
        %4187 = vmatpush1.bf16.msra.mxu0 %v4163
        %4188 = vmatprep.subr.bf16.mxu0 0
        %4189 = vmatpush1.bf16.msra.mxu0 %v4164
        %4190 = vmatprep.subr.bf16.mxu0 0
        %4191 = vmatpush1.bf16.msra.mxu0 %v4165
        %4192 = vmatprep.subr.bf16.mxu0 0
        %4193 = vmatpush1.bf16.msra.mxu0 0
        %4194 = vmatprep.subr.bf16.mxu0 0
        %4195 = vmatpush1.bf16.msra.mxu0 0
        %4196 = vmatprep.subr.bf16.mxu0 0
        %4197 = vmatpush1.bf16.msra.mxu0 0
        %4198 = vmatprep.subr.bf16.mxu0 0
        %4199 = vmatpush1.bf16.msra.mxu0 0
        %4200 = vmatprep.subr.bf16.mxu0 0
        %4201 = vmatpush1.bf16.msra.mxu0 0
        %4202 = vmatprep.subr.bf16.mxu0 0
        %4203 = vmatpush1.bf16.msra.mxu0 0
        %4204 = vmatprep.subr.bf16.mxu0 0
        %4205 = vmatpush1.bf16.msra.mxu0 0
        %4206 = vmatprep.subr.bf16.mxu0 0
        %4207 = vmatpush1.bf16.msra.mxu0 0
        %4208 = vmatprep.mubr.bf16.mxu0 0
        %4209 = vmatmul.mubr.bf16.gmra.mrb[0].mxu0 %v4109
        %v4210 = vpop.f32.mrb[0].mxu0
        %v4211 = vadd.f32 %v4174, %v4210
        %v4212 = vpop.f32.mrb[0].mxu0
        %v4213 = vpop.f32.mrb[0].mxu0
        %v4214 = vpop.f32.mrb[0].mxu0
        %4215 = vdwg.mxu0
        %v4216 = vlaneseq
        %v4217 = vshrl.u32 %v4216, 7
        %v4218 = vsub.s32 0, %v4217
        %v4219 = vrot.slane %v4211, %v4218
        %vm4220 = vcmask 23552
        %4221 = vst.msk [vmem:[%s478] sm:$0xff] %vm4220, %v4219
        %p4222 = scmp.lt.s32.totalorder %s23, 1
        %s4223 = scalar_select %p4222, %s23, 1
        %s4224 = smul.addr %s4223, 8
        %s4225 = scalar_lea.vmem %s12, %s4224
        // Predicated region
        $region92: #{_lambda_.3} parent=86 // pred_check
          %p4226 = pneg %p303
        $region93: #{_lambda_.3} parent=86 // pred_check_branch
          %4228 = sbr.rel (%p4226) target = $region95
        $region94: #{_lambda_.3} parent=86 // pred_region
          _
        $region95: #{_lambda_.3} parent=86 // pred_fallthru
          _
      $region87: #{_lambda_.3} parent=5 // pred_fallthru
        _
      %p4229 = scmp.le.s32.totalorder 2, %s18
      // Predicated region
      $region96: #{_lambda_.3} parent=5 // pred_check
        %p4230 = pneg %p4229
      $region97: #{_lambda_.3} parent=5 // pred_check_branch
        %4232 = sbr.rel (%p4230) target = $region99
      $region98: #{_lambda_.3} parent=5 // pred_region
        %s4233 = ssub.s32 %s18, 2
        // Predicated region
        $region100: #{_lambda_.3} parent=98 // pred_check
          %p4234 = pneg %p309
        $region101: #{_lambda_.3} parent=98 // pred_check_branch
          %4236 = sbr.rel (%p4234) target = $region103
        $region102: #{_lambda_.3} parent=98 // pred_region
          %p4237 = scmp.lt.s32.totalorder %s24, 1
          %s4238 = scalar_select %p4237, %s24, 1
          %s4239 = smul.addr %s4238, 8
          %s4240 = scalar_lea.vmem %s12, %s4239
        $region103: #{_lambda_.3} parent=98 // pred_fallthru
          _
      $region99: #{_lambda_.3} parent=5 // pred_fallthru
        _
    $region6: #{_lambda_.3} parent=1 // loop_footer
      %s22 = sadd.s32 1, %s18
    $region7: #{_lambda_.3} parent=1 // loop_footer_branch
      %17 = sbr.rel target = $region3
    $region8: #{_lambda_.3} parent=1 // loop_exit
      _

// kernel: _lambda_.2
$region0: #{_lambda_.2}
  #allocation0 [shape = 'u32[]', space=smem, size = 0x4, offset = 0x4, fixed_abs, tag = 'smem constant byte address 0x4 - core index']
  #allocation1 [shape = 'u32[144,128]{1,0:T(1,128)}', space=vmem, size = 0x12000, scoped, tag = 'internal scratch']
  %s0 = inlined_call_operand.vmem [shape: f32[192,128], index: 0, kind: input, shape index: {}]
  %s1 = inlined_call_operand.vmem [shape: bf16[128,512], index: 1, kind: input, shape index: {}]
  %s2 = inlined_call_operand.vmem [shape: bf16[5,512,512], index: 2, kind: input, shape index: {}]
  %s3 = inlined_call_operand.vmem [shape: bf16[512,512], index: 3, kind: input, shape index: {}]
  %s4 = inlined_call_operand.vmem [shape: f32[3,512], index: 4, kind: input, shape index: {}]
  %s5 = inlined_call_operand.vmem [shape: f32[64,512], index: 5, kind: output, shape index: {}]
  %s6 = sld [smem:[#allocation0]]
  $region30: #{_lambda_.2} parent=0
    _
  %s8 = ssub.s32 1, %s6
  %s9 = scalar_select 0, %s8, %s6
  // Predicated region
  $region2: #{_lambda_.2} parent=0 // pred_check
    _
  $region3: #{_lambda_.2} parent=0 // pred_check_branch
    %11 = sbr.rel (0) target = $region5
  $region4: #{_lambda_.2} parent=0 // pred_region
    _
  $region5: #{_lambda_.2} parent=0 // pred_fallthru
    _
  // Predicated region
  $region6: #{_lambda_.2} parent=0 // pred_check
    _
  $region7: #{_lambda_.2} parent=0 // pred_check_branch
    %13 = sbr.rel (0) target = $region9
  $region8: #{_lambda_.2} parent=0 // pred_region
    _
  $region9: #{_lambda_.2} parent=0 // pred_fallthru
    _
  // Predicated region
  $region10: #{_lambda_.2} parent=0 // pred_check
    _
  $region11: #{_lambda_.2} parent=0 // pred_check_branch
    %15 = sbr.rel (0) target = $region13
  $region12: #{_lambda_.2} parent=0 // pred_region
    _
  $region13: #{_lambda_.2} parent=0 // pred_fallthru
    _
  // Predicated region
  $region14: #{_lambda_.2} parent=0 // pred_check
    _
  $region15: #{_lambda_.2} parent=0 // pred_check_branch
    %17 = sbr.rel (0) target = $region17
  $region16: #{_lambda_.2} parent=0 // pred_region
    _
  $region17: #{_lambda_.2} parent=0 // pred_fallthru
    _
  // Predicated region
  $region18: #{_lambda_.2} parent=0 // pred_check
    _
  $region19: #{_lambda_.2} parent=0 // pred_check_branch
    %19 = sbr.rel (0) target = $region21
  $region20: #{_lambda_.2} parent=0 // pred_region
    _
  $region21: #{_lambda_.2} parent=0 // pred_fallthru
    _
  %v21 = vld [vmem:[%s0] sm:$0xff]
  %v22 = vld [vmem:[%s0 + $0x8] sm:$0xff]
  %v23 = vld [vmem:[%s0 + $0x10] sm:$0xff]
  %v24 = vld [vmem:[%s0 + $0x18] sm:$0xff]
  %v25 = vld [vmem:[%s0 + $0x20] sm:$0xff]
  %v26 = vld [vmem:[%s0 + $0x28] sm:$0xff]
  %v27 = vld [vmem:[%s0 + $0x30] sm:$0xff]
  %v28 = vld [vmem:[%s0 + $0x38] sm:$0xff]
  %v29 = vld [vmem:[%s0 + $0x40] sm:$0xff]
  %v30 = vld [vmem:[%s0 + $0x48] sm:$0xff]
  %v31 = vld [vmem:[%s0 + $0x50] sm:$0xff]
  %v32 = vld [vmem:[%s0 + $0x58] sm:$0xff]
  %v33 = vld [vmem:[%s0 + $0x60] sm:$0xff]
  %v34 = vld [vmem:[%s0 + $0x68] sm:$0xff]
  %v35 = vld [vmem:[%s0 + $0x70] sm:$0xff]
  %v36 = vld [vmem:[%s0 + $0x78] sm:$0xff]
  %v37 = vld [vmem:[%s0 + $0x80] sm:$0xff]
  %v38 = vld [vmem:[%s0 + $0x88] sm:$0xff]
  %v39 = vld [vmem:[%s0 + $0x90] sm:$0xff]
  %v40 = vld [vmem:[%s0 + $0x98] sm:$0xff]
  %v41 = vld [vmem:[%s0 + $0xa0] sm:$0xff]
  %v42 = vld [vmem:[%s0 + $0xa8] sm:$0xff]
  %v43 = vld [vmem:[%s0 + $0xb0] sm:$0xff]
  %v44 = vld [vmem:[%s0 + $0xb8] sm:$0xff]
  %v45 = vpack.c.bf16 %v22, %v21
  %v46 = vpack.c.bf16 %v24, %v23
  %v47 = vpack.c.bf16 %v26, %v25
  %v48 = vpack.c.bf16 %v28, %v27
  %v49 = vpack.c.bf16 %v30, %v29
  %v50 = vpack.c.bf16 %v32, %v31
  %v51 = vpack.c.bf16 %v34, %v33
  %v52 = vpack.c.bf16 %v36, %v35
  %v53 = vpack.c.bf16 %v38, %v37
  %v54 = vpack.c.bf16 %v40, %v39
  %v55 = vpack.c.bf16 %v42, %v41
  %v56 = vpack.c.bf16 %v44, %v43
  %v57 = vld [vmem:[%s1] sm:$0xff]
  %v58 = vld [vmem:[%s1 + $0x8] sm:$0xff]
  %v59 = vld [vmem:[%s1 + $0x10] sm:$0xff]
  %v60 = vld [vmem:[%s1 + $0x18] sm:$0xff]
  %v61 = vld [vmem:[%s1 + $0x20] sm:$0xff]
  %v62 = vld [vmem:[%s1 + $0x28] sm:$0xff]
  %v63 = vld [vmem:[%s1 + $0x30] sm:$0xff]
  %v64 = vld [vmem:[%s1 + $0x38] sm:$0xff]
  %v65 = vld [vmem:[%s1 + $0x40] sm:$0xff]
  %v66 = vld [vmem:[%s1 + $0x48] sm:$0xff]
  %v67 = vld [vmem:[%s1 + $0x50] sm:$0xff]
  %v68 = vld [vmem:[%s1 + $0x58] sm:$0xff]
  %v69 = vld [vmem:[%s1 + $0x60] sm:$0xff]
  %v70 = vld [vmem:[%s1 + $0x68] sm:$0xff]
  %v71 = vld [vmem:[%s1 + $0x70] sm:$0xff]
  %v72 = vld [vmem:[%s1 + $0x78] sm:$0xff]
  %v73 = vld [vmem:[%s1 + $0x80] sm:$0xff]
  %v74 = vld [vmem:[%s1 + $0x88] sm:$0xff]
  %v75 = vld [vmem:[%s1 + $0x90] sm:$0xff]
  %v76 = vld [vmem:[%s1 + $0x98] sm:$0xff]
  %v77 = vld [vmem:[%s1 + $0xa0] sm:$0xff]
  %v78 = vld [vmem:[%s1 + $0xa8] sm:$0xff]
  %v79 = vld [vmem:[%s1 + $0xb0] sm:$0xff]
  %v80 = vld [vmem:[%s1 + $0xb8] sm:$0xff]
  %v81 = vld [vmem:[%s1 + $0xc0] sm:$0xff]
  %v82 = vld [vmem:[%s1 + $0xc8] sm:$0xff]
  %v83 = vld [vmem:[%s1 + $0xd0] sm:$0xff]
  %v84 = vld [vmem:[%s1 + $0xd8] sm:$0xff]
  %v85 = vld [vmem:[%s1 + $0xe0] sm:$0xff]
  %v86 = vld [vmem:[%s1 + $0xe8] sm:$0xff]
  %v87 = vld [vmem:[%s1 + $0xf0] sm:$0xff]
  %v88 = vld [vmem:[%s1 + $0xf8] sm:$0xff]
  %v89 = vld [vmem:[%s4] ss:$4 sm:$0xf]
  %v91 = vlaneseq
  %v92 = vshrl.u32 %v91, 7
  %v93 = vsub.s32 0, %v92
  %v94 = vrot.slane %v89, %v93
  %v95 = vlaneseq
  %v96 = vshrl.u32 %v95, 7
  %v97 = vsub.s32 1, %v96
  %v98 = vrot.slane %v89, %v97
  %v99 = vlaneseq
  %v100 = vshrl.u32 %v99, 7
  %v101 = vsub.s32 2, %v100
  %v102 = vrot.slane %v89, %v101
  %v103 = vlaneseq
  %v104 = vshrl.u32 %v103, 7
  %v105 = vsub.s32 3, %v104
  %v106 = vrot.slane %v89, %v105
  %v143 = vunpack.c.l.b16 %v57
  %v144 = vunpack.c.h.b16 %v57
  %v145 = vunpack.c.l.b16 %v58
  %v146 = vunpack.c.h.b16 %v58
  %v147 = vunpack.c.l.b16 %v59
  %v148 = vunpack.c.h.b16 %v59
  %v149 = vunpack.c.l.b16 %v60
  %v150 = vunpack.c.h.b16 %v60
  %v151 = vunpack.c.l.b16 %v61
  %v152 = vunpack.c.h.b16 %v61
  %v153 = vunpack.c.l.b16 %v62
  %v154 = vunpack.c.h.b16 %v62
  %v155 = vunpack.c.l.b16 %v63
  %v156 = vunpack.c.h.b16 %v63
  %v157 = vunpack.c.l.b16 %v64
  %v158 = vunpack.c.h.b16 %v64
  %v159 = vunpack.c.l.b16 %v65
  %v160 = vunpack.c.h.b16 %v65
  %v161 = vunpack.c.l.b16 %v66
  %v162 = vunpack.c.h.b16 %v66
  %v163 = vunpack.c.l.b16 %v67
  %v164 = vunpack.c.h.b16 %v67
  %v165 = vunpack.c.l.b16 %v68
  %v166 = vunpack.c.h.b16 %v68
  %v167 = vunpack.c.l.b16 %v69
  %v168 = vunpack.c.h.b16 %v69
  %v169 = vunpack.c.l.b16 %v70
  %v170 = vunpack.c.h.b16 %v70
  %v171 = vunpack.c.l.b16 %v71
  %v172 = vunpack.c.h.b16 %v71
  %v173 = vunpack.c.l.b16 %v72
  %v174 = vunpack.c.h.b16 %v72
  %v175 = vunpack.c.l.b16 %v73
  %v176 = vunpack.c.h.b16 %v73
  %v177 = vunpack.c.l.b16 %v74
  %v178 = vunpack.c.h.b16 %v74
  %v179 = vunpack.c.l.b16 %v75
  %v180 = vunpack.c.h.b16 %v75
  %v181 = vunpack.c.l.b16 %v76
  %v182 = vunpack.c.h.b16 %v76
  %v183 = vunpack.c.l.b16 %v77
  %v184 = vunpack.c.h.b16 %v77
  %v185 = vunpack.c.l.b16 %v78
  %v186 = vunpack.c.h.b16 %v78
  %v187 = vunpack.c.l.b16 %v79
  %v188 = vunpack.c.h.b16 %v79
  %v189 = vunpack.c.l.b16 %v80
  %v190 = vunpack.c.h.b16 %v80
  %v191 = vunpack.c.l.b16 %v81
  %v192 = vunpack.c.h.b16 %v81
  %v193 = vunpack.c.l.b16 %v82
  %v194 = vunpack.c.h.b16 %v82
  %v195 = vunpack.c.l.b16 %v83
  %v196 = vunpack.c.h.b16 %v83
  %v197 = vunpack.c.l.b16 %v84
  %v198 = vunpack.c.h.b16 %v84
  %v199 = vunpack.c.l.b16 %v85
  %v200 = vunpack.c.h.b16 %v85
  %v201 = vunpack.c.l.b16 %v86
  %v202 = vunpack.c.h.b16 %v86
  %v203 = vunpack.c.l.b16 %v87
  %v204 = vunpack.c.h.b16 %v87
  %v205 = vunpack.c.l.b16 %v88
  %v206 = vunpack.c.h.b16 %v88
  %v207 = vpack.c.b16 %v147, %v143
  %v208 = vpack.c.b16 %v148, %v144
  %v209 = vpack.c.b16 %v149, %v145
  %v210 = vpack.c.b16 %v150, %v146
  %v211 = vpack.c.b16 %v155, %v151
  %v212 = vpack.c.b16 %v156, %v152
  %v213 = vpack.c.b16 %v157, %v153
  %v214 = vpack.c.b16 %v158, %v154
  %v215 = vpack.c.b16 %v163, %v159
  %v216 = vpack.c.b16 %v164, %v160
  %v217 = vpack.c.b16 %v165, %v161
  %v218 = vpack.c.b16 %v166, %v162
  %v219 = vpack.c.b16 %v171, %v167
  %v220 = vpack.c.b16 %v172, %v168
  %v221 = vpack.c.b16 %v173, %v169
  %v222 = vpack.c.b16 %v174, %v170
  %v223 = vpack.c.b16 %v179, %v175
  %v224 = vpack.c.b16 %v180, %v176
  %v225 = vpack.c.b16 %v181, %v177
  %v226 = vpack.c.b16 %v182, %v178
  %v227 = vpack.c.b16 %v187, %v183
  %v228 = vpack.c.b16 %v188, %v184
  %v229 = vpack.c.b16 %v189, %v185
  %v230 = vpack.c.b16 %v190, %v186
  %v231 = vpack.c.b16 %v195, %v191
  %v232 = vpack.c.b16 %v196, %v192
  %v233 = vpack.c.b16 %v197, %v193
  %v234 = vpack.c.b16 %v198, %v194
  %v235 = vpack.c.b16 %v203, %v199
  %v236 = vpack.c.b16 %v204, %v200
  %v237 = vpack.c.b16 %v205, %v201
  %v238 = vpack.c.b16 %v206, %v202
  %271 = vmatprep.subr.bf16.mxu0 %v208
  %272 = vmatpush1.bf16.msra.mxu0 %v207
  %273 = vmatprep.subr.bf16.mxu0 %v212
  %274 = vmatpush1.bf16.msra.mxu0 %v211
  %275 = vmatprep.subr.bf16.mxu0 %v216
  %276 = vmatpush1.bf16.msra.mxu0 %v215
  %277 = vmatprep.subr.bf16.mxu0 %v220
  %278 = vmatpush1.bf16.msra.mxu0 %v219
  %279 = vmatprep.subr.bf16.mxu0 %v224
  %280 = vmatpush1.bf16.msra.mxu0 %v223
  %281 = vmatprep.subr.bf16.mxu0 %v228
  %282 = vmatpush1.bf16.msra.mxu0 %v227
  %283 = vmatprep.subr.bf16.mxu0 %v232
  %284 = vmatpush1.bf16.msra.mxu0 %v231
  %285 = vmatprep.subr.bf16.mxu0 %v236
  %286 = vmatpush1.bf16.msra.mxu0 %v235
  %287 = vmatprep.subr.bf16.mxu0 0
  %288 = vmatpush1.bf16.msra.mxu0 0
  %289 = vmatprep.subr.bf16.mxu0 0
  %290 = vmatpush1.bf16.msra.mxu0 0
  %291 = vmatprep.subr.bf16.mxu0 0
  %292 = vmatpush1.bf16.msra.mxu0 0
  %293 = vmatprep.subr.bf16.mxu0 0
  %294 = vmatpush1.bf16.msra.mxu0 0
  %295 = vmatprep.subr.bf16.mxu0 0
  %296 = vmatpush1.bf16.msra.mxu0 0
  %297 = vmatprep.subr.bf16.mxu0 0
  %298 = vmatpush1.bf16.msra.mxu0 0
  %299 = vmatprep.subr.bf16.mxu0 0
  %300 = vmatpush1.bf16.msra.mxu0 0
  %301 = vmatprep.subr.bf16.mxu0 0
  %302 = vmatpush1.bf16.msra.mxu0 0
  %303 = vmatprep.mubr.bf16.mxu0 0
  %304 = vmatmul.mubr.bf16.gmra.mrb[0].mxu0 %v45
  %v305 = vpop.f32.mrb[0].mxu0
  %v306 = vadd.f32 %v94, %v305
  %v307 = vpop.f32.mrb[0].mxu0
  %v308 = vadd.f32 %v98, %v307
  %v309 = vpop.f32.mrb[0].mxu0
  %v310 = vadd.f32 %v94, %v309
  %v311 = vpop.f32.mrb[0].mxu0
  %v312 = vadd.f32 %v98, %v311
  %313 = vmatprep.mubr.bf16.mxu0 0
  %314 = vmatmul.mubr.bf16.gmra.mrb[0].mxu0 %v46
  %v315 = vpop.f32.mrb[0].mxu0
  %v316 = vadd.f32 %v94, %v315
  %v317 = vpop.f32.mrb[0].mxu0
  %v318 = vadd.f32 %v98, %v317
  %v319 = vpop.f32.mrb[0].mxu0
  %v320 = vadd.f32 %v94, %v319
  %v321 = vpop.f32.mrb[0].mxu0
  %v322 = vadd.f32 %v98, %v321
  %323 = vmatprep.mubr.bf16.mxu0 0
  %324 = vmatmul.mubr.bf16.gmra.mrb[0].mxu0 %v47
  %v325 = vpop.f32.mrb[0].mxu0
  %v326 = vadd.f32 %v94, %v325
  %v327 = vpop.f32.mrb[0].mxu0
  %v328 = vadd.f32 %v98, %v327
  %v329 = vpop.f32.mrb[0].mxu0
  %v330 = vadd.f32 %v94, %v329
  %v331 = vpop.f32.mrb[0].mxu0
  %v332 = vadd.f32 %v98, %v331
  %333 = vmatprep.mubr.bf16.mxu0 0
  %334 = vmatmul.mubr.bf16.gmra.mrb[0].mxu0 %v48
  %v335 = vpop.f32.mrb[0].mxu0
  %v336 = vadd.f32 %v94, %v335
  %v337 = vpop.f32.mrb[0].mxu0
  %v338 = vadd.f32 %v98, %v337
  %v339 = vpop.f32.mrb[0].mxu0
  %v340 = vadd.f32 %v94, %v339
  %v341 = vpop.f32.mrb[0].mxu0
  %v342 = vadd.f32 %v98, %v341
  %343 = vmatprep.mubr.bf16.mxu0 0
  %344 = vmatmul.mubr.bf16.gmra.mrb[0].mxu0 %v49
  %v345 = vpop.f32.mrb[0].mxu0
  %v346 = vadd.f32 %v94, %v345
  %v347 = vpop.f32.mrb[0].mxu0
  %v348 = vadd.f32 %v98, %v347
  %v349 = vpop.f32.mrb[0].mxu0
  %v350 = vadd.f32 %v94, %v349
  %v351 = vpop.f32.mrb[0].mxu0
  %v352 = vadd.f32 %v98, %v351
  %353 = vmatprep.mubr.bf16.mxu0 0
  %354 = vmatmul.mubr.bf16.gmra.mrb[0].mxu0 %v50
  %v355 = vpop.f32.mrb[0].mxu0
  %v356 = vadd.f32 %v94, %v355
  %v357 = vpop.f32.mrb[0].mxu0
  %v358 = vadd.f32 %v98, %v357
  %v359 = vpop.f32.mrb[0].mxu0
  %v360 = vadd.f32 %v94, %v359
  %v361 = vpop.f32.mrb[0].mxu0
  %v362 = vadd.f32 %v98, %v361
  %363 = vmatprep.mubr.bf16.mxu0 0
  %364 = vmatmul.mubr.bf16.gmra.mrb[0].mxu0 %v51
  %v365 = vpop.f32.mrb[0].mxu0
  %v366 = vadd.f32 %v94, %v365
  %v367 = vpop.f32.mrb[0].mxu0
  %v368 = vadd.f32 %v98, %v367
  %v369 = vpop.f32.mrb[0].mxu0
  %v370 = vadd.f32 %v94, %v369
  %v371 = vpop.f32.mrb[0].mxu0
  %v372 = vadd.f32 %v98, %v371
  %373 = vmatprep.mubr.bf16.mxu0 0
  %374 = vmatmul.mubr.bf16.gmra.mrb[0].mxu0 %v52
  %v375 = vpop.f32.mrb[0].mxu0
  %v376 = vadd.f32 %v94, %v375
  %v377 = vpop.f32.mrb[0].mxu0
  %v378 = vadd.f32 %v98, %v377
  %v379 = vpop.f32.mrb[0].mxu0
  %v380 = vadd.f32 %v94, %v379
  %v381 = vpop.f32.mrb[0].mxu0
  %v382 = vadd.f32 %v98, %v381
  %383 = vmatprep.mubr.bf16.mxu0 0
  %384 = vmatmul.mubr.bf16.gmra.mrb[0].mxu0 %v53
  %v385 = vpop.f32.mrb[0].mxu0
  %v386 = vadd.f32 %v94, %v385
  %v387 = vpop.f32.mrb[0].mxu0
  %v388 = vadd.f32 %v98, %v387
  %v389 = vpop.f32.mrb[0].mxu0
  %v390 = vadd.f32 %v94, %v389
  %v391 = vpop.f32.mrb[0].mxu0
  %v392 = vadd.f32 %v98, %v391
  %393 = vmatprep.mubr.bf16.mxu0 0
  %394 = vmatmul.mubr.bf16.gmra.mrb[0].mxu0 %v54
  %v395 = vpop.f32.mrb[0].mxu0
  %v396 = vadd.f32 %v94, %v395
  %v397 = vpop.f32.mrb[0].mxu0
  %v398 = vadd.f32 %v98, %v397
  %v399 = vpop.f32.mrb[0].mxu0
  %v400 = vadd.f32 %v94, %v399
  %v401 = vpop.f32.mrb[0].mxu0
  %v402 = vadd.f32 %v98, %v401
  %403 = vmatprep.mubr.bf16.mxu0 0
  %404 = vmatmul.mubr.bf16.gmra.mrb[0].mxu0 %v55
  %v405 = vpop.f32.mrb[0].mxu0
  %v406 = vadd.f32 %v94, %v405
  %v407 = vpop.f32.mrb[0].mxu0
  %v408 = vadd.f32 %v98, %v407
  %v409 = vpop.f32.mrb[0].mxu0
  %v410 = vadd.f32 %v94, %v409
  %v411 = vpop.f32.mrb[0].mxu0
  %v412 = vadd.f32 %v98, %v411
  %413 = vmatprep.mubr.bf16.mxu0 0
  %414 = vmatmul.mubr.bf16.gmra.mrb[0].mxu0 %v56
  %v415 = vpop.f32.mrb[0].mxu0
  %v416 = vadd.f32 %v94, %v415
  %v417 = vpop.f32.mrb[0].mxu0
  %v418 = vadd.f32 %v98, %v417
  %v419 = vpop.f32.mrb[0].mxu0
  %v420 = vadd.f32 %v94, %v419
  %v421 = vpop.f32.mrb[0].mxu0
  %v422 = vadd.f32 %v98, %v421
  %423 = vdwg.mxu0
  %424 = vmatprep.subr.bf16.mxu0 %v210
  %425 = vmatpush1.bf16.msra.mxu0 %v209
  %426 = vmatprep.subr.bf16.mxu0 %v214
  %427 = vmatpush1.bf16.msra.mxu0 %v213
  %428 = vmatprep.subr.bf16.mxu0 %v218
  %429 = vmatpush1.bf16.msra.mxu0 %v217
  %430 = vmatprep.subr.bf16.mxu0 %v222
  %431 = vmatpush1.bf16.msra.mxu0 %v221
  %432 = vmatprep.subr.bf16.mxu0 %v226
  %433 = vmatpush1.bf16.msra.mxu0 %v225
  %434 = vmatprep.subr.bf16.mxu0 %v230
  %435 = vmatpush1.bf16.msra.mxu0 %v229
  %436 = vmatprep.subr.bf16.mxu0 %v234
  %437 = vmatpush1.bf16.msra.mxu0 %v233
  %438 = vmatprep.subr.bf16.mxu0 %v238
  %439 = vmatpush1.bf16.msra.mxu0 %v237
  %440 = vmatprep.subr.bf16.mxu0 0
  %441 = vmatpush1.bf16.msra.mxu0 0
  %442 = vmatprep.subr.bf16.mxu0 0
  %443 = vmatpush1.bf16.msra.mxu0 0
  %444 = vmatprep.subr.bf16.mxu0 0
  %445 = vmatpush1.bf16.msra.mxu0 0
  %446 = vmatprep.subr.bf16.mxu0 0
  %447 = vmatpush1.bf16.msra.mxu0 0
  %448 = vmatprep.subr.bf16.mxu0 0
  %449 = vmatpush1.bf16.msra.mxu0 0
  %450 = vmatprep.subr.bf16.mxu0 0
  %451 = vmatpush1.bf16.msra.mxu0 0
  %452 = vmatprep.subr.bf16.mxu0 0
  %453 = vmatpush1.bf16.msra.mxu0 0
  %454 = vmatprep.subr.bf16.mxu0 0
  %455 = vmatpush1.bf16.msra.mxu0 0
  %456 = vmatprep.mubr.bf16.mxu0 0
  %457 = vmatmul.mubr.bf16.gmra.mrb[0].mxu0 %v45
  %v458 = vpop.f32.mrb[0].mxu0
  %v459 = vadd.f32 %v102, %v458
  %v460 = vpop.f32.mrb[0].mxu0
  %v461 = vadd.f32 %v106, %v460
  %v462 = vpop.f32.mrb[0].mxu0
  %v463 = vadd.f32 %v102, %v462
  %v464 = vpop.f32.mrb[0].mxu0
  %v465 = vadd.f32 %v106, %v464
  %466 = vmatprep.mubr.bf16.mxu0 0
  %467 = vmatmul.mubr.bf16.gmra.mrb[0].mxu0 %v46
  %v468 = vpop.f32.mrb[0].mxu0
  %v469 = vadd.f32 %v102, %v468
  %v470 = vpop.f32.mrb[0].mxu0
  %v471 = vadd.f32 %v106, %v470
  %v472 = vpop.f32.mrb[0].mxu0
  %v473 = vadd.f32 %v102, %v472
  %v474 = vpop.f32.mrb[0].mxu0
  %v475 = vadd.f32 %v106, %v474
  %476 = vmatprep.mubr.bf16.mxu0 0
  %477 = vmatmul.mubr.bf16.gmra.mrb[0].mxu0 %v47
  %v478 = vpop.f32.mrb[0].mxu0
  %v479 = vadd.f32 %v102, %v478
  %v480 = vpop.f32.mrb[0].mxu0
  %v481 = vadd.f32 %v106, %v480
  %v482 = vpop.f32.mrb[0].mxu0
  %v483 = vadd.f32 %v102, %v482
  %v484 = vpop.f32.mrb[0].mxu0
  %v485 = vadd.f32 %v106, %v484
  %486 = vmatprep.mubr.bf16.mxu0 0
  %487 = vmatmul.mubr.bf16.gmra.mrb[0].mxu0 %v48
  %v488 = vpop.f32.mrb[0].mxu0
  %v489 = vadd.f32 %v102, %v488
  %v490 = vpop.f32.mrb[0].mxu0
  %v491 = vadd.f32 %v106, %v490
  %v492 = vpop.f32.mrb[0].mxu0
  %v493 = vadd.f32 %v102, %v492
  %v494 = vpop.f32.mrb[0].mxu0
  %v495 = vadd.f32 %v106, %v494
  %496 = vmatprep.mubr.bf16.mxu0 0
  %497 = vmatmul.mubr.bf16.gmra.mrb[0].mxu0 %v49
  %v498 = vpop.f32.mrb[0].mxu0
  %v499 = vadd.f32 %v102, %v498
  %v500 = vpop.f32.mrb[0].mxu0
  %v501 = vadd.f32 %v106, %v500
  %v502 = vpop.f32.mrb[0].mxu0
  %v503 = vadd.f32 %v102, %v502
  %v504 = vpop.f32.mrb[0].mxu0
  %v505 = vadd.f32 %v106, %v504
  %506 = vmatprep.mubr.bf16.mxu0 0
  %507 = vmatmul.mubr.bf16.gmra.mrb[0].mxu0 %v50
  %v508 = vpop.f32.mrb[0].mxu0
  %v509 = vadd.f32 %v102, %v508
  %v510 = vpop.f32.mrb[0].mxu0
  %v511 = vadd.f32 %v106, %v510
  %v512 = vpop.f32.mrb[0].mxu0
  %v513 = vadd.f32 %v102, %v512
  %v514 = vpop.f32.mrb[0].mxu0
  %v515 = vadd.f32 %v106, %v514
  %516 = vmatprep.mubr.bf16.mxu0 0
  %517 = vmatmul.mubr.bf16.gmra.mrb[0].mxu0 %v51
  %v518 = vpop.f32.mrb[0].mxu0
  %v519 = vadd.f32 %v102, %v518
  %v520 = vpop.f32.mrb[0].mxu0
  %v521 = vadd.f32 %v106, %v520
  %v522 = vpop.f32.mrb[0].mxu0
  %v523 = vadd.f32 %v102, %v522
  %v524 = vpop.f32.mrb[0].mxu0
  %v525 = vadd.f32 %v106, %v524
  %526 = vmatprep.mubr.bf16.mxu0 0
  %527 = vmatmul.mubr.bf16.gmra.mrb[0].mxu0 %v52
  %v528 = vpop.f32.mrb[0].mxu0
  %v529 = vadd.f32 %v102, %v528
  %v530 = vpop.f32.mrb[0].mxu0
  %v531 = vadd.f32 %v106, %v530
  %v532 = vpop.f32.mrb[0].mxu0
  %v533 = vadd.f32 %v102, %v532
  %v534 = vpop.f32.mrb[0].mxu0
  %v535 = vadd.f32 %v106, %v534
  %536 = vmatprep.mubr.bf16.mxu0 0
  %537 = vmatmul.mubr.bf16.gmra.mrb[0].mxu0 %v53
  %v538 = vpop.f32.mrb[0].mxu0
  %v539 = vadd.f32 %v102, %v538
  %v540 = vpop.f32.mrb[0].mxu0
  %v541 = vadd.f32 %v106, %v540
  %v542 = vpop.f32.mrb[0].mxu0
  %v543 = vadd.f32 %v102, %v542
  %v544 = vpop.f32.mrb[0].mxu0
  %v545 = vadd.f32 %v106, %v544
  %546 = vmatprep.mubr.bf16.mxu0 0
  %547 = vmatmul.mubr.bf16.gmra.mrb[0].mxu0 %v54
  %v548 = vpop.f32.mrb[0].mxu0
  %v549 = vadd.f32 %v102, %v548
  %v550 = vpop.f32.mrb[0].mxu0
  %v551 = vadd.f32 %v106, %v550
  %v552 = vpop.f32.mrb[0].mxu0
  %v553 = vadd.f32 %v102, %v552
  %v554 = vpop.f32.mrb[0].mxu0
  %v555 = vadd.f32 %v106, %v554
  %556 = vmatprep.mubr.bf16.mxu0 0
  %557 = vmatmul.mubr.bf16.gmra.mrb[0].mxu0 %v55
  %v558 = vpop.f32.mrb[0].mxu0
  %v559 = vadd.f32 %v102, %v558
  %v560 = vpop.f32.mrb[0].mxu0
  %v561 = vadd.f32 %v106, %v560
  %v562 = vpop.f32.mrb[0].mxu0
  %v563 = vadd.f32 %v102, %v562
  %v564 = vpop.f32.mrb[0].mxu0
  %v565 = vadd.f32 %v106, %v564
  %566 = vmatprep.mubr.bf16.mxu0 0
  %567 = vmatmul.mubr.bf16.gmra.mrb[0].mxu0 %v56
  %v568 = vpop.f32.mrb[0].mxu0
  %v569 = vadd.f32 %v102, %v568
  %v570 = vpop.f32.mrb[0].mxu0
  %v571 = vadd.f32 %v106, %v570
  %v572 = vpop.f32.mrb[0].mxu0
  %v573 = vadd.f32 %v102, %v572
  %v574 = vpop.f32.mrb[0].mxu0
  %v575 = vadd.f32 %v106, %v574
  %576 = vdwg.mxu0
  %v577 = vmax.f32 %v306, 0.0
  %v578 = vmax.f32 %v308, 0.0
  %v579 = vmax.f32 %v459, 0.0
  %v580 = vmax.f32 %v461, 0.0
  %v581 = vmax.f32 %v310, 0.0
  %v582 = vmax.f32 %v312, 0.0
  %v583 = vmax.f32 %v463, 0.0
  %v584 = vmax.f32 %v465, 0.0
  %v585 = vmax.f32 %v316, 0.0
  %v586 = vmax.f32 %v318, 0.0
  %v587 = vmax.f32 %v469, 0.0
  %v588 = vmax.f32 %v471, 0.0
  %v589 = vmax.f32 %v320, 0.0
  %v590 = vmax.f32 %v322, 0.0
  %v591 = vmax.f32 %v473, 0.0
  %v592 = vmax.f32 %v475, 0.0
  %v593 = vmax.f32 %v326, 0.0
  %v594 = vmax.f32 %v328, 0.0
  %v595 = vmax.f32 %v479, 0.0
  %v596 = vmax.f32 %v481, 0.0
  %v597 = vmax.f32 %v330, 0.0
  %v598 = vmax.f32 %v332, 0.0
  %v599 = vmax.f32 %v483, 0.0
  %v600 = vmax.f32 %v485, 0.0
  %v601 = vmax.f32 %v336, 0.0
  %v602 = vmax.f32 %v338, 0.0
  %v603 = vmax.f32 %v489, 0.0
  %v604 = vmax.f32 %v491, 0.0
  %v605 = vmax.f32 %v340, 0.0
  %v606 = vmax.f32 %v342, 0.0
  %v607 = vmax.f32 %v493, 0.0
  %v608 = vmax.f32 %v495, 0.0
  %v609 = vmax.f32 %v346, 0.0
  %v610 = vmax.f32 %v348, 0.0
  %v611 = vmax.f32 %v499, 0.0
  %v612 = vmax.f32 %v501, 0.0
  %v613 = vmax.f32 %v350, 0.0
  %v614 = vmax.f32 %v352, 0.0
  %v615 = vmax.f32 %v503, 0.0
  %v616 = vmax.f32 %v505, 0.0
  %v617 = vmax.f32 %v356, 0.0
  %v618 = vmax.f32 %v358, 0.0
  %v619 = vmax.f32 %v509, 0.0
  %v620 = vmax.f32 %v511, 0.0
  %v621 = vmax.f32 %v360, 0.0
  %v622 = vmax.f32 %v362, 0.0
  %v623 = vmax.f32 %v513, 0.0
  %v624 = vmax.f32 %v515, 0.0
  %v625 = vmax.f32 %v366, 0.0
  %v626 = vmax.f32 %v368, 0.0
  %v627 = vmax.f32 %v519, 0.0
  %v628 = vmax.f32 %v521, 0.0
  %v629 = vmax.f32 %v370, 0.0
  %v630 = vmax.f32 %v372, 0.0
  %v631 = vmax.f32 %v523, 0.0
  %v632 = vmax.f32 %v525, 0.0
  %v633 = vmax.f32 %v376, 0.0
  %v634 = vmax.f32 %v378, 0.0
  %v635 = vmax.f32 %v529, 0.0
  %v636 = vmax.f32 %v531, 0.0
  %v637 = vmax.f32 %v380, 0.0
  %v638 = vmax.f32 %v382, 0.0
  %v639 = vmax.f32 %v533, 0.0
  %v640 = vmax.f32 %v535, 0.0
  %v641 = vmax.f32 %v386, 0.0
  %v642 = vmax.f32 %v388, 0.0
  %v643 = vmax.f32 %v539, 0.0
  %v644 = vmax.f32 %v541, 0.0
  %v645 = vmax.f32 %v390, 0.0
  %v646 = vmax.f32 %v392, 0.0
  %v647 = vmax.f32 %v543, 0.0
  %v648 = vmax.f32 %v545, 0.0
  %v649 = vmax.f32 %v396, 0.0
  %v650 = vmax.f32 %v398, 0.0
  %v651 = vmax.f32 %v549, 0.0
  %v652 = vmax.f32 %v551, 0.0
  %v653 = vmax.f32 %v400, 0.0
  %v654 = vmax.f32 %v402, 0.0
  %v655 = vmax.f32 %v553, 0.0
  %v656 = vmax.f32 %v555, 0.0
  %v657 = vmax.f32 %v406, 0.0
  %v658 = vmax.f32 %v408, 0.0
  %v659 = vmax.f32 %v559, 0.0
  %v660 = vmax.f32 %v561, 0.0
  %v661 = vmax.f32 %v410, 0.0
  %v662 = vmax.f32 %v412, 0.0
  %v663 = vmax.f32 %v563, 0.0
  %v664 = vmax.f32 %v565, 0.0
  %v665 = vmax.f32 %v416, 0.0
  %v666 = vmax.f32 %v418, 0.0
  %v667 = vmax.f32 %v569, 0.0
  %v668 = vmax.f32 %v571, 0.0
  %v669 = vmax.f32 %v420, 0.0
  %v670 = vmax.f32 %v422, 0.0
  %v671 = vmax.f32 %v573, 0.0
  %v672 = vmax.f32 %v575, 0.0
  %v673 = vmul.f32 %v577, 0.999995
  %v674 = vmul.f32 %v578, 0.999995
  %v675 = vmul.f32 %v579, 0.999995
  %v676 = vmul.f32 %v580, 0.999995
  %v677 = vmul.f32 %v581, 0.999995
  %v678 = vmul.f32 %v582, 0.999995
  %v679 = vmul.f32 %v583, 0.999995
  %v680 = vmul.f32 %v584, 0.999995
  %v681 = vmul.f32 %v585, 0.999995
  %v682 = vmul.f32 %v586, 0.999995
  %v683 = vmul.f32 %v587, 0.999995
  %v684 = vmul.f32 %v588, 0.999995
  %v685 = vmul.f32 %v589, 0.999995
  %v686 = vmul.f32 %v590, 0.999995
  %v687 = vmul.f32 %v591, 0.999995
  %v688 = vmul.f32 %v592, 0.999995
  %v689 = vmul.f32 %v593, 0.999995
  %v690 = vmul.f32 %v594, 0.999995
  %v691 = vmul.f32 %v595, 0.999995
  %v692 = vmul.f32 %v596, 0.999995
  %v693 = vmul.f32 %v597, 0.999995
  %v694 = vmul.f32 %v598, 0.999995
  %v695 = vmul.f32 %v599, 0.999995
  %v696 = vmul.f32 %v600, 0.999995
  %v697 = vmul.f32 %v601, 0.999995
  %v698 = vmul.f32 %v602, 0.999995
  %v699 = vmul.f32 %v603, 0.999995
  %v700 = vmul.f32 %v604, 0.999995
  %v701 = vmul.f32 %v605, 0.999995
  %v702 = vmul.f32 %v606, 0.999995
  %v703 = vmul.f32 %v607, 0.999995
  %v704 = vmul.f32 %v608, 0.999995
  %v705 = vmul.f32 %v609, 0.999995
  %v706 = vmul.f32 %v610, 0.999995
  %v707 = vmul.f32 %v611, 0.999995
  %v708 = vmul.f32 %v612, 0.999995
  %v709 = vmul.f32 %v613, 0.999995
  %v710 = vmul.f32 %v614, 0.999995
  %v711 = vmul.f32 %v615, 0.999995
  %v712 = vmul.f32 %v616, 0.999995
  %v713 = vmul.f32 %v617, 0.999995
  %v714 = vmul.f32 %v618, 0.999995
  %v715 = vmul.f32 %v619, 0.999995
  %v716 = vmul.f32 %v620, 0.999995
  %v717 = vmul.f32 %v621, 0.999995
  %v718 = vmul.f32 %v622, 0.999995
  %v719 = vmul.f32 %v623, 0.999995
  %v720 = vmul.f32 %v624, 0.999995
  %v721 = vmul.f32 %v625, 0.999995
  %v722 = vmul.f32 %v626, 0.999995
  %v723 = vmul.f32 %v627, 0.999995
  %v724 = vmul.f32 %v628, 0.999995
  %v725 = vmul.f32 %v629, 0.999995
  %v726 = vmul.f32 %v630, 0.999995
  %v727 = vmul.f32 %v631, 0.999995
  %v728 = vmul.f32 %v632, 0.999995
  %v729 = vmul.f32 %v633, 0.999995
  %v730 = vmul.f32 %v634, 0.999995
  %v731 = vmul.f32 %v635, 0.999995
  %v732 = vmul.f32 %v636, 0.999995
  %v733 = vmul.f32 %v637, 0.999995
  %v734 = vmul.f32 %v638, 0.999995
  %v735 = vmul.f32 %v639, 0.999995
  %v736 = vmul.f32 %v640, 0.999995
  %v737 = vmul.f32 %v641, 0.999995
  %v738 = vmul.f32 %v642, 0.999995
  %v739 = vmul.f32 %v643, 0.999995
  %v740 = vmul.f32 %v644, 0.999995
  %v741 = vmul.f32 %v645, 0.999995
  %v742 = vmul.f32 %v646, 0.999995
  %v743 = vmul.f32 %v647, 0.999995
  %v744 = vmul.f32 %v648, 0.999995
  %v745 = vmul.f32 %v649, 0.999995
  %v746 = vmul.f32 %v650, 0.999995
  %v747 = vmul.f32 %v651, 0.999995
  %v748 = vmul.f32 %v652, 0.999995
  %v749 = vmul.f32 %v653, 0.999995
  %v750 = vmul.f32 %v654, 0.999995
  %v751 = vmul.f32 %v655, 0.999995
  %v752 = vmul.f32 %v656, 0.999995
  %v753 = vmul.f32 %v657, 0.999995
  %v754 = vmul.f32 %v658, 0.999995
  %v755 = vmul.f32 %v659, 0.999995
  %v756 = vmul.f32 %v660, 0.999995
  %v757 = vmul.f32 %v661, 0.999995
  %v758 = vmul.f32 %v662, 0.999995
  %v759 = vmul.f32 %v663, 0.999995
  %v760 = vmul.f32 %v664, 0.999995
  %v761 = vmul.f32 %v665, 0.999995
  %v762 = vmul.f32 %v666, 0.999995
  %v763 = vmul.f32 %v667, 0.999995
  %v764 = vmul.f32 %v668, 0.999995
  %v765 = vmul.f32 %v669, 0.999995
  %v766 = vmul.f32 %v670, 0.999995
  %v767 = vmul.f32 %v671, 0.999995
  %v768 = vmul.f32 %v672, 0.999995
  %v769 = vpack.c.bf16 %v677, %v673
  %v770 = vpack.c.bf16 %v678, %v674
  %v771 = vpack.c.bf16 %v679, %v675
  %v772 = vpack.c.bf16 %v680, %v676
  %v773 = vpack.c.bf16 %v685, %v681
  %v774 = vpack.c.bf16 %v686, %v682
  %v775 = vpack.c.bf16 %v687, %v683
  %v776 = vpack.c.bf16 %v688, %v684
  %v777 = vpack.c.bf16 %v693, %v689
  %v778 = vpack.c.bf16 %v694, %v690
  %v779 = vpack.c.bf16 %v695, %v691
  %v780 = vpack.c.bf16 %v696, %v692
  %v781 = vpack.c.bf16 %v701, %v697
  %v782 = vpack.c.bf16 %v702, %v698
  %v783 = vpack.c.bf16 %v703, %v699
  %v784 = vpack.c.bf16 %v704, %v700
  %v785 = vpack.c.bf16 %v709, %v705
  %v786 = vpack.c.bf16 %v710, %v706
  %v787 = vpack.c.bf16 %v711, %v707
  %v788 = vpack.c.bf16 %v712, %v708
  %v789 = vpack.c.bf16 %v717, %v713
  %v790 = vpack.c.bf16 %v718, %v714
  %v791 = vpack.c.bf16 %v719, %v715
  %v792 = vpack.c.bf16 %v720, %v716
  %v793 = vpack.c.bf16 %v725, %v721
  %v794 = vpack.c.bf16 %v726, %v722
  %v795 = vpack.c.bf16 %v727, %v723
  %v796 = vpack.c.bf16 %v728, %v724
  %v797 = vpack.c.bf16 %v733, %v729
  %v798 = vpack.c.bf16 %v734, %v730
  %v799 = vpack.c.bf16 %v735, %v731
  %v800 = vpack.c.bf16 %v736, %v732
  %v801 = vpack.c.bf16 %v741, %v737
  %v802 = vpack.c.bf16 %v742, %v738
  %v803 = vpack.c.bf16 %v743, %v739
  %v804 = vpack.c.bf16 %v744, %v740
  %v805 = vpack.c.bf16 %v749, %v745
  %v806 = vpack.c.bf16 %v750, %v746
  %v807 = vpack.c.bf16 %v751, %v747
  %v808 = vpack.c.bf16 %v752, %v748
  %v809 = vpack.c.bf16 %v757, %v753
  %v810 = vpack.c.bf16 %v758, %v754
  %v811 = vpack.c.bf16 %v759, %v755
  %v812 = vpack.c.bf16 %v760, %v756
  %v813 = vpack.c.bf16 %v765, %v761
  %v814 = vpack.c.bf16 %v766, %v762
  %v815 = vpack.c.bf16 %v767, %v763
  %v816 = vpack.c.bf16 %v768, %v764
  %v817 = vld [vmem:[%s2] sm:$0xff]
  %v818 = vld [vmem:[%s2 + $0x8] sm:$0xff]
  %v819 = vld [vmem:[%s2 + $0x10] sm:$0xff]
  %v820 = vld [vmem:[%s2 + $0x18] sm:$0xff]
  %v821 = vld [vmem:[%s2 + $0x20] sm:$0xff]
  %v822 = vld [vmem:[%s2 + $0x28] sm:$0xff]
  %v823 = vld [vmem:[%s2 + $0x30] sm:$0xff]
  %v824 = vld [vmem:[%s2 + $0x38] sm:$0xff]
  %v825 = vld [vmem:[%s2 + $0x40] sm:$0xff]
  %v826 = vld [vmem:[%s2 + $0x48] sm:$0xff]
  %v827 = vld [vmem:[%s2 + $0x50] sm:$0xff]
  %v828 = vld [vmem:[%s2 + $0x58] sm:$0xff]
  %v829 = vld [vmem:[%s2 + $0x60] sm:$0xff]
  %v830 = vld [vmem:[%s2 + $0x68] sm:$0xff]
  %v831 = vld [vmem:[%s2 + $0x70] sm:$0xff]
  %v832 = vld [vmem:[%s2 + $0x78] sm:$0xff]
  %v833 = vld [vmem:[%s2 + $0x80] sm:$0xff]
  %v834 = vld [vmem:[%s2 + $0x88] sm:$0xff]
  %v835 = vld [vmem:[%s2 + $0x90] sm:$0xff]
  %v836 = vld [vmem:[%s2 + $0x98] sm:$0xff]
  %v837 = vld [vmem:[%s2 + $0xa0] sm:$0xff]
  %v838 = vld [vmem:[%s2 + $0xa8] sm:$0xff]
  %v839 = vld [vmem:[%s2 + $0xb0] sm:$0xff]
  %v840 = vld [vmem:[%s2 + $0xb8] sm:$0xff]
  %v841 = vld [vmem:[%s2 + $0xc0] sm:$0xff]
  %v842 = vld [vmem:[%s2 + $0xc8] sm:$0xff]
  %v843 = vld [vmem:[%s2 + $0xd0] sm:$0xff]
  %v844 = vld [vmem:[%s2 + $0xd8] sm:$0xff]
  %v845 = vld [vmem:[%s2 + $0xe0] sm:$0xff]
  %v846 = vld [vmem:[%s2 + $0xe8] sm:$0xff]
  %v847 = vld [vmem:[%s2 + $0xf0] sm:$0xff]
  %v848 = vld [vmem:[%s2 + $0xf8] sm:$0xff]
  %v849 = vld [vmem:[%s2 + $0x100] sm:$0xff]
  %v850 = vld [vmem:[%s2 + $0x108] sm:$0xff]
  %v851 = vld [vmem:[%s2 + $0x110] sm:$0xff]
  %v852 = vld [vmem:[%s2 + $0x118] sm:$0xff]
  %v853 = vld [vmem:[%s2 + $0x120] sm:$0xff]
  %v854 = vld [vmem:[%s2 + $0x128] sm:$0xff]
  %v855 = vld [vmem:[%s2 + $0x130] sm:$0xff]
  %v856 = vld [vmem:[%s2 + $0x138] sm:$0xff]
  %v857 = vld [vmem:[%s2 + $0x140] sm:$0xff]
  %v858 = vld [vmem:[%s2 + $0x148] sm:$0xff]
  %v859 = vld [vmem:[%s2 + $0x150] sm:$0xff]
  %v860 = vld [vmem:[%s2 + $0x158] sm:$0xff]
  %v861 = vld [vmem:[%s2 + $0x160] sm:$0xff]
  %v862 = vld [vmem:[%s2 + $0x168] sm:$0xff]
  %v863 = vld [vmem:[%s2 + $0x170] sm:$0xff]
  %v864 = vld [vmem:[%s2 + $0x178] sm:$0xff]
  %v865 = vld [vmem:[%s2 + $0x180] sm:$0xff]
  %v866 = vld [vmem:[%s2 + $0x188] sm:$0xff]
  %v867 = vld [vmem:[%s2 + $0x190] sm:$0xff]
  %v868 = vld [vmem:[%s2 + $0x198] sm:$0xff]
  %v869 = vld [vmem:[%s2 + $0x1a0] sm:$0xff]
  %v870 = vld [vmem:[%s2 + $0x1a8] sm:$0xff]
  %v871 = vld [vmem:[%s2 + $0x1b0] sm:$0xff]
  %v872 = vld [vmem:[%s2 + $0x1b8] sm:$0xff]
  %v873 = vld [vmem:[%s2 + $0x1c0] sm:$0xff]
  %v874 = vld [vmem:[%s2 + $0x1c8] sm:$0xff]
  %v875 = vld [vmem:[%s2 + $0x1d0] sm:$0xff]
  %v876 = vld [vmem:[%s2 + $0x1d8] sm:$0xff]
  %v877 = vld [vmem:[%s2 + $0x1e0] sm:$0xff]
  %v878 = vld [vmem:[%s2 + $0x1e8] sm:$0xff]
  %v879 = vld [vmem:[%s2 + $0x1f0] sm:$0xff]
  %v880 = vld [vmem:[%s2 + $0x1f8] sm:$0xff]
  %v881 = vld [vmem:[%s2 + $0x200] sm:$0xff]
  %v882 = vld [vmem:[%s2 + $0x208] sm:$0xff]
  %v883 = vld [vmem:[%s2 + $0x210] sm:$0xff]
  %v884 = vld [vmem:[%s2 + $0x218] sm:$0xff]
  %v885 = vld [vmem:[%s2 + $0x220] sm:$0xff]
  %v886 = vld [vmem:[%s2 + $0x228] sm:$0xff]
  %v887 = vld [vmem:[%s2 + $0x230] sm:$0xff]
  %v888 = vld [vmem:[%s2 + $0x238] sm:$0xff]
  %v889 = vld [vmem:[%s2 + $0x240] sm:$0xff]
  %v890 = vld [vmem:[%s2 + $0x248] sm:$0xff]
  %v891 = vld [vmem:[%s2 + $0x250] sm:$0xff]
  %v892 = vld [vmem:[%s2 + $0x258] sm:$0xff]
  %v893 = vld [vmem:[%s2 + $0x260] sm:$0xff]
  %v894 = vld [vmem:[%s2 + $0x268] sm:$0xff]
  %v895 = vld [vmem:[%s2 + $0x270] sm:$0xff]
  %v896 = vld [vmem:[%s2 + $0x278] sm:$0xff]
  %v897 = vld [vmem:[%s2 + $0x280] sm:$0xff]
  %v898 = vld [vmem:[%s2 + $0x288] sm:$0xff]
  %v899 = vld [vmem:[%s2 + $0x290] sm:$0xff]
  %v900 = vld [vmem:[%s2 + $0x298] sm:$0xff]
  %v901 = vld [vmem:[%s2 + $0x2a0] sm:$0xff]
  %v902 = vld [vmem:[%s2 + $0x2a8] sm:$0xff]
  %v903 = vld [vmem:[%s2 + $0x2b0] sm:$0xff]
  %v904 = vld [vmem:[%s2 + $0x2b8] sm:$0xff]
  %v905 = vld [vmem:[%s2 + $0x2c0] sm:$0xff]
  %v906 = vld [vmem:[%s2 + $0x2c8] sm:$0xff]
  %v907 = vld [vmem:[%s2 + $0x2d0] sm:$0xff]
  %v908 = vld [vmem:[%s2 + $0x2d8] sm:$0xff]
  %v909 = vld [vmem:[%s2 + $0x2e0] sm:$0xff]
  %v910 = vld [vmem:[%s2 + $0x2e8] sm:$0xff]
  %v911 = vld [vmem:[%s2 + $0x2f0] sm:$0xff]
  %v912 = vld [vmem:[%s2 + $0x2f8] sm:$0xff]
  %v913 = vld [vmem:[%s2 + $0x300] sm:$0xff]
  %v914 = vld [vmem:[%s2 + $0x308] sm:$0xff]
  %v915 = vld [vmem:[%s2 + $0x310] sm:$0xff]
  %v916 = vld [vmem:[%s2 + $0x318] sm:$0xff]
  %v917 = vld [vmem:[%s2 + $0x320] sm:$0xff]
  %v918 = vld [vmem:[%s2 + $0x328] sm:$0xff]
  %v919 = vld [vmem:[%s2 + $0x330] sm:$0xff]
  %v920 = vld [vmem:[%s2 + $0x338] sm:$0xff]
  %v921 = vld [vmem:[%s2 + $0x340] sm:$0xff]
  %v922 = vld [vmem:[%s2 + $0x348] sm:$0xff]
  %v923 = vld [vmem:[%s2 + $0x350] sm:$0xff]
  %v924 = vld [vmem:[%s2 + $0x358] sm:$0xff]
  %v925 = vld [vmem:[%s2 + $0x360] sm:$0xff]
  %v926 = vld [vmem:[%s2 + $0x368] sm:$0xff]
  %v927 = vld [vmem:[%s2 + $0x370] sm:$0xff]
  %v928 = vld [vmem:[%s2 + $0x378] sm:$0xff]
  %v929 = vld [vmem:[%s2 + $0x380] sm:$0xff]
  %v930 = vld [vmem:[%s2 + $0x388] sm:$0xff]
  %v931 = vld [vmem:[%s2 + $0x390] sm:$0xff]
  %v932 = vld [vmem:[%s2 + $0x398] sm:$0xff]
  %v933 = vld [vmem:[%s2 + $0x3a0] sm:$0xff]
  %v934 = vld [vmem:[%s2 + $0x3a8] sm:$0xff]
  %v935 = vld [vmem:[%s2 + $0x3b0] sm:$0xff]
  %v936 = vld [vmem:[%s2 + $0x3b8] sm:$0xff]
  %v937 = vld [vmem:[%s2 + $0x3c0] sm:$0xff]
  %v938 = vld [vmem:[%s2 + $0x3c8] sm:$0xff]
  %v939 = vld [vmem:[%s2 + $0x3d0] sm:$0xff]
  %v940 = vld [vmem:[%s2 + $0x3d8] sm:$0xff]
  %v941 = vld [vmem:[%s2 + $0x3e0] sm:$0xff]
  %v942 = vld [vmem:[%s2 + $0x3e8] sm:$0xff]
  %v943 = vld [vmem:[%s2 + $0x3f0] sm:$0xff]
  %v944 = vld [vmem:[%s2 + $0x3f8] sm:$0xff]
  %s945 = scalar_lea.vmem %s2, 1024
  %v946 = vld [vmem:[%s945] sm:$0xff]
  %v947 = vld [vmem:[%s945 + $0x8] sm:$0xff]
  %v948 = vld [vmem:[%s945 + $0x10] sm:$0xff]
  %v949 = vld [vmem:[%s945 + $0x18] sm:$0xff]
  %v950 = vld [vmem:[%s945 + $0x20] sm:$0xff]
  %v951 = vld [vmem:[%s945 + $0x28] sm:$0xff]
  %v952 = vld [vmem:[%s945 + $0x30] sm:$0xff]
  %v953 = vld [vmem:[%s945 + $0x38] sm:$0xff]
  %v954 = vld [vmem:[%s945 + $0x40] sm:$0xff]
  %v955 = vld [vmem:[%s945 + $0x48] sm:$0xff]
  %v956 = vld [vmem:[%s945 + $0x50] sm:$0xff]
  %v957 = vld [vmem:[%s945 + $0x58] sm:$0xff]
  %v958 = vld [vmem:[%s945 + $0x60] sm:$0xff]
  %v959 = vld [vmem:[%s945 + $0x68] sm:$0xff]
  %v960 = vld [vmem:[%s945 + $0x70] sm:$0xff]
  %v961 = vld [vmem:[%s945 + $0x78] sm:$0xff]
  %v962 = vld [vmem:[%s945 + $0x80] sm:$0xff]
  %v963 = vld [vmem:[%s945 + $0x88] sm:$0xff]
  %v964 = vld [vmem:[%s945 + $0x90] sm:$0xff]
  %v965 = vld [vmem:[%s945 + $0x98] sm:$0xff]
  %v966 = vld [vmem:[%s945 + $0xa0] sm:$0xff]
  %v967 = vld [vmem:[%s945 + $0xa8] sm:$0xff]
  %v968 = vld [vmem:[%s945 + $0xb0] sm:$0xff]
  %v969 = vld [vmem:[%s945 + $0xb8] sm:$0xff]
  %v970 = vld [vmem:[%s945 + $0xc0] sm:$0xff]
  %v971 = vld [vmem:[%s945 + $0xc8] sm:$0xff]
  %v972 = vld [vmem:[%s945 + $0xd0] sm:$0xff]
  %v973 = vld [vmem:[%s945 + $0xd8] sm:$0xff]
  %v974 = vld [vmem:[%s945 + $0xe0] sm:$0xff]
  %v975 = vld [vmem:[%s945 + $0xe8] sm:$0xff]
  %v976 = vld [vmem:[%s945 + $0xf0] sm:$0xff]
  %v977 = vld [vmem:[%s945 + $0xf8] sm:$0xff]
  %v978 = vld [vmem:[%s945 + $0x100] sm:$0xff]
  %v979 = vld [vmem:[%s945 + $0x108] sm:$0xff]
  %v980 = vld [vmem:[%s945 + $0x110] sm:$0xff]
  %v981 = vld [vmem:[%s945 + $0x118] sm:$0xff]
  %v982 = vld [vmem:[%s945 + $0x120] sm:$0xff]
  %v983 = vld [vmem:[%s945 + $0x128] sm:$0xff]
  %v984 = vld [vmem:[%s945 + $0x130] sm:$0xff]
  %v985 = vld [vmem:[%s945 + $0x138] sm:$0xff]
  %v986 = vld [vmem:[%s945 + $0x140] sm:$0xff]
  %v987 = vld [vmem:[%s945 + $0x148] sm:$0xff]
  %v988 = vld [vmem:[%s945 + $0x150] sm:$0xff]
  %v989 = vld [vmem:[%s945 + $0x158] sm:$0xff]
  %v990 = vld [vmem:[%s945 + $0x160] sm:$0xff]
  %v991 = vld [vmem:[%s945 + $0x168] sm:$0xff]
  %v992 = vld [vmem:[%s945 + $0x170] sm:$0xff]
  %v993 = vld [vmem:[%s945 + $0x178] sm:$0xff]
  %v994 = vld [vmem:[%s945 + $0x180] sm:$0xff]
  %v995 = vld [vmem:[%s945 + $0x188] sm:$0xff]
  %v996 = vld [vmem:[%s945 + $0x190] sm:$0xff]
  %v997 = vld [vmem:[%s945 + $0x198] sm:$0xff]
  %v998 = vld [vmem:[%s945 + $0x1a0] sm:$0xff]
  %v999 = vld [vmem:[%s945 + $0x1a8] sm:$0xff]
  %v1000 = vld [vmem:[%s945 + $0x1b0] sm:$0xff]
  %v1001 = vld [vmem:[%s945 + $0x1b8] sm:$0xff]
  %v1002 = vld [vmem:[%s945 + $0x1c0] sm:$0xff]
  %v1003 = vld [vmem:[%s945 + $0x1c8] sm:$0xff]
  %v1004 = vld [vmem:[%s945 + $0x1d0] sm:$0xff]
  %v1005 = vld [vmem:[%s945 + $0x1d8] sm:$0xff]
  %v1006 = vld [vmem:[%s945 + $0x1e0] sm:$0xff]
  %v1007 = vld [vmem:[%s945 + $0x1e8] sm:$0xff]
  %v1008 = vld [vmem:[%s945 + $0x1f0] sm:$0xff]
  %v1009 = vld [vmem:[%s945 + $0x1f8] sm:$0xff]
  %v1010 = vld [vmem:[%s945 + $0x200] sm:$0xff]
  %v1011 = vld [vmem:[%s945 + $0x208] sm:$0xff]
  %v1012 = vld [vmem:[%s945 + $0x210] sm:$0xff]
  %v1013 = vld [vmem:[%s945 + $0x218] sm:$0xff]
  %v1014 = vld [vmem:[%s945 + $0x220] sm:$0xff]
  %v1015 = vld [vmem:[%s945 + $0x228] sm:$0xff]
  %v1016 = vld [vmem:[%s945 + $0x230] sm:$0xff]
  %v1017 = vld [vmem:[%s945 + $0x238] sm:$0xff]
  %v1018 = vld [vmem:[%s945 + $0x240] sm:$0xff]
  %v1019 = vld [vmem:[%s945 + $0x248] sm:$0xff]
  %v1020 = vld [vmem:[%s945 + $0x250] sm:$0xff]
  %v1021 = vld [vmem:[%s945 + $0x258] sm:$0xff]
  %v1022 = vld [vmem:[%s945 + $0x260] sm:$0xff]
  %v1023 = vld [vmem:[%s945 + $0x268] sm:$0xff]
  %v1024 = vld [vmem:[%s945 + $0x270] sm:$0xff]
  %v1025 = vld [vmem:[%s945 + $0x278] sm:$0xff]
  %v1026 = vld [vmem:[%s945 + $0x280] sm:$0xff]
  %v1027 = vld [vmem:[%s945 + $0x288] sm:$0xff]
  %v1028 = vld [vmem:[%s945 + $0x290] sm:$0xff]
  %v1029 = vld [vmem:[%s945 + $0x298] sm:$0xff]
  %v1030 = vld [vmem:[%s945 + $0x2a0] sm:$0xff]
  %v1031 = vld [vmem:[%s945 + $0x2a8] sm:$0xff]
  %v1032 = vld [vmem:[%s945 + $0x2b0] sm:$0xff]
  %v1033 = vld [vmem:[%s945 + $0x2b8] sm:$0xff]
  %v1034 = vld [vmem:[%s945 + $0x2c0] sm:$0xff]
  %v1035 = vld [vmem:[%s945 + $0x2c8] sm:$0xff]
  %v1036 = vld [vmem:[%s945 + $0x2d0] sm:$0xff]
  %v1037 = vld [vmem:[%s945 + $0x2d8] sm:$0xff]
  %v1038 = vld [vmem:[%s945 + $0x2e0] sm:$0xff]
  %v1039 = vld [vmem:[%s945 + $0x2e8] sm:$0xff]
  %v1040 = vld [vmem:[%s945 + $0x2f0] sm:$0xff]
  %v1041 = vld [vmem:[%s945 + $0x2f8] sm:$0xff]
  %v1042 = vld [vmem:[%s945 + $0x300] sm:$0xff]
  %v1043 = vld [vmem:[%s945 + $0x308] sm:$0xff]
  %v1044 = vld [vmem:[%s945 + $0x310] sm:$0xff]
  %v1045 = vld [vmem:[%s945 + $0x318] sm:$0xff]
  %v1046 = vld [vmem:[%s945 + $0x320] sm:$0xff]
  %v1047 = vld [vmem:[%s945 + $0x328] sm:$0xff]
  %v1048 = vld [vmem:[%s945 + $0x330] sm:$0xff]
  %v1049 = vld [vmem:[%s945 + $0x338] sm:$0xff]
  %v1050 = vld [vmem:[%s945 + $0x340] sm:$0xff]
  %v1051 = vld [vmem:[%s945 + $0x348] sm:$0xff]
  %v1052 = vld [vmem:[%s945 + $0x350] sm:$0xff]
  %v1053 = vld [vmem:[%s945 + $0x358] sm:$0xff]
  %v1054 = vld [vmem:[%s945 + $0x360] sm:$0xff]
  %v1055 = vld [vmem:[%s945 + $0x368] sm:$0xff]
  %v1056 = vld [vmem:[%s945 + $0x370] sm:$0xff]
  %v1057 = vld [vmem:[%s945 + $0x378] sm:$0xff]
  %v1058 = vld [vmem:[%s945 + $0x380] sm:$0xff]
  %v1059 = vld [vmem:[%s945 + $0x388] sm:$0xff]
  %v1060 = vld [vmem:[%s945 + $0x390] sm:$0xff]
  %v1061 = vld [vmem:[%s945 + $0x398] sm:$0xff]
  %v1062 = vld [vmem:[%s945 + $0x3a0] sm:$0xff]
  %v1063 = vld [vmem:[%s945 + $0x3a8] sm:$0xff]
  %v1064 = vld [vmem:[%s945 + $0x3b0] sm:$0xff]
  %v1065 = vld [vmem:[%s945 + $0x3b8] sm:$0xff]
  %v1066 = vld [vmem:[%s945 + $0x3c0] sm:$0xff]
  %v1067 = vld [vmem:[%s945 + $0x3c8] sm:$0xff]
  %v1068 = vld [vmem:[%s945 + $0x3d0] sm:$0xff]
  %v1069 = vld [vmem:[%s945 + $0x3d8] sm:$0xff]
  %v1070 = vld [vmem:[%s945 + $0x3e0] sm:$0xff]
  %v1071 = vld [vmem:[%s945 + $0x3e8] sm:$0xff]
  %v1072 = vld [vmem:[%s945 + $0x3f0] sm:$0xff]
  %v1073 = vld [vmem:[%s945 + $0x3f8] sm:$0xff]
  %v1202 = vunpack.c.l.b16 %v946
  %v1203 = vunpack.c.h.b16 %v946
  %v1204 = vunpack.c.l.b16 %v947
  %v1205 = vunpack.c.h.b16 %v947
  %v1206 = vunpack.c.l.b16 %v948
  %v1207 = vunpack.c.h.b16 %v948
  %v1208 = vunpack.c.l.b16 %v949
  %v1209 = vunpack.c.h.b16 %v949
  %v1210 = vunpack.c.l.b16 %v950
  %v1211 = vunpack.c.h.b16 %v950
  %v1212 = vunpack.c.l.b16 %v951
  %v1213 = vunpack.c.h.b16 %v951
  %v1214 = vunpack.c.l.b16 %v952
  %v1215 = vunpack.c.h.b16 %v952
  %v1216 = vunpack.c.l.b16 %v953
  %v1217 = vunpack.c.h.b16 %v953
  %v1218 = vunpack.c.l.b16 %v954
  %v1219 = vunpack.c.h.b16 %v954
  %v1220 = vunpack.c.l.b16 %v955
  %v1221 = vunpack.c.h.b16 %v955
  %v1222 = vunpack.c.l.b16 %v956
  %v1223 = vunpack.c.h.b16 %v956
  %v1224 = vunpack.c.l.b16 %v957
  %v1225 = vunpack.c.h.b16 %v957
  %v1226 = vunpack.c.l.b16 %v958
  %v1227 = vunpack.c.h.b16 %v958
  %v1228 = vunpack.c.l.b16 %v959
  %v1229 = vunpack.c.h.b16 %v959
  %v1230 = vunpack.c.l.b16 %v960
  %v1231 = vunpack.c.h.b16 %v960
  %v1232 = vunpack.c.l.b16 %v961
  %v1233 = vunpack.c.h.b16 %v961
  %v1234 = vunpack.c.l.b16 %v962
  %v1235 = vunpack.c.h.b16 %v962
  %v1236 = vunpack.c.l.b16 %v963
  %v1237 = vunpack.c.h.b16 %v963
  %v1238 = vunpack.c.l.b16 %v964
  %v1239 = vunpack.c.h.b16 %v964
  %v1240 = vunpack.c.l.b16 %v965
  %v1241 = vunpack.c.h.b16 %v965
  %v1242 = vunpack.c.l.b16 %v966
  %v1243 = vunpack.c.h.b16 %v966
  %v1244 = vunpack.c.l.b16 %v967
  %v1245 = vunpack.c.h.b16 %v967
  %v1246 = vunpack.c.l.b16 %v968
  %v1247 = vunpack.c.h.b16 %v968
  %v1248 = vunpack.c.l.b16 %v969
  %v1249 = vunpack.c.h.b16 %v969
  %v1250 = vunpack.c.l.b16 %v970
  %v1251 = vunpack.c.h.b16 %v970
  %v1252 = vunpack.c.l.b16 %v971
  %v1253 = vunpack.c.h.b16 %v971
  %v1254 = vunpack.c.l.b16 %v972
  %v1255 = vunpack.c.h.b16 %v972
  %v1256 = vunpack.c.l.b16 %v973
  %v1257 = vunpack.c.h.b16 %v973
  %v1258 = vunpack.c.l.b16 %v974
  %v1259 = vunpack.c.h.b16 %v974
  %v1260 = vunpack.c.l.b16 %v975
  %v1261 = vunpack.c.h.b16 %v975
  %v1262 = vunpack.c.l.b16 %v976
  %v1263 = vunpack.c.h.b16 %v976
  %v1264 = vunpack.c.l.b16 %v977
  %v1265 = vunpack.c.h.b16 %v977
  %v1266 = vunpack.c.l.b16 %v978
  %v1267 = vunpack.c.h.b16 %v978
  %v1268 = vunpack.c.l.b16 %v979
  %v1269 = vunpack.c.h.b16 %v979
  %v1270 = vunpack.c.l.b16 %v980
  %v1271 = vunpack.c.h.b16 %v980
  %v1272 = vunpack.c.l.b16 %v981
  %v1273 = vunpack.c.h.b16 %v981
  %v1274 = vunpack.c.l.b16 %v982
  %v1275 = vunpack.c.h.b16 %v982
  %v1276 = vunpack.c.l.b16 %v983
  %v1277 = vunpack.c.h.b16 %v983
  %v1278 = vunpack.c.l.b16 %v984
  %v1279 = vunpack.c.h.b16 %v984
  %v1280 = vunpack.c.l.b16 %v985
  %v1281 = vunpack.c.h.b16 %v985
  %v1282 = vunpack.c.l.b16 %v986
  %v1283 = vunpack.c.h.b16 %v986
  %v1284 = vunpack.c.l.b16 %v987
  %v1285 = vunpack.c.h.b16 %v987
  %v1286 = vunpack.c.l.b16 %v988
  %v1287 = vunpack.c.h.b16 %v988
  %v1288 = vunpack.c.l.b16 %v989
  %v1289 = vunpack.c.h.b16 %v989
  %v1290 = vunpack.c.l.b16 %v990
  %v1291 = vunpack.c.h.b16 %v990
  %v1292 = vunpack.c.l.b16 %v991
  %v1293 = vunpack.c.h.b16 %v991
  %v1294 = vunpack.c.l.b16 %v992
  %v1295 = vunpack.c.h.b16 %v992
  %v1296 = vunpack.c.l.b16 %v993
  %v1297 = vunpack.c.h.b16 %v993
  %v1298 = vunpack.c.l.b16 %v994
  %v1299 = vunpack.c.h.b16 %v994
  %v1300 = vunpack.c.l.b16 %v995
  %v1301 = vunpack.c.h.b16 %v995
  %v1302 = vunpack.c.l.b16 %v996
  %v1303 = vunpack.c.h.b16 %v996
  %v1304 = vunpack.c.l.b16 %v997
  %v1305 = vunpack.c.h.b16 %v997
  %v1306 = vunpack.c.l.b16 %v998
  %v1307 = vunpack.c.h.b16 %v998
  %v1308 = vunpack.c.l.b16 %v999
  %v1309 = vunpack.c.h.b16 %v999
  %v1310 = vunpack.c.l.b16 %v1000
  %v1311 = vunpack.c.h.b16 %v1000
  %v1312 = vunpack.c.l.b16 %v1001
  %v1313 = vunpack.c.h.b16 %v1001
  %v1314 = vunpack.c.l.b16 %v1002
  %v1315 = vunpack.c.h.b16 %v1002
  %v1316 = vunpack.c.l.b16 %v1003
  %v1317 = vunpack.c.h.b16 %v1003
  %v1318 = vunpack.c.l.b16 %v1004
  %v1319 = vunpack.c.h.b16 %v1004
  %v1320 = vunpack.c.l.b16 %v1005
  %v1321 = vunpack.c.h.b16 %v1005
  %v1322 = vunpack.c.l.b16 %v1006
  %v1323 = vunpack.c.h.b16 %v1006
  %v1324 = vunpack.c.l.b16 %v1007
  %v1325 = vunpack.c.h.b16 %v1007
  %v1326 = vunpack.c.l.b16 %v1008
  %v1327 = vunpack.c.h.b16 %v1008
  %v1328 = vunpack.c.l.b16 %v1009
  %v1329 = vunpack.c.h.b16 %v1009
  %v1330 = vunpack.c.l.b16 %v1010
  %v1331 = vunpack.c.h.b16 %v1010
  %v1332 = vunpack.c.l.b16 %v1011
  %v1333 = vunpack.c.h.b16 %v1011
  %v1334 = vunpack.c.l.b16 %v1012
  %v1335 = vunpack.c.h.b16 %v1012
  %v1336 = vunpack.c.l.b16 %v1013
  %v1337 = vunpack.c.h.b16 %v1013
  %v1338 = vunpack.c.l.b16 %v1014
  %v1339 = vunpack.c.h.b16 %v1014
  %v1340 = vunpack.c.l.b16 %v1015
  %v1341 = vunpack.c.h.b16 %v1015
  %v1342 = vunpack.c.l.b16 %v1016
  %v1343 = vunpack.c.h.b16 %v1016
  %v1344 = vunpack.c.l.b16 %v1017
  %v1345 = vunpack.c.h.b16 %v1017
  %v1346 = vunpack.c.l.b16 %v1018
  %v1347 = vunpack.c.h.b16 %v1018
  %v1348 = vunpack.c.l.b16 %v1019
  %v1349 = vunpack.c.h.b16 %v1019
  %v1350 = vunpack.c.l.b16 %v1020
  %v1351 = vunpack.c.h.b16 %v1020
  %v1352 = vunpack.c.l.b16 %v1021
  %v1353 = vunpack.c.h.b16 %v1021
  %v1354 = vunpack.c.l.b16 %v1022
  %v1355 = vunpack.c.h.b16 %v1022
  %v1356 = vunpack.c.l.b16 %v1023
  %v1357 = vunpack.c.h.b16 %v1023
  %v1358 = vunpack.c.l.b16 %v1024
  %v1359 = vunpack.c.h.b16 %v1024
  %v1360 = vunpack.c.l.b16 %v1025
  %v1361 = vunpack.c.h.b16 %v1025
  %v1362 = vunpack.c.l.b16 %v1026
  %v1363 = vunpack.c.h.b16 %v1026
  %v1364 = vunpack.c.l.b16 %v1027
  %v1365 = vunpack.c.h.b16 %v1027
  %v1366 = vunpack.c.l.b16 %v1028
  %v1367 = vunpack.c.h.b16 %v1028
  %v1368 = vunpack.c.l.b16 %v1029
  %v1369 = vunpack.c.h.b16 %v1029
  %v1370 = vunpack.c.l.b16 %v1030
  %v1371 = vunpack.c.h.b16 %v1030
  %v1372 = vunpack.c.l.b16 %v1031
  %v1373 = vunpack.c.h.b16 %v1031
  %v1374 = vunpack.c.l.b16 %v1032
  %v1375 = vunpack.c.h.b16 %v1032
  %v1376 = vunpack.c.l.b16 %v1033
  %v1377 = vunpack.c.h.b16 %v1033
  %v1378 = vunpack.c.l.b16 %v1034
  %v1379 = vunpack.c.h.b16 %v1034
  %v1380 = vunpack.c.l.b16 %v1035
  %v1381 = vunpack.c.h.b16 %v1035
  %v1382 = vunpack.c.l.b16 %v1036
  %v1383 = vunpack.c.h.b16 %v1036
  %v1384 = vunpack.c.l.b16 %v1037
  %v1385 = vunpack.c.h.b16 %v1037
  %v1386 = vunpack.c.l.b16 %v1038
  %v1387 = vunpack.c.h.b16 %v1038
  %v1388 = vunpack.c.l.b16 %v1039
  %v1389 = vunpack.c.h.b16 %v1039
  %v1390 = vunpack.c.l.b16 %v1040
  %v1391 = vunpack.c.h.b16 %v1040
  %v1392 = vunpack.c.l.b16 %v1041
  %v1393 = vunpack.c.h.b16 %v1041
  %v1394 = vunpack.c.l.b16 %v1042
  %v1395 = vunpack.c.h.b16 %v1042
  %v1396 = vunpack.c.l.b16 %v1043
  %v1397 = vunpack.c.h.b16 %v1043
  %v1398 = vunpack.c.l.b16 %v1044
  %v1399 = vunpack.c.h.b16 %v1044
  %v1400 = vunpack.c.l.b16 %v1045
  %v1401 = vunpack.c.h.b16 %v1045
  %v1402 = vunpack.c.l.b16 %v1046
  %v1403 = vunpack.c.h.b16 %v1046
  %v1404 = vunpack.c.l.b16 %v1047
  %v1405 = vunpack.c.h.b16 %v1047
  %v1406 = vunpack.c.l.b16 %v1048
  %v1407 = vunpack.c.h.b16 %v1048
  %v1408 = vunpack.c.l.b16 %v1049
  %v1409 = vunpack.c.h.b16 %v1049
  %v1410 = vunpack.c.l.b16 %v1050
  %v1411 = vunpack.c.h.b16 %v1050
  %v1412 = vunpack.c.l.b16 %v1051
  %v1413 = vunpack.c.h.b16 %v1051
  %v1414 = vunpack.c.l.b16 %v1052
  %v1415 = vunpack.c.h.b16 %v1052
  %v1416 = vunpack.c.l.b16 %v1053
  %v1417 = vunpack.c.h.b16 %v1053
  %v1418 = vunpack.c.l.b16 %v1054
  %v1419 = vunpack.c.h.b16 %v1054
  %v1420 = vunpack.c.l.b16 %v1055
  %v1421 = vunpack.c.h.b16 %v1055
  %v1422 = vunpack.c.l.b16 %v1056
  %v1423 = vunpack.c.h.b16 %v1056
  %v1424 = vunpack.c.l.b16 %v1057
  %v1425 = vunpack.c.h.b16 %v1057
  %v1426 = vunpack.c.l.b16 %v1058
  %v1427 = vunpack.c.h.b16 %v1058
  %v1428 = vunpack.c.l.b16 %v1059
  %v1429 = vunpack.c.h.b16 %v1059
  %v1430 = vunpack.c.l.b16 %v1060
  %v1431 = vunpack.c.h.b16 %v1060
  %v1432 = vunpack.c.l.b16 %v1061
  %v1433 = vunpack.c.h.b16 %v1061
  %v1434 = vunpack.c.l.b16 %v1062
  %v1435 = vunpack.c.h.b16 %v1062
  %v1436 = vunpack.c.l.b16 %v1063
  %v1437 = vunpack.c.h.b16 %v1063
  %v1438 = vunpack.c.l.b16 %v1064
  %v1439 = vunpack.c.h.b16 %v1064
  %v1440 = vunpack.c.l.b16 %v1065
  %v1441 = vunpack.c.h.b16 %v1065
  %v1442 = vunpack.c.l.b16 %v1066
  %v1443 = vunpack.c.h.b16 %v1066
  %v1444 = vunpack.c.l.b16 %v1067
  %v1445 = vunpack.c.h.b16 %v1067
  %v1446 = vunpack.c.l.b16 %v1068
  %v1447 = vunpack.c.h.b16 %v1068
  %v1448 = vunpack.c.l.b16 %v1069
  %v1449 = vunpack.c.h.b16 %v1069
  %v1450 = vunpack.c.l.b16 %v1070
  %v1451 = vunpack.c.h.b16 %v1070
  %v1452 = vunpack.c.l.b16 %v1071
  %v1453 = vunpack.c.h.b16 %v1071
  %v1454 = vunpack.c.l.b16 %v1072
  %v1455 = vunpack.c.h.b16 %v1072
  %v1456 = vunpack.c.l.b16 %v1073
  %v1457 = vunpack.c.h.b16 %v1073
  %v1458 = vpack.c.b16 %v1206, %v1202
  %v1459 = vpack.c.b16 %v1207, %v1203
  %v1460 = vpack.c.b16 %v1208, %v1204
  %v1461 = vpack.c.b16 %v1209, %v1205
  %v1462 = vpack.c.b16 %v1214, %v1210
  %v1463 = vpack.c.b16 %v1215, %v1211
  %v1464 = vpack.c.b16 %v1216, %v1212
  %v1465 = vpack.c.b16 %v1217, %v1213
  %v1466 = vpack.c.b16 %v1222, %v1218
  %v1467 = vpack.c.b16 %v1223, %v1219
  %v1468 = vpack.c.b16 %v1224, %v1220
  %v1469 = vpack.c.b16 %v1225, %v1221
  %v1470 = vpack.c.b16 %v1230, %v1226
  %v1471 = vpack.c.b16 %v1231, %v1227
  %v1472 = vpack.c.b16 %v1232, %v1228
  %v1473 = vpack.c.b16 %v1233, %v1229
  %v1474 = vpack.c.b16 %v1238, %v1234
  %v1475 = vpack.c.b16 %v1239, %v1235
  %v1476 = vpack.c.b16 %v1240, %v1236
  %v1477 = vpack.c.b16 %v1241, %v1237
  %v1478 = vpack.c.b16 %v1246, %v1242
  %v1479 = vpack.c.b16 %v1247, %v1243
  %v1480 = vpack.c.b16 %v1248, %v1244
  %v1481 = vpack.c.b16 %v1249, %v1245
  %v1482 = vpack.c.b16 %v1254, %v1250
  %v1483 = vpack.c.b16 %v1255, %v1251
  %v1484 = vpack.c.b16 %v1256, %v1252
  %v1485 = vpack.c.b16 %v1257, %v1253
  %v1486 = vpack.c.b16 %v1262, %v1258
  %v1487 = vpack.c.b16 %v1263, %v1259
  %v1488 = vpack.c.b16 %v1264, %v1260
  %v1489 = vpack.c.b16 %v1265, %v1261
  %v1490 = vpack.c.b16 %v1270, %v1266
  %v1491 = vpack.c.b16 %v1271, %v1267
  %v1492 = vpack.c.b16 %v1272, %v1268
  %v1493 = vpack.c.b16 %v1273, %v1269
  %v1494 = vpack.c.b16 %v1278, %v1274
  %v1495 = vpack.c.b16 %v1279, %v1275
  %v1496 = vpack.c.b16 %v1280, %v1276
  %v1497 = vpack.c.b16 %v1281, %v1277
  %v1498 = vpack.c.b16 %v1286, %v1282
  %v1499 = vpack.c.b16 %v1287, %v1283
  %v1500 = vpack.c.b16 %v1288, %v1284
  %v1501 = vpack.c.b16 %v1289, %v1285
  %v1502 = vpack.c.b16 %v1294, %v1290
  %v1503 = vpack.c.b16 %v1295, %v1291
  %v1504 = vpack.c.b16 %v1296, %v1292
  %v1505 = vpack.c.b16 %v1297, %v1293
  %v1506 = vpack.c.b16 %v1302, %v1298
  %v1507 = vpack.c.b16 %v1303, %v1299
  %v1508 = vpack.c.b16 %v1304, %v1300
  %v1509 = vpack.c.b16 %v1305, %v1301
  %v1510 = vpack.c.b16 %v1310, %v1306
  %v1511 = vpack.c.b16 %v1311, %v1307
  %v1512 = vpack.c.b16 %v1312, %v1308
  %v1513 = vpack.c.b16 %v1313, %v1309
  %v1514 = vpack.c.b16 %v1318, %v1314
  %v1515 = vpack.c.b16 %v1319, %v1315
  %v1516 = vpack.c.b16 %v1320, %v1316
  %v1517 = vpack.c.b16 %v1321, %v1317
  %v1518 = vpack.c.b16 %v1326, %v1322
  %v1519 = vpack.c.b16 %v1327, %v1323
  %v1520 = vpack.c.b16 %v1328, %v1324
  %v1521 = vpack.c.b16 %v1329, %v1325
  %v1522 = vpack.c.b16 %v1334, %v1330
  %v1523 = vpack.c.b16 %v1335, %v1331
  %v1524 = vpack.c.b16 %v1336, %v1332
  %v1525 = vpack.c.b16 %v1337, %v1333
  %v1526 = vpack.c.b16 %v1342, %v1338
  %v1527 = vpack.c.b16 %v1343, %v1339
  %v1528 = vpack.c.b16 %v1344, %v1340
  %v1529 = vpack.c.b16 %v1345, %v1341
  %v1530 = vpack.c.b16 %v1350, %v1346
  %v1531 = vpack.c.b16 %v1351, %v1347
  %v1532 = vpack.c.b16 %v1352, %v1348
  %v1533 = vpack.c.b16 %v1353, %v1349
  %v1534 = vpack.c.b16 %v1358, %v1354
  %v1535 = vpack.c.b16 %v1359, %v1355
  %v1536 = vpack.c.b16 %v1360, %v1356
  %v1537 = vpack.c.b16 %v1361, %v1357
  %v1538 = vpack.c.b16 %v1366, %v1362
  %v1539 = vpack.c.b16 %v1367, %v1363
  %v1540 = vpack.c.b16 %v1368, %v1364
  %v1541 = vpack.c.b16 %v1369, %v1365
  %v1542 = vpack.c.b16 %v1374, %v1370
  %v1543 = vpack.c.b16 %v1375, %v1371
  %v1544 = vpack.c.b16 %v1376, %v1372
  %v1545 = vpack.c.b16 %v1377, %v1373
  %v1546 = vpack.c.b16 %v1382, %v1378
  %v1547 = vpack.c.b16 %v1383, %v1379
  %v1548 = vpack.c.b16 %v1384, %v1380
  %v1549 = vpack.c.b16 %v1385, %v1381
  %v1550 = vpack.c.b16 %v1390, %v1386
  %v1551 = vpack.c.b16 %v1391, %v1387
  %v1552 = vpack.c.b16 %v1392, %v1388
  %v1553 = vpack.c.b16 %v1393, %v1389
  %v1554 = vpack.c.b16 %v1398, %v1394
  %v1555 = vpack.c.b16 %v1399, %v1395
  %v1556 = vpack.c.b16 %v1400, %v1396
  %v1557 = vpack.c.b16 %v1401, %v1397
  %v1558 = vpack.c.b16 %v1406, %v1402
  %v1559 = vpack.c.b16 %v1407, %v1403
  %v1560 = vpack.c.b16 %v1408, %v1404
  %v1561 = vpack.c.b16 %v1409, %v1405
  %v1562 = vpack.c.b16 %v1414, %v1410
  %v1563 = vpack.c.b16 %v1415, %v1411
  %v1564 = vpack.c.b16 %v1416, %v1412
  %v1565 = vpack.c.b16 %v1417, %v1413
  %v1566 = vpack.c.b16 %v1422, %v1418
  %v1567 = vpack.c.b16 %v1423, %v1419
  %v1568 = vpack.c.b16 %v1424, %v1420
  %v1569 = vpack.c.b16 %v1425, %v1421
  %v1570 = vpack.c.b16 %v1430, %v1426
  %v1571 = vpack.c.b16 %v1431, %v1427
  %v1572 = vpack.c.b16 %v1432, %v1428
  %v1573 = vpack.c.b16 %v1433, %v1429
  %v1574 = vpack.c.b16 %v1438, %v1434
  %v1575 = vpack.c.b16 %v1439, %v1435
  %v1576 = vpack.c.b16 %v1440, %v1436
  %v1577 = vpack.c.b16 %v1441, %v1437
  %v1578 = vpack.c.b16 %v1446, %v1442
  %v1579 = vpack.c.b16 %v1447, %v1443
  %v1580 = vpack.c.b16 %v1448, %v1444
  %v1581 = vpack.c.b16 %v1449, %v1445
  %v1582 = vpack.c.b16 %v1454, %v1450
  %v1583 = vpack.c.b16 %v1455, %v1451
  %v1584 = vpack.c.b16 %v1456, %v1452
  %v1585 = vpack.c.b16 %v1457, %v1453
  %1714 = vmatprep.subr.bf16.mxu0 %v1459
  %1715 = vmatpush1.bf16.msra.mxu0 %v1458
  %1716 = vmatprep.subr.bf16.mxu0 %v1463
  %1717 = vmatpush1.bf16.msra.mxu0 %v1462
  %1718 = vmatprep.subr.bf16.mxu0 %v1467
  %1719 = vmatpush1.bf16.msra.mxu0 %v1466
  %1720 = vmatprep.subr.bf16.mxu0 %v1471
  %1721 = vmatpush1.bf16.msra.mxu0 %v1470
  %1722 = vmatprep.subr.bf16.mxu0 %v1475
  %1723 = vmatpush1.bf16.msra.mxu0 %v1474
  %1724 = vmatprep.subr.bf16.mxu0 %v1479
  %1725 = vmatpush1.bf16.msra.mxu0 %v1478
  %1726 = vmatprep.subr.bf16.mxu0 %v1483
  %1727 = vmatpush1.bf16.msra.mxu0 %v1482
  %1728 = vmatprep.subr.bf16.mxu0 %v1487
  %1729 = vmatpush1.bf16.msra.mxu0 %v1486
  %1730 = vmatprep.subr.bf16.mxu0 %v1491
  %1731 = vmatpush1.bf16.msra.mxu0 %v1490
  %1732 = vmatprep.subr.bf16.mxu0 %v1495
  %1733 = vmatpush1.bf16.msra.mxu0 %v1494
  %1734 = vmatprep.subr.bf16.mxu0 %v1499
  %1735 = vmatpush1.bf16.msra.mxu0 %v1498
  %1736 = vmatprep.subr.bf16.mxu0 %v1503
  %1737 = vmatpush1.bf16.msra.mxu0 %v1502
  %1738 = vmatprep.subr.bf16.mxu0 %v1507
  %1739 = vmatpush1.bf16.msra.mxu0 %v1506
  %1740 = vmatprep.subr.bf16.mxu0 %v1511
  %1741 = vmatpush1.bf16.msra.mxu0 %v1510
  %1742 = vmatprep.subr.bf16.mxu0 %v1515
  %1743 = vmatpush1.bf16.msra.mxu0 %v1514
  %1744 = vmatprep.subr.bf16.mxu0 %v1519
  %1745 = vmatpush1.bf16.msra.mxu0 %v1518
  %1746 = vmatprep.mubr.bf16.mxu0 %v778
  %1747 = vmatmul.mubr.bf16.gmra.mrb[0].mxu0 %v777
  %v1748 = vpop.f32.mrb[0].mxu0
  %v1749 = vadd.f32 0.0, %v1748
  %v1750 = vpop.f32.mrb[0].mxu0
  %v1751 = vadd.f32 0.0, %v1750
  %v1752 = vpop.f32.mrb[0].mxu0
  %v1753 = vadd.f32 0.0, %v1752
  %v1754 = vpop.f32.mrb[0].mxu0
  %v1755 = vadd.f32 0.0, %v1754
  %1756 = vmatprep.mubr.bf16.mxu0 %v782
  %1757 = vmatmul.mubr.bf16.gmra.mrb[0].mxu0 %v781
  %v1758 = vpop.f32.mrb[0].mxu0
  %v1759 = vadd.f32 0.0, %v1758
  %v1760 = vpop.f32.mrb[0].mxu0
  %v1761 = vadd.f32 0.0, %v1760
  %v1762 = vpop.f32.mrb[0].mxu0
  %v1763 = vadd.f32 0.0, %v1762
  %v1764 = vpop.f32.mrb[0].mxu0
  %v1765 = vadd.f32 0.0, %v1764
  %1766 = vmatprep.mubr.bf16.mxu0 %v786
  %1767 = vmatmul.mubr.bf16.gmra.mrb[0].mxu0 %v785
  %v1768 = vpop.f32.mrb[0].mxu0
  %v1769 = vadd.f32 0.0, %v1768
  %v1770 = vpop.f32.mrb[0].mxu0
  %v1771 = vadd.f32 0.0, %v1770
  %v1772 = vpop.f32.mrb[0].mxu0
  %v1773 = vadd.f32 0.0, %v1772
  %v1774 = vpop.f32.mrb[0].mxu0
  %v1775 = vadd.f32 0.0, %v1774
  %1776 = vmatprep.mubr.bf16.mxu0 %v790
  %1777 = vmatmul.mubr.bf16.gmra.mrb[0].mxu0 %v789
  %v1778 = vpop.f32.mrb[0].mxu0
  %v1779 = vadd.f32 0.0, %v1778
  %v1780 = vpop.f32.mrb[0].mxu0
  %v1781 = vadd.f32 0.0, %v1780
  %v1782 = vpop.f32.mrb[0].mxu0
  %v1783 = vadd.f32 0.0, %v1782
  %v1784 = vpop.f32.mrb[0].mxu0
  %v1785 = vadd.f32 0.0, %v1784
  %1786 = vdwg.mxu0
  %1787 = vmatprep.subr.bf16.mxu0 %v1523
  %1788 = vmatpush1.bf16.msra.mxu0 %v1522
  %1789 = vmatprep.subr.bf16.mxu0 %v1527
  %1790 = vmatpush1.bf16.msra.mxu0 %v1526
  %1791 = vmatprep.subr.bf16.mxu0 %v1531
  %1792 = vmatpush1.bf16.msra.mxu0 %v1530
  %1793 = vmatprep.subr.bf16.mxu0 %v1535
  %1794 = vmatpush1.bf16.msra.mxu0 %v1534
  %1795 = vmatprep.subr.bf16.mxu0 %v1539
  %1796 = vmatpush1.bf16.msra.mxu0 %v1538
  %1797 = vmatprep.subr.bf16.mxu0 %v1543
  %1798 = vmatpush1.bf16.msra.mxu0 %v1542
  %1799 = vmatprep.subr.bf16.mxu0 %v1547
  %1800 = vmatpush1.bf16.msra.mxu0 %v1546
  %1801 = vmatprep.subr.bf16.mxu0 %v1551
  %1802 = vmatpush1.bf16.msra.mxu0 %v1550
  %1803 = vmatprep.subr.bf16.mxu0 %v1555
  %1804 = vmatpush1.bf16.msra.mxu0 %v1554
  %1805 = vmatprep.subr.bf16.mxu0 %v1559
  %1806 = vmatpush1.bf16.msra.mxu0 %v1558
  %1807 = vmatprep.subr.bf16.mxu0 %v1563
  %1808 = vmatpush1.bf16.msra.mxu0 %v1562
  %1809 = vmatprep.subr.bf16.mxu0 %v1567
  %1810 = vmatpush1.bf16.msra.mxu0 %v1566
  %1811 = vmatprep.subr.bf16.mxu0 %v1571
  %1812 = vmatpush1.bf16.msra.mxu0 %v1570
  %1813 = vmatprep.subr.bf16.mxu0 %v1575
  %1814 = vmatpush1.bf16.msra.mxu0 %v1574
  %1815 = vmatprep.subr.bf16.mxu0 %v1579
  %1816 = vmatpush1.bf16.msra.mxu0 %v1578
  %1817 = vmatprep.subr.bf16.mxu0 %v1583
  %1818 = vmatpush1.bf16.msra.mxu0 %v1582
  %1819 = vmatprep.mubr.bf16.mxu0 %v780
  %1820 = vmatmul.mubr.bf16.gmra.mrb[0].mxu0 %v779
  %v1821 = vpop.f32.mrb[0].mxu0
  %v1822 = vadd.f32 %v1749, %v1821
  %v1823 = vpop.f32.mrb[0].mxu0
  %v1824 = vadd.f32 %v1751, %v1823
  %v1825 = vpop.f32.mrb[0].mxu0
  %v1826 = vadd.f32 %v1753, %v1825
  %v1827 = vpop.f32.mrb[0].mxu0
  %v1828 = vadd.f32 %v1755, %v1827
  %1829 = vmatprep.mubr.bf16.mxu0 %v784
  %1830 = vmatmul.mubr.bf16.gmra.mrb[0].mxu0 %v783
  %v1831 = vpop.f32.mrb[0].mxu0
  %v1832 = vadd.f32 %v1759, %v1831
  %v1833 = vpop.f32.mrb[0].mxu0
  %v1834 = vadd.f32 %v1761, %v1833
  %v1835 = vpop.f32.mrb[0].mxu0
  %v1836 = vadd.f32 %v1763, %v1835
  %v1837 = vpop.f32.mrb[0].mxu0
  %v1838 = vadd.f32 %v1765, %v1837
  %1839 = vmatprep.mubr.bf16.mxu0 %v788
  %1840 = vmatmul.mubr.bf16.gmra.mrb[0].mxu0 %v787
  %v1841 = vpop.f32.mrb[0].mxu0
  %v1842 = vadd.f32 %v1769, %v1841
  %v1843 = vpop.f32.mrb[0].mxu0
  %v1844 = vadd.f32 %v1771, %v1843
  %v1845 = vpop.f32.mrb[0].mxu0
  %v1846 = vadd.f32 %v1773, %v1845
  %v1847 = vpop.f32.mrb[0].mxu0
  %v1848 = vadd.f32 %v1775, %v1847
  %1849 = vmatprep.mubr.bf16.mxu0 %v792
  %1850 = vmatmul.mubr.bf16.gmra.mrb[0].mxu0 %v791
  %v1851 = vpop.f32.mrb[0].mxu0
  %v1852 = vadd.f32 %v1779, %v1851
  %v1853 = vpop.f32.mrb[0].mxu0
  %v1854 = vadd.f32 %v1781, %v1853
  %v1855 = vpop.f32.mrb[0].mxu0
  %v1856 = vadd.f32 %v1783, %v1855
  %v1857 = vpop.f32.mrb[0].mxu0
  %v1858 = vadd.f32 %v1785, %v1857
  %1859 = vdwg.mxu0
  %1860 = vmatprep.subr.bf16.mxu0 %v1461
  %1861 = vmatpush1.bf16.msra.mxu0 %v1460
  %1862 = vmatprep.subr.bf16.mxu0 %v1465
  %1863 = vmatpush1.bf16.msra.mxu0 %v1464
  %1864 = vmatprep.subr.bf16.mxu0 %v1469
  %1865 = vmatpush1.bf16.msra.mxu0 %v1468
  %1866 = vmatprep.subr.bf16.mxu0 %v1473
  %1867 = vmatpush1.bf16.msra.mxu0 %v1472
  %1868 = vmatprep.subr.bf16.mxu0 %v1477
  %1869 = vmatpush1.bf16.msra.mxu0 %v1476
  %1870 = vmatprep.subr.bf16.mxu0 %v1481
  %1871 = vmatpush1.bf16.msra.mxu0 %v1480
  %1872 = vmatprep.subr.bf16.mxu0 %v1485
  %1873 = vmatpush1.bf16.msra.mxu0 %v1484
  %1874 = vmatprep.subr.bf16.mxu0 %v1489
  %1875 = vmatpush1.bf16.msra.mxu0 %v1488
  %1876 = vmatprep.subr.bf16.mxu0 %v1493
  %1877 = vmatpush1.bf16.msra.mxu0 %v1492
  %1878 = vmatprep.subr.bf16.mxu0 %v1497
  %1879 = vmatpush1.bf16.msra.mxu0 %v1496
  %1880 = vmatprep.subr.bf16.mxu0 %v1501
  %1881 = vmatpush1.bf16.msra.mxu0 %v1500
  %1882 = vmatprep.subr.bf16.mxu0 %v1505
  %1883 = vmatpush1.bf16.msra.mxu0 %v1504
  %1884 = vmatprep.subr.bf16.mxu0 %v1509
  %1885 = vmatpush1.bf16.msra.mxu0 %v1508
  %1886 = vmatprep.subr.bf16.mxu0 %v1513
  %1887 = vmatpush1.bf16.msra.mxu0 %v1512
  %1888 = vmatprep.subr.bf16.mxu0 %v1517
  %1889 = vmatpush1.bf16.msra.mxu0 %v1516
  %1890 = vmatprep.subr.bf16.mxu0 %v1521
  %1891 = vmatpush1.bf16.msra.mxu0 %v1520
  %1892 = vmatprep.mubr.bf16.mxu0 %v778
  %1893 = vmatmul.mubr.bf16.gmra.mrb[0].mxu0 %v777
  %v1894 = vpop.f32.mrb[0].mxu0
  %v1895 = vadd.f32 0.0, %v1894
  %v1896 = vpop.f32.mrb[0].mxu0
  %v1897 = vadd.f32 0.0, %v1896
  %v1898 = vpop.f32.mrb[0].mxu0
  %v1899 = vadd.f32 0.0, %v1898
  %v1900 = vpop.f32.mrb[0].mxu0
  %v1901 = vadd.f32 0.0, %v1900
  %1902 = vmatprep.mubr.bf16.mxu0 %v782
  %1903 = vmatmul.mubr.bf16.gmra.mrb[0].mxu0 %v781
  %v1904 = vpop.f32.mrb[0].mxu0
  %v1905 = vadd.f32 0.0, %v1904
  %v1906 = vpop.f32.mrb[0].mxu0
  %v1907 = vadd.f32 0.0, %v1906
  %v1908 = vpop.f32.mrb[0].mxu0
  %v1909 = vadd.f32 0.0, %v1908
  %v1910 = vpop.f32.mrb[0].mxu0
  %v1911 = vadd.f32 0.0, %v1910
  %1912 = vmatprep.mubr.bf16.mxu0 %v786
  %1913 = vmatmul.mubr.bf16.gmra.mrb[0].mxu0 %v785
  %v1914 = vpop.f32.mrb[0].mxu0
  %v1915 = vadd.f32 0.0, %v1914
  %v1916 = vpop.f32.mrb[0].mxu0
  %v1917 = vadd.f32 0.0, %v1916
  %v1918 = vpop.f32.mrb[0].mxu0
  %v1919 = vadd.f32 0.0, %v1918
  %v1920 = vpop.f32.mrb[0].mxu0
  %v1921 = vadd.f32 0.0, %v1920
  %1922 = vmatprep.mubr.bf16.mxu0 %v790
  %1923 = vmatmul.mubr.bf16.gmra.mrb[0].mxu0 %v789
  %v1924 = vpop.f32.mrb[0].mxu0
  %v1925 = vadd.f32 0.0, %v1924
  %v1926 = vpop.f32.mrb[0].mxu0
  %v1927 = vadd.f32 0.0, %v1926
  %v1928 = vpop.f32.mrb[0].mxu0
  %v1929 = vadd.f32 0.0, %v1928
  %v1930 = vpop.f32.mrb[0].mxu0
  %v1931 = vadd.f32 0.0, %v1930
  %1932 = vdwg.mxu0
  %1933 = vmatprep.subr.bf16.mxu0 %v1525
  %1934 = vmatpush1.bf16.msra.mxu0 %v1524
  %1935 = vmatprep.subr.bf16.mxu0 %v1529
  %1936 = vmatpush1.bf16.msra.mxu0 %v1528
  %1937 = vmatprep.subr.bf16.mxu0 %v1533
  %1938 = vmatpush1.bf16.msra.mxu0 %v1532
  %1939 = vmatprep.subr.bf16.mxu0 %v1537
  %1940 = vmatpush1.bf16.msra.mxu0 %v1536
  %1941 = vmatprep.subr.bf16.mxu0 %v1541
  %1942 = vmatpush1.bf16.msra.mxu0 %v1540
  %1943 = vmatprep.subr.bf16.mxu0 %v1545
  %1944 = vmatpush1.bf16.msra.mxu0 %v1544
  %1945 = vmatprep.subr.bf16.mxu0 %v1549
  %1946 = vmatpush1.bf16.msra.mxu0 %v1548
  %1947 = vmatprep.subr.bf16.mxu0 %v1553
  %1948 = vmatpush1.bf16.msra.mxu0 %v1552
  %1949 = vmatprep.subr.bf16.mxu0 %v1557
  %1950 = vmatpush1.bf16.msra.mxu0 %v1556
  %1951 = vmatprep.subr.bf16.mxu0 %v1561
  %1952 = vmatpush1.bf16.msra.mxu0 %v1560
  %1953 = vmatprep.subr.bf16.mxu0 %v1565
  %1954 = vmatpush1.bf16.msra.mxu0 %v1564
  %1955 = vmatprep.subr.bf16.mxu0 %v1569
  %1956 = vmatpush1.bf16.msra.mxu0 %v1568
  %1957 = vmatprep.subr.bf16.mxu0 %v1573
  %1958 = vmatpush1.bf16.msra.mxu0 %v1572
  %1959 = vmatprep.subr.bf16.mxu0 %v1577
  %1960 = vmatpush1.bf16.msra.mxu0 %v1576
  %1961 = vmatprep.subr.bf16.mxu0 %v1581
  %1962 = vmatpush1.bf16.msra.mxu0 %v1580
  %1963 = vmatprep.subr.bf16.mxu0 %v1585
  %1964 = vmatpush1.bf16.msra.mxu0 %v1584
  %1965 = vmatprep.mubr.bf16.mxu0 %v780
  %1966 = vmatmul.mubr.bf16.gmra.mrb[0].mxu0 %v779
  %v1967 = vpop.f32.mrb[0].mxu0
  %v1968 = vadd.f32 %v1895, %v1967
  %v1969 = vpop.f32.mrb[0].mxu0
  %v1970 = vadd.f32 %v1897, %v1969
  %v1971 = vpop.f32.mrb[0].mxu0
  %v1972 = vadd.f32 %v1899, %v1971
  %v1973 = vpop.f32.mrb[0].mxu0
  %v1974 = vadd.f32 %v1901, %v1973
  %1975 = vmatprep.mubr.bf16.mxu0 %v784
  %1976 = vmatmul.mubr.bf16.gmra.mrb[0].mxu0 %v783
  %v1977 = vpop.f32.mrb[0].mxu0
  %v1978 = vadd.f32 %v1905, %v1977
  %v1979 = vpop.f32.mrb[0].mxu0
  %v1980 = vadd.f32 %v1907, %v1979
  %v1981 = vpop.f32.mrb[0].mxu0
  %v1982 = vadd.f32 %v1909, %v1981
  %v1983 = vpop.f32.mrb[0].mxu0
  %v1984 = vadd.f32 %v1911, %v1983
  %1985 = vmatprep.mubr.bf16.mxu0 %v788
  %1986 = vmatmul.mubr.bf16.gmra.mrb[0].mxu0 %v787
  %v1987 = vpop.f32.mrb[0].mxu0
  %v1988 = vadd.f32 %v1915, %v1987
  %v1989 = vpop.f32.mrb[0].mxu0
  %v1990 = vadd.f32 %v1917, %v1989
  %v1991 = vpop.f32.mrb[0].mxu0
  %v1992 = vadd.f32 %v1919, %v1991
  %v1993 = vpop.f32.mrb[0].mxu0
  %v1994 = vadd.f32 %v1921, %v1993
  %1995 = vmatprep.mubr.bf16.mxu0 %v792
  %1996 = vmatmul.mubr.bf16.gmra.mrb[0].mxu0 %v791
  %v1997 = vpop.f32.mrb[0].mxu0
  %v1998 = vadd.f32 %v1925, %v1997
  %v1999 = vpop.f32.mrb[0].mxu0
  %v2000 = vadd.f32 %v1927, %v1999
  %v2001 = vpop.f32.mrb[0].mxu0
  %v2002 = vadd.f32 %v1929, %v2001
  %v2003 = vpop.f32.mrb[0].mxu0
  %v2004 = vadd.f32 %v1931, %v2003
  %2005 = vdwg.mxu0
  %v2134 = vunpack.c.l.b16 %v817
  %v2135 = vunpack.c.h.b16 %v817
  %v2136 = vunpack.c.l.b16 %v818
  %v2137 = vunpack.c.h.b16 %v818
  %v2138 = vunpack.c.l.b16 %v819
  %v2139 = vunpack.c.h.b16 %v819
  %v2140 = vunpack.c.l.b16 %v820
  %v2141 = vunpack.c.h.b16 %v820
  %v2142 = vunpack.c.l.b16 %v821
  %v2143 = vunpack.c.h.b16 %v821
  %v2144 = vunpack.c.l.b16 %v822
  %v2145 = vunpack.c.h.b16 %v822
  %v2146 = vunpack.c.l.b16 %v823
  %v2147 = vunpack.c.h.b16 %v823
  %v2148 = vunpack.c.l.b16 %v824
  %v2149 = vunpack.c.h.b16 %v824
  %v2150 = vunpack.c.l.b16 %v825
  %v2151 = vunpack.c.h.b16 %v825
  %v2152 = vunpack.c.l.b16 %v826
  %v2153 = vunpack.c.h.b16 %v826
  %v2154 = vunpack.c.l.b16 %v827
  %v2155 = vunpack.c.h.b16 %v827
  %v2156 = vunpack.c.l.b16 %v828
  %v2157 = vunpack.c.h.b16 %v828
  %v2158 = vunpack.c.l.b16 %v829
  %v2159 = vunpack.c.h.b16 %v829
  %v2160 = vunpack.c.l.b16 %v830
  %v2161 = vunpack.c.h.b16 %v830
  %v2162 = vunpack.c.l.b16 %v831
  %v2163 = vunpack.c.h.b16 %v831
  %v2164 = vunpack.c.l.b16 %v832
  %v2165 = vunpack.c.h.b16 %v832
  %v2166 = vunpack.c.l.b16 %v833
  %v2167 = vunpack.c.h.b16 %v833
  %v2168 = vunpack.c.l.b16 %v834
  %v2169 = vunpack.c.h.b16 %v834
  %v2170 = vunpack.c.l.b16 %v835
  %v2171 = vunpack.c.h.b16 %v835
  %v2172 = vunpack.c.l.b16 %v836
  %v2173 = vunpack.c.h.b16 %v836
  %v2174 = vunpack.c.l.b16 %v837
  %v2175 = vunpack.c.h.b16 %v837
  %v2176 = vunpack.c.l.b16 %v838
  %v2177 = vunpack.c.h.b16 %v838
  %v2178 = vunpack.c.l.b16 %v839
  %v2179 = vunpack.c.h.b16 %v839
  %v2180 = vunpack.c.l.b16 %v840
  %v2181 = vunpack.c.h.b16 %v840
  %v2182 = vunpack.c.l.b16 %v841
  %v2183 = vunpack.c.h.b16 %v841
  %v2184 = vunpack.c.l.b16 %v842
  %v2185 = vunpack.c.h.b16 %v842
  %v2186 = vunpack.c.l.b16 %v843
  %v2187 = vunpack.c.h.b16 %v843
  %v2188 = vunpack.c.l.b16 %v844
  %v2189 = vunpack.c.h.b16 %v844
  %v2190 = vunpack.c.l.b16 %v845
  %v2191 = vunpack.c.h.b16 %v845
  %v2192 = vunpack.c.l.b16 %v846
  %v2193 = vunpack.c.h.b16 %v846
  %v2194 = vunpack.c.l.b16 %v847
  %v2195 = vunpack.c.h.b16 %v847
  %v2196 = vunpack.c.l.b16 %v848
  %v2197 = vunpack.c.h.b16 %v848
  %v2198 = vunpack.c.l.b16 %v849
  %v2199 = vunpack.c.h.b16 %v849
  %v2200 = vunpack.c.l.b16 %v850
  %v2201 = vunpack.c.h.b16 %v850
  %v2202 = vunpack.c.l.b16 %v851
  %v2203 = vunpack.c.h.b16 %v851
  %v2204 = vunpack.c.l.b16 %v852
  %v2205 = vunpack.c.h.b16 %v852
  %v2206 = vunpack.c.l.b16 %v853
  %v2207 = vunpack.c.h.b16 %v853
  %v2208 = vunpack.c.l.b16 %v854
  %v2209 = vunpack.c.h.b16 %v854
  %v2210 = vunpack.c.l.b16 %v855
  %v2211 = vunpack.c.h.b16 %v855
  %v2212 = vunpack.c.l.b16 %v856
  %v2213 = vunpack.c.h.b16 %v856
  %v2214 = vunpack.c.l.b16 %v857
  %v2215 = vunpack.c.h.b16 %v857
  %v2216 = vunpack.c.l.b16 %v858
  %v2217 = vunpack.c.h.b16 %v858
  %v2218 = vunpack.c.l.b16 %v859
  %v2219 = vunpack.c.h.b16 %v859
  %v2220 = vunpack.c.l.b16 %v860
  %v2221 = vunpack.c.h.b16 %v860
  %v2222 = vunpack.c.l.b16 %v861
  %v2223 = vunpack.c.h.b16 %v861
  %v2224 = vunpack.c.l.b16 %v862
  %v2225 = vunpack.c.h.b16 %v862
  %v2226 = vunpack.c.l.b16 %v863
  %v2227 = vunpack.c.h.b16 %v863
  %v2228 = vunpack.c.l.b16 %v864
  %v2229 = vunpack.c.h.b16 %v864
  %v2230 = vunpack.c.l.b16 %v865
  %v2231 = vunpack.c.h.b16 %v865
  %v2232 = vunpack.c.l.b16 %v866
  %v2233 = vunpack.c.h.b16 %v866
  %v2234 = vunpack.c.l.b16 %v867
  %v2235 = vunpack.c.h.b16 %v867
  %v2236 = vunpack.c.l.b16 %v868
  %v2237 = vunpack.c.h.b16 %v868
  %v2238 = vunpack.c.l.b16 %v869
  %v2239 = vunpack.c.h.b16 %v869
  %v2240 = vunpack.c.l.b16 %v870
  %v2241 = vunpack.c.h.b16 %v870
  %v2242 = vunpack.c.l.b16 %v871
  %v2243 = vunpack.c.h.b16 %v871
  %v2244 = vunpack.c.l.b16 %v872
  %v2245 = vunpack.c.h.b16 %v872
  %v2246 = vunpack.c.l.b16 %v873
  %v2247 = vunpack.c.h.b16 %v873
  %v2248 = vunpack.c.l.b16 %v874
  %v2249 = vunpack.c.h.b16 %v874
  %v2250 = vunpack.c.l.b16 %v875
  %v2251 = vunpack.c.h.b16 %v875
  %v2252 = vunpack.c.l.b16 %v876
  %v2253 = vunpack.c.h.b16 %v876
  %v2254 = vunpack.c.l.b16 %v877
  %v2255 = vunpack.c.h.b16 %v877
  %v2256 = vunpack.c.l.b16 %v878
  %v2257 = vunpack.c.h.b16 %v878
  %v2258 = vunpack.c.l.b16 %v879
  %v2259 = vunpack.c.h.b16 %v879
  %v2260 = vunpack.c.l.b16 %v880
  %v2261 = vunpack.c.h.b16 %v880
  %v2262 = vunpack.c.l.b16 %v881
  %v2263 = vunpack.c.h.b16 %v881
  %v2264 = vunpack.c.l.b16 %v882
  %v2265 = vunpack.c.h.b16 %v882
  %v2266 = vunpack.c.l.b16 %v883
  %v2267 = vunpack.c.h.b16 %v883
  %v2268 = vunpack.c.l.b16 %v884
  %v2269 = vunpack.c.h.b16 %v884
  %v2270 = vunpack.c.l.b16 %v885
  %v2271 = vunpack.c.h.b16 %v885
  %v2272 = vunpack.c.l.b16 %v886
  %v2273 = vunpack.c.h.b16 %v886
  %v2274 = vunpack.c.l.b16 %v887
  %v2275 = vunpack.c.h.b16 %v887
  %v2276 = vunpack.c.l.b16 %v888
  %v2277 = vunpack.c.h.b16 %v888
  %v2278 = vunpack.c.l.b16 %v889
  %v2279 = vunpack.c.h.b16 %v889
  %v2280 = vunpack.c.l.b16 %v890
  %v2281 = vunpack.c.h.b16 %v890
  %v2282 = vunpack.c.l.b16 %v891
  %v2283 = vunpack.c.h.b16 %v891
  %v2284 = vunpack.c.l.b16 %v892
  %v2285 = vunpack.c.h.b16 %v892
  %v2286 = vunpack.c.l.b16 %v893
  %v2287 = vunpack.c.h.b16 %v893
  %v2288 = vunpack.c.l.b16 %v894
  %v2289 = vunpack.c.h.b16 %v894
  %v2290 = vunpack.c.l.b16 %v895
  %v2291 = vunpack.c.h.b16 %v895
  %v2292 = vunpack.c.l.b16 %v896
  %v2293 = vunpack.c.h.b16 %v896
  %v2294 = vunpack.c.l.b16 %v897
  %v2295 = vunpack.c.h.b16 %v897
  %v2296 = vunpack.c.l.b16 %v898
  %v2297 = vunpack.c.h.b16 %v898
  %v2298 = vunpack.c.l.b16 %v899
  %v2299 = vunpack.c.h.b16 %v899
  %v2300 = vunpack.c.l.b16 %v900
  %v2301 = vunpack.c.h.b16 %v900
  %v2302 = vunpack.c.l.b16 %v901
  %v2303 = vunpack.c.h.b16 %v901
  %v2304 = vunpack.c.l.b16 %v902
  %v2305 = vunpack.c.h.b16 %v902
  %v2306 = vunpack.c.l.b16 %v903
  %v2307 = vunpack.c.h.b16 %v903
  %v2308 = vunpack.c.l.b16 %v904
  %v2309 = vunpack.c.h.b16 %v904
  %v2310 = vunpack.c.l.b16 %v905
  %v2311 = vunpack.c.h.b16 %v905
  %v2312 = vunpack.c.l.b16 %v906
  %v2313 = vunpack.c.h.b16 %v906
  %v2314 = vunpack.c.l.b16 %v907
  %v2315 = vunpack.c.h.b16 %v907
  %v2316 = vunpack.c.l.b16 %v908
  %v2317 = vunpack.c.h.b16 %v908
  %v2318 = vunpack.c.l.b16 %v909
  %v2319 = vunpack.c.h.b16 %v909
  %v2320 = vunpack.c.l.b16 %v910
  %v2321 = vunpack.c.h.b16 %v910
  %v2322 = vunpack.c.l.b16 %v911
  %v2323 = vunpack.c.h.b16 %v911
  %v2324 = vunpack.c.l.b16 %v912
  %v2325 = vunpack.c.h.b16 %v912
  %v2326 = vunpack.c.l.b16 %v913
  %v2327 = vunpack.c.h.b16 %v913
  %v2328 = vunpack.c.l.b16 %v914
  %v2329 = vunpack.c.h.b16 %v914
  %v2330 = vunpack.c.l.b16 %v915
  %v2331 = vunpack.c.h.b16 %v915
  %v2332 = vunpack.c.l.b16 %v916
  %v2333 = vunpack.c.h.b16 %v916
  %v2334 = vunpack.c.l.b16 %v917
  %v2335 = vunpack.c.h.b16 %v917
  %v2336 = vunpack.c.l.b16 %v918
  %v2337 = vunpack.c.h.b16 %v918
  %v2338 = vunpack.c.l.b16 %v919
  %v2339 = vunpack.c.h.b16 %v919
  %v2340 = vunpack.c.l.b16 %v920
  %v2341 = vunpack.c.h.b16 %v920
  %v2342 = vunpack.c.l.b16 %v921
  %v2343 = vunpack.c.h.b16 %v921
  %v2344 = vunpack.c.l.b16 %v922
  %v2345 = vunpack.c.h.b16 %v922
  %v2346 = vunpack.c.l.b16 %v923
  %v2347 = vunpack.c.h.b16 %v923
  %v2348 = vunpack.c.l.b16 %v924
  %v2349 = vunpack.c.h.b16 %v924
  %v2350 = vunpack.c.l.b16 %v925
  %v2351 = vunpack.c.h.b16 %v925
  %v2352 = vunpack.c.l.b16 %v926
  %v2353 = vunpack.c.h.b16 %v926
  %v2354 = vunpack.c.l.b16 %v927
  %v2355 = vunpack.c.h.b16 %v927
  %v2356 = vunpack.c.l.b16 %v928
  %v2357 = vunpack.c.h.b16 %v928
  %v2358 = vunpack.c.l.b16 %v929
  %v2359 = vunpack.c.h.b16 %v929
  %v2360 = vunpack.c.l.b16 %v930
  %v2361 = vunpack.c.h.b16 %v930
  %v2362 = vunpack.c.l.b16 %v931
  %v2363 = vunpack.c.h.b16 %v931
  %v2364 = vunpack.c.l.b16 %v932
  %v2365 = vunpack.c.h.b16 %v932
  %v2366 = vunpack.c.l.b16 %v933
  %v2367 = vunpack.c.h.b16 %v933
  %v2368 = vunpack.c.l.b16 %v934
  %v2369 = vunpack.c.h.b16 %v934
  %v2370 = vunpack.c.l.b16 %v935
  %v2371 = vunpack.c.h.b16 %v935
  %v2372 = vunpack.c.l.b16 %v936
  %v2373 = vunpack.c.h.b16 %v936
  %v2374 = vunpack.c.l.b16 %v937
  %v2375 = vunpack.c.h.b16 %v937
  %v2376 = vunpack.c.l.b16 %v938
  %v2377 = vunpack.c.h.b16 %v938
  %v2378 = vunpack.c.l.b16 %v939
  %v2379 = vunpack.c.h.b16 %v939
  %v2380 = vunpack.c.l.b16 %v940
  %v2381 = vunpack.c.h.b16 %v940
  %v2382 = vunpack.c.l.b16 %v941
  %v2383 = vunpack.c.h.b16 %v941
  %v2384 = vunpack.c.l.b16 %v942
  %v2385 = vunpack.c.h.b16 %v942
  %v2386 = vunpack.c.l.b16 %v943
  %v2387 = vunpack.c.h.b16 %v943
  %v2388 = vunpack.c.l.b16 %v944
  %v2389 = vunpack.c.h.b16 %v944
  %v2390 = vpack.c.b16 %v2138, %v2134
  %v2391 = vpack.c.b16 %v2139, %v2135
  %v2392 = vpack.c.b16 %v2140, %v2136
  %v2393 = vpack.c.b16 %v2141, %v2137
  %v2394 = vpack.c.b16 %v2146, %v2142
  %v2395 = vpack.c.b16 %v2147, %v2143
  %v2396 = vpack.c.b16 %v2148, %v2144
  %v2397 = vpack.c.b16 %v2149, %v2145
  %v2398 = vpack.c.b16 %v2154, %v2150
  %v2399 = vpack.c.b16 %v2155, %v2151
  %v2400 = vpack.c.b16 %v2156, %v2152
  %v2401 = vpack.c.b16 %v2157, %v2153
  %v2402 = vpack.c.b16 %v2162, %v2158
  %v2403 = vpack.c.b16 %v2163, %v2159
  %v2404 = vpack.c.b16 %v2164, %v2160
  %v2405 = vpack.c.b16 %v2165, %v2161
  %v2406 = vpack.c.b16 %v2170, %v2166
  %v2407 = vpack.c.b16 %v2171, %v2167
  %v2408 = vpack.c.b16 %v2172, %v2168
  %v2409 = vpack.c.b16 %v2173, %v2169
  %v2410 = vpack.c.b16 %v2178, %v2174
  %v2411 = vpack.c.b16 %v2179, %v2175
  %v2412 = vpack.c.b16 %v2180, %v2176
  %v2413 = vpack.c.b16 %v2181, %v2177
  %v2414 = vpack.c.b16 %v2186, %v2182
  %v2415 = vpack.c.b16 %v2187, %v2183
  %v2416 = vpack.c.b16 %v2188, %v2184
  %v2417 = vpack.c.b16 %v2189, %v2185
  %v2418 = vpack.c.b16 %v2194, %v2190
  %v2419 = vpack.c.b16 %v2195, %v2191
  %v2420 = vpack.c.b16 %v2196, %v2192
  %v2421 = vpack.c.b16 %v2197, %v2193
  %v2422 = vpack.c.b16 %v2202, %v2198
  %v2423 = vpack.c.b16 %v2203, %v2199
  %v2424 = vpack.c.b16 %v2204, %v2200
  %v2425 = vpack.c.b16 %v2205, %v2201
  %v2426 = vpack.c.b16 %v2210, %v2206
  %v2427 = vpack.c.b16 %v2211, %v2207
  %v2428 = vpack.c.b16 %v2212, %v2208
  %v2429 = vpack.c.b16 %v2213, %v2209
  %v2430 = vpack.c.b16 %v2218, %v2214
  %v2431 = vpack.c.b16 %v2219, %v2215
  %v2432 = vpack.c.b16 %v2220, %v2216
  %v2433 = vpack.c.b16 %v2221, %v2217
  %v2434 = vpack.c.b16 %v2226, %v2222
  %v2435 = vpack.c.b16 %v2227, %v2223
  %v2436 = vpack.c.b16 %v2228, %v2224
  %v2437 = vpack.c.b16 %v2229, %v2225
  %v2438 = vpack.c.b16 %v2234, %v2230
  %v2439 = vpack.c.b16 %v2235, %v2231
  %v2440 = vpack.c.b16 %v2236, %v2232
  %v2441 = vpack.c.b16 %v2237, %v2233
  %v2442 = vpack.c.b16 %v2242, %v2238
  %v2443 = vpack.c.b16 %v2243, %v2239
  %v2444 = vpack.c.b16 %v2244, %v2240
  %v2445 = vpack.c.b16 %v2245, %v2241
  %v2446 = vpack.c.b16 %v2250, %v2246
  %v2447 = vpack.c.b16 %v2251, %v2247
  %v2448 = vpack.c.b16 %v2252, %v2248
  %v2449 = vpack.c.b16 %v2253, %v2249
  %v2450 = vpack.c.b16 %v2258, %v2254
  %v2451 = vpack.c.b16 %v2259, %v2255
  %v2452 = vpack.c.b16 %v2260, %v2256
  %v2453 = vpack.c.b16 %v2261, %v2257
  %v2454 = vpack.c.b16 %v2266, %v2262
  %v2455 = vpack.c.b16 %v2267, %v2263
  %v2456 = vpack.c.b16 %v2268, %v2264
  %v2457 = vpack.c.b16 %v2269, %v2265
  %v2458 = vpack.c.b16 %v2274, %v2270
  %v2459 = vpack.c.b16 %v2275, %v2271
  %v2460 = vpack.c.b16 %v2276, %v2272
  %v2461 = vpack.c.b16 %v2277, %v2273
  %v2462 = vpack.c.b16 %v2282, %v2278
  %v2463 = vpack.c.b16 %v2283, %v2279
  %v2464 = vpack.c.b16 %v2284, %v2280
  %v2465 = vpack.c.b16 %v2285, %v2281
  %v2466 = vpack.c.b16 %v2290, %v2286
  %v2467 = vpack.c.b16 %v2291, %v2287
  %v2468 = vpack.c.b16 %v2292, %v2288
  %v2469 = vpack.c.b16 %v2293, %v2289
  %v2470 = vpack.c.b16 %v2298, %v2294
  %v2471 = vpack.c.b16 %v2299, %v2295
  %v2472 = vpack.c.b16 %v2300, %v2296
  %v2473 = vpack.c.b16 %v2301, %v2297
  %v2474 = vpack.c.b16 %v2306, %v2302
  %v2475 = vpack.c.b16 %v2307, %v2303
  %v2476 = vpack.c.b16 %v2308, %v2304
  %v2477 = vpack.c.b16 %v2309, %v2305
  %v2478 = vpack.c.b16 %v2314, %v2310
  %v2479 = vpack.c.b16 %v2315, %v2311
  %v2480 = vpack.c.b16 %v2316, %v2312
  %v2481 = vpack.c.b16 %v2317, %v2313
  %v2482 = vpack.c.b16 %v2322, %v2318
  %v2483 = vpack.c.b16 %v2323, %v2319
  %v2484 = vpack.c.b16 %v2324, %v2320
  %v2485 = vpack.c.b16 %v2325, %v2321
  %v2486 = vpack.c.b16 %v2330, %v2326
  %v2487 = vpack.c.b16 %v2331, %v2327
  %v2488 = vpack.c.b16 %v2332, %v2328
  %v2489 = vpack.c.b16 %v2333, %v2329
  %v2490 = vpack.c.b16 %v2338, %v2334
  %v2491 = vpack.c.b16 %v2339, %v2335
  %v2492 = vpack.c.b16 %v2340, %v2336
  %v2493 = vpack.c.b16 %v2341, %v2337
  %v2494 = vpack.c.b16 %v2346, %v2342
  %v2495 = vpack.c.b16 %v2347, %v2343
  %v2496 = vpack.c.b16 %v2348, %v2344
  %v2497 = vpack.c.b16 %v2349, %v2345
  %v2498 = vpack.c.b16 %v2354, %v2350
  %v2499 = vpack.c.b16 %v2355, %v2351
  %v2500 = vpack.c.b16 %v2356, %v2352
  %v2501 = vpack.c.b16 %v2357, %v2353
  %v2502 = vpack.c.b16 %v2362, %v2358
  %v2503 = vpack.c.b16 %v2363, %v2359
  %v2504 = vpack.c.b16 %v2364, %v2360
  %v2505 = vpack.c.b16 %v2365, %v2361
  %v2506 = vpack.c.b16 %v2370, %v2366
  %v2507 = vpack.c.b16 %v2371, %v2367
  %v2508 = vpack.c.b16 %v2372, %v2368
  %v2509 = vpack.c.b16 %v2373, %v2369
  %v2510 = vpack.c.b16 %v2378, %v2374
  %v2511 = vpack.c.b16 %v2379, %v2375
  %v2512 = vpack.c.b16 %v2380, %v2376
  %v2513 = vpack.c.b16 %v2381, %v2377
  %v2514 = vpack.c.b16 %v2386, %v2382
  %v2515 = vpack.c.b16 %v2387, %v2383
  %v2516 = vpack.c.b16 %v2388, %v2384
  %v2517 = vpack.c.b16 %v2389, %v2385
  %2646 = vmatprep.subr.bf16.mxu0 %v2391
  %2647 = vmatpush1.bf16.msra.mxu0 %v2390
  %2648 = vmatprep.subr.bf16.mxu0 %v2395
  %2649 = vmatpush1.bf16.msra.mxu0 %v2394
  %2650 = vmatprep.subr.bf16.mxu0 %v2399
  %2651 = vmatpush1.bf16.msra.mxu0 %v2398
  %2652 = vmatprep.subr.bf16.mxu0 %v2403
  %2653 = vmatpush1.bf16.msra.mxu0 %v2402
  %2654 = vmatprep.subr.bf16.mxu0 %v2407
  %2655 = vmatpush1.bf16.msra.mxu0 %v2406
  %2656 = vmatprep.subr.bf16.mxu0 %v2411
  %2657 = vmatpush1.bf16.msra.mxu0 %v2410
  %2658 = vmatprep.subr.bf16.mxu0 %v2415
  %2659 = vmatpush1.bf16.msra.mxu0 %v2414
  %2660 = vmatprep.subr.bf16.mxu0 %v2419
  %2661 = vmatpush1.bf16.msra.mxu0 %v2418
  %2662 = vmatprep.subr.bf16.mxu0 %v2423
  %2663 = vmatpush1.bf16.msra.mxu0 %v2422
  %2664 = vmatprep.subr.bf16.mxu0 %v2427
  %2665 = vmatpush1.bf16.msra.mxu0 %v2426
  %2666 = vmatprep.subr.bf16.mxu0 %v2431
  %2667 = vmatpush1.bf16.msra.mxu0 %v2430
  %2668 = vmatprep.subr.bf16.mxu0 %v2435
  %2669 = vmatpush1.bf16.msra.mxu0 %v2434
  %2670 = vmatprep.subr.bf16.mxu0 %v2439
  %2671 = vmatpush1.bf16.msra.mxu0 %v2438
  %2672 = vmatprep.subr.bf16.mxu0 %v2443
  %2673 = vmatpush1.bf16.msra.mxu0 %v2442
  %2674 = vmatprep.subr.bf16.mxu0 %v2447
  %2675 = vmatpush1.bf16.msra.mxu0 %v2446
  %2676 = vmatprep.subr.bf16.mxu0 %v2451
  %2677 = vmatpush1.bf16.msra.mxu0 %v2450
  %2678 = vmatprep.mubr.bf16.mxu0 %v770
  %2679 = vmatmul.mubr.bf16.gmra.mrb[0].mxu0 %v769
  %v2680 = vpop.f32.mrb[0].mxu0
  %v2681 = vadd.f32 %v1822, %v2680
  %v2682 = vpop.f32.mrb[0].mxu0
  %v2683 = vadd.f32 %v1824, %v2682
  %v2684 = vpop.f32.mrb[0].mxu0
  %v2685 = vadd.f32 %v1826, %v2684
  %v2686 = vpop.f32.mrb[0].mxu0
  %v2687 = vadd.f32 %v1828, %v2686
  %2688 = vmatprep.mubr.bf16.mxu0 %v774
  %2689 = vmatmul.mubr.bf16.gmra.mrb[0].mxu0 %v773
  %v2690 = vpop.f32.mrb[0].mxu0
  %v2691 = vadd.f32 %v1832, %v2690
  %v2692 = vpop.f32.mrb[0].mxu0
  %v2693 = vadd.f32 %v1834, %v2692
  %v2694 = vpop.f32.mrb[0].mxu0
  %v2695 = vadd.f32 %v1836, %v2694
  %v2696 = vpop.f32.mrb[0].mxu0
  %v2697 = vadd.f32 %v1838, %v2696
  %2698 = vmatprep.mubr.bf16.mxu0 %v778
  %2699 = vmatmul.mubr.bf16.gmra.mrb[0].mxu0 %v777
  %v2700 = vpop.f32.mrb[0].mxu0
  %v2701 = vadd.f32 %v1842, %v2700
  %v2702 = vpop.f32.mrb[0].mxu0
  %v2703 = vadd.f32 %v1844, %v2702
  %v2704 = vpop.f32.mrb[0].mxu0
  %v2705 = vadd.f32 %v1846, %v2704
  %v2706 = vpop.f32.mrb[0].mxu0
  %v2707 = vadd.f32 %v1848, %v2706
  %2708 = vmatprep.mubr.bf16.mxu0 %v782
  %2709 = vmatmul.mubr.bf16.gmra.mrb[0].mxu0 %v781
  %v2710 = vpop.f32.mrb[0].mxu0
  %v2711 = vadd.f32 %v1852, %v2710
  %v2712 = vpop.f32.mrb[0].mxu0
  %v2713 = vadd.f32 %v1854, %v2712
  %v2714 = vpop.f32.mrb[0].mxu0
  %v2715 = vadd.f32 %v1856, %v2714
  %v2716 = vpop.f32.mrb[0].mxu0
  %v2717 = vadd.f32 %v1858, %v2716
  %2718 = vdwg.mxu0
  %2719 = vmatprep.subr.bf16.mxu0 %v2455
  %2720 = vmatpush1.bf16.msra.mxu0 %v2454
  %2721 = vmatprep.subr.bf16.mxu0 %v2459
  %2722 = vmatpush1.bf16.msra.mxu0 %v2458
  %2723 = vmatprep.subr.bf16.mxu0 %v2463
  %2724 = vmatpush1.bf16.msra.mxu0 %v2462
  %2725 = vmatprep.subr.bf16.mxu0 %v2467
  %2726 = vmatpush1.bf16.msra.mxu0 %v2466
  %2727 = vmatprep.subr.bf16.mxu0 %v2471
  %2728 = vmatpush1.bf16.msra.mxu0 %v2470
  %2729 = vmatprep.subr.bf16.mxu0 %v2475
  %2730 = vmatpush1.bf16.msra.mxu0 %v2474
  %2731 = vmatprep.subr.bf16.mxu0 %v2479
  %2732 = vmatpush1.bf16.msra.mxu0 %v2478
  %2733 = vmatprep.subr.bf16.mxu0 %v2483
  %2734 = vmatpush1.bf16.msra.mxu0 %v2482
  %2735 = vmatprep.subr.bf16.mxu0 %v2487
  %2736 = vmatpush1.bf16.msra.mxu0 %v2486
  %2737 = vmatprep.subr.bf16.mxu0 %v2491
  %2738 = vmatpush1.bf16.msra.mxu0 %v2490
  %2739 = vmatprep.subr.bf16.mxu0 %v2495
  %2740 = vmatpush1.bf16.msra.mxu0 %v2494
  %2741 = vmatprep.subr.bf16.mxu0 %v2499
  %2742 = vmatpush1.bf16.msra.mxu0 %v2498
  %2743 = vmatprep.subr.bf16.mxu0 %v2503
  %2744 = vmatpush1.bf16.msra.mxu0 %v2502
  %2745 = vmatprep.subr.bf16.mxu0 %v2507
  %2746 = vmatpush1.bf16.msra.mxu0 %v2506
  %2747 = vmatprep.subr.bf16.mxu0 %v2511
  %2748 = vmatpush1.bf16.msra.mxu0 %v2510
  %2749 = vmatprep.subr.bf16.mxu0 %v2515
  %2750 = vmatpush1.bf16.msra.mxu0 %v2514
  %2751 = vmatprep.mubr.bf16.mxu0 %v772
  %2752 = vmatmul.mubr.bf16.gmra.mrb[0].mxu0 %v771
  %v2753 = vpop.f32.mrb[0].mxu0
  %v2754 = vadd.f32 %v2681, %v2753
  %v2755 = vpop.f32.mrb[0].mxu0
  %v2756 = vadd.f32 %v2683, %v2755
  %v2757 = vpop.f32.mrb[0].mxu0
  %v2758 = vadd.f32 %v2685, %v2757
  %v2759 = vpop.f32.mrb[0].mxu0
  %v2760 = vadd.f32 %v2687, %v2759
  %2761 = vmatprep.mubr.bf16.mxu0 %v776
  %2762 = vmatmul.mubr.bf16.gmra.mrb[0].mxu0 %v775
  %v2763 = vpop.f32.mrb[0].mxu0
  %v2764 = vadd.f32 %v2691, %v2763
  %v2765 = vpop.f32.mrb[0].mxu0
  %v2766 = vadd.f32 %v2693, %v2765
  %v2767 = vpop.f32.mrb[0].mxu0
  %v2768 = vadd.f32 %v2695, %v2767
  %v2769 = vpop.f32.mrb[0].mxu0
  %v2770 = vadd.f32 %v2697, %v2769
  %2771 = vmatprep.mubr.bf16.mxu0 %v780
  %2772 = vmatmul.mubr.bf16.gmra.mrb[0].mxu0 %v779
  %v2773 = vpop.f32.mrb[0].mxu0
  %v2774 = vadd.f32 %v2701, %v2773
  %v2775 = vpop.f32.mrb[0].mxu0
  %v2776 = vadd.f32 %v2703, %v2775
  %v2777 = vpop.f32.mrb[0].mxu0
  %v2778 = vadd.f32 %v2705, %v2777
  %v2779 = vpop.f32.mrb[0].mxu0
  %v2780 = vadd.f32 %v2707, %v2779
  %2781 = vmatprep.mubr.bf16.mxu0 %v784
  %2782 = vmatmul.mubr.bf16.gmra.mrb[0].mxu0 %v783
  %v2783 = vpop.f32.mrb[0].mxu0
  %v2784 = vadd.f32 %v2711, %v2783
  %v2785 = vpop.f32.mrb[0].mxu0
  %v2786 = vadd.f32 %v2713, %v2785
  %v2787 = vpop.f32.mrb[0].mxu0
  %v2788 = vadd.f32 %v2715, %v2787
  %v2789 = vpop.f32.mrb[0].mxu0
  %v2790 = vadd.f32 %v2717, %v2789
  %2791 = vdwg.mxu0
  %2792 = vmatprep.subr.bf16.mxu0 %v2393
  %2793 = vmatpush1.bf16.msra.mxu0 %v2392
  %2794 = vmatprep.subr.bf16.mxu0 %v2397
  %2795 = vmatpush1.bf16.msra.mxu0 %v2396
  %2796 = vmatprep.subr.bf16.mxu0 %v2401
  %2797 = vmatpush1.bf16.msra.mxu0 %v2400
  %2798 = vmatprep.subr.bf16.mxu0 %v2405
  %2799 = vmatpush1.bf16.msra.mxu0 %v2404
  %2800 = vmatprep.subr.bf16.mxu0 %v2409
  %2801 = vmatpush1.bf16.msra.mxu0 %v2408
  %2802 = vmatprep.subr.bf16.mxu0 %v2413
  %2803 = vmatpush1.bf16.msra.mxu0 %v2412
  %2804 = vmatprep.subr.bf16.mxu0 %v2417
  %2805 = vmatpush1.bf16.msra.mxu0 %v2416
  %2806 = vmatprep.subr.bf16.mxu0 %v2421
  %2807 = vmatpush1.bf16.msra.mxu0 %v2420
  %2808 = vmatprep.subr.bf16.mxu0 %v2425
  %2809 = vmatpush1.bf16.msra.mxu0 %v2424
  %2810 = vmatprep.subr.bf16.mxu0 %v2429
  %2811 = vmatpush1.bf16.msra.mxu0 %v2428
  %2812 = vmatprep.subr.bf16.mxu0 %v2433
  %2813 = vmatpush1.bf16.msra.mxu0 %v2432
  %2814 = vmatprep.subr.bf16.mxu0 %v2437
  %2815 = vmatpush1.bf16.msra.mxu0 %v2436
  %2816 = vmatprep.subr.bf16.mxu0 %v2441
  %2817 = vmatpush1.bf16.msra.mxu0 %v2440
  %2818 = vmatprep.subr.bf16.mxu0 %v2445
  %2819 = vmatpush1.bf16.msra.mxu0 %v2444
  %2820 = vmatprep.subr.bf16.mxu0 %v2449
  %2821 = vmatpush1.bf16.msra.mxu0 %v2448
  %2822 = vmatprep.subr.bf16.mxu0 %v2453
  %2823 = vmatpush1.bf16.msra.mxu0 %v2452
  %2824 = vmatprep.mubr.bf16.mxu0 %v770
  %2825 = vmatmul.mubr.bf16.gmra.mrb[0].mxu0 %v769
  %v2826 = vpop.f32.mrb[0].mxu0
  %v2827 = vadd.f32 %v1968, %v2826
  %v2828 = vpop.f32.mrb[0].mxu0
  %v2829 = vadd.f32 %v1970, %v2828
  %v2830 = vpop.f32.mrb[0].mxu0
  %v2831 = vadd.f32 %v1972, %v2830
  %v2832 = vpop.f32.mrb[0].mxu0
  %v2833 = vadd.f32 %v1974, %v2832
  %2834 = vmatprep.mubr.bf16.mxu0 %v774
  %2835 = vmatmul.mubr.bf16.gmra.mrb[0].mxu0 %v773
  %v2836 = vpop.f32.mrb[0].mxu0
  %v2837 = vadd.f32 %v1978, %v2836
  %v2838 = vpop.f32.mrb[0].mxu0
  %v2839 = vadd.f32 %v1980, %v2838
  %v2840 = vpop.f32.mrb[0].mxu0
  %v2841 = vadd.f32 %v1982, %v2840
  %v2842 = vpop.f32.mrb[0].mxu0
  %v2843 = vadd.f32 %v1984, %v2842
  %2844 = vmatprep.mubr.bf16.mxu0 %v778
  %2845 = vmatmul.mubr.bf16.gmra.mrb[0].mxu0 %v777
  %v2846 = vpop.f32.mrb[0].mxu0
  %v2847 = vadd.f32 %v1988, %v2846
  %v2848 = vpop.f32.mrb[0].mxu0
  %v2849 = vadd.f32 %v1990, %v2848
  %v2850 = vpop.f32.mrb[0].mxu0
  %v2851 = vadd.f32 %v1992, %v2850
  %v2852 = vpop.f32.mrb[0].mxu0
  %v2853 = vadd.f32 %v1994, %v2852
  %2854 = vmatprep.mubr.bf16.mxu0 %v782
  %2855 = vmatmul.mubr.bf16.gmra.mrb[0].mxu0 %v781
  %v2856 = vpop.f32.mrb[0].mxu0
  %v2857 = vadd.f32 %v1998, %v2856
  %v2858 = vpop.f32.mrb[0].mxu0
  %v2859 = vadd.f32 %v2000, %v2858
  %v2860 = vpop.f32.mrb[0].mxu0
  %v2861 = vadd.f32 %v2002, %v2860
  %v2862 = vpop.f32.mrb[0].mxu0
  %v2863 = vadd.f32 %v2004, %v2862
  %2864 = vdwg.mxu0
  %2865 = vmatprep.subr.bf16.mxu0 %v2457
  %2866 = vmatpush1.bf16.msra.mxu0 %v2456
  %2867 = vmatprep.subr.bf16.mxu0 %v2461
  %2868 = vmatpush1.bf16.msra.mxu0 %v2460
  %2869 = vmatprep.subr.bf16.mxu0 %v2465
  %2870 = vmatpush1.bf16.msra.mxu0 %v2464
  %2871 = vmatprep.subr.bf16.mxu0 %v2469
  %2872 = vmatpush1.bf16.msra.mxu0 %v2468
  %2873 = vmatprep.subr.bf16.mxu0 %v2473
  %2874 = vmatpush1.bf16.msra.mxu0 %v2472
  %2875 = vmatprep.subr.bf16.mxu0 %v2477
  %2876 = vmatpush1.bf16.msra.mxu0 %v2476
  %2877 = vmatprep.subr.bf16.mxu0 %v2481
  %2878 = vmatpush1.bf16.msra.mxu0 %v2480
  %2879 = vmatprep.subr.bf16.mxu0 %v2485
  %2880 = vmatpush1.bf16.msra.mxu0 %v2484
  %2881 = vmatprep.subr.bf16.mxu0 %v2489
  %2882 = vmatpush1.bf16.msra.mxu0 %v2488
  %2883 = vmatprep.subr.bf16.mxu0 %v2493
  %2884 = vmatpush1.bf16.msra.mxu0 %v2492
  %2885 = vmatprep.subr.bf16.mxu0 %v2497
  %2886 = vmatpush1.bf16.msra.mxu0 %v2496
  %2887 = vmatprep.subr.bf16.mxu0 %v2501
  %2888 = vmatpush1.bf16.msra.mxu0 %v2500
  %2889 = vmatprep.subr.bf16.mxu0 %v2505
  %2890 = vmatpush1.bf16.msra.mxu0 %v2504
  %2891 = vmatprep.subr.bf16.mxu0 %v2509
  %2892 = vmatpush1.bf16.msra.mxu0 %v2508
  %2893 = vmatprep.subr.bf16.mxu0 %v2513
  %2894 = vmatpush1.bf16.msra.mxu0 %v2512
  %2895 = vmatprep.subr.bf16.mxu0 %v2517
  %2896 = vmatpush1.bf16.msra.mxu0 %v2516
  %2897 = vmatprep.mubr.bf16.mxu0 %v772
  %2898 = vmatmul.mubr.bf16.gmra.mrb[0].mxu0 %v771
  %v2899 = vpop.f32.mrb[0].mxu0
  %v2900 = vadd.f32 %v2827, %v2899
  %v2901 = vpop.f32.mrb[0].mxu0
  %v2902 = vadd.f32 %v2829, %v2901
  %v2903 = vpop.f32.mrb[0].mxu0
  %v2904 = vadd.f32 %v2831, %v2903
  %v2905 = vpop.f32.mrb[0].mxu0
  %v2906 = vadd.f32 %v2833, %v2905
  %2907 = vmatprep.mubr.bf16.mxu0 %v776
  %2908 = vmatmul.mubr.bf16.gmra.mrb[0].mxu0 %v775
  %v2909 = vpop.f32.mrb[0].mxu0
  %v2910 = vadd.f32 %v2837, %v2909
  %v2911 = vpop.f32.mrb[0].mxu0
  %v2912 = vadd.f32 %v2839, %v2911
  %v2913 = vpop.f32.mrb[0].mxu0
  %v2914 = vadd.f32 %v2841, %v2913
  %v2915 = vpop.f32.mrb[0].mxu0
  %v2916 = vadd.f32 %v2843, %v2915
  %2917 = vmatprep.mubr.bf16.mxu0 %v780
  %2918 = vmatmul.mubr.bf16.gmra.mrb[0].mxu0 %v779
  %v2919 = vpop.f32.mrb[0].mxu0
  %v2920 = vadd.f32 %v2847, %v2919
  %v2921 = vpop.f32.mrb[0].mxu0
  %v2922 = vadd.f32 %v2849, %v2921
  %v2923 = vpop.f32.mrb[0].mxu0
  %v2924 = vadd.f32 %v2851, %v2923
  %v2925 = vpop.f32.mrb[0].mxu0
  %v2926 = vadd.f32 %v2853, %v2925
  %2927 = vmatprep.mubr.bf16.mxu0 %v784
  %2928 = vmatmul.mubr.bf16.gmra.mrb[0].mxu0 %v783
  %v2929 = vpop.f32.mrb[0].mxu0
  %v2930 = vadd.f32 %v2857, %v2929
  %v2931 = vpop.f32.mrb[0].mxu0
  %v2932 = vadd.f32 %v2859, %v2931
  %v2933 = vpop.f32.mrb[0].mxu0
  %v2934 = vadd.f32 %v2861, %v2933
  %v2935 = vpop.f32.mrb[0].mxu0
  %v2936 = vadd.f32 %v2863, %v2935
  %2937 = vdwg.mxu0
  %s2938 = scalar_lea.vmem %s2, 2048
  %v2939 = vld [vmem:[%s2938] sm:$0xff]
  %v2940 = vld [vmem:[%s2938 + $0x8] sm:$0xff]
  %v2941 = vld [vmem:[%s2938 + $0x10] sm:$0xff]
  %v2942 = vld [vmem:[%s2938 + $0x18] sm:$0xff]
  %v2943 = vld [vmem:[%s2938 + $0x20] sm:$0xff]
  %v2944 = vld [vmem:[%s2938 + $0x28] sm:$0xff]
  %v2945 = vld [vmem:[%s2938 + $0x30] sm:$0xff]
  %v2946 = vld [vmem:[%s2938 + $0x38] sm:$0xff]
  %v2947 = vld [vmem:[%s2938 + $0x40] sm:$0xff]
  %v2948 = vld [vmem:[%s2938 + $0x48] sm:$0xff]
  %v2949 = vld [vmem:[%s2938 + $0x50] sm:$0xff]
  %v2950 = vld [vmem:[%s2938 + $0x58] sm:$0xff]
  %v2951 = vld [vmem:[%s2938 + $0x60] sm:$0xff]
  %v2952 = vld [vmem:[%s2938 + $0x68] sm:$0xff]
  %v2953 = vld [vmem:[%s2938 + $0x70] sm:$0xff]
  %v2954 = vld [vmem:[%s2938 + $0x78] sm:$0xff]
  %v2955 = vld [vmem:[%s2938 + $0x80] sm:$0xff]
  %v2956 = vld [vmem:[%s2938 + $0x88] sm:$0xff]
  %v2957 = vld [vmem:[%s2938 + $0x90] sm:$0xff]
  %v2958 = vld [vmem:[%s2938 + $0x98] sm:$0xff]
  %v2959 = vld [vmem:[%s2938 + $0xa0] sm:$0xff]
  %v2960 = vld [vmem:[%s2938 + $0xa8] sm:$0xff]
  %v2961 = vld [vmem:[%s2938 + $0xb0] sm:$0xff]
  %v2962 = vld [vmem:[%s2938 + $0xb8] sm:$0xff]
  %v2963 = vld [vmem:[%s2938 + $0xc0] sm:$0xff]
  %v2964 = vld [vmem:[%s2938 + $0xc8] sm:$0xff]
  %v2965 = vld [vmem:[%s2938 + $0xd0] sm:$0xff]
  %v2966 = vld [vmem:[%s2938 + $0xd8] sm:$0xff]
  %v2967 = vld [vmem:[%s2938 + $0xe0] sm:$0xff]
  %v2968 = vld [vmem:[%s2938 + $0xe8] sm:$0xff]
  %v2969 = vld [vmem:[%s2938 + $0xf0] sm:$0xff]
  %v2970 = vld [vmem:[%s2938 + $0xf8] sm:$0xff]
  %v2971 = vld [vmem:[%s2938 + $0x100] sm:$0xff]
  %v2972 = vld [vmem:[%s2938 + $0x108] sm:$0xff]
  %v2973 = vld [vmem:[%s2938 + $0x110] sm:$0xff]
  %v2974 = vld [vmem:[%s2938 + $0x118] sm:$0xff]
  %v2975 = vld [vmem:[%s2938 + $0x120] sm:$0xff]
  %v2976 = vld [vmem:[%s2938 + $0x128] sm:$0xff]
  %v2977 = vld [vmem:[%s2938 + $0x130] sm:$0xff]
  %v2978 = vld [vmem:[%s2938 + $0x138] sm:$0xff]
  %v2979 = vld [vmem:[%s2938 + $0x140] sm:$0xff]
  %v2980 = vld [vmem:[%s2938 + $0x148] sm:$0xff]
  %v2981 = vld [vmem:[%s2938 + $0x150] sm:$0xff]
  %v2982 = vld [vmem:[%s2938 + $0x158] sm:$0xff]
  %v2983 = vld [vmem:[%s2938 + $0x160] sm:$0xff]
  %v2984 = vld [vmem:[%s2938 + $0x168] sm:$0xff]
  %v2985 = vld [vmem:[%s2938 + $0x170] sm:$0xff]
  %v2986 = vld [vmem:[%s2938 + $0x178] sm:$0xff]
  %v2987 = vld [vmem:[%s2938 + $0x180] sm:$0xff]
  %v2988 = vld [vmem:[%s2938 + $0x188] sm:$0xff]
  %v2989 = vld [vmem:[%s2938 + $0x190] sm:$0xff]
  %v2990 = vld [vmem:[%s2938 + $0x198] sm:$0xff]
  %v2991 = vld [vmem:[%s2938 + $0x1a0] sm:$0xff]
  %v2992 = vld [vmem:[%s2938 + $0x1a8] sm:$0xff]
  %v2993 = vld [vmem:[%s2938 + $0x1b0] sm:$0xff]
  %v2994 = vld [vmem:[%s2938 + $0x1b8] sm:$0xff]
  %v2995 = vld [vmem:[%s2938 + $0x1c0] sm:$0xff]
  %v2996 = vld [vmem:[%s2938 + $0x1c8] sm:$0xff]
  %v2997 = vld [vmem:[%s2938 + $0x1d0] sm:$0xff]
  %v2998 = vld [vmem:[%s2938 + $0x1d8] sm:$0xff]
  %v2999 = vld [vmem:[%s2938 + $0x1e0] sm:$0xff]
  %v3000 = vld [vmem:[%s2938 + $0x1e8] sm:$0xff]
  %v3001 = vld [vmem:[%s2938 + $0x1f0] sm:$0xff]
  %v3002 = vld [vmem:[%s2938 + $0x1f8] sm:$0xff]
  %v3003 = vld [vmem:[%s2938 + $0x200] sm:$0xff]
  %v3004 = vld [vmem:[%s2938 + $0x208] sm:$0xff]
  %v3005 = vld [vmem:[%s2938 + $0x210] sm:$0xff]
  %v3006 = vld [vmem:[%s2938 + $0x218] sm:$0xff]
  %v3007 = vld [vmem:[%s2938 + $0x220] sm:$0xff]
  %v3008 = vld [vmem:[%s2938 + $0x228] sm:$0xff]
  %v3009 = vld [vmem:[%s2938 + $0x230] sm:$0xff]
  %v3010 = vld [vmem:[%s2938 + $0x238] sm:$0xff]
  %v3011 = vld [vmem:[%s2938 + $0x240] sm:$0xff]
  %v3012 = vld [vmem:[%s2938 + $0x248] sm:$0xff]
  %v3013 = vld [vmem:[%s2938 + $0x250] sm:$0xff]
  %v3014 = vld [vmem:[%s2938 + $0x258] sm:$0xff]
  %v3015 = vld [vmem:[%s2938 + $0x260] sm:$0xff]
  %v3016 = vld [vmem:[%s2938 + $0x268] sm:$0xff]
  %v3017 = vld [vmem:[%s2938 + $0x270] sm:$0xff]
  %v3018 = vld [vmem:[%s2938 + $0x278] sm:$0xff]
  %v3019 = vld [vmem:[%s2938 + $0x280] sm:$0xff]
  %v3020 = vld [vmem:[%s2938 + $0x288] sm:$0xff]
  %v3021 = vld [vmem:[%s2938 + $0x290] sm:$0xff]
  %v3022 = vld [vmem:[%s2938 + $0x298] sm:$0xff]
  %v3023 = vld [vmem:[%s2938 + $0x2a0] sm:$0xff]
  %v3024 = vld [vmem:[%s2938 + $0x2a8] sm:$0xff]
  %v3025 = vld [vmem:[%s2938 + $0x2b0] sm:$0xff]
  %v3026 = vld [vmem:[%s2938 + $0x2b8] sm:$0xff]
  %v3027 = vld [vmem:[%s2938 + $0x2c0] sm:$0xff]
  %v3028 = vld [vmem:[%s2938 + $0x2c8] sm:$0xff]
  %v3029 = vld [vmem:[%s2938 + $0x2d0] sm:$0xff]
  %v3030 = vld [vmem:[%s2938 + $0x2d8] sm:$0xff]
  %v3031 = vld [vmem:[%s2938 + $0x2e0] sm:$0xff]
  %v3032 = vld [vmem:[%s2938 + $0x2e8] sm:$0xff]
  %v3033 = vld [vmem:[%s2938 + $0x2f0] sm:$0xff]
  %v3034 = vld [vmem:[%s2938 + $0x2f8] sm:$0xff]
  %v3035 = vld [vmem:[%s2938 + $0x300] sm:$0xff]
  %v3036 = vld [vmem:[%s2938 + $0x308] sm:$0xff]
  %v3037 = vld [vmem:[%s2938 + $0x310] sm:$0xff]
  %v3038 = vld [vmem:[%s2938 + $0x318] sm:$0xff]
  %v3039 = vld [vmem:[%s2938 + $0x320] sm:$0xff]
  %v3040 = vld [vmem:[%s2938 + $0x328] sm:$0xff]
  %v3041 = vld [vmem:[%s2938 + $0x330] sm:$0xff]
  %v3042 = vld [vmem:[%s2938 + $0x338] sm:$0xff]
  %v3043 = vld [vmem:[%s2938 + $0x340] sm:$0xff]
  %v3044 = vld [vmem:[%s2938 + $0x348] sm:$0xff]
  %v3045 = vld [vmem:[%s2938 + $0x350] sm:$0xff]
  %v3046 = vld [vmem:[%s2938 + $0x358] sm:$0xff]
  %v3047 = vld [vmem:[%s2938 + $0x360] sm:$0xff]
  %v3048 = vld [vmem:[%s2938 + $0x368] sm:$0xff]
  %v3049 = vld [vmem:[%s2938 + $0x370] sm:$0xff]
  %v3050 = vld [vmem:[%s2938 + $0x378] sm:$0xff]
  %v3051 = vld [vmem:[%s2938 + $0x380] sm:$0xff]
  %v3052 = vld [vmem:[%s2938 + $0x388] sm:$0xff]
  %v3053 = vld [vmem:[%s2938 + $0x390] sm:$0xff]
  %v3054 = vld [vmem:[%s2938 + $0x398] sm:$0xff]
  %v3055 = vld [vmem:[%s2938 + $0x3a0] sm:$0xff]
  %v3056 = vld [vmem:[%s2938 + $0x3a8] sm:$0xff]
  %v3057 = vld [vmem:[%s2938 + $0x3b0] sm:$0xff]
  %v3058 = vld [vmem:[%s2938 + $0x3b8] sm:$0xff]
  %v3059 = vld [vmem:[%s2938 + $0x3c0] sm:$0xff]
  %v3060 = vld [vmem:[%s2938 + $0x3c8] sm:$0xff]
  %v3061 = vld [vmem:[%s2938 + $0x3d0] sm:$0xff]
  %v3062 = vld [vmem:[%s2938 + $0x3d8] sm:$0xff]
  %v3063 = vld [vmem:[%s2938 + $0x3e0] sm:$0xff]
  %v3064 = vld [vmem:[%s2938 + $0x3e8] sm:$0xff]
  %v3065 = vld [vmem:[%s2938 + $0x3f0] sm:$0xff]
  %v3066 = vld [vmem:[%s2938 + $0x3f8] sm:$0xff]
  %v3195 = vunpack.c.l.b16 %v2939
  %v3196 = vunpack.c.h.b16 %v2939
  %v3197 = vunpack.c.l.b16 %v2940
  %v3198 = vunpack.c.h.b16 %v2940
  %v3199 = vunpack.c.l.b16 %v2941
  %v3200 = vunpack.c.h.b16 %v2941
  %v3201 = vunpack.c.l.b16 %v2942
  %v3202 = vunpack.c.h.b16 %v2942
  %v3203 = vunpack.c.l.b16 %v2943
  %v3204 = vunpack.c.h.b16 %v2943
  %v3205 = vunpack.c.l.b16 %v2944
  %v3206 = vunpack.c.h.b16 %v2944
  %v3207 = vunpack.c.l.b16 %v2945
  %v3208 = vunpack.c.h.b16 %v2945
  %v3209 = vunpack.c.l.b16 %v2946
  %v3210 = vunpack.c.h.b16 %v2946
  %v3211 = vunpack.c.l.b16 %v2947
  %v3212 = vunpack.c.h.b16 %v2947
  %v3213 = vunpack.c.l.b16 %v2948
  %v3214 = vunpack.c.h.b16 %v2948
  %v3215 = vunpack.c.l.b16 %v2949
  %v3216 = vunpack.c.h.b16 %v2949
  %v3217 = vunpack.c.l.b16 %v2950
  %v3218 = vunpack.c.h.b16 %v2950
  %v3219 = vunpack.c.l.b16 %v2951
  %v3220 = vunpack.c.h.b16 %v2951
  %v3221 = vunpack.c.l.b16 %v2952
  %v3222 = vunpack.c.h.b16 %v2952
  %v3223 = vunpack.c.l.b16 %v2953
  %v3224 = vunpack.c.h.b16 %v2953
  %v3225 = vunpack.c.l.b16 %v2954
  %v3226 = vunpack.c.h.b16 %v2954
  %v3227 = vunpack.c.l.b16 %v2955
  %v3228 = vunpack.c.h.b16 %v2955
  %v3229 = vunpack.c.l.b16 %v2956
  %v3230 = vunpack.c.h.b16 %v2956
  %v3231 = vunpack.c.l.b16 %v2957
  %v3232 = vunpack.c.h.b16 %v2957
  %v3233 = vunpack.c.l.b16 %v2958
  %v3234 = vunpack.c.h.b16 %v2958
  %v3235 = vunpack.c.l.b16 %v2959
  %v3236 = vunpack.c.h.b16 %v2959
  %v3237 = vunpack.c.l.b16 %v2960
  %v3238 = vunpack.c.h.b16 %v2960
  %v3239 = vunpack.c.l.b16 %v2961
  %v3240 = vunpack.c.h.b16 %v2961
  %v3241 = vunpack.c.l.b16 %v2962
  %v3242 = vunpack.c.h.b16 %v2962
  %v3243 = vunpack.c.l.b16 %v2963
  %v3244 = vunpack.c.h.b16 %v2963
  %v3245 = vunpack.c.l.b16 %v2964
  %v3246 = vunpack.c.h.b16 %v2964
  %v3247 = vunpack.c.l.b16 %v2965
  %v3248 = vunpack.c.h.b16 %v2965
  %v3249 = vunpack.c.l.b16 %v2966
  %v3250 = vunpack.c.h.b16 %v2966
  %v3251 = vunpack.c.l.b16 %v2967
  %v3252 = vunpack.c.h.b16 %v2967
  %v3253 = vunpack.c.l.b16 %v2968
  %v3254 = vunpack.c.h.b16 %v2968
  %v3255 = vunpack.c.l.b16 %v2969
  %v3256 = vunpack.c.h.b16 %v2969
  %v3257 = vunpack.c.l.b16 %v2970
  %v3258 = vunpack.c.h.b16 %v2970
  %v3259 = vunpack.c.l.b16 %v2971
  %v3260 = vunpack.c.h.b16 %v2971
  %v3261 = vunpack.c.l.b16 %v2972
  %v3262 = vunpack.c.h.b16 %v2972
  %v3263 = vunpack.c.l.b16 %v2973
  %v3264 = vunpack.c.h.b16 %v2973
  %v3265 = vunpack.c.l.b16 %v2974
  %v3266 = vunpack.c.h.b16 %v2974
  %v3267 = vunpack.c.l.b16 %v2975
  %v3268 = vunpack.c.h.b16 %v2975
  %v3269 = vunpack.c.l.b16 %v2976
  %v3270 = vunpack.c.h.b16 %v2976
  %v3271 = vunpack.c.l.b16 %v2977
  %v3272 = vunpack.c.h.b16 %v2977
  %v3273 = vunpack.c.l.b16 %v2978
  %v3274 = vunpack.c.h.b16 %v2978
  %v3275 = vunpack.c.l.b16 %v2979
  %v3276 = vunpack.c.h.b16 %v2979
  %v3277 = vunpack.c.l.b16 %v2980
  %v3278 = vunpack.c.h.b16 %v2980
  %v3279 = vunpack.c.l.b16 %v2981
  %v3280 = vunpack.c.h.b16 %v2981
  %v3281 = vunpack.c.l.b16 %v2982
  %v3282 = vunpack.c.h.b16 %v2982
  %v3283 = vunpack.c.l.b16 %v2983
  %v3284 = vunpack.c.h.b16 %v2983
  %v3285 = vunpack.c.l.b16 %v2984
  %v3286 = vunpack.c.h.b16 %v2984
  %v3287 = vunpack.c.l.b16 %v2985
  %v3288 = vunpack.c.h.b16 %v2985
  %v3289 = vunpack.c.l.b16 %v2986
  %v3290 = vunpack.c.h.b16 %v2986
  %v3291 = vunpack.c.l.b16 %v2987
  %v3292 = vunpack.c.h.b16 %v2987
  %v3293 = vunpack.c.l.b16 %v2988
  %v3294 = vunpack.c.h.b16 %v2988
  %v3295 = vunpack.c.l.b16 %v2989
  %v3296 = vunpack.c.h.b16 %v2989
  %v3297 = vunpack.c.l.b16 %v2990
  %v3298 = vunpack.c.h.b16 %v2990
  %v3299 = vunpack.c.l.b16 %v2991
  %v3300 = vunpack.c.h.b16 %v2991
  %v3301 = vunpack.c.l.b16 %v2992
  %v3302 = vunpack.c.h.b16 %v2992
  %v3303 = vunpack.c.l.b16 %v2993
  %v3304 = vunpack.c.h.b16 %v2993
  %v3305 = vunpack.c.l.b16 %v2994
  %v3306 = vunpack.c.h.b16 %v2994
  %v3307 = vunpack.c.l.b16 %v2995
  %v3308 = vunpack.c.h.b16 %v2995
  %v3309 = vunpack.c.l.b16 %v2996
  %v3310 = vunpack.c.h.b16 %v2996
  %v3311 = vunpack.c.l.b16 %v2997
  %v3312 = vunpack.c.h.b16 %v2997
  %v3313 = vunpack.c.l.b16 %v2998
  %v3314 = vunpack.c.h.b16 %v2998
  %v3315 = vunpack.c.l.b16 %v2999
  %v3316 = vunpack.c.h.b16 %v2999
  %v3317 = vunpack.c.l.b16 %v3000
  %v3318 = vunpack.c.h.b16 %v3000
  %v3319 = vunpack.c.l.b16 %v3001
  %v3320 = vunpack.c.h.b16 %v3001
  %v3321 = vunpack.c.l.b16 %v3002
  %v3322 = vunpack.c.h.b16 %v3002
  %v3323 = vunpack.c.l.b16 %v3003
  %v3324 = vunpack.c.h.b16 %v3003
  %v3325 = vunpack.c.l.b16 %v3004
  %v3326 = vunpack.c.h.b16 %v3004
  %v3327 = vunpack.c.l.b16 %v3005
  %v3328 = vunpack.c.h.b16 %v3005
  %v3329 = vunpack.c.l.b16 %v3006
  %v3330 = vunpack.c.h.b16 %v3006
  %v3331 = vunpack.c.l.b16 %v3007
  %v3332 = vunpack.c.h.b16 %v3007
  %v3333 = vunpack.c.l.b16 %v3008
  %v3334 = vunpack.c.h.b16 %v3008
  %v3335 = vunpack.c.l.b16 %v3009
  %v3336 = vunpack.c.h.b16 %v3009
  %v3337 = vunpack.c.l.b16 %v3010
  %v3338 = vunpack.c.h.b16 %v3010
  %v3339 = vunpack.c.l.b16 %v3011
  %v3340 = vunpack.c.h.b16 %v3011
  %v3341 = vunpack.c.l.b16 %v3012
  %v3342 = vunpack.c.h.b16 %v3012
  %v3343 = vunpack.c.l.b16 %v3013
  %v3344 = vunpack.c.h.b16 %v3013
  %v3345 = vunpack.c.l.b16 %v3014
  %v3346 = vunpack.c.h.b16 %v3014
  %v3347 = vunpack.c.l.b16 %v3015
  %v3348 = vunpack.c.h.b16 %v3015
  %v3349 = vunpack.c.l.b16 %v3016
  %v3350 = vunpack.c.h.b16 %v3016
  %v3351 = vunpack.c.l.b16 %v3017
  %v3352 = vunpack.c.h.b16 %v3017
  %v3353 = vunpack.c.l.b16 %v3018
  %v3354 = vunpack.c.h.b16 %v3018
  %v3355 = vunpack.c.l.b16 %v3019
  %v3356 = vunpack.c.h.b16 %v3019
  %v3357 = vunpack.c.l.b16 %v3020
  %v3358 = vunpack.c.h.b16 %v3020
  %v3359 = vunpack.c.l.b16 %v3021
  %v3360 = vunpack.c.h.b16 %v3021
  %v3361 = vunpack.c.l.b16 %v3022
  %v3362 = vunpack.c.h.b16 %v3022
  %v3363 = vunpack.c.l.b16 %v3023
  %v3364 = vunpack.c.h.b16 %v3023
  %v3365 = vunpack.c.l.b16 %v3024
  %v3366 = vunpack.c.h.b16 %v3024
  %v3367 = vunpack.c.l.b16 %v3025
  %v3368 = vunpack.c.h.b16 %v3025
  %v3369 = vunpack.c.l.b16 %v3026
  %v3370 = vunpack.c.h.b16 %v3026
  %v3371 = vunpack.c.l.b16 %v3027
  %v3372 = vunpack.c.h.b16 %v3027
  %v3373 = vunpack.c.l.b16 %v3028
  %v3374 = vunpack.c.h.b16 %v3028
  %v3375 = vunpack.c.l.b16 %v3029
  %v3376 = vunpack.c.h.b16 %v3029
  %v3377 = vunpack.c.l.b16 %v3030
  %v3378 = vunpack.c.h.b16 %v3030
  %v3379 = vunpack.c.l.b16 %v3031
  %v3380 = vunpack.c.h.b16 %v3031
  %v3381 = vunpack.c.l.b16 %v3032
  %v3382 = vunpack.c.h.b16 %v3032
  %v3383 = vunpack.c.l.b16 %v3033
  %v3384 = vunpack.c.h.b16 %v3033
  %v3385 = vunpack.c.l.b16 %v3034
  %v3386 = vunpack.c.h.b16 %v3034
  %v3387 = vunpack.c.l.b16 %v3035
  %v3388 = vunpack.c.h.b16 %v3035
  %v3389 = vunpack.c.l.b16 %v3036
  %v3390 = vunpack.c.h.b16 %v3036
  %v3391 = vunpack.c.l.b16 %v3037
  %v3392 = vunpack.c.h.b16 %v3037
  %v3393 = vunpack.c.l.b16 %v3038
  %v3394 = vunpack.c.h.b16 %v3038
  %v3395 = vunpack.c.l.b16 %v3039
  %v3396 = vunpack.c.h.b16 %v3039
  %v3397 = vunpack.c.l.b16 %v3040
  %v3398 = vunpack.c.h.b16 %v3040
  %v3399 = vunpack.c.l.b16 %v3041
  %v3400 = vunpack.c.h.b16 %v3041
  %v3401 = vunpack.c.l.b16 %v3042
  %v3402 = vunpack.c.h.b16 %v3042
  %v3403 = vunpack.c.l.b16 %v3043
  %v3404 = vunpack.c.h.b16 %v3043
  %v3405 = vunpack.c.l.b16 %v3044
  %v3406 = vunpack.c.h.b16 %v3044
  %v3407 = vunpack.c.l.b16 %v3045
  %v3408 = vunpack.c.h.b16 %v3045
  %v3409 = vunpack.c.l.b16 %v3046
  %v3410 = vunpack.c.h.b16 %v3046
  %v3411 = vunpack.c.l.b16 %v3047
  %v3412 = vunpack.c.h.b16 %v3047
  %v3413 = vunpack.c.l.b16 %v3048
  %v3414 = vunpack.c.h.b16 %v3048
  %v3415 = vunpack.c.l.b16 %v3049
  %v3416 = vunpack.c.h.b16 %v3049
  %v3417 = vunpack.c.l.b16 %v3050
  %v3418 = vunpack.c.h.b16 %v3050
  %v3419 = vunpack.c.l.b16 %v3051
  %v3420 = vunpack.c.h.b16 %v3051
  %v3421 = vunpack.c.l.b16 %v3052
  %v3422 = vunpack.c.h.b16 %v3052
  %v3423 = vunpack.c.l.b16 %v3053
  %v3424 = vunpack.c.h.b16 %v3053
  %v3425 = vunpack.c.l.b16 %v3054
  %v3426 = vunpack.c.h.b16 %v3054
  %v3427 = vunpack.c.l.b16 %v3055
  %v3428 = vunpack.c.h.b16 %v3055
  %v3429 = vunpack.c.l.b16 %v3056
  %v3430 = vunpack.c.h.b16 %v3056
  %v3431 = vunpack.c.l.b16 %v3057
  %v3432 = vunpack.c.h.b16 %v3057
  %v3433 = vunpack.c.l.b16 %v3058
  %v3434 = vunpack.c.h.b16 %v3058
  %v3435 = vunpack.c.l.b16 %v3059
  %v3436 = vunpack.c.h.b16 %v3059
  %v3437 = vunpack.c.l.b16 %v3060
  %v3438 = vunpack.c.h.b16 %v3060
  %v3439 = vunpack.c.l.b16 %v3061
  %v3440 = vunpack.c.h.b16 %v3061
  %v3441 = vunpack.c.l.b16 %v3062
  %v3442 = vunpack.c.h.b16 %v3062
  %v3443 = vunpack.c.l.b16 %v3063
  %v3444 = vunpack.c.h.b16 %v3063
  %v3445 = vunpack.c.l.b16 %v3064
  %v3446 = vunpack.c.h.b16 %v3064
  %v3447 = vunpack.c.l.b16 %v3065
  %v3448 = vunpack.c.h.b16 %v3065
  %v3449 = vunpack.c.l.b16 %v3066
  %v3450 = vunpack.c.h.b16 %v3066
  %v3451 = vpack.c.b16 %v3199, %v3195
  %v3452 = vpack.c.b16 %v3200, %v3196
  %v3453 = vpack.c.b16 %v3201, %v3197
  %v3454 = vpack.c.b16 %v3202, %v3198
  %v3455 = vpack.c.b16 %v3207, %v3203
  %v3456 = vpack.c.b16 %v3208, %v3204
  %v3457 = vpack.c.b16 %v3209, %v3205
  %v3458 = vpack.c.b16 %v3210, %v3206
  %v3459 = vpack.c.b16 %v3215, %v3211
  %v3460 = vpack.c.b16 %v3216, %v3212
  %v3461 = vpack.c.b16 %v3217, %v3213
  %v3462 = vpack.c.b16 %v3218, %v3214
  %v3463 = vpack.c.b16 %v3223, %v3219
  %v3464 = vpack.c.b16 %v3224, %v3220
  %v3465 = vpack.c.b16 %v3225, %v3221
  %v3466 = vpack.c.b16 %v3226, %v3222
  %v3467 = vpack.c.b16 %v3231, %v3227
  %v3468 = vpack.c.b16 %v3232, %v3228
  %v3469 = vpack.c.b16 %v3233, %v3229
  %v3470 = vpack.c.b16 %v3234, %v3230
  %v3471 = vpack.c.b16 %v3239, %v3235
  %v3472 = vpack.c.b16 %v3240, %v3236
  %v3473 = vpack.c.b16 %v3241, %v3237
  %v3474 = vpack.c.b16 %v3242, %v3238
  %v3475 = vpack.c.b16 %v3247, %v3243
  %v3476 = vpack.c.b16 %v3248, %v3244
  %v3477 = vpack.c.b16 %v3249, %v3245
  %v3478 = vpack.c.b16 %v3250, %v3246
  %v3479 = vpack.c.b16 %v3255, %v3251
  %v3480 = vpack.c.b16 %v3256, %v3252
  %v3481 = vpack.c.b16 %v3257, %v3253
  %v3482 = vpack.c.b16 %v3258, %v3254
  %v3483 = vpack.c.b16 %v3263, %v3259
  %v3484 = vpack.c.b16 %v3264, %v3260
  %v3485 = vpack.c.b16 %v3265, %v3261
  %v3486 = vpack.c.b16 %v3266, %v3262
  %v3487 = vpack.c.b16 %v3271, %v3267
  %v3488 = vpack.c.b16 %v3272, %v3268
  %v3489 = vpack.c.b16 %v3273, %v3269
  %v3490 = vpack.c.b16 %v3274, %v3270
  %v3491 = vpack.c.b16 %v3279, %v3275
  %v3492 = vpack.c.b16 %v3280, %v3276
  %v3493 = vpack.c.b16 %v3281, %v3277
  %v3494 = vpack.c.b16 %v3282, %v3278
  %v3495 = vpack.c.b16 %v3287, %v3283
  %v3496 = vpack.c.b16 %v3288, %v3284
  %v3497 = vpack.c.b16 %v3289, %v3285
  %v3498 = vpack.c.b16 %v3290, %v3286
  %v3499 = vpack.c.b16 %v3295, %v3291
  %v3500 = vpack.c.b16 %v3296, %v3292
  %v3501 = vpack.c.b16 %v3297, %v3293
  %v3502 = vpack.c.b16 %v3298, %v3294
  %v3503 = vpack.c.b16 %v3303, %v3299
  %v3504 = vpack.c.b16 %v3304, %v3300
  %v3505 = vpack.c.b16 %v3305, %v3301
  %v3506 = vpack.c.b16 %v3306, %v3302
  %v3507 = vpack.c.b16 %v3311, %v3307
  %v3508 = vpack.c.b16 %v3312, %v3308
  %v3509 = vpack.c.b16 %v3313, %v3309
  %v3510 = vpack.c.b16 %v3314, %v3310
  %v3511 = vpack.c.b16 %v3319, %v3315
  %v3512 = vpack.c.b16 %v3320, %v3316
  %v3513 = vpack.c.b16 %v3321, %v3317
  %v3514 = vpack.c.b16 %v3322, %v3318
  %v3515 = vpack.c.b16 %v3327, %v3323
  %v3516 = vpack.c.b16 %v3328, %v3324
  %v3517 = vpack.c.b16 %v3329, %v3325
  %v3518 = vpack.c.b16 %v3330, %v3326
  %v3519 = vpack.c.b16 %v3335, %v3331
  %v3520 = vpack.c.b16 %v3336, %v3332
  %v3521 = vpack.c.b16 %v3337, %v3333
  %v3522 = vpack.c.b16 %v3338, %v3334
  %v3523 = vpack.c.b16 %v3343, %v3339
  %v3524 = vpack.c.b16 %v3344, %v3340
  %v3525 = vpack.c.b16 %v3345, %v3341
  %v3526 = vpack.c.b16 %v3346, %v3342
  %v3527 = vpack.c.b16 %v3351, %v3347
  %v3528 = vpack.c.b16 %v3352, %v3348
  %v3529 = vpack.c.b16 %v3353, %v3349
  %v3530 = vpack.c.b16 %v3354, %v3350
  %v3531 = vpack.c.b16 %v3359, %v3355
  %v3532 = vpack.c.b16 %v3360, %v3356
  %v3533 = vpack.c.b16 %v3361, %v3357
  %v3534 = vpack.c.b16 %v3362, %v3358
  %v3535 = vpack.c.b16 %v3367, %v3363
  %v3536 = vpack.c.b16 %v3368, %v3364
  %v3537 = vpack.c.b16 %v3369, %v3365
  %v3538 = vpack.c.b16 %v3370, %v3366
  %v3539 = vpack.c.b16 %v3375, %v3371
  %v3540 = vpack.c.b16 %v3376, %v3372
  %v3541 = vpack.c.b16 %v3377, %v3373
  %v3542 = vpack.c.b16 %v3378, %v3374
  %v3543 = vpack.c.b16 %v3383, %v3379
  %v3544 = vpack.c.b16 %v3384, %v3380
  %v3545 = vpack.c.b16 %v3385, %v3381
  %v3546 = vpack.c.b16 %v3386, %v3382
  %v3547 = vpack.c.b16 %v3391, %v3387
  %v3548 = vpack.c.b16 %v3392, %v3388
  %v3549 = vpack.c.b16 %v3393, %v3389
  %v3550 = vpack.c.b16 %v3394, %v3390
  %v3551 = vpack.c.b16 %v3399, %v3395
  %v3552 = vpack.c.b16 %v3400, %v3396
  %v3553 = vpack.c.b16 %v3401, %v3397
  %v3554 = vpack.c.b16 %v3402, %v3398
  %v3555 = vpack.c.b16 %v3407, %v3403
  %v3556 = vpack.c.b16 %v3408, %v3404
  %v3557 = vpack.c.b16 %v3409, %v3405
  %v3558 = vpack.c.b16 %v3410, %v3406
  %v3559 = vpack.c.b16 %v3415, %v3411
  %v3560 = vpack.c.b16 %v3416, %v3412
  %v3561 = vpack.c.b16 %v3417, %v3413
  %v3562 = vpack.c.b16 %v3418, %v3414
  %v3563 = vpack.c.b16 %v3423, %v3419
  %v3564 = vpack.c.b16 %v3424, %v3420
  %v3565 = vpack.c.b16 %v3425, %v3421
  %v3566 = vpack.c.b16 %v3426, %v3422
  %v3567 = vpack.c.b16 %v3431, %v3427
  %v3568 = vpack.c.b16 %v3432, %v3428
  %v3569 = vpack.c.b16 %v3433, %v3429
  %v3570 = vpack.c.b16 %v3434, %v3430
  %v3571 = vpack.c.b16 %v3439, %v3435
  %v3572 = vpack.c.b16 %v3440, %v3436
  %v3573 = vpack.c.b16 %v3441, %v3437
  %v3574 = vpack.c.b16 %v3442, %v3438
  %v3575 = vpack.c.b16 %v3447, %v3443
  %v3576 = vpack.c.b16 %v3448, %v3444
  %v3577 = vpack.c.b16 %v3449, %v3445
  %v3578 = vpack.c.b16 %v3450, %v3446
  %3707 = vmatprep.subr.bf16.mxu0 %v3452
  %3708 = vmatpush1.bf16.msra.mxu0 %v3451
  %3709 = vmatprep.subr.bf16.mxu0 %v3456
  %3710 = vmatpush1.bf16.msra.mxu0 %v3455
  %3711 = vmatprep.subr.bf16.mxu0 %v3460
  %3712 = vmatpush1.bf16.msra.mxu0 %v3459
  %3713 = vmatprep.subr.bf16.mxu0 %v3464
  %3714 = vmatpush1.bf16.msra.mxu0 %v3463
  %3715 = vmatprep.subr.bf16.mxu0 %v3468
  %3716 = vmatpush1.bf16.msra.mxu0 %v3467
  %3717 = vmatprep.subr.bf16.mxu0 %v3472
  %3718 = vmatpush1.bf16.msra.mxu0 %v3471
  %3719 = vmatprep.subr.bf16.mxu0 %v3476
  %3720 = vmatpush1.bf16.msra.mxu0 %v3475
  %3721 = vmatprep.subr.bf16.mxu0 %v3480
  %3722 = vmatpush1.bf16.msra.mxu0 %v3479
  %3723 = vmatprep.subr.bf16.mxu0 %v3484
  %3724 = vmatpush1.bf16.msra.mxu0 %v3483
  %3725 = vmatprep.subr.bf16.mxu0 %v3488
  %3726 = vmatpush1.bf16.msra.mxu0 %v3487
  %3727 = vmatprep.subr.bf16.mxu0 %v3492
  %3728 = vmatpush1.bf16.msra.mxu0 %v3491
  %3729 = vmatprep.subr.bf16.mxu0 %v3496
  %3730 = vmatpush1.bf16.msra.mxu0 %v3495
  %3731 = vmatprep.subr.bf16.mxu0 %v3500
  %3732 = vmatpush1.bf16.msra.mxu0 %v3499
  %3733 = vmatprep.subr.bf16.mxu0 %v3504
  %3734 = vmatpush1.bf16.msra.mxu0 %v3503
  %3735 = vmatprep.subr.bf16.mxu0 %v3508
  %3736 = vmatpush1.bf16.msra.mxu0 %v3507
  %3737 = vmatprep.subr.bf16.mxu0 %v3512
  %3738 = vmatpush1.bf16.msra.mxu0 %v3511
  %3739 = vmatprep.mubr.bf16.mxu0 %v786
  %3740 = vmatmul.mubr.bf16.gmra.mrb[0].mxu0 %v785
  %v3741 = vpop.f32.mrb[0].mxu0
  %v3742 = vadd.f32 0.0, %v3741
  %v3743 = vpop.f32.mrb[0].mxu0
  %v3744 = vadd.f32 0.0, %v3743
  %v3745 = vpop.f32.mrb[0].mxu0
  %v3746 = vadd.f32 0.0, %v3745
  %v3747 = vpop.f32.mrb[0].mxu0
  %v3748 = vadd.f32 0.0, %v3747
  %3749 = vmatprep.mubr.bf16.mxu0 %v790
  %3750 = vmatmul.mubr.bf16.gmra.mrb[0].mxu0 %v789
  %v3751 = vpop.f32.mrb[0].mxu0
  %v3752 = vadd.f32 0.0, %v3751
  %v3753 = vpop.f32.mrb[0].mxu0
  %v3754 = vadd.f32 0.0, %v3753
  %v3755 = vpop.f32.mrb[0].mxu0
  %v3756 = vadd.f32 0.0, %v3755
  %v3757 = vpop.f32.mrb[0].mxu0
  %v3758 = vadd.f32 0.0, %v3757
  %3759 = vmatprep.mubr.bf16.mxu0 %v794
  %3760 = vmatmul.mubr.bf16.gmra.mrb[0].mxu0 %v793
  %v3761 = vpop.f32.mrb[0].mxu0
  %v3762 = vadd.f32 0.0, %v3761
  %v3763 = vpop.f32.mrb[0].mxu0
  %v3764 = vadd.f32 0.0, %v3763
  %v3765 = vpop.f32.mrb[0].mxu0
  %v3766 = vadd.f32 0.0, %v3765
  %v3767 = vpop.f32.mrb[0].mxu0
  %v3768 = vadd.f32 0.0, %v3767
  %3769 = vmatprep.mubr.bf16.mxu0 %v798
  %3770 = vmatmul.mubr.bf16.gmra.mrb[0].mxu0 %v797
  %v3771 = vpop.f32.mrb[0].mxu0
  %v3772 = vadd.f32 0.0, %v3771
  %v3773 = vpop.f32.mrb[0].mxu0
  %v3774 = vadd.f32 0.0, %v3773
  %v3775 = vpop.f32.mrb[0].mxu0
  %v3776 = vadd.f32 0.0, %v3775
  %v3777 = vpop.f32.mrb[0].mxu0
  %v3778 = vadd.f32 0.0, %v3777
  %3779 = vdwg.mxu0
  %3780 = vmatprep.subr.bf16.mxu0 %v3516
  %3781 = vmatpush1.bf16.msra.mxu0 %v3515
  %3782 = vmatprep.subr.bf16.mxu0 %v3520
  %3783 = vmatpush1.bf16.msra.mxu0 %v3519
  %3784 = vmatprep.subr.bf16.mxu0 %v3524
  %3785 = vmatpush1.bf16.msra.mxu0 %v3523
  %3786 = vmatprep.subr.bf16.mxu0 %v3528
  %3787 = vmatpush1.bf16.msra.mxu0 %v3527
  %3788 = vmatprep.subr.bf16.mxu0 %v3532
  %3789 = vmatpush1.bf16.msra.mxu0 %v3531
  %3790 = vmatprep.subr.bf16.mxu0 %v3536
  %3791 = vmatpush1.bf16.msra.mxu0 %v3535
  %3792 = vmatprep.subr.bf16.mxu0 %v3540
  %3793 = vmatpush1.bf16.msra.mxu0 %v3539
  %3794 = vmatprep.subr.bf16.mxu0 %v3544
  %3795 = vmatpush1.bf16.msra.mxu0 %v3543
  %3796 = vmatprep.subr.bf16.mxu0 %v3548
  %3797 = vmatpush1.bf16.msra.mxu0 %v3547
  %3798 = vmatprep.subr.bf16.mxu0 %v3552
  %3799 = vmatpush1.bf16.msra.mxu0 %v3551
  %3800 = vmatprep.subr.bf16.mxu0 %v3556
  %3801 = vmatpush1.bf16.msra.mxu0 %v3555
  %3802 = vmatprep.subr.bf16.mxu0 %v3560
  %3803 = vmatpush1.bf16.msra.mxu0 %v3559
  %3804 = vmatprep.subr.bf16.mxu0 %v3564
  %3805 = vmatpush1.bf16.msra.mxu0 %v3563
  %3806 = vmatprep.subr.bf16.mxu0 %v3568
  %3807 = vmatpush1.bf16.msra.mxu0 %v3567
  %3808 = vmatprep.subr.bf16.mxu0 %v3572
  %3809 = vmatpush1.bf16.msra.mxu0 %v3571
  %3810 = vmatprep.subr.bf16.mxu0 %v3576
  %3811 = vmatpush1.bf16.msra.mxu0 %v3575
  %3812 = vmatprep.mubr.bf16.mxu0 %v788
  %3813 = vmatmul.mubr.bf16.gmra.mrb[0].mxu0 %v787
  %v3814 = vpop.f32.mrb[0].mxu0
  %v3815 = vadd.f32 %v3742, %v3814
  %v3816 = vpop.f32.mrb[0].mxu0
  %v3817 = vadd.f32 %v3744, %v3816
  %v3818 = vpop.f32.mrb[0].mxu0
  %v3819 = vadd.f32 %v3746, %v3818
  %v3820 = vpop.f32.mrb[0].mxu0
  %v3821 = vadd.f32 %v3748, %v3820
  %3822 = vmatprep.mubr.bf16.mxu0 %v792
  %3823 = vmatmul.mubr.bf16.gmra.mrb[0].mxu0 %v791
  %v3824 = vpop.f32.mrb[0].mxu0
  %v3825 = vadd.f32 %v3752, %v3824
  %v3826 = vpop.f32.mrb[0].mxu0
  %v3827 = vadd.f32 %v3754, %v3826
  %v3828 = vpop.f32.mrb[0].mxu0
  %v3829 = vadd.f32 %v3756, %v3828
  %v3830 = vpop.f32.mrb[0].mxu0
  %v3831 = vadd.f32 %v3758, %v3830
  %3832 = vmatprep.mubr.bf16.mxu0 %v796
  %3833 = vmatmul.mubr.bf16.gmra.mrb[0].mxu0 %v795
  %v3834 = vpop.f32.mrb[0].mxu0
  %v3835 = vadd.f32 %v3762, %v3834
  %v3836 = vpop.f32.mrb[0].mxu0
  %v3837 = vadd.f32 %v3764, %v3836
  %v3838 = vpop.f32.mrb[0].mxu0
  %v3839 = vadd.f32 %v3766, %v3838
  %v3840 = vpop.f32.mrb[0].mxu0
  %v3841 = vadd.f32 %v3768, %v3840
  %3842 = vmatprep.mubr.bf16.mxu0 %v800
  %3843 = vmatmul.mubr.bf16.gmra.mrb[0].mxu0 %v799
  %v3844 = vpop.f32.mrb[0].mxu0
  %v3845 = vadd.f32 %v3772, %v3844
  %v3846 = vpop.f32.mrb[0].mxu0
  %v3847 = vadd.f32 %v3774, %v3846
  %v3848 = vpop.f32.mrb[0].mxu0
  %v3849 = vadd.f32 %v3776, %v3848
  %v3850 = vpop.f32.mrb[0].mxu0
  %v3851 = vadd.f32 %v3778, %v3850
  %3852 = vdwg.mxu0
  %3853 = vmatprep.subr.bf16.mxu0 %v3454
  %3854 = vmatpush1.bf16.msra.mxu0 %v3453
  %3855 = vmatprep.subr.bf16.mxu0 %v3458
  %3856 = vmatpush1.bf16.msra.mxu0 %v3457
  %3857 = vmatprep.subr.bf16.mxu0 %v3462
  %3858 = vmatpush1.bf16.msra.mxu0 %v3461
  %3859 = vmatprep.subr.bf16.mxu0 %v3466
  %3860 = vmatpush1.bf16.msra.mxu0 %v3465
  %3861 = vmatprep.subr.bf16.mxu0 %v3470
  %3862 = vmatpush1.bf16.msra.mxu0 %v3469
  %3863 = vmatprep.subr.bf16.mxu0 %v3474
  %3864 = vmatpush1.bf16.msra.mxu0 %v3473
  %3865 = vmatprep.subr.bf16.mxu0 %v3478
  %3866 = vmatpush1.bf16.msra.mxu0 %v3477
  %3867 = vmatprep.subr.bf16.mxu0 %v3482
  %3868 = vmatpush1.bf16.msra.mxu0 %v3481
  %3869 = vmatprep.subr.bf16.mxu0 %v3486
  %3870 = vmatpush1.bf16.msra.mxu0 %v3485
  %3871 = vmatprep.subr.bf16.mxu0 %v3490
  %3872 = vmatpush1.bf16.msra.mxu0 %v3489
  %3873 = vmatprep.subr.bf16.mxu0 %v3494
  %3874 = vmatpush1.bf16.msra.mxu0 %v3493
  %3875 = vmatprep.subr.bf16.mxu0 %v3498
  %3876 = vmatpush1.bf16.msra.mxu0 %v3497
  %3877 = vmatprep.subr.bf16.mxu0 %v3502
  %3878 = vmatpush1.bf16.msra.mxu0 %v3501
  %3879 = vmatprep.subr.bf16.mxu0 %v3506
  %3880 = vmatpush1.bf16.msra.mxu0 %v3505
  %3881 = vmatprep.subr.bf16.mxu0 %v3510
  %3882 = vmatpush1.bf16.msra.mxu0 %v3509
  %3883 = vmatprep.subr.bf16.mxu0 %v3514
  %3884 = vmatpush1.bf16.msra.mxu0 %v3513
  %3885 = vmatprep.mubr.bf16.mxu0 %v786
  %3886 = vmatmul.mubr.bf16.gmra.mrb[0].mxu0 %v785
  %v3887 = vpop.f32.mrb[0].mxu0
  %v3888 = vadd.f32 0.0, %v3887
  %v3889 = vpop.f32.mrb[0].mxu0
  %v3890 = vadd.f32 0.0, %v3889
  %v3891 = vpop.f32.mrb[0].mxu0
  %v3892 = vadd.f32 0.0, %v3891
  %v3893 = vpop.f32.mrb[0].mxu0
  %v3894 = vadd.f32 0.0, %v3893
  %3895 = vmatprep.mubr.bf16.mxu0 %v790
  %3896 = vmatmul.mubr.bf16.gmra.mrb[0].mxu0 %v789
  %v3897 = vpop.f32.mrb[0].mxu0
  %v3898 = vadd.f32 0.0, %v3897
  %v3899 = vpop.f32.mrb[0].mxu0
  %v3900 = vadd.f32 0.0, %v3899
  %v3901 = vpop.f32.mrb[0].mxu0
  %v3902 = vadd.f32 0.0, %v3901
  %v3903 = vpop.f32.mrb[0].mxu0
  %v3904 = vadd.f32 0.0, %v3903
  %3905 = vmatprep.mubr.bf16.mxu0 %v794
  %3906 = vmatmul.mubr.bf16.gmra.mrb[0].mxu0 %v793
  %v3907 = vpop.f32.mrb[0].mxu0
  %v3908 = vadd.f32 0.0, %v3907
  %v3909 = vpop.f32.mrb[0].mxu0
  %v3910 = vadd.f32 0.0, %v3909
  %v3911 = vpop.f32.mrb[0].mxu0
  %v3912 = vadd.f32 0.0, %v3911
  %v3913 = vpop.f32.mrb[0].mxu0
  %v3914 = vadd.f32 0.0, %v3913
  %3915 = vmatprep.mubr.bf16.mxu0 %v798
  %3916 = vmatmul.mubr.bf16.gmra.mrb[0].mxu0 %v797
  %v3917 = vpop.f32.mrb[0].mxu0
  %v3918 = vadd.f32 0.0, %v3917
  %v3919 = vpop.f32.mrb[0].mxu0
  %v3920 = vadd.f32 0.0, %v3919
  %v3921 = vpop.f32.mrb[0].mxu0
  %v3922 = vadd.f32 0.0, %v3921
  %v3923 = vpop.f32.mrb[0].mxu0
  %v3924 = vadd.f32 0.0, %v3923
  %3925 = vdwg.mxu0
  %3926 = vmatprep.subr.bf16.mxu0 %v3518
  %3927 = vmatpush1.bf16.msra.mxu0 %v3517
  %3928 = vmatprep.subr.bf16.mxu0 %v3522
  %3929 = vmatpush1.bf16.msra.mxu0 %v3521
  %3930 = vmatprep.subr.bf16.mxu0 %v3526
  %3931 = vmatpush1.bf16.msra.mxu0 %v3525
  %3932 = vmatprep.subr.bf16.mxu0 %v3530
  %3933 = vmatpush1.bf16.msra.mxu0 %v3529
  %3934 = vmatprep.subr.bf16.mxu0 %v3534
  %3935 = vmatpush1.bf16.msra.mxu0 %v3533
  %3936 = vmatprep.subr.bf16.mxu0 %v3538
  %3937 = vmatpush1.bf16.msra.mxu0 %v3537
  %3938 = vmatprep.subr.bf16.mxu0 %v3542
  %3939 = vmatpush1.bf16.msra.mxu0 %v3541
  %3940 = vmatprep.subr.bf16.mxu0 %v3546
  %3941 = vmatpush1.bf16.msra.mxu0 %v3545
  %3942 = vmatprep.subr.bf16.mxu0 %v3550
  %3943 = vmatpush1.bf16.msra.mxu0 %v3549
  %3944 = vmatprep.subr.bf16.mxu0 %v3554
  %3945 = vmatpush1.bf16.msra.mxu0 %v3553
  %3946 = vmatprep.subr.bf16.mxu0 %v3558
  %3947 = vmatpush1.bf16.msra.mxu0 %v3557
  %3948 = vmatprep.subr.bf16.mxu0 %v3562
  %3949 = vmatpush1.bf16.msra.mxu0 %v3561
  %3950 = vmatprep.subr.bf16.mxu0 %v3566
  %3951 = vmatpush1.bf16.msra.mxu0 %v3565
  %3952 = vmatprep.subr.bf16.mxu0 %v3570
  %3953 = vmatpush1.bf16.msra.mxu0 %v3569
  %3954 = vmatprep.subr.bf16.mxu0 %v3574
  %3955 = vmatpush1.bf16.msra.mxu0 %v3573
  %3956 = vmatprep.subr.bf16.mxu0 %v3578
  %3957 = vmatpush1.bf16.msra.mxu0 %v3577
  %3958 = vmatprep.mubr.bf16.mxu0 %v788
  %3959 = vmatmul.mubr.bf16.gmra.mrb[0].mxu0 %v787
  %v3960 = vpop.f32.mrb[0].mxu0
  %v3961 = vadd.f32 %v3888, %v3960
  %v3962 = vpop.f32.mrb[0].mxu0
  %v3963 = vadd.f32 %v3890, %v3962
  %v3964 = vpop.f32.mrb[0].mxu0
  %v3965 = vadd.f32 %v3892, %v3964
  %v3966 = vpop.f32.mrb[0].mxu0
  %v3967 = vadd.f32 %v3894, %v3966
  %3968 = vmatprep.mubr.bf16.mxu0 %v792
  %3969 = vmatmul.mubr.bf16.gmra.mrb[0].mxu0 %v791
  %v3970 = vpop.f32.mrb[0].mxu0
  %v3971 = vadd.f32 %v3898, %v3970
  %v3972 = vpop.f32.mrb[0].mxu0
  %v3973 = vadd.f32 %v3900, %v3972
  %v3974 = vpop.f32.mrb[0].mxu0
  %v3975 = vadd.f32 %v3902, %v3974
  %v3976 = vpop.f32.mrb[0].mxu0
  %v3977 = vadd.f32 %v3904, %v3976
  %3978 = vmatprep.mubr.bf16.mxu0 %v796
  %3979 = vmatmul.mubr.bf16.gmra.mrb[0].mxu0 %v795
  %v3980 = vpop.f32.mrb[0].mxu0
  %v3981 = vadd.f32 %v3908, %v3980
  %v3982 = vpop.f32.mrb[0].mxu0
  %v3983 = vadd.f32 %v3910, %v3982
  %v3984 = vpop.f32.mrb[0].mxu0
  %v3985 = vadd.f32 %v3912, %v3984
  %v3986 = vpop.f32.mrb[0].mxu0
  %v3987 = vadd.f32 %v3914, %v3986
  %3988 = vmatprep.mubr.bf16.mxu0 %v800
  %3989 = vmatmul.mubr.bf16.gmra.mrb[0].mxu0 %v799
  %v3990 = vpop.f32.mrb[0].mxu0
  %v3991 = vadd.f32 %v3918, %v3990
  %v3992 = vpop.f32.mrb[0].mxu0
  %v3993 = vadd.f32 %v3920, %v3992
  %v3994 = vpop.f32.mrb[0].mxu0
  %v3995 = vadd.f32 %v3922, %v3994
  %v3996 = vpop.f32.mrb[0].mxu0
  %v3997 = vadd.f32 %v3924, %v3996
  %3998 = vdwg.mxu0
  %v3999 = vadd.f32 %v2754, %v3815
  %v4000 = vadd.f32 %v2756, %v3817
  %v4001 = vadd.f32 %v2900, %v3961
  %v4002 = vadd.f32 %v2902, %v3963
  %v4003 = vadd.f32 %v2758, %v3819
  %v4004 = vadd.f32 %v2760, %v3821
  %v4005 = vadd.f32 %v2904, %v3965
  %v4006 = vadd.f32 %v2906, %v3967
  %v4007 = vadd.f32 %v2764, %v3825
  %v4008 = vadd.f32 %v2766, %v3827
  %v4009 = vadd.f32 %v2910, %v3971
  %v4010 = vadd.f32 %v2912, %v3973
  %v4011 = vadd.f32 %v2768, %v3829
  %v4012 = vadd.f32 %v2770, %v3831
  %v4013 = vadd.f32 %v2914, %v3975
  %v4014 = vadd.f32 %v2916, %v3977
  %v4015 = vadd.f32 %v2774, %v3835
  %v4016 = vadd.f32 %v2776, %v3837
  %v4017 = vadd.f32 %v2920, %v3981
  %v4018 = vadd.f32 %v2922, %v3983
  %v4019 = vadd.f32 %v2778, %v3839
  %v4020 = vadd.f32 %v2780, %v3841
  %v4021 = vadd.f32 %v2924, %v3985
  %v4022 = vadd.f32 %v2926, %v3987
  %v4023 = vadd.f32 %v2784, %v3845
  %v4024 = vadd.f32 %v2786, %v3847
  %v4025 = vadd.f32 %v2930, %v3991
  %v4026 = vadd.f32 %v2932, %v3993
  %v4027 = vadd.f32 %v2788, %v3849
  %v4028 = vadd.f32 %v2790, %v3851
  %v4029 = vadd.f32 %v2934, %v3995
  %v4030 = vadd.f32 %v2936, %v3997
  %s4031 = scalar_lea.vmem %s2, 3072
  %v4032 = vld [vmem:[%s4031] sm:$0xff]
  %v4033 = vld [vmem:[%s4031 + $0x8] sm:$0xff]
  %v4034 = vld [vmem:[%s4031 + $0x10] sm:$0xff]
  %v4035 = vld [vmem:[%s4031 + $0x18] sm:$0xff]
  %v4036 = vld [vmem:[%s4031 + $0x20] sm:$0xff]
  %v4037 = vld [vmem:[%s4031 + $0x28] sm:$0xff]
  %v4038 = vld [vmem:[%s4031 + $0x30] sm:$0xff]
  %v4039 = vld [vmem:[%s4031 + $0x38] sm:$0xff]
  %v4040 = vld [vmem:[%s4031 + $0x40] sm:$0xff]
  %v4041 = vld [vmem:[%s4031 + $0x48] sm:$0xff]
  %v4042 = vld [vmem:[%s4031 + $0x50] sm:$0xff]
  %v4043 = vld [vmem:[%s4031 + $0x58] sm:$0xff]
  %v4044 = vld [vmem:[%s4031 + $0x60] sm:$0xff]
  %v4045 = vld [vmem:[%s4031 + $0x68] sm:$0xff]
  %v4046 = vld [vmem:[%s4031 + $0x70] sm:$0xff]
  %v4047 = vld [vmem:[%s4031 + $0x78] sm:$0xff]
  %v4048 = vld [vmem:[%s4031 + $0x80] sm:$0xff]
  %v4049 = vld [vmem:[%s4031 + $0x88] sm:$0xff]
  %v4050 = vld [vmem:[%s4031 + $0x90] sm:$0xff]
  %v4051 = vld [vmem:[%s4031 + $0x98] sm:$0xff]
  %v4052 = vld [vmem:[%s4031 + $0xa0] sm:$0xff]
  %v4053 = vld [vmem:[%s4031 + $0xa8] sm:$0xff]
  %v4054 = vld [vmem:[%s4031 + $0xb0] sm:$0xff]
  %v4055 = vld [vmem:[%s4031 + $0xb8] sm:$0xff]
  %v4056 = vld [vmem:[%s4031 + $0xc0] sm:$0xff]
  %v4057 = vld [vmem:[%s4031 + $0xc8] sm:$0xff]
  %v4058 = vld [vmem:[%s4031 + $0xd0] sm:$0xff]
  %v4059 = vld [vmem:[%s4031 + $0xd8] sm:$0xff]
  %v4060 = vld [vmem:[%s4031 + $0xe0] sm:$0xff]
  %v4061 = vld [vmem:[%s4031 + $0xe8] sm:$0xff]
  %v4062 = vld [vmem:[%s4031 + $0xf0] sm:$0xff]
  %v4063 = vld [vmem:[%s4031 + $0xf8] sm:$0xff]
  %v4064 = vld [vmem:[%s4031 + $0x100] sm:$0xff]
  %v4065 = vld [vmem:[%s4031 + $0x108] sm:$0xff]
  %v4066 = vld [vmem:[%s4031 + $0x110] sm:$0xff]
  %v4067 = vld [vmem:[%s4031 + $0x118] sm:$0xff]
  %v4068 = vld [vmem:[%s4031 + $0x120] sm:$0xff]
  %v4069 = vld [vmem:[%s4031 + $0x128] sm:$0xff]
  %v4070 = vld [vmem:[%s4031 + $0x130] sm:$0xff]
  %v4071 = vld [vmem:[%s4031 + $0x138] sm:$0xff]
  %v4072 = vld [vmem:[%s4031 + $0x140] sm:$0xff]
  %v4073 = vld [vmem:[%s4031 + $0x148] sm:$0xff]
  %v4074 = vld [vmem:[%s4031 + $0x150] sm:$0xff]
  %v4075 = vld [vmem:[%s4031 + $0x158] sm:$0xff]
  %v4076 = vld [vmem:[%s4031 + $0x160] sm:$0xff]
  %v4077 = vld [vmem:[%s4031 + $0x168] sm:$0xff]
  %v4078 = vld [vmem:[%s4031 + $0x170] sm:$0xff]
  %v4079 = vld [vmem:[%s4031 + $0x178] sm:$0xff]
  %v4080 = vld [vmem:[%s4031 + $0x180] sm:$0xff]
  %v4081 = vld [vmem:[%s4031 + $0x188] sm:$0xff]
  %v4082 = vld [vmem:[%s4031 + $0x190] sm:$0xff]
  %v4083 = vld [vmem:[%s4031 + $0x198] sm:$0xff]
  %v4084 = vld [vmem:[%s4031 + $0x1a0] sm:$0xff]
  %v4085 = vld [vmem:[%s4031 + $0x1a8] sm:$0xff]
  %v4086 = vld [vmem:[%s4031 + $0x1b0] sm:$0xff]
  %v4087 = vld [vmem:[%s4031 + $0x1b8] sm:$0xff]
  %v4088 = vld [vmem:[%s4031 + $0x1c0] sm:$0xff]
  %v4089 = vld [vmem:[%s4031 + $0x1c8] sm:$0xff]
  %v4090 = vld [vmem:[%s4031 + $0x1d0] sm:$0xff]
  %v4091 = vld [vmem:[%s4031 + $0x1d8] sm:$0xff]
  %v4092 = vld [vmem:[%s4031 + $0x1e0] sm:$0xff]
  %v4093 = vld [vmem:[%s4031 + $0x1e8] sm:$0xff]
  %v4094 = vld [vmem:[%s4031 + $0x1f0] sm:$0xff]
  %v4095 = vld [vmem:[%s4031 + $0x1f8] sm:$0xff]
  %v4096 = vld [vmem:[%s4031 + $0x200] sm:$0xff]
  %v4097 = vld [vmem:[%s4031 + $0x208] sm:$0xff]
  %v4098 = vld [vmem:[%s4031 + $0x210] sm:$0xff]
  %v4099 = vld [vmem:[%s4031 + $0x218] sm:$0xff]
  %v4100 = vld [vmem:[%s4031 + $0x220] sm:$0xff]
  %v4101 = vld [vmem:[%s4031 + $0x228] sm:$0xff]
  %v4102 = vld [vmem:[%s4031 + $0x230] sm:$0xff]
  %v4103 = vld [vmem:[%s4031 + $0x238] sm:$0xff]
  %v4104 = vld [vmem:[%s4031 + $0x240] sm:$0xff]
  %v4105 = vld [vmem:[%s4031 + $0x248] sm:$0xff]
  %v4106 = vld [vmem:[%s4031 + $0x250] sm:$0xff]
  %v4107 = vld [vmem:[%s4031 + $0x258] sm:$0xff]
  %v4108 = vld [vmem:[%s4031 + $0x260] sm:$0xff]
  %v4109 = vld [vmem:[%s4031 + $0x268] sm:$0xff]
  %v4110 = vld [vmem:[%s4031 + $0x270] sm:$0xff]
  %v4111 = vld [vmem:[%s4031 + $0x278] sm:$0xff]
  %v4112 = vld [vmem:[%s4031 + $0x280] sm:$0xff]
  %v4113 = vld [vmem:[%s4031 + $0x288] sm:$0xff]
  %v4114 = vld [vmem:[%s4031 + $0x290] sm:$0xff]
  %v4115 = vld [vmem:[%s4031 + $0x298] sm:$0xff]
  %v4116 = vld [vmem:[%s4031 + $0x2a0] sm:$0xff]
  %v4117 = vld [vmem:[%s4031 + $0x2a8] sm:$0xff]
  %v4118 = vld [vmem:[%s4031 + $0x2b0] sm:$0xff]
  %v4119 = vld [vmem:[%s4031 + $0x2b8] sm:$0xff]
  %v4120 = vld [vmem:[%s4031 + $0x2c0] sm:$0xff]
  %v4121 = vld [vmem:[%s4031 + $0x2c8] sm:$0xff]
  %v4122 = vld [vmem:[%s4031 + $0x2d0] sm:$0xff]
  %v4123 = vld [vmem:[%s4031 + $0x2d8] sm:$0xff]
  %v4124 = vld [vmem:[%s4031 + $0x2e0] sm:$0xff]
  %v4125 = vld [vmem:[%s4031 + $0x2e8] sm:$0xff]
  %v4126 = vld [vmem:[%s4031 + $0x2f0] sm:$0xff]
  %v4127 = vld [vmem:[%s4031 + $0x2f8] sm:$0xff]
  %v4128 = vld [vmem:[%s4031 + $0x300] sm:$0xff]
  %v4129 = vld [vmem:[%s4031 + $0x308] sm:$0xff]
  %v4130 = vld [vmem:[%s4031 + $0x310] sm:$0xff]
  %v4131 = vld [vmem:[%s4031 + $0x318] sm:$0xff]
  %v4132 = vld [vmem:[%s4031 + $0x320] sm:$0xff]
  %v4133 = vld [vmem:[%s4031 + $0x328] sm:$0xff]
  %v4134 = vld [vmem:[%s4031 + $0x330] sm:$0xff]
  %v4135 = vld [vmem:[%s4031 + $0x338] sm:$0xff]
  %v4136 = vld [vmem:[%s4031 + $0x340] sm:$0xff]
  %v4137 = vld [vmem:[%s4031 + $0x348] sm:$0xff]
  %v4138 = vld [vmem:[%s4031 + $0x350] sm:$0xff]
  %v4139 = vld [vmem:[%s4031 + $0x358] sm:$0xff]
  %v4140 = vld [vmem:[%s4031 + $0x360] sm:$0xff]
  %v4141 = vld [vmem:[%s4031 + $0x368] sm:$0xff]
  %v4142 = vld [vmem:[%s4031 + $0x370] sm:$0xff]
  %v4143 = vld [vmem:[%s4031 + $0x378] sm:$0xff]
  %v4144 = vld [vmem:[%s4031 + $0x380] sm:$0xff]
  %v4145 = vld [vmem:[%s4031 + $0x388] sm:$0xff]
  %v4146 = vld [vmem:[%s4031 + $0x390] sm:$0xff]
  %v4147 = vld [vmem:[%s4031 + $0x398] sm:$0xff]
  %v4148 = vld [vmem:[%s4031 + $0x3a0] sm:$0xff]
  %v4149 = vld [vmem:[%s4031 + $0x3a8] sm:$0xff]
  %v4150 = vld [vmem:[%s4031 + $0x3b0] sm:$0xff]
  %v4151 = vld [vmem:[%s4031 + $0x3b8] sm:$0xff]
  %v4152 = vld [vmem:[%s4031 + $0x3c0] sm:$0xff]
  %v4153 = vld [vmem:[%s4031 + $0x3c8] sm:$0xff]
  %v4154 = vld [vmem:[%s4031 + $0x3d0] sm:$0xff]
  %v4155 = vld [vmem:[%s4031 + $0x3d8] sm:$0xff]
  %v4156 = vld [vmem:[%s4031 + $0x3e0] sm:$0xff]
  %v4157 = vld [vmem:[%s4031 + $0x3e8] sm:$0xff]
  %v4158 = vld [vmem:[%s4031 + $0x3f0] sm:$0xff]
  %v4159 = vld [vmem:[%s4031 + $0x3f8] sm:$0xff]
  %v4288 = vunpack.c.l.b16 %v4032
  %v4289 = vunpack.c.h.b16 %v4032
  %v4290 = vunpack.c.l.b16 %v4033
  %v4291 = vunpack.c.h.b16 %v4033
  %v4292 = vunpack.c.l.b16 %v4034
  %v4293 = vunpack.c.h.b16 %v4034
  %v4294 = vunpack.c.l.b16 %v4035
  %v4295 = vunpack.c.h.b16 %v4035
  %v4296 = vunpack.c.l.b16 %v4036
  %v4297 = vunpack.c.h.b16 %v4036
  %v4298 = vunpack.c.l.b16 %v4037
  %v4299 = vunpack.c.h.b16 %v4037
  %v4300 = vunpack.c.l.b16 %v4038
  %v4301 = vunpack.c.h.b16 %v4038
  %v4302 = vunpack.c.l.b16 %v4039
  %v4303 = vunpack.c.h.b16 %v4039
  %v4304 = vunpack.c.l.b16 %v4040
  %v4305 = vunpack.c.h.b16 %v4040
  %v4306 = vunpack.c.l.b16 %v4041
  %v4307 = vunpack.c.h.b16 %v4041
  %v4308 = vunpack.c.l.b16 %v4042
  %v4309 = vunpack.c.h.b16 %v4042
  %v4310 = vunpack.c.l.b16 %v4043
  %v4311 = vunpack.c.h.b16 %v4043
  %v4312 = vunpack.c.l.b16 %v4044
  %v4313 = vunpack.c.h.b16 %v4044
  %v4314 = vunpack.c.l.b16 %v4045
  %v4315 = vunpack.c.h.b16 %v4045
  %v4316 = vunpack.c.l.b16 %v4046
  %v4317 = vunpack.c.h.b16 %v4046
  %v4318 = vunpack.c.l.b16 %v4047
  %v4319 = vunpack.c.h.b16 %v4047
  %v4320 = vunpack.c.l.b16 %v4048
  %v4321 = vunpack.c.h.b16 %v4048
  %v4322 = vunpack.c.l.b16 %v4049
  %v4323 = vunpack.c.h.b16 %v4049
  %v4324 = vunpack.c.l.b16 %v4050
  %v4325 = vunpack.c.h.b16 %v4050
  %v4326 = vunpack.c.l.b16 %v4051
  %v4327 = vunpack.c.h.b16 %v4051
  %v4328 = vunpack.c.l.b16 %v4052
  %v4329 = vunpack.c.h.b16 %v4052
  %v4330 = vunpack.c.l.b16 %v4053
  %v4331 = vunpack.c.h.b16 %v4053
  %v4332 = vunpack.c.l.b16 %v4054
  %v4333 = vunpack.c.h.b16 %v4054
  %v4334 = vunpack.c.l.b16 %v4055
  %v4335 = vunpack.c.h.b16 %v4055
  %v4336 = vunpack.c.l.b16 %v4056
  %v4337 = vunpack.c.h.b16 %v4056
  %v4338 = vunpack.c.l.b16 %v4057
  %v4339 = vunpack.c.h.b16 %v4057
  %v4340 = vunpack.c.l.b16 %v4058
  %v4341 = vunpack.c.h.b16 %v4058
  %v4342 = vunpack.c.l.b16 %v4059
  %v4343 = vunpack.c.h.b16 %v4059
  %v4344 = vunpack.c.l.b16 %v4060
  %v4345 = vunpack.c.h.b16 %v4060
  %v4346 = vunpack.c.l.b16 %v4061
  %v4347 = vunpack.c.h.b16 %v4061
  %v4348 = vunpack.c.l.b16 %v4062
  %v4349 = vunpack.c.h.b16 %v4062
  %v4350 = vunpack.c.l.b16 %v4063
  %v4351 = vunpack.c.h.b16 %v4063
  %v4352 = vunpack.c.l.b16 %v4064
  %v4353 = vunpack.c.h.b16 %v4064
  %v4354 = vunpack.c.l.b16 %v4065
  %v4355 = vunpack.c.h.b16 %v4065
  %v4356 = vunpack.c.l.b16 %v4066
  %v4357 = vunpack.c.h.b16 %v4066
  %v4358 = vunpack.c.l.b16 %v4067
  %v4359 = vunpack.c.h.b16 %v4067
  %v4360 = vunpack.c.l.b16 %v4068
  %v4361 = vunpack.c.h.b16 %v4068
  %v4362 = vunpack.c.l.b16 %v4069
  %v4363 = vunpack.c.h.b16 %v4069
  %v4364 = vunpack.c.l.b16 %v4070
  %v4365 = vunpack.c.h.b16 %v4070
  %v4366 = vunpack.c.l.b16 %v4071
  %v4367 = vunpack.c.h.b16 %v4071
  %v4368 = vunpack.c.l.b16 %v4072
  %v4369 = vunpack.c.h.b16 %v4072
  %v4370 = vunpack.c.l.b16 %v4073
  %v4371 = vunpack.c.h.b16 %v4073
  %v4372 = vunpack.c.l.b16 %v4074
  %v4373 = vunpack.c.h.b16 %v4074
  %v4374 = vunpack.c.l.b16 %v4075
  %v4375 = vunpack.c.h.b16 %v4075
  %v4376 = vunpack.c.l.b16 %v4076
  %v4377 = vunpack.c.h.b16 %v4076
  %v4378 = vunpack.c.l.b16 %v4077
  %v4379 = vunpack.c.h.b16 %v4077
  %v4380 = vunpack.c.l.b16 %v4078
  %v4381 = vunpack.c.h.b16 %v4078
  %v4382 = vunpack.c.l.b16 %v4079
  %v4383 = vunpack.c.h.b16 %v4079
  %v4384 = vunpack.c.l.b16 %v4080
  %v4385 = vunpack.c.h.b16 %v4080
  %v4386 = vunpack.c.l.b16 %v4081
  %v4387 = vunpack.c.h.b16 %v4081
  %v4388 = vunpack.c.l.b16 %v4082
  %v4389 = vunpack.c.h.b16 %v4082
  %v4390 = vunpack.c.l.b16 %v4083
  %v4391 = vunpack.c.h.b16 %v4083
  %v4392 = vunpack.c.l.b16 %v4084
  %v4393 = vunpack.c.h.b16 %v4084
  %v4394 = vunpack.c.l.b16 %v4085
  %v4395 = vunpack.c.h.b16 %v4085
  %v4396 = vunpack.c.l.b16 %v4086
  %v4397 = vunpack.c.h.b16 %v4086
  %v4398 = vunpack.c.l.b16 %v4087
  %v4399 = vunpack.c.h.b16 %v4087
  %v4400 = vunpack.c.l.b16 %v4088
  %v4401 = vunpack.c.h.b16 %v4088
  %v4402 = vunpack.c.l.b16 %v4089
  %v4403 = vunpack.c.h.b16 %v4089
  %v4404 = vunpack.c.l.b16 %v4090
  %v4405 = vunpack.c.h.b16 %v4090
  %v4406 = vunpack.c.l.b16 %v4091
  %v4407 = vunpack.c.h.b16 %v4091
  %v4408 = vunpack.c.l.b16 %v4092
  %v4409 = vunpack.c.h.b16 %v4092
  %v4410 = vunpack.c.l.b16 %v4093
  %v4411 = vunpack.c.h.b16 %v4093
  %v4412 = vunpack.c.l.b16 %v4094
  %v4413 = vunpack.c.h.b16 %v4094
  %v4414 = vunpack.c.l.b16 %v4095
  %v4415 = vunpack.c.h.b16 %v4095
  %v4416 = vunpack.c.l.b16 %v4096
  %v4417 = vunpack.c.h.b16 %v4096
  %v4418 = vunpack.c.l.b16 %v4097
  %v4419 = vunpack.c.h.b16 %v4097
  %v4420 = vunpack.c.l.b16 %v4098
  %v4421 = vunpack.c.h.b16 %v4098
  %v4422 = vunpack.c.l.b16 %v4099
  %v4423 = vunpack.c.h.b16 %v4099
  %v4424 = vunpack.c.l.b16 %v4100
  %v4425 = vunpack.c.h.b16 %v4100
  %v4426 = vunpack.c.l.b16 %v4101
  %v4427 = vunpack.c.h.b16 %v4101
  %v4428 = vunpack.c.l.b16 %v4102
  %v4429 = vunpack.c.h.b16 %v4102
  %v4430 = vunpack.c.l.b16 %v4103
  %v4431 = vunpack.c.h.b16 %v4103
  %v4432 = vunpack.c.l.b16 %v4104
  %v4433 = vunpack.c.h.b16 %v4104
  %v4434 = vunpack.c.l.b16 %v4105
  %v4435 = vunpack.c.h.b16 %v4105
  %v4436 = vunpack.c.l.b16 %v4106
  %v4437 = vunpack.c.h.b16 %v4106
  %v4438 = vunpack.c.l.b16 %v4107
  %v4439 = vunpack.c.h.b16 %v4107
  %v4440 = vunpack.c.l.b16 %v4108
  %v4441 = vunpack.c.h.b16 %v4108
  %v4442 = vunpack.c.l.b16 %v4109
  %v4443 = vunpack.c.h.b16 %v4109
  %v4444 = vunpack.c.l.b16 %v4110
  %v4445 = vunpack.c.h.b16 %v4110
  %v4446 = vunpack.c.l.b16 %v4111
  %v4447 = vunpack.c.h.b16 %v4111
  %v4448 = vunpack.c.l.b16 %v4112
  %v4449 = vunpack.c.h.b16 %v4112
  %v4450 = vunpack.c.l.b16 %v4113
  %v4451 = vunpack.c.h.b16 %v4113
  %v4452 = vunpack.c.l.b16 %v4114
  %v4453 = vunpack.c.h.b16 %v4114
  %v4454 = vunpack.c.l.b16 %v4115
  %v4455 = vunpack.c.h.b16 %v4115
  %v4456 = vunpack.c.l.b16 %v4116
  %v4457 = vunpack.c.h.b16 %v4116
  %v4458 = vunpack.c.l.b16 %v4117
  %v4459 = vunpack.c.h.b16 %v4117
  %v4460 = vunpack.c.l.b16 %v4118
  %v4461 = vunpack.c.h.b16 %v4118
  %v4462 = vunpack.c.l.b16 %v4119
  %v4463 = vunpack.c.h.b16 %v4119
  %v4464 = vunpack.c.l.b16 %v4120
  %v4465 = vunpack.c.h.b16 %v4120
  %v4466 = vunpack.c.l.b16 %v4121
  %v4467 = vunpack.c.h.b16 %v4121
  %v4468 = vunpack.c.l.b16 %v4122
  %v4469 = vunpack.c.h.b16 %v4122
  %v4470 = vunpack.c.l.b16 %v4123
  %v4471 = vunpack.c.h.b16 %v4123
  %v4472 = vunpack.c.l.b16 %v4124
  %v4473 = vunpack.c.h.b16 %v4124
  %v4474 = vunpack.c.l.b16 %v4125
  %v4475 = vunpack.c.h.b16 %v4125
  %v4476 = vunpack.c.l.b16 %v4126
  %v4477 = vunpack.c.h.b16 %v4126
  %v4478 = vunpack.c.l.b16 %v4127
  %v4479 = vunpack.c.h.b16 %v4127
  %v4480 = vunpack.c.l.b16 %v4128
  %v4481 = vunpack.c.h.b16 %v4128
  %v4482 = vunpack.c.l.b16 %v4129
  %v4483 = vunpack.c.h.b16 %v4129
  %v4484 = vunpack.c.l.b16 %v4130
  %v4485 = vunpack.c.h.b16 %v4130
  %v4486 = vunpack.c.l.b16 %v4131
  %v4487 = vunpack.c.h.b16 %v4131
  %v4488 = vunpack.c.l.b16 %v4132
  %v4489 = vunpack.c.h.b16 %v4132
  %v4490 = vunpack.c.l.b16 %v4133
  %v4491 = vunpack.c.h.b16 %v4133
  %v4492 = vunpack.c.l.b16 %v4134
  %v4493 = vunpack.c.h.b16 %v4134
  %v4494 = vunpack.c.l.b16 %v4135
  %v4495 = vunpack.c.h.b16 %v4135
  %v4496 = vunpack.c.l.b16 %v4136
  %v4497 = vunpack.c.h.b16 %v4136
  %v4498 = vunpack.c.l.b16 %v4137
  %v4499 = vunpack.c.h.b16 %v4137
  %v4500 = vunpack.c.l.b16 %v4138
  %v4501 = vunpack.c.h.b16 %v4138
  %v4502 = vunpack.c.l.b16 %v4139
  %v4503 = vunpack.c.h.b16 %v4139
  %v4504 = vunpack.c.l.b16 %v4140
  %v4505 = vunpack.c.h.b16 %v4140
  %v4506 = vunpack.c.l.b16 %v4141
  %v4507 = vunpack.c.h.b16 %v4141
  %v4508 = vunpack.c.l.b16 %v4142
  %v4509 = vunpack.c.h.b16 %v4142
  %v4510 = vunpack.c.l.b16 %v4143
  %v4511 = vunpack.c.h.b16 %v4143
  %v4512 = vunpack.c.l.b16 %v4144
  %v4513 = vunpack.c.h.b16 %v4144
  %v4514 = vunpack.c.l.b16 %v4145
  %v4515 = vunpack.c.h.b16 %v4145
  %v4516 = vunpack.c.l.b16 %v4146
  %v4517 = vunpack.c.h.b16 %v4146
  %v4518 = vunpack.c.l.b16 %v4147
  %v4519 = vunpack.c.h.b16 %v4147
  %v4520 = vunpack.c.l.b16 %v4148
  %v4521 = vunpack.c.h.b16 %v4148
  %v4522 = vunpack.c.l.b16 %v4149
  %v4523 = vunpack.c.h.b16 %v4149
  %v4524 = vunpack.c.l.b16 %v4150
  %v4525 = vunpack.c.h.b16 %v4150
  %v4526 = vunpack.c.l.b16 %v4151
  %v4527 = vunpack.c.h.b16 %v4151
  %v4528 = vunpack.c.l.b16 %v4152
  %v4529 = vunpack.c.h.b16 %v4152
  %v4530 = vunpack.c.l.b16 %v4153
  %v4531 = vunpack.c.h.b16 %v4153
  %v4532 = vunpack.c.l.b16 %v4154
  %v4533 = vunpack.c.h.b16 %v4154
  %v4534 = vunpack.c.l.b16 %v4155
  %v4535 = vunpack.c.h.b16 %v4155
  %v4536 = vunpack.c.l.b16 %v4156
  %v4537 = vunpack.c.h.b16 %v4156
  %v4538 = vunpack.c.l.b16 %v4157
  %v4539 = vunpack.c.h.b16 %v4157
  %v4540 = vunpack.c.l.b16 %v4158
  %v4541 = vunpack.c.h.b16 %v4158
  %v4542 = vunpack.c.l.b16 %v4159
  %v4543 = vunpack.c.h.b16 %v4159
  %v4544 = vpack.c.b16 %v4292, %v4288
  %v4545 = vpack.c.b16 %v4293, %v4289
  %v4546 = vpack.c.b16 %v4294, %v4290
  %v4547 = vpack.c.b16 %v4295, %v4291
  %v4548 = vpack.c.b16 %v4300, %v4296
  %v4549 = vpack.c.b16 %v4301, %v4297
  %v4550 = vpack.c.b16 %v4302, %v4298
  %v4551 = vpack.c.b16 %v4303, %v4299
  %v4552 = vpack.c.b16 %v4308, %v4304
  %v4553 = vpack.c.b16 %v4309, %v4305
  %v4554 = vpack.c.b16 %v4310, %v4306
  %v4555 = vpack.c.b16 %v4311, %v4307
  %v4556 = vpack.c.b16 %v4316, %v4312
  %v4557 = vpack.c.b16 %v4317, %v4313
  %v4558 = vpack.c.b16 %v4318, %v4314
  %v4559 = vpack.c.b16 %v4319, %v4315
  %v4560 = vpack.c.b16 %v4324, %v4320
  %v4561 = vpack.c.b16 %v4325, %v4321
  %v4562 = vpack.c.b16 %v4326, %v4322
  %v4563 = vpack.c.b16 %v4327, %v4323
  %v4564 = vpack.c.b16 %v4332, %v4328
  %v4565 = vpack.c.b16 %v4333, %v4329
  %v4566 = vpack.c.b16 %v4334, %v4330
  %v4567 = vpack.c.b16 %v4335, %v4331
  %v4568 = vpack.c.b16 %v4340, %v4336
  %v4569 = vpack.c.b16 %v4341, %v4337
  %v4570 = vpack.c.b16 %v4342, %v4338
  %v4571 = vpack.c.b16 %v4343, %v4339
  %v4572 = vpack.c.b16 %v4348, %v4344
  %v4573 = vpack.c.b16 %v4349, %v4345
  %v4574 = vpack.c.b16 %v4350, %v4346
  %v4575 = vpack.c.b16 %v4351, %v4347
  %v4576 = vpack.c.b16 %v4356, %v4352
  %v4577 = vpack.c.b16 %v4357, %v4353
  %v4578 = vpack.c.b16 %v4358, %v4354
  %v4579 = vpack.c.b16 %v4359, %v4355
  %v4580 = vpack.c.b16 %v4364, %v4360
  %v4581 = vpack.c.b16 %v4365, %v4361
  %v4582 = vpack.c.b16 %v4366, %v4362
  %v4583 = vpack.c.b16 %v4367, %v4363
  %v4584 = vpack.c.b16 %v4372, %v4368
  %v4585 = vpack.c.b16 %v4373, %v4369
  %v4586 = vpack.c.b16 %v4374, %v4370
  %v4587 = vpack.c.b16 %v4375, %v4371
  %v4588 = vpack.c.b16 %v4380, %v4376
  %v4589 = vpack.c.b16 %v4381, %v4377
  %v4590 = vpack.c.b16 %v4382, %v4378
  %v4591 = vpack.c.b16 %v4383, %v4379
  %v4592 = vpack.c.b16 %v4388, %v4384
  %v4593 = vpack.c.b16 %v4389, %v4385
  %v4594 = vpack.c.b16 %v4390, %v4386
  %v4595 = vpack.c.b16 %v4391, %v4387
  %v4596 = vpack.c.b16 %v4396, %v4392
  %v4597 = vpack.c.b16 %v4397, %v4393
  %v4598 = vpack.c.b16 %v4398, %v4394
  %v4599 = vpack.c.b16 %v4399, %v4395
  %v4600 = vpack.c.b16 %v4404, %v4400
  %v4601 = vpack.c.b16 %v4405, %v4401
  %v4602 = vpack.c.b16 %v4406, %v4402
  %v4603 = vpack.c.b16 %v4407, %v4403
  %v4604 = vpack.c.b16 %v4412, %v4408
  %v4605 = vpack.c.b16 %v4413, %v4409
  %v4606 = vpack.c.b16 %v4414, %v4410
  %v4607 = vpack.c.b16 %v4415, %v4411
  %v4608 = vpack.c.b16 %v4420, %v4416
  %v4609 = vpack.c.b16 %v4421, %v4417
  %v4610 = vpack.c.b16 %v4422, %v4418
  %v4611 = vpack.c.b16 %v4423, %v4419
  %v4612 = vpack.c.b16 %v4428, %v4424
  %v4613 = vpack.c.b16 %v4429, %v4425
  %v4614 = vpack.c.b16 %v4430, %v4426
  %v4615 = vpack.c.b16 %v4431, %v4427
  %v4616 = vpack.c.b16 %v4436, %v4432
  %v4617 = vpack.c.b16 %v4437, %v4433
  %v4618 = vpack.c.b16 %v4438, %v4434
  %v4619 = vpack.c.b16 %v4439, %v4435
  %v4620 = vpack.c.b16 %v4444, %v4440
  %v4621 = vpack.c.b16 %v4445, %v4441
  %v4622 = vpack.c.b16 %v4446, %v4442
  %v4623 = vpack.c.b16 %v4447, %v4443
  %v4624 = vpack.c.b16 %v4452, %v4448
  %v4625 = vpack.c.b16 %v4453, %v4449
  %v4626 = vpack.c.b16 %v4454, %v4450
  %v4627 = vpack.c.b16 %v4455, %v4451
  %v4628 = vpack.c.b16 %v4460, %v4456
  %v4629 = vpack.c.b16 %v4461, %v4457
  %v4630 = vpack.c.b16 %v4462, %v4458
  %v4631 = vpack.c.b16 %v4463, %v4459
  %v4632 = vpack.c.b16 %v4468, %v4464
  %v4633 = vpack.c.b16 %v4469, %v4465
  %v4634 = vpack.c.b16 %v4470, %v4466
  %v4635 = vpack.c.b16 %v4471, %v4467
  %v4636 = vpack.c.b16 %v4476, %v4472
  %v4637 = vpack.c.b16 %v4477, %v4473
  %v4638 = vpack.c.b16 %v4478, %v4474
  %v4639 = vpack.c.b16 %v4479, %v4475
  %v4640 = vpack.c.b16 %v4484, %v4480
  %v4641 = vpack.c.b16 %v4485, %v4481
  %v4642 = vpack.c.b16 %v4486, %v4482
  %v4643 = vpack.c.b16 %v4487, %v4483
  %v4644 = vpack.c.b16 %v4492, %v4488
  %v4645 = vpack.c.b16 %v4493, %v4489
  %v4646 = vpack.c.b16 %v4494, %v4490
  %v4647 = vpack.c.b16 %v4495, %v4491
  %v4648 = vpack.c.b16 %v4500, %v4496
  %v4649 = vpack.c.b16 %v4501, %v4497
  %v4650 = vpack.c.b16 %v4502, %v4498
  %v4651 = vpack.c.b16 %v4503, %v4499
  %v4652 = vpack.c.b16 %v4508, %v4504
  %v4653 = vpack.c.b16 %v4509, %v4505
  %v4654 = vpack.c.b16 %v4510, %v4506
  %v4655 = vpack.c.b16 %v4511, %v4507
  %v4656 = vpack.c.b16 %v4516, %v4512
  %v4657 = vpack.c.b16 %v4517, %v4513
  %v4658 = vpack.c.b16 %v4518, %v4514
  %v4659 = vpack.c.b16 %v4519, %v4515
  %v4660 = vpack.c.b16 %v4524, %v4520
  %v4661 = vpack.c.b16 %v4525, %v4521
  %v4662 = vpack.c.b16 %v4526, %v4522
  %v4663 = vpack.c.b16 %v4527, %v4523
  %v4664 = vpack.c.b16 %v4532, %v4528
  %v4665 = vpack.c.b16 %v4533, %v4529
  %v4666 = vpack.c.b16 %v4534, %v4530
  %v4667 = vpack.c.b16 %v4535, %v4531
  %v4668 = vpack.c.b16 %v4540, %v4536
  %v4669 = vpack.c.b16 %v4541, %v4537
  %v4670 = vpack.c.b16 %v4542, %v4538
  %v4671 = vpack.c.b16 %v4543, %v4539
  %4800 = vmatprep.subr.bf16.mxu0 %v4545
  %4801 = vmatpush1.bf16.msra.mxu0 %v4544
  %4802 = vmatprep.subr.bf16.mxu0 %v4549
  %4803 = vmatpush1.bf16.msra.mxu0 %v4548
  %4804 = vmatprep.subr.bf16.mxu0 %v4553
  %4805 = vmatpush1.bf16.msra.mxu0 %v4552
  %4806 = vmatprep.subr.bf16.mxu0 %v4557
  %4807 = vmatpush1.bf16.msra.mxu0 %v4556
  %4808 = vmatprep.subr.bf16.mxu0 %v4561
  %4809 = vmatpush1.bf16.msra.mxu0 %v4560
  %4810 = vmatprep.subr.bf16.mxu0 %v4565
  %4811 = vmatpush1.bf16.msra.mxu0 %v4564
  %4812 = vmatprep.subr.bf16.mxu0 %v4569
  %4813 = vmatpush1.bf16.msra.mxu0 %v4568
  %4814 = vmatprep.subr.bf16.mxu0 %v4573
  %4815 = vmatpush1.bf16.msra.mxu0 %v4572
  %4816 = vmatprep.subr.bf16.mxu0 %v4577
  %4817 = vmatpush1.bf16.msra.mxu0 %v4576
  %4818 = vmatprep.subr.bf16.mxu0 %v4581
  %4819 = vmatpush1.bf16.msra.mxu0 %v4580
  %4820 = vmatprep.subr.bf16.mxu0 %v4585
  %4821 = vmatpush1.bf16.msra.mxu0 %v4584
  %4822 = vmatprep.subr.bf16.mxu0 %v4589
  %4823 = vmatpush1.bf16.msra.mxu0 %v4588
  %4824 = vmatprep.subr.bf16.mxu0 %v4593
  %4825 = vmatpush1.bf16.msra.mxu0 %v4592
  %4826 = vmatprep.subr.bf16.mxu0 %v4597
  %4827 = vmatpush1.bf16.msra.mxu0 %v4596
  %4828 = vmatprep.subr.bf16.mxu0 %v4601
  %4829 = vmatpush1.bf16.msra.mxu0 %v4600
  %4830 = vmatprep.subr.bf16.mxu0 %v4605
  %4831 = vmatpush1.bf16.msra.mxu0 %v4604
  %4832 = vmatprep.mubr.bf16.mxu0 %v794
  %4833 = vmatmul.mubr.bf16.gmra.mrb[0].mxu0 %v793
  %v4834 = vpop.f32.mrb[0].mxu0
  %v4835 = vadd.f32 0.0, %v4834
  %v4836 = vpop.f32.mrb[0].mxu0
  %v4837 = vadd.f32 0.0, %v4836
  %v4838 = vpop.f32.mrb[0].mxu0
  %v4839 = vadd.f32 0.0, %v4838
  %v4840 = vpop.f32.mrb[0].mxu0
  %v4841 = vadd.f32 0.0, %v4840
  %4842 = vmatprep.mubr.bf16.mxu0 %v798
  %4843 = vmatmul.mubr.bf16.gmra.mrb[0].mxu0 %v797
  %v4844 = vpop.f32.mrb[0].mxu0
  %v4845 = vadd.f32 0.0, %v4844
  %v4846 = vpop.f32.mrb[0].mxu0
  %v4847 = vadd.f32 0.0, %v4846
  %v4848 = vpop.f32.mrb[0].mxu0
  %v4849 = vadd.f32 0.0, %v4848
  %v4850 = vpop.f32.mrb[0].mxu0
  %v4851 = vadd.f32 0.0, %v4850
  %4852 = vmatprep.mubr.bf16.mxu0 %v802
  %4853 = vmatmul.mubr.bf16.gmra.mrb[0].mxu0 %v801
  %v4854 = vpop.f32.mrb[0].mxu0
  %v4855 = vadd.f32 0.0, %v4854
  %v4856 = vpop.f32.mrb[0].mxu0
  %v4857 = vadd.f32 0.0, %v4856
  %v4858 = vpop.f32.mrb[0].mxu0
  %v4859 = vadd.f32 0.0, %v4858
  %v4860 = vpop.f32.mrb[0].mxu0
  %v4861 = vadd.f32 0.0, %v4860
  %4862 = vmatprep.mubr.bf16.mxu0 %v806
  %4863 = vmatmul.mubr.bf16.gmra.mrb[0].mxu0 %v805
  %v4864 = vpop.f32.mrb[0].mxu0
  %v4865 = vadd.f32 0.0, %v4864
  %v4866 = vpop.f32.mrb[0].mxu0
  %v4867 = vadd.f32 0.0, %v4866
  %v4868 = vpop.f32.mrb[0].mxu0
  %v4869 = vadd.f32 0.0, %v4868
  %v4870 = vpop.f32.mrb[0].mxu0
  %v4871 = vadd.f32 0.0, %v4870
  %4872 = vdwg.mxu0
  %4873 = vmatprep.subr.bf16.mxu0 %v4609
  %4874 = vmatpush1.bf16.msra.mxu0 %v4608
  %4875 = vmatprep.subr.bf16.mxu0 %v4613
  %4876 = vmatpush1.bf16.msra.mxu0 %v4612
  %4877 = vmatprep.subr.bf16.mxu0 %v4617
  %4878 = vmatpush1.bf16.msra.mxu0 %v4616
  %4879 = vmatprep.subr.bf16.mxu0 %v4621
  %4880 = vmatpush1.bf16.msra.mxu0 %v4620
  %4881 = vmatprep.subr.bf16.mxu0 %v4625
  %4882 = vmatpush1.bf16.msra.mxu0 %v4624
  %4883 = vmatprep.subr.bf16.mxu0 %v4629
  %4884 = vmatpush1.bf16.msra.mxu0 %v4628
  %4885 = vmatprep.subr.bf16.mxu0 %v4633
  %4886 = vmatpush1.bf16.msra.mxu0 %v4632
  %4887 = vmatprep.subr.bf16.mxu0 %v4637
  %4888 = vmatpush1.bf16.msra.mxu0 %v4636
  %4889 = vmatprep.subr.bf16.mxu0 %v4641
  %4890 = vmatpush1.bf16.msra.mxu0 %v4640
  %4891 = vmatprep.subr.bf16.mxu0 %v4645
  %4892 = vmatpush1.bf16.msra.mxu0 %v4644
  %4893 = vmatprep.subr.bf16.mxu0 %v4649
  %4894 = vmatpush1.bf16.msra.mxu0 %v4648
  %4895 = vmatprep.subr.bf16.mxu0 %v4653
  %4896 = vmatpush1.bf16.msra.mxu0 %v4652
  %4897 = vmatprep.subr.bf16.mxu0 %v4657
  %4898 = vmatpush1.bf16.msra.mxu0 %v4656
  %4899 = vmatprep.subr.bf16.mxu0 %v4661
  %4900 = vmatpush1.bf16.msra.mxu0 %v4660
  %4901 = vmatprep.subr.bf16.mxu0 %v4665
  %4902 = vmatpush1.bf16.msra.mxu0 %v4664
  %4903 = vmatprep.subr.bf16.mxu0 %v4669
  %4904 = vmatpush1.bf16.msra.mxu0 %v4668
  %4905 = vmatprep.mubr.bf16.mxu0 %v796
  %4906 = vmatmul.mubr.bf16.gmra.mrb[0].mxu0 %v795
  %v4907 = vpop.f32.mrb[0].mxu0
  %v4908 = vadd.f32 %v4835, %v4907
  %v4909 = vpop.f32.mrb[0].mxu0
  %v4910 = vadd.f32 %v4837, %v4909
  %v4911 = vpop.f32.mrb[0].mxu0
  %v4912 = vadd.f32 %v4839, %v4911
  %v4913 = vpop.f32.mrb[0].mxu0
  %v4914 = vadd.f32 %v4841, %v4913
  %4915 = vmatprep.mubr.bf16.mxu0 %v800
  %4916 = vmatmul.mubr.bf16.gmra.mrb[0].mxu0 %v799
  %v4917 = vpop.f32.mrb[0].mxu0
  %v4918 = vadd.f32 %v4845, %v4917
  %v4919 = vpop.f32.mrb[0].mxu0
  %v4920 = vadd.f32 %v4847, %v4919
  %v4921 = vpop.f32.mrb[0].mxu0
  %v4922 = vadd.f32 %v4849, %v4921
  %v4923 = vpop.f32.mrb[0].mxu0
  %v4924 = vadd.f32 %v4851, %v4923
  %4925 = vmatprep.mubr.bf16.mxu0 %v804
  %4926 = vmatmul.mubr.bf16.gmra.mrb[0].mxu0 %v803
  %v4927 = vpop.f32.mrb[0].mxu0
  %v4928 = vadd.f32 %v4855, %v4927
  %v4929 = vpop.f32.mrb[0].mxu0
  %v4930 = vadd.f32 %v4857, %v4929
  %v4931 = vpop.f32.mrb[0].mxu0
  %v4932 = vadd.f32 %v4859, %v4931
  %v4933 = vpop.f32.mrb[0].mxu0
  %v4934 = vadd.f32 %v4861, %v4933
  %4935 = vmatprep.mubr.bf16.mxu0 %v808
  %4936 = vmatmul.mubr.bf16.gmra.mrb[0].mxu0 %v807
  %v4937 = vpop.f32.mrb[0].mxu0
  %v4938 = vadd.f32 %v4865, %v4937
  %v4939 = vpop.f32.mrb[0].mxu0
  %v4940 = vadd.f32 %v4867, %v4939
  %v4941 = vpop.f32.mrb[0].mxu0
  %v4942 = vadd.f32 %v4869, %v4941
  %v4943 = vpop.f32.mrb[0].mxu0
  %v4944 = vadd.f32 %v4871, %v4943
  %4945 = vdwg.mxu0
  %4946 = vmatprep.subr.bf16.mxu0 %v4547
  %4947 = vmatpush1.bf16.msra.mxu0 %v4546
  %4948 = vmatprep.subr.bf16.mxu0 %v4551
  %4949 = vmatpush1.bf16.msra.mxu0 %v4550
  %4950 = vmatprep.subr.bf16.mxu0 %v4555
  %4951 = vmatpush1.bf16.msra.mxu0 %v4554
  %4952 = vmatprep.subr.bf16.mxu0 %v4559
  %4953 = vmatpush1.bf16.msra.mxu0 %v4558
  %4954 = vmatprep.subr.bf16.mxu0 %v4563
  %4955 = vmatpush1.bf16.msra.mxu0 %v4562
  %4956 = vmatprep.subr.bf16.mxu0 %v4567
  %4957 = vmatpush1.bf16.msra.mxu0 %v4566
  %4958 = vmatprep.subr.bf16.mxu0 %v4571
  %4959 = vmatpush1.bf16.msra.mxu0 %v4570
  %4960 = vmatprep.subr.bf16.mxu0 %v4575
  %4961 = vmatpush1.bf16.msra.mxu0 %v4574
  %4962 = vmatprep.subr.bf16.mxu0 %v4579
  %4963 = vmatpush1.bf16.msra.mxu0 %v4578
  %4964 = vmatprep.subr.bf16.mxu0 %v4583
  %4965 = vmatpush1.bf16.msra.mxu0 %v4582
  %4966 = vmatprep.subr.bf16.mxu0 %v4587
  %4967 = vmatpush1.bf16.msra.mxu0 %v4586
  %4968 = vmatprep.subr.bf16.mxu0 %v4591
  %4969 = vmatpush1.bf16.msra.mxu0 %v4590
  %4970 = vmatprep.subr.bf16.mxu0 %v4595
  %4971 = vmatpush1.bf16.msra.mxu0 %v4594
  %4972 = vmatprep.subr.bf16.mxu0 %v4599
  %4973 = vmatpush1.bf16.msra.mxu0 %v4598
  %4974 = vmatprep.subr.bf16.mxu0 %v4603
  %4975 = vmatpush1.bf16.msra.mxu0 %v4602
  %4976 = vmatprep.subr.bf16.mxu0 %v4607
  %4977 = vmatpush1.bf16.msra.mxu0 %v4606
  %4978 = vmatprep.mubr.bf16.mxu0 %v794
  %4979 = vmatmul.mubr.bf16.gmra.mrb[0].mxu0 %v793
  %v4980 = vpop.f32.mrb[0].mxu0
  %v4981 = vadd.f32 0.0, %v4980
  %v4982 = vpop.f32.mrb[0].mxu0
  %v4983 = vadd.f32 0.0, %v4982
  %v4984 = vpop.f32.mrb[0].mxu0
  %v4985 = vadd.f32 0.0, %v4984
  %v4986 = vpop.f32.mrb[0].mxu0
  %v4987 = vadd.f32 0.0, %v4986
  %4988 = vmatprep.mubr.bf16.mxu0 %v798
  %4989 = vmatmul.mubr.bf16.gmra.mrb[0].mxu0 %v797
  %v4990 = vpop.f32.mrb[0].mxu0
  %v4991 = vadd.f32 0.0, %v4990
  %v4992 = vpop.f32.mrb[0].mxu0
  %v4993 = vadd.f32 0.0, %v4992
  %v4994 = vpop.f32.mrb[0].mxu0
  %v4995 = vadd.f32 0.0, %v4994
  %v4996 = vpop.f32.mrb[0].mxu0
  %v4997 = vadd.f32 0.0, %v4996
  %4998 = vmatprep.mubr.bf16.mxu0 %v802
  %4999 = vmatmul.mubr.bf16.gmra.mrb[0].mxu0 %v801
  %v5000 = vpop.f32.mrb[0].mxu0
  %v5001 = vadd.f32 0.0, %v5000
  %v5002 = vpop.f32.mrb[0].mxu0
  %v5003 = vadd.f32 0.0, %v5002
  %v5004 = vpop.f32.mrb[0].mxu0
  %v5005 = vadd.f32 0.0, %v5004
  %v5006 = vpop.f32.mrb[0].mxu0
  %v5007 = vadd.f32 0.0, %v5006
  %5008 = vmatprep.mubr.bf16.mxu0 %v806
  %5009 = vmatmul.mubr.bf16.gmra.mrb[0].mxu0 %v805
  %v5010 = vpop.f32.mrb[0].mxu0
  %v5011 = vadd.f32 0.0, %v5010
  %v5012 = vpop.f32.mrb[0].mxu0
  %v5013 = vadd.f32 0.0, %v5012
  %v5014 = vpop.f32.mrb[0].mxu0
  %v5015 = vadd.f32 0.0, %v5014
  %v5016 = vpop.f32.mrb[0].mxu0
  %v5017 = vadd.f32 0.0, %v5016
  %5018 = vdwg.mxu0
  %5019 = vmatprep.subr.bf16.mxu0 %v4611
  %5020 = vmatpush1.bf16.msra.mxu0 %v4610
  %5021 = vmatprep.subr.bf16.mxu0 %v4615
  %5022 = vmatpush1.bf16.msra.mxu0 %v4614
  %5023 = vmatprep.subr.bf16.mxu0 %v4619
  %5024 = vmatpush1.bf16.msra.mxu0 %v4618
  %5025 = vmatprep.subr.bf16.mxu0 %v4623
  %5026 = vmatpush1.bf16.msra.mxu0 %v4622
  %5027 = vmatprep.subr.bf16.mxu0 %v4627
  %5028 = vmatpush1.bf16.msra.mxu0 %v4626
  %5029 = vmatprep.subr.bf16.mxu0 %v4631
  %5030 = vmatpush1.bf16.msra.mxu0 %v4630
  %5031 = vmatprep.subr.bf16.mxu0 %v4635
  %5032 = vmatpush1.bf16.msra.mxu0 %v4634
  %5033 = vmatprep.subr.bf16.mxu0 %v4639
  %5034 = vmatpush1.bf16.msra.mxu0 %v4638
  %5035 = vmatprep.subr.bf16.mxu0 %v4643
  %5036 = vmatpush1.bf16.msra.mxu0 %v4642
  %5037 = vmatprep.subr.bf16.mxu0 %v4647
  %5038 = vmatpush1.bf16.msra.mxu0 %v4646
  %5039 = vmatprep.subr.bf16.mxu0 %v4651
  %5040 = vmatpush1.bf16.msra.mxu0 %v4650
  %5041 = vmatprep.subr.bf16.mxu0 %v4655
  %5042 = vmatpush1.bf16.msra.mxu0 %v4654
  %5043 = vmatprep.subr.bf16.mxu0 %v4659
  %5044 = vmatpush1.bf16.msra.mxu0 %v4658
  %5045 = vmatprep.subr.bf16.mxu0 %v4663
  %5046 = vmatpush1.bf16.msra.mxu0 %v4662
  %5047 = vmatprep.subr.bf16.mxu0 %v4667
  %5048 = vmatpush1.bf16.msra.mxu0 %v4666
  %5049 = vmatprep.subr.bf16.mxu0 %v4671
  %5050 = vmatpush1.bf16.msra.mxu0 %v4670
  %5051 = vmatprep.mubr.bf16.mxu0 %v796
  %5052 = vmatmul.mubr.bf16.gmra.mrb[0].mxu0 %v795
  %v5053 = vpop.f32.mrb[0].mxu0
  %v5054 = vadd.f32 %v4981, %v5053
  %v5055 = vpop.f32.mrb[0].mxu0
  %v5056 = vadd.f32 %v4983, %v5055
  %v5057 = vpop.f32.mrb[0].mxu0
  %v5058 = vadd.f32 %v4985, %v5057
  %v5059 = vpop.f32.mrb[0].mxu0
  %v5060 = vadd.f32 %v4987, %v5059
  %5061 = vmatprep.mubr.bf16.mxu0 %v800
  %5062 = vmatmul.mubr.bf16.gmra.mrb[0].mxu0 %v799
  %v5063 = vpop.f32.mrb[0].mxu0
  %v5064 = vadd.f32 %v4991, %v5063
  %v5065 = vpop.f32.mrb[0].mxu0
  %v5066 = vadd.f32 %v4993, %v5065
  %v5067 = vpop.f32.mrb[0].mxu0
  %v5068 = vadd.f32 %v4995, %v5067
  %v5069 = vpop.f32.mrb[0].mxu0
  %v5070 = vadd.f32 %v4997, %v5069
  %5071 = vmatprep.mubr.bf16.mxu0 %v804
  %5072 = vmatmul.mubr.bf16.gmra.mrb[0].mxu0 %v803
  %v5073 = vpop.f32.mrb[0].mxu0
  %v5074 = vadd.f32 %v5001, %v5073
  %v5075 = vpop.f32.mrb[0].mxu0
  %v5076 = vadd.f32 %v5003, %v5075
  %v5077 = vpop.f32.mrb[0].mxu0
  %v5078 = vadd.f32 %v5005, %v5077
  %v5079 = vpop.f32.mrb[0].mxu0
  %v5080 = vadd.f32 %v5007, %v5079
  %5081 = vmatprep.mubr.bf16.mxu0 %v808
  %5082 = vmatmul.mubr.bf16.gmra.mrb[0].mxu0 %v807
  %v5083 = vpop.f32.mrb[0].mxu0
  %v5084 = vadd.f32 %v5011, %v5083
  %v5085 = vpop.f32.mrb[0].mxu0
  %v5086 = vadd.f32 %v5013, %v5085
  %v5087 = vpop.f32.mrb[0].mxu0
  %v5088 = vadd.f32 %v5015, %v5087
  %v5089 = vpop.f32.mrb[0].mxu0
  %v5090 = vadd.f32 %v5017, %v5089
  %5091 = vdwg.mxu0
  %v5092 = vadd.f32 %v3999, %v4908
  %v5093 = vadd.f32 %v4000, %v4910
  %v5094 = vadd.f32 %v4001, %v5054
  %v5095 = vadd.f32 %v4002, %v5056
  %v5096 = vadd.f32 %v4003, %v4912
  %v5097 = vadd.f32 %v4004, %v4914
  %v5098 = vadd.f32 %v4005, %v5058
  %v5099 = vadd.f32 %v4006, %v5060
  %v5100 = vadd.f32 %v4007, %v4918
  %v5101 = vadd.f32 %v4008, %v4920
  %v5102 = vadd.f32 %v4009, %v5064
  %v5103 = vadd.f32 %v4010, %v5066
  %v5104 = vadd.f32 %v4011, %v4922
  %v5105 = vadd.f32 %v4012, %v4924
  %v5106 = vadd.f32 %v4013, %v5068
  %v5107 = vadd.f32 %v4014, %v5070
  %v5108 = vadd.f32 %v4015, %v4928
  %v5109 = vadd.f32 %v4016, %v4930
  %v5110 = vadd.f32 %v4017, %v5074
  %v5111 = vadd.f32 %v4018, %v5076
  %v5112 = vadd.f32 %v4019, %v4932
  %v5113 = vadd.f32 %v4020, %v4934
  %v5114 = vadd.f32 %v4021, %v5078
  %v5115 = vadd.f32 %v4022, %v5080
  %v5116 = vadd.f32 %v4023, %v4938
  %v5117 = vadd.f32 %v4024, %v4940
  %v5118 = vadd.f32 %v4025, %v5084
  %v5119 = vadd.f32 %v4026, %v5086
  %v5120 = vadd.f32 %v4027, %v4942
  %v5121 = vadd.f32 %v4028, %v4944
  %v5122 = vadd.f32 %v4029, %v5088
  %v5123 = vadd.f32 %v4030, %v5090
  %s5124 = scalar_lea.vmem %s2, 4096
  %v5125 = vld [vmem:[%s5124] sm:$0xff]
  %v5126 = vld [vmem:[%s5124 + $0x8] sm:$0xff]
  %v5127 = vld [vmem:[%s5124 + $0x10] sm:$0xff]
  %v5128 = vld [vmem:[%s5124 + $0x18] sm:$0xff]
  %v5129 = vld [vmem:[%s5124 + $0x20] sm:$0xff]
  %v5130 = vld [vmem:[%s5124 + $0x28] sm:$0xff]
  %v5131 = vld [vmem:[%s5124 + $0x30] sm:$0xff]
  %v5132 = vld [vmem:[%s5124 + $0x38] sm:$0xff]
  %v5133 = vld [vmem:[%s5124 + $0x40] sm:$0xff]
  %v5134 = vld [vmem:[%s5124 + $0x48] sm:$0xff]
  %v5135 = vld [vmem:[%s5124 + $0x50] sm:$0xff]
  %v5136 = vld [vmem:[%s5124 + $0x58] sm:$0xff]
  %v5137 = vld [vmem:[%s5124 + $0x60] sm:$0xff]
  %v5138 = vld [vmem:[%s5124 + $0x68] sm:$0xff]
  %v5139 = vld [vmem:[%s5124 + $0x70] sm:$0xff]
  %v5140 = vld [vmem:[%s5124 + $0x78] sm:$0xff]
  %v5141 = vld [vmem:[%s5124 + $0x80] sm:$0xff]
  %v5142 = vld [vmem:[%s5124 + $0x88] sm:$0xff]
  %v5143 = vld [vmem:[%s5124 + $0x90] sm:$0xff]
  %v5144 = vld [vmem:[%s5124 + $0x98] sm:$0xff]
  %v5145 = vld [vmem:[%s5124 + $0xa0] sm:$0xff]
  %v5146 = vld [vmem:[%s5124 + $0xa8] sm:$0xff]
  %v5147 = vld [vmem:[%s5124 + $0xb0] sm:$0xff]
  %v5148 = vld [vmem:[%s5124 + $0xb8] sm:$0xff]
  %v5149 = vld [vmem:[%s5124 + $0xc0] sm:$0xff]
  %v5150 = vld [vmem:[%s5124 + $0xc8] sm:$0xff]
  %v5151 = vld [vmem:[%s5124 + $0xd0] sm:$0xff]
  %v5152 = vld [vmem:[%s5124 + $0xd8] sm:$0xff]
  %v5153 = vld [vmem:[%s5124 + $0xe0] sm:$0xff]
  %v5154 = vld [vmem:[%s5124 + $0xe8] sm:$0xff]
  %v5155 = vld [vmem:[%s5124 + $0xf0] sm:$0xff]
  %v5156 = vld [vmem:[%s5124 + $0xf8] sm:$0xff]
  %v5157 = vld [vmem:[%s5124 + $0x100] sm:$0xff]
  %v5158 = vld [vmem:[%s5124 + $0x108] sm:$0xff]
  %v5159 = vld [vmem:[%s5124 + $0x110] sm:$0xff]
  %v5160 = vld [vmem:[%s5124 + $0x118] sm:$0xff]
  %v5161 = vld [vmem:[%s5124 + $0x120] sm:$0xff]
  %v5162 = vld [vmem:[%s5124 + $0x128] sm:$0xff]
  %v5163 = vld [vmem:[%s5124 + $0x130] sm:$0xff]
  %v5164 = vld [vmem:[%s5124 + $0x138] sm:$0xff]
  %v5165 = vld [vmem:[%s5124 + $0x140] sm:$0xff]
  %v5166 = vld [vmem:[%s5124 + $0x148] sm:$0xff]
  %v5167 = vld [vmem:[%s5124 + $0x150] sm:$0xff]
  %v5168 = vld [vmem:[%s5124 + $0x158] sm:$0xff]
  %v5169 = vld [vmem:[%s5124 + $0x160] sm:$0xff]
  %v5170 = vld [vmem:[%s5124 + $0x168] sm:$0xff]
  %v5171 = vld [vmem:[%s5124 + $0x170] sm:$0xff]
  %v5172 = vld [vmem:[%s5124 + $0x178] sm:$0xff]
  %v5173 = vld [vmem:[%s5124 + $0x180] sm:$0xff]
  %v5174 = vld [vmem:[%s5124 + $0x188] sm:$0xff]
  %v5175 = vld [vmem:[%s5124 + $0x190] sm:$0xff]
  %v5176 = vld [vmem:[%s5124 + $0x198] sm:$0xff]
  %v5177 = vld [vmem:[%s5124 + $0x1a0] sm:$0xff]
  %v5178 = vld [vmem:[%s5124 + $0x1a8] sm:$0xff]
  %v5179 = vld [vmem:[%s5124 + $0x1b0] sm:$0xff]
  %v5180 = vld [vmem:[%s5124 + $0x1b8] sm:$0xff]
  %v5181 = vld [vmem:[%s5124 + $0x1c0] sm:$0xff]
  %v5182 = vld [vmem:[%s5124 + $0x1c8] sm:$0xff]
  %v5183 = vld [vmem:[%s5124 + $0x1d0] sm:$0xff]
  %v5184 = vld [vmem:[%s5124 + $0x1d8] sm:$0xff]
  %v5185 = vld [vmem:[%s5124 + $0x1e0] sm:$0xff]
  %v5186 = vld [vmem:[%s5124 + $0x1e8] sm:$0xff]
  %v5187 = vld [vmem:[%s5124 + $0x1f0] sm:$0xff]
  %v5188 = vld [vmem:[%s5124 + $0x1f8] sm:$0xff]
  %v5189 = vld [vmem:[%s5124 + $0x200] sm:$0xff]
  %v5190 = vld [vmem:[%s5124 + $0x208] sm:$0xff]
  %v5191 = vld [vmem:[%s5124 + $0x210] sm:$0xff]
  %v5192 = vld [vmem:[%s5124 + $0x218] sm:$0xff]
  %v5193 = vld [vmem:[%s5124 + $0x220] sm:$0xff]
  %v5194 = vld [vmem:[%s5124 + $0x228] sm:$0xff]
  %v5195 = vld [vmem:[%s5124 + $0x230] sm:$0xff]
  %v5196 = vld [vmem:[%s5124 + $0x238] sm:$0xff]
  %v5197 = vld [vmem:[%s5124 + $0x240] sm:$0xff]
  %v5198 = vld [vmem:[%s5124 + $0x248] sm:$0xff]
  %v5199 = vld [vmem:[%s5124 + $0x250] sm:$0xff]
  %v5200 = vld [vmem:[%s5124 + $0x258] sm:$0xff]
  %v5201 = vld [vmem:[%s5124 + $0x260] sm:$0xff]
  %v5202 = vld [vmem:[%s5124 + $0x268] sm:$0xff]
  %v5203 = vld [vmem:[%s5124 + $0x270] sm:$0xff]
  %v5204 = vld [vmem:[%s5124 + $0x278] sm:$0xff]
  %v5205 = vld [vmem:[%s5124 + $0x280] sm:$0xff]
  %v5206 = vld [vmem:[%s5124 + $0x288] sm:$0xff]
  %v5207 = vld [vmem:[%s5124 + $0x290] sm:$0xff]
  %v5208 = vld [vmem:[%s5124 + $0x298] sm:$0xff]
  %v5209 = vld [vmem:[%s5124 + $0x2a0] sm:$0xff]
  %v5210 = vld [vmem:[%s5124 + $0x2a8] sm:$0xff]
  %v5211 = vld [vmem:[%s5124 + $0x2b0] sm:$0xff]
  %v5212 = vld [vmem:[%s5124 + $0x2b8] sm:$0xff]
  %v5213 = vld [vmem:[%s5124 + $0x2c0] sm:$0xff]
  %v5214 = vld [vmem:[%s5124 + $0x2c8] sm:$0xff]
  %v5215 = vld [vmem:[%s5124 + $0x2d0] sm:$0xff]
  %v5216 = vld [vmem:[%s5124 + $0x2d8] sm:$0xff]
  %v5217 = vld [vmem:[%s5124 + $0x2e0] sm:$0xff]
  %v5218 = vld [vmem:[%s5124 + $0x2e8] sm:$0xff]
  %v5219 = vld [vmem:[%s5124 + $0x2f0] sm:$0xff]
  %v5220 = vld [vmem:[%s5124 + $0x2f8] sm:$0xff]
  %v5221 = vld [vmem:[%s5124 + $0x300] sm:$0xff]
  %v5222 = vld [vmem:[%s5124 + $0x308] sm:$0xff]
  %v5223 = vld [vmem:[%s5124 + $0x310] sm:$0xff]
  %v5224 = vld [vmem:[%s5124 + $0x318] sm:$0xff]
  %v5225 = vld [vmem:[%s5124 + $0x320] sm:$0xff]
  %v5226 = vld [vmem:[%s5124 + $0x328] sm:$0xff]
  %v5227 = vld [vmem:[%s5124 + $0x330] sm:$0xff]
  %v5228 = vld [vmem:[%s5124 + $0x338] sm:$0xff]
  %v5229 = vld [vmem:[%s5124 + $0x340] sm:$0xff]
  %v5230 = vld [vmem:[%s5124 + $0x348] sm:$0xff]
  %v5231 = vld [vmem:[%s5124 + $0x350] sm:$0xff]
  %v5232 = vld [vmem:[%s5124 + $0x358] sm:$0xff]
  %v5233 = vld [vmem:[%s5124 + $0x360] sm:$0xff]
  %v5234 = vld [vmem:[%s5124 + $0x368] sm:$0xff]
  %v5235 = vld [vmem:[%s5124 + $0x370] sm:$0xff]
  %v5236 = vld [vmem:[%s5124 + $0x378] sm:$0xff]
  %v5237 = vld [vmem:[%s5124 + $0x380] sm:$0xff]
  %v5238 = vld [vmem:[%s5124 + $0x388] sm:$0xff]
  %v5239 = vld [vmem:[%s5124 + $0x390] sm:$0xff]
  %v5240 = vld [vmem:[%s5124 + $0x398] sm:$0xff]
  %v5241 = vld [vmem:[%s5124 + $0x3a0] sm:$0xff]
  %v5242 = vld [vmem:[%s5124 + $0x3a8] sm:$0xff]
  %v5243 = vld [vmem:[%s5124 + $0x3b0] sm:$0xff]
  %v5244 = vld [vmem:[%s5124 + $0x3b8] sm:$0xff]
  %v5245 = vld [vmem:[%s5124 + $0x3c0] sm:$0xff]
  %v5246 = vld [vmem:[%s5124 + $0x3c8] sm:$0xff]
  %v5247 = vld [vmem:[%s5124 + $0x3d0] sm:$0xff]
  %v5248 = vld [vmem:[%s5124 + $0x3d8] sm:$0xff]
  %v5249 = vld [vmem:[%s5124 + $0x3e0] sm:$0xff]
  %v5250 = vld [vmem:[%s5124 + $0x3e8] sm:$0xff]
  %v5251 = vld [vmem:[%s5124 + $0x3f0] sm:$0xff]
  %v5252 = vld [vmem:[%s5124 + $0x3f8] sm:$0xff]
  %v5381 = vunpack.c.l.b16 %v5125
  %v5382 = vunpack.c.h.b16 %v5125
  %v5383 = vunpack.c.l.b16 %v5126
  %v5384 = vunpack.c.h.b16 %v5126
  %v5385 = vunpack.c.l.b16 %v5127
  %v5386 = vunpack.c.h.b16 %v5127
  %v5387 = vunpack.c.l.b16 %v5128
  %v5388 = vunpack.c.h.b16 %v5128
  %v5389 = vunpack.c.l.b16 %v5129
  %v5390 = vunpack.c.h.b16 %v5129
  %v5391 = vunpack.c.l.b16 %v5130
  %v5392 = vunpack.c.h.b16 %v5130
  %v5393 = vunpack.c.l.b16 %v5131
  %v5394 = vunpack.c.h.b16 %v5131
  %v5395 = vunpack.c.l.b16 %v5132
  %v5396 = vunpack.c.h.b16 %v5132
  %v5397 = vunpack.c.l.b16 %v5133
  %v5398 = vunpack.c.h.b16 %v5133
  %v5399 = vunpack.c.l.b16 %v5134
  %v5400 = vunpack.c.h.b16 %v5134
  %v5401 = vunpack.c.l.b16 %v5135
  %v5402 = vunpack.c.h.b16 %v5135
  %v5403 = vunpack.c.l.b16 %v5136
  %v5404 = vunpack.c.h.b16 %v5136
  %v5405 = vunpack.c.l.b16 %v5137
  %v5406 = vunpack.c.h.b16 %v5137
  %v5407 = vunpack.c.l.b16 %v5138
  %v5408 = vunpack.c.h.b16 %v5138
  %v5409 = vunpack.c.l.b16 %v5139
  %v5410 = vunpack.c.h.b16 %v5139
  %v5411 = vunpack.c.l.b16 %v5140
  %v5412 = vunpack.c.h.b16 %v5140
  %v5413 = vunpack.c.l.b16 %v5141
  %v5414 = vunpack.c.h.b16 %v5141
  %v5415 = vunpack.c.l.b16 %v5142
  %v5416 = vunpack.c.h.b16 %v5142
  %v5417 = vunpack.c.l.b16 %v5143
  %v5418 = vunpack.c.h.b16 %v5143
  %v5419 = vunpack.c.l.b16 %v5144
  %v5420 = vunpack.c.h.b16 %v5144
  %v5421 = vunpack.c.l.b16 %v5145
  %v5422 = vunpack.c.h.b16 %v5145
  %v5423 = vunpack.c.l.b16 %v5146
  %v5424 = vunpack.c.h.b16 %v5146
  %v5425 = vunpack.c.l.b16 %v5147
  %v5426 = vunpack.c.h.b16 %v5147
  %v5427 = vunpack.c.l.b16 %v5148
  %v5428 = vunpack.c.h.b16 %v5148
  %v5429 = vunpack.c.l.b16 %v5149
  %v5430 = vunpack.c.h.b16 %v5149
  %v5431 = vunpack.c.l.b16 %v5150
  %v5432 = vunpack.c.h.b16 %v5150
  %v5433 = vunpack.c.l.b16 %v5151
  %v5434 = vunpack.c.h.b16 %v5151
  %v5435 = vunpack.c.l.b16 %v5152
  %v5436 = vunpack.c.h.b16 %v5152
  %v5437 = vunpack.c.l.b16 %v5153
  %v5438 = vunpack.c.h.b16 %v5153
  %v5439 = vunpack.c.l.b16 %v5154
  %v5440 = vunpack.c.h.b16 %v5154
  %v5441 = vunpack.c.l.b16 %v5155
  %v5442 = vunpack.c.h.b16 %v5155
  %v5443 = vunpack.c.l.b16 %v5156
  %v5444 = vunpack.c.h.b16 %v5156
  %v5445 = vunpack.c.l.b16 %v5157
  %v5446 = vunpack.c.h.b16 %v5157
  %v5447 = vunpack.c.l.b16 %v5158
  %v5448 = vunpack.c.h.b16 %v5158
  %v5449 = vunpack.c.l.b16 %v5159
  %v5450 = vunpack.c.h.b16 %v5159
  %v5451 = vunpack.c.l.b16 %v5160
  %v5452 = vunpack.c.h.b16 %v5160
  %v5453 = vunpack.c.l.b16 %v5161
  %v5454 = vunpack.c.h.b16 %v5161
  %v5455 = vunpack.c.l.b16 %v5162
  %v5456 = vunpack.c.h.b16 %v5162
  %v5457 = vunpack.c.l.b16 %v5163
  %v5458 = vunpack.c.h.b16 %v5163
  %v5459 = vunpack.c.l.b16 %v5164
  %v5460 = vunpack.c.h.b16 %v5164
  %v5461 = vunpack.c.l.b16 %v5165
  %v5462 = vunpack.c.h.b16 %v5165
  %v5463 = vunpack.c.l.b16 %v5166
  %v5464 = vunpack.c.h.b16 %v5166
  %v5465 = vunpack.c.l.b16 %v5167
  %v5466 = vunpack.c.h.b16 %v5167
  %v5467 = vunpack.c.l.b16 %v5168
  %v5468 = vunpack.c.h.b16 %v5168
  %v5469 = vunpack.c.l.b16 %v5169
  %v5470 = vunpack.c.h.b16 %v5169
  %v5471 = vunpack.c.l.b16 %v5170
  %v5472 = vunpack.c.h.b16 %v5170
  %v5473 = vunpack.c.l.b16 %v5171
  %v5474 = vunpack.c.h.b16 %v5171
  %v5475 = vunpack.c.l.b16 %v5172
  %v5476 = vunpack.c.h.b16 %v5172
  %v5477 = vunpack.c.l.b16 %v5173
  %v5478 = vunpack.c.h.b16 %v5173
  %v5479 = vunpack.c.l.b16 %v5174
  %v5480 = vunpack.c.h.b16 %v5174
  %v5481 = vunpack.c.l.b16 %v5175
  %v5482 = vunpack.c.h.b16 %v5175
  %v5483 = vunpack.c.l.b16 %v5176
  %v5484 = vunpack.c.h.b16 %v5176
  %v5485 = vunpack.c.l.b16 %v5177
  %v5486 = vunpack.c.h.b16 %v5177
  %v5487 = vunpack.c.l.b16 %v5178
  %v5488 = vunpack.c.h.b16 %v5178
  %v5489 = vunpack.c.l.b16 %v5179
  %v5490 = vunpack.c.h.b16 %v5179
  %v5491 = vunpack.c.l.b16 %v5180
  %v5492 = vunpack.c.h.b16 %v5180
  %v5493 = vunpack.c.l.b16 %v5181
  %v5494 = vunpack.c.h.b16 %v5181
  %v5495 = vunpack.c.l.b16 %v5182
  %v5496 = vunpack.c.h.b16 %v5182
  %v5497 = vunpack.c.l.b16 %v5183
  %v5498 = vunpack.c.h.b16 %v5183
  %v5499 = vunpack.c.l.b16 %v5184
  %v5500 = vunpack.c.h.b16 %v5184
  %v5501 = vunpack.c.l.b16 %v5185
  %v5502 = vunpack.c.h.b16 %v5185
  %v5503 = vunpack.c.l.b16 %v5186
  %v5504 = vunpack.c.h.b16 %v5186
  %v5505 = vunpack.c.l.b16 %v5187
  %v5506 = vunpack.c.h.b16 %v5187
  %v5507 = vunpack.c.l.b16 %v5188
  %v5508 = vunpack.c.h.b16 %v5188
  %v5509 = vunpack.c.l.b16 %v5189
  %v5510 = vunpack.c.h.b16 %v5189
  %v5511 = vunpack.c.l.b16 %v5190
  %v5512 = vunpack.c.h.b16 %v5190
  %v5513 = vunpack.c.l.b16 %v5191
  %v5514 = vunpack.c.h.b16 %v5191
  %v5515 = vunpack.c.l.b16 %v5192
  %v5516 = vunpack.c.h.b16 %v5192
  %v5517 = vunpack.c.l.b16 %v5193
  %v5518 = vunpack.c.h.b16 %v5193
  %v5519 = vunpack.c.l.b16 %v5194
  %v5520 = vunpack.c.h.b16 %v5194
  %v5521 = vunpack.c.l.b16 %v5195
  %v5522 = vunpack.c.h.b16 %v5195
  %v5523 = vunpack.c.l.b16 %v5196
  %v5524 = vunpack.c.h.b16 %v5196
  %v5525 = vunpack.c.l.b16 %v5197
  %v5526 = vunpack.c.h.b16 %v5197
  %v5527 = vunpack.c.l.b16 %v5198
  %v5528 = vunpack.c.h.b16 %v5198
  %v5529 = vunpack.c.l.b16 %v5199
  %v5530 = vunpack.c.h.b16 %v5199
  %v5531 = vunpack.c.l.b16 %v5200
  %v5532 = vunpack.c.h.b16 %v5200
  %v5533 = vunpack.c.l.b16 %v5201
  %v5534 = vunpack.c.h.b16 %v5201
  %v5535 = vunpack.c.l.b16 %v5202
  %v5536 = vunpack.c.h.b16 %v5202
  %v5537 = vunpack.c.l.b16 %v5203
  %v5538 = vunpack.c.h.b16 %v5203
  %v5539 = vunpack.c.l.b16 %v5204
  %v5540 = vunpack.c.h.b16 %v5204
  %v5541 = vunpack.c.l.b16 %v5205
  %v5542 = vunpack.c.h.b16 %v5205
  %v5543 = vunpack.c.l.b16 %v5206
  %v5544 = vunpack.c.h.b16 %v5206
  %v5545 = vunpack.c.l.b16 %v5207
  %v5546 = vunpack.c.h.b16 %v5207
  %v5547 = vunpack.c.l.b16 %v5208
  %v5548 = vunpack.c.h.b16 %v5208
  %v5549 = vunpack.c.l.b16 %v5209
  %v5550 = vunpack.c.h.b16 %v5209
  %v5551 = vunpack.c.l.b16 %v5210
  %v5552 = vunpack.c.h.b16 %v5210
  %v5553 = vunpack.c.l.b16 %v5211
  %v5554 = vunpack.c.h.b16 %v5211
  %v5555 = vunpack.c.l.b16 %v5212
  %v5556 = vunpack.c.h.b16 %v5212
  %v5557 = vunpack.c.l.b16 %v5213
  %v5558 = vunpack.c.h.b16 %v5213
  %v5559 = vunpack.c.l.b16 %v5214
  %v5560 = vunpack.c.h.b16 %v5214
  %v5561 = vunpack.c.l.b16 %v5215
  %v5562 = vunpack.c.h.b16 %v5215
  %v5563 = vunpack.c.l.b16 %v5216
  %v5564 = vunpack.c.h.b16 %v5216
  %v5565 = vunpack.c.l.b16 %v5217
  %v5566 = vunpack.c.h.b16 %v5217
  %v5567 = vunpack.c.l.b16 %v5218
  %v5568 = vunpack.c.h.b16 %v5218
  %v5569 = vunpack.c.l.b16 %v5219
  %v5570 = vunpack.c.h.b16 %v5219
  %v5571 = vunpack.c.l.b16 %v5220
  %v5572 = vunpack.c.h.b16 %v5220
  %v5573 = vunpack.c.l.b16 %v5221
  %v5574 = vunpack.c.h.b16 %v5221
  %v5575 = vunpack.c.l.b16 %v5222
  %v5576 = vunpack.c.h.b16 %v5222
  %v5577 = vunpack.c.l.b16 %v5223
  %v5578 = vunpack.c.h.b16 %v5223
  %v5579 = vunpack.c.l.b16 %v5224
  %v5580 = vunpack.c.h.b16 %v5224
  %v5581 = vunpack.c.l.b16 %v5225
  %v5582 = vunpack.c.h.b16 %v5225
  %v5583 = vunpack.c.l.b16 %v5226
  %v5584 = vunpack.c.h.b16 %v5226
  %v5585 = vunpack.c.l.b16 %v5227
  %v5586 = vunpack.c.h.b16 %v5227
  %v5587 = vunpack.c.l.b16 %v5228
  %v5588 = vunpack.c.h.b16 %v5228
  %v5589 = vunpack.c.l.b16 %v5229
  %v5590 = vunpack.c.h.b16 %v5229
  %v5591 = vunpack.c.l.b16 %v5230
  %v5592 = vunpack.c.h.b16 %v5230
  %v5593 = vunpack.c.l.b16 %v5231
  %v5594 = vunpack.c.h.b16 %v5231
  %v5595 = vunpack.c.l.b16 %v5232
  %v5596 = vunpack.c.h.b16 %v5232
  %v5597 = vunpack.c.l.b16 %v5233
  %v5598 = vunpack.c.h.b16 %v5233
  %v5599 = vunpack.c.l.b16 %v5234
  %v5600 = vunpack.c.h.b16 %v5234
  %v5601 = vunpack.c.l.b16 %v5235
  %v5602 = vunpack.c.h.b16 %v5235
  %v5603 = vunpack.c.l.b16 %v5236
  %v5604 = vunpack.c.h.b16 %v5236
  %v5605 = vunpack.c.l.b16 %v5237
  %v5606 = vunpack.c.h.b16 %v5237
  %v5607 = vunpack.c.l.b16 %v5238
  %v5608 = vunpack.c.h.b16 %v5238
  %v5609 = vunpack.c.l.b16 %v5239
  %v5610 = vunpack.c.h.b16 %v5239
  %v5611 = vunpack.c.l.b16 %v5240
  %v5612 = vunpack.c.h.b16 %v5240
  %v5613 = vunpack.c.l.b16 %v5241
  %v5614 = vunpack.c.h.b16 %v5241
  %v5615 = vunpack.c.l.b16 %v5242
  %v5616 = vunpack.c.h.b16 %v5242
  %v5617 = vunpack.c.l.b16 %v5243
  %v5618 = vunpack.c.h.b16 %v5243
  %v5619 = vunpack.c.l.b16 %v5244
  %v5620 = vunpack.c.h.b16 %v5244
  %v5621 = vunpack.c.l.b16 %v5245
  %v5622 = vunpack.c.h.b16 %v5245
  %v5623 = vunpack.c.l.b16 %v5246
  %v5624 = vunpack.c.h.b16 %v5246
  %v5625 = vunpack.c.l.b16 %v5247
  %v5626 = vunpack.c.h.b16 %v5247
  %v5627 = vunpack.c.l.b16 %v5248
  %v5628 = vunpack.c.h.b16 %v5248
  %v5629 = vunpack.c.l.b16 %v5249
  %v5630 = vunpack.c.h.b16 %v5249
  %v5631 = vunpack.c.l.b16 %v5250
  %v5632 = vunpack.c.h.b16 %v5250
  %v5633 = vunpack.c.l.b16 %v5251
  %v5634 = vunpack.c.h.b16 %v5251
  %v5635 = vunpack.c.l.b16 %v5252
  %v5636 = vunpack.c.h.b16 %v5252
  %v5637 = vpack.c.b16 %v5385, %v5381
  %v5638 = vpack.c.b16 %v5386, %v5382
  %v5639 = vpack.c.b16 %v5387, %v5383
  %v5640 = vpack.c.b16 %v5388, %v5384
  %v5641 = vpack.c.b16 %v5393, %v5389
  %v5642 = vpack.c.b16 %v5394, %v5390
  %v5643 = vpack.c.b16 %v5395, %v5391
  %v5644 = vpack.c.b16 %v5396, %v5392
  %v5645 = vpack.c.b16 %v5401, %v5397
  %v5646 = vpack.c.b16 %v5402, %v5398
  %v5647 = vpack.c.b16 %v5403, %v5399
  %v5648 = vpack.c.b16 %v5404, %v5400
  %v5649 = vpack.c.b16 %v5409, %v5405
  %v5650 = vpack.c.b16 %v5410, %v5406
  %v5651 = vpack.c.b16 %v5411, %v5407
  %v5652 = vpack.c.b16 %v5412, %v5408
  %v5653 = vpack.c.b16 %v5417, %v5413
  %v5654 = vpack.c.b16 %v5418, %v5414
  %v5655 = vpack.c.b16 %v5419, %v5415
  %v5656 = vpack.c.b16 %v5420, %v5416
  %v5657 = vpack.c.b16 %v5425, %v5421
  %v5658 = vpack.c.b16 %v5426, %v5422
  %v5659 = vpack.c.b16 %v5427, %v5423
  %v5660 = vpack.c.b16 %v5428, %v5424
  %v5661 = vpack.c.b16 %v5433, %v5429
  %v5662 = vpack.c.b16 %v5434, %v5430
  %v5663 = vpack.c.b16 %v5435, %v5431
  %v5664 = vpack.c.b16 %v5436, %v5432
  %v5665 = vpack.c.b16 %v5441, %v5437
  %v5666 = vpack.c.b16 %v5442, %v5438
  %v5667 = vpack.c.b16 %v5443, %v5439
  %v5668 = vpack.c.b16 %v5444, %v5440
  %v5669 = vpack.c.b16 %v5449, %v5445
  %v5670 = vpack.c.b16 %v5450, %v5446
  %v5671 = vpack.c.b16 %v5451, %v5447
  %v5672 = vpack.c.b16 %v5452, %v5448
  %v5673 = vpack.c.b16 %v5457, %v5453
  %v5674 = vpack.c.b16 %v5458, %v5454
  %v5675 = vpack.c.b16 %v5459, %v5455
  %v5676 = vpack.c.b16 %v5460, %v5456
  %v5677 = vpack.c.b16 %v5465, %v5461
  %v5678 = vpack.c.b16 %v5466, %v5462
  %v5679 = vpack.c.b16 %v5467, %v5463
  %v5680 = vpack.c.b16 %v5468, %v5464
  %v5681 = vpack.c.b16 %v5473, %v5469
  %v5682 = vpack.c.b16 %v5474, %v5470
  %v5683 = vpack.c.b16 %v5475, %v5471
  %v5684 = vpack.c.b16 %v5476, %v5472
  %v5685 = vpack.c.b16 %v5481, %v5477
  %v5686 = vpack.c.b16 %v5482, %v5478
  %v5687 = vpack.c.b16 %v5483, %v5479
  %v5688 = vpack.c.b16 %v5484, %v5480
  %v5689 = vpack.c.b16 %v5489, %v5485
  %v5690 = vpack.c.b16 %v5490, %v5486
  %v5691 = vpack.c.b16 %v5491, %v5487
  %v5692 = vpack.c.b16 %v5492, %v5488
  %v5693 = vpack.c.b16 %v5497, %v5493
  %v5694 = vpack.c.b16 %v5498, %v5494
  %v5695 = vpack.c.b16 %v5499, %v5495
  %v5696 = vpack.c.b16 %v5500, %v5496
  %v5697 = vpack.c.b16 %v5505, %v5501
  %v5698 = vpack.c.b16 %v5506, %v5502
  %v5699 = vpack.c.b16 %v5507, %v5503
  %v5700 = vpack.c.b16 %v5508, %v5504
  %v5701 = vpack.c.b16 %v5513, %v5509
  %v5702 = vpack.c.b16 %v5514, %v5510
  %v5703 = vpack.c.b16 %v5515, %v5511
  %v5704 = vpack.c.b16 %v5516, %v5512
  %v5705 = vpack.c.b16 %v5521, %v5517
  %v5706 = vpack.c.b16 %v5522, %v5518
  %v5707 = vpack.c.b16 %v5523, %v5519
  %v5708 = vpack.c.b16 %v5524, %v5520
  %v5709 = vpack.c.b16 %v5529, %v5525
  %v5710 = vpack.c.b16 %v5530, %v5526
  %v5711 = vpack.c.b16 %v5531, %v5527
  %v5712 = vpack.c.b16 %v5532, %v5528
  %v5713 = vpack.c.b16 %v5537, %v5533
  %v5714 = vpack.c.b16 %v5538, %v5534
  %v5715 = vpack.c.b16 %v5539, %v5535
  %v5716 = vpack.c.b16 %v5540, %v5536
  %v5717 = vpack.c.b16 %v5545, %v5541
  %v5718 = vpack.c.b16 %v5546, %v5542
  %v5719 = vpack.c.b16 %v5547, %v5543
  %v5720 = vpack.c.b16 %v5548, %v5544
  %v5721 = vpack.c.b16 %v5553, %v5549
  %v5722 = vpack.c.b16 %v5554, %v5550
  %v5723 = vpack.c.b16 %v5555, %v5551
  %v5724 = vpack.c.b16 %v5556, %v5552
  %v5725 = vpack.c.b16 %v5561, %v5557
  %v5726 = vpack.c.b16 %v5562, %v5558
  %v5727 = vpack.c.b16 %v5563, %v5559
  %v5728 = vpack.c.b16 %v5564, %v5560
  %v5729 = vpack.c.b16 %v5569, %v5565
  %v5730 = vpack.c.b16 %v5570, %v5566
  %v5731 = vpack.c.b16 %v5571, %v5567
  %v5732 = vpack.c.b16 %v5572, %v5568
  %v5733 = vpack.c.b16 %v5577, %v5573
  %v5734 = vpack.c.b16 %v5578, %v5574
  %v5735 = vpack.c.b16 %v5579, %v5575
  %v5736 = vpack.c.b16 %v5580, %v5576
  %v5737 = vpack.c.b16 %v5585, %v5581
  %v5738 = vpack.c.b16 %v5586, %v5582
  %v5739 = vpack.c.b16 %v5587, %v5583
  %v5740 = vpack.c.b16 %v5588, %v5584
  %v5741 = vpack.c.b16 %v5593, %v5589
  %v5742 = vpack.c.b16 %v5594, %v5590
  %v5743 = vpack.c.b16 %v5595, %v5591
  %v5744 = vpack.c.b16 %v5596, %v5592
  %v5745 = vpack.c.b16 %v5601, %v5597
  %v5746 = vpack.c.b16 %v5602, %v5598
  %v5747 = vpack.c.b16 %v5603, %v5599
  %v5748 = vpack.c.b16 %v5604, %v5600
  %v5749 = vpack.c.b16 %v5609, %v5605
  %v5750 = vpack.c.b16 %v5610, %v5606
  %v5751 = vpack.c.b16 %v5611, %v5607
  %v5752 = vpack.c.b16 %v5612, %v5608
  %v5753 = vpack.c.b16 %v5617, %v5613
  %v5754 = vpack.c.b16 %v5618, %v5614
  %v5755 = vpack.c.b16 %v5619, %v5615
  %v5756 = vpack.c.b16 %v5620, %v5616
  %v5757 = vpack.c.b16 %v5625, %v5621
  %v5758 = vpack.c.b16 %v5626, %v5622
  %v5759 = vpack.c.b16 %v5627, %v5623
  %v5760 = vpack.c.b16 %v5628, %v5624
  %v5761 = vpack.c.b16 %v5633, %v5629
  %v5762 = vpack.c.b16 %v5634, %v5630
  %v5763 = vpack.c.b16 %v5635, %v5631
  %v5764 = vpack.c.b16 %v5636, %v5632
  %5893 = vmatprep.subr.bf16.mxu0 %v5638
  %5894 = vmatpush1.bf16.msra.mxu0 %v5637
  %5895 = vmatprep.subr.bf16.mxu0 %v5642
  %5896 = vmatpush1.bf16.msra.mxu0 %v5641
  %5897 = vmatprep.subr.bf16.mxu0 %v5646
  %5898 = vmatpush1.bf16.msra.mxu0 %v5645
  %5899 = vmatprep.subr.bf16.mxu0 %v5650
  %5900 = vmatpush1.bf16.msra.mxu0 %v5649
  %5901 = vmatprep.subr.bf16.mxu0 %v5654
  %5902 = vmatpush1.bf16.msra.mxu0 %v5653
  %5903 = vmatprep.subr.bf16.mxu0 %v5658
  %5904 = vmatpush1.bf16.msra.mxu0 %v5657
  %5905 = vmatprep.subr.bf16.mxu0 %v5662
  %5906 = vmatpush1.bf16.msra.mxu0 %v5661
  %5907 = vmatprep.subr.bf16.mxu0 %v5666
  %5908 = vmatpush1.bf16.msra.mxu0 %v5665
  %5909 = vmatprep.subr.bf16.mxu0 %v5670
  %5910 = vmatpush1.bf16.msra.mxu0 %v5669
  %5911 = vmatprep.subr.bf16.mxu0 %v5674
  %5912 = vmatpush1.bf16.msra.mxu0 %v5673
  %5913 = vmatprep.subr.bf16.mxu0 %v5678
  %5914 = vmatpush1.bf16.msra.mxu0 %v5677
  %5915 = vmatprep.subr.bf16.mxu0 %v5682
  %5916 = vmatpush1.bf16.msra.mxu0 %v5681
  %5917 = vmatprep.subr.bf16.mxu0 %v5686
  %5918 = vmatpush1.bf16.msra.mxu0 %v5685
  %5919 = vmatprep.subr.bf16.mxu0 %v5690
  %5920 = vmatpush1.bf16.msra.mxu0 %v5689
  %5921 = vmatprep.subr.bf16.mxu0 %v5694
  %5922 = vmatpush1.bf16.msra.mxu0 %v5693
  %5923 = vmatprep.subr.bf16.mxu0 %v5698
  %5924 = vmatpush1.bf16.msra.mxu0 %v5697
  %5925 = vmatprep.mubr.bf16.mxu0 %v802
  %5926 = vmatmul.mubr.bf16.gmra.mrb[0].mxu0 %v801
  %v5927 = vpop.f32.mrb[0].mxu0
  %v5928 = vadd.f32 0.0, %v5927
  %v5929 = vpop.f32.mrb[0].mxu0
  %v5930 = vadd.f32 0.0, %v5929
  %v5931 = vpop.f32.mrb[0].mxu0
  %v5932 = vadd.f32 0.0, %v5931
  %v5933 = vpop.f32.mrb[0].mxu0
  %v5934 = vadd.f32 0.0, %v5933
  %5935 = vmatprep.mubr.bf16.mxu0 %v806
  %5936 = vmatmul.mubr.bf16.gmra.mrb[0].mxu0 %v805
  %v5937 = vpop.f32.mrb[0].mxu0
  %v5938 = vadd.f32 0.0, %v5937
  %v5939 = vpop.f32.mrb[0].mxu0
  %v5940 = vadd.f32 0.0, %v5939
  %v5941 = vpop.f32.mrb[0].mxu0
  %v5942 = vadd.f32 0.0, %v5941
  %v5943 = vpop.f32.mrb[0].mxu0
  %v5944 = vadd.f32 0.0, %v5943
  %5945 = vmatprep.mubr.bf16.mxu0 %v810
  %5946 = vmatmul.mubr.bf16.gmra.mrb[0].mxu0 %v809
  %v5947 = vpop.f32.mrb[0].mxu0
  %v5948 = vadd.f32 0.0, %v5947
  %v5949 = vpop.f32.mrb[0].mxu0
  %v5950 = vadd.f32 0.0, %v5949
  %v5951 = vpop.f32.mrb[0].mxu0
  %v5952 = vadd.f32 0.0, %v5951
  %v5953 = vpop.f32.mrb[0].mxu0
  %v5954 = vadd.f32 0.0, %v5953
  %5955 = vmatprep.mubr.bf16.mxu0 %v814
  %5956 = vmatmul.mubr.bf16.gmra.mrb[0].mxu0 %v813
  %v5957 = vpop.f32.mrb[0].mxu0
  %v5958 = vadd.f32 0.0, %v5957
  %v5959 = vpop.f32.mrb[0].mxu0
  %v5960 = vadd.f32 0.0, %v5959
  %v5961 = vpop.f32.mrb[0].mxu0
  %v5962 = vadd.f32 0.0, %v5961
  %v5963 = vpop.f32.mrb[0].mxu0
  %v5964 = vadd.f32 0.0, %v5963
  %5965 = vdwg.mxu0
  %5966 = vmatprep.subr.bf16.mxu0 %v5702
  %5967 = vmatpush1.bf16.msra.mxu0 %v5701
  %5968 = vmatprep.subr.bf16.mxu0 %v5706
  %5969 = vmatpush1.bf16.msra.mxu0 %v5705
  %5970 = vmatprep.subr.bf16.mxu0 %v5710
  %5971 = vmatpush1.bf16.msra.mxu0 %v5709
  %5972 = vmatprep.subr.bf16.mxu0 %v5714
  %5973 = vmatpush1.bf16.msra.mxu0 %v5713
  %5974 = vmatprep.subr.bf16.mxu0 %v5718
  %5975 = vmatpush1.bf16.msra.mxu0 %v5717
  %5976 = vmatprep.subr.bf16.mxu0 %v5722
  %5977 = vmatpush1.bf16.msra.mxu0 %v5721
  %5978 = vmatprep.subr.bf16.mxu0 %v5726
  %5979 = vmatpush1.bf16.msra.mxu0 %v5725
  %5980 = vmatprep.subr.bf16.mxu0 %v5730
  %5981 = vmatpush1.bf16.msra.mxu0 %v5729
  %5982 = vmatprep.subr.bf16.mxu0 %v5734
  %5983 = vmatpush1.bf16.msra.mxu0 %v5733
  %5984 = vmatprep.subr.bf16.mxu0 %v5738
  %5985 = vmatpush1.bf16.msra.mxu0 %v5737
  %5986 = vmatprep.subr.bf16.mxu0 %v5742
  %5987 = vmatpush1.bf16.msra.mxu0 %v5741
  %5988 = vmatprep.subr.bf16.mxu0 %v5746
  %5989 = vmatpush1.bf16.msra.mxu0 %v5745
  %5990 = vmatprep.subr.bf16.mxu0 %v5750
  %5991 = vmatpush1.bf16.msra.mxu0 %v5749
  %5992 = vmatprep.subr.bf16.mxu0 %v5754
  %5993 = vmatpush1.bf16.msra.mxu0 %v5753
  %5994 = vmatprep.subr.bf16.mxu0 %v5758
  %5995 = vmatpush1.bf16.msra.mxu0 %v5757
  %5996 = vmatprep.subr.bf16.mxu0 %v5762
  %5997 = vmatpush1.bf16.msra.mxu0 %v5761
  %5998 = vmatprep.mubr.bf16.mxu0 %v804
  %5999 = vmatmul.mubr.bf16.gmra.mrb[0].mxu0 %v803
  %v6000 = vpop.f32.mrb[0].mxu0
  %v6001 = vadd.f32 %v5928, %v6000
  %v6002 = vpop.f32.mrb[0].mxu0
  %v6003 = vadd.f32 %v5930, %v6002
  %v6004 = vpop.f32.mrb[0].mxu0
  %v6005 = vadd.f32 %v5932, %v6004
  %v6006 = vpop.f32.mrb[0].mxu0
  %v6007 = vadd.f32 %v5934, %v6006
  %6008 = vmatprep.mubr.bf16.mxu0 %v808
  %6009 = vmatmul.mubr.bf16.gmra.mrb[0].mxu0 %v807
  %v6010 = vpop.f32.mrb[0].mxu0
  %v6011 = vadd.f32 %v5938, %v6010
  %v6012 = vpop.f32.mrb[0].mxu0
  %v6013 = vadd.f32 %v5940, %v6012
  %v6014 = vpop.f32.mrb[0].mxu0
  %v6015 = vadd.f32 %v5942, %v6014
  %v6016 = vpop.f32.mrb[0].mxu0
  %v6017 = vadd.f32 %v5944, %v6016
  %6018 = vmatprep.mubr.bf16.mxu0 %v812
  %6019 = vmatmul.mubr.bf16.gmra.mrb[0].mxu0 %v811
  %v6020 = vpop.f32.mrb[0].mxu0
  %v6021 = vadd.f32 %v5948, %v6020
  %v6022 = vpop.f32.mrb[0].mxu0
  %v6023 = vadd.f32 %v5950, %v6022
  %v6024 = vpop.f32.mrb[0].mxu0
  %v6025 = vadd.f32 %v5952, %v6024
  %v6026 = vpop.f32.mrb[0].mxu0
  %v6027 = vadd.f32 %v5954, %v6026
  %6028 = vmatprep.mubr.bf16.mxu0 %v816
  %6029 = vmatmul.mubr.bf16.gmra.mrb[0].mxu0 %v815
  %v6030 = vpop.f32.mrb[0].mxu0
  %v6031 = vadd.f32 %v5958, %v6030
  %v6032 = vpop.f32.mrb[0].mxu0
  %v6033 = vadd.f32 %v5960, %v6032
  %v6034 = vpop.f32.mrb[0].mxu0
  %v6035 = vadd.f32 %v5962, %v6034
  %v6036 = vpop.f32.mrb[0].mxu0
  %v6037 = vadd.f32 %v5964, %v6036
  %6038 = vdwg.mxu0
  %6039 = vmatprep.subr.bf16.mxu0 %v5640
  %6040 = vmatpush1.bf16.msra.mxu0 %v5639
  %6041 = vmatprep.subr.bf16.mxu0 %v5644
  %6042 = vmatpush1.bf16.msra.mxu0 %v5643
  %6043 = vmatprep.subr.bf16.mxu0 %v5648
  %6044 = vmatpush1.bf16.msra.mxu0 %v5647
  %6045 = vmatprep.subr.bf16.mxu0 %v5652
  %6046 = vmatpush1.bf16.msra.mxu0 %v5651
  %6047 = vmatprep.subr.bf16.mxu0 %v5656
  %6048 = vmatpush1.bf16.msra.mxu0 %v5655
  %6049 = vmatprep.subr.bf16.mxu0 %v5660
  %6050 = vmatpush1.bf16.msra.mxu0 %v5659
  %6051 = vmatprep.subr.bf16.mxu0 %v5664
  %6052 = vmatpush1.bf16.msra.mxu0 %v5663
  %6053 = vmatprep.subr.bf16.mxu0 %v5668
  %6054 = vmatpush1.bf16.msra.mxu0 %v5667
  %6055 = vmatprep.subr.bf16.mxu0 %v5672
  %6056 = vmatpush1.bf16.msra.mxu0 %v5671
  %6057 = vmatprep.subr.bf16.mxu0 %v5676
  %6058 = vmatpush1.bf16.msra.mxu0 %v5675
  %6059 = vmatprep.subr.bf16.mxu0 %v5680
  %6060 = vmatpush1.bf16.msra.mxu0 %v5679
  %6061 = vmatprep.subr.bf16.mxu0 %v5684
  %6062 = vmatpush1.bf16.msra.mxu0 %v5683
  %6063 = vmatprep.subr.bf16.mxu0 %v5688
  %6064 = vmatpush1.bf16.msra.mxu0 %v5687
  %6065 = vmatprep.subr.bf16.mxu0 %v5692
  %6066 = vmatpush1.bf16.msra.mxu0 %v5691
  %6067 = vmatprep.subr.bf16.mxu0 %v5696
  %6068 = vmatpush1.bf16.msra.mxu0 %v5695
  %6069 = vmatprep.subr.bf16.mxu0 %v5700
  %6070 = vmatpush1.bf16.msra.mxu0 %v5699
  %6071 = vmatprep.mubr.bf16.mxu0 %v802
  %6072 = vmatmul.mubr.bf16.gmra.mrb[0].mxu0 %v801
  %v6073 = vpop.f32.mrb[0].mxu0
  %v6074 = vadd.f32 0.0, %v6073
  %v6075 = vpop.f32.mrb[0].mxu0
  %v6076 = vadd.f32 0.0, %v6075
  %v6077 = vpop.f32.mrb[0].mxu0
  %v6078 = vadd.f32 0.0, %v6077
  %v6079 = vpop.f32.mrb[0].mxu0
  %v6080 = vadd.f32 0.0, %v6079
  %6081 = vmatprep.mubr.bf16.mxu0 %v806
  %6082 = vmatmul.mubr.bf16.gmra.mrb[0].mxu0 %v805
  %v6083 = vpop.f32.mrb[0].mxu0
  %v6084 = vadd.f32 0.0, %v6083
  %v6085 = vpop.f32.mrb[0].mxu0
  %v6086 = vadd.f32 0.0, %v6085
  %v6087 = vpop.f32.mrb[0].mxu0
  %v6088 = vadd.f32 0.0, %v6087
  %v6089 = vpop.f32.mrb[0].mxu0
  %v6090 = vadd.f32 0.0, %v6089
  %6091 = vmatprep.mubr.bf16.mxu0 %v810
  %6092 = vmatmul.mubr.bf16.gmra.mrb[0].mxu0 %v809
  %v6093 = vpop.f32.mrb[0].mxu0
  %v6094 = vadd.f32 0.0, %v6093
  %v6095 = vpop.f32.mrb[0].mxu0
  %v6096 = vadd.f32 0.0, %v6095
  %v6097 = vpop.f32.mrb[0].mxu0
  %v6098 = vadd.f32 0.0, %v6097
  %v6099 = vpop.f32.mrb[0].mxu0
  %v6100 = vadd.f32 0.0, %v6099
  %6101 = vmatprep.mubr.bf16.mxu0 %v814
  %6102 = vmatmul.mubr.bf16.gmra.mrb[0].mxu0 %v813
  %v6103 = vpop.f32.mrb[0].mxu0
  %v6104 = vadd.f32 0.0, %v6103
  %v6105 = vpop.f32.mrb[0].mxu0
  %v6106 = vadd.f32 0.0, %v6105
  %v6107 = vpop.f32.mrb[0].mxu0
  %v6108 = vadd.f32 0.0, %v6107
  %v6109 = vpop.f32.mrb[0].mxu0
  %v6110 = vadd.f32 0.0, %v6109
  %6111 = vdwg.mxu0
  %6112 = vmatprep.subr.bf16.mxu0 %v5704
  %6113 = vmatpush1.bf16.msra.mxu0 %v5703
  %6114 = vmatprep.subr.bf16.mxu0 %v5708
  %6115 = vmatpush1.bf16.msra.mxu0 %v5707
  %6116 = vmatprep.subr.bf16.mxu0 %v5712
  %6117 = vmatpush1.bf16.msra.mxu0 %v5711
  %6118 = vmatprep.subr.bf16.mxu0 %v5716
  %6119 = vmatpush1.bf16.msra.mxu0 %v5715
  %6120 = vmatprep.subr.bf16.mxu0 %v5720
  %6121 = vmatpush1.bf16.msra.mxu0 %v5719
  %6122 = vmatprep.subr.bf16.mxu0 %v5724
  %6123 = vmatpush1.bf16.msra.mxu0 %v5723
  %6124 = vmatprep.subr.bf16.mxu0 %v5728
  %6125 = vmatpush1.bf16.msra.mxu0 %v5727
  %6126 = vmatprep.subr.bf16.mxu0 %v5732
  %6127 = vmatpush1.bf16.msra.mxu0 %v5731
  %6128 = vmatprep.subr.bf16.mxu0 %v5736
  %6129 = vmatpush1.bf16.msra.mxu0 %v5735
  %6130 = vmatprep.subr.bf16.mxu0 %v5740
  %6131 = vmatpush1.bf16.msra.mxu0 %v5739
  %6132 = vmatprep.subr.bf16.mxu0 %v5744
  %6133 = vmatpush1.bf16.msra.mxu0 %v5743
  %6134 = vmatprep.subr.bf16.mxu0 %v5748
  %6135 = vmatpush1.bf16.msra.mxu0 %v5747
  %6136 = vmatprep.subr.bf16.mxu0 %v5752
  %6137 = vmatpush1.bf16.msra.mxu0 %v5751
  %6138 = vmatprep.subr.bf16.mxu0 %v5756
  %6139 = vmatpush1.bf16.msra.mxu0 %v5755
  %6140 = vmatprep.subr.bf16.mxu0 %v5760
  %6141 = vmatpush1.bf16.msra.mxu0 %v5759
  %6142 = vmatprep.subr.bf16.mxu0 %v5764
  %6143 = vmatpush1.bf16.msra.mxu0 %v5763
  %6144 = vmatprep.mubr.bf16.mxu0 %v804
  %6145 = vmatmul.mubr.bf16.gmra.mrb[0].mxu0 %v803
  %v6146 = vpop.f32.mrb[0].mxu0
  %v6147 = vadd.f32 %v6074, %v6146
  %v6148 = vpop.f32.mrb[0].mxu0
  %v6149 = vadd.f32 %v6076, %v6148
  %v6150 = vpop.f32.mrb[0].mxu0
  %v6151 = vadd.f32 %v6078, %v6150
  %v6152 = vpop.f32.mrb[0].mxu0
  %v6153 = vadd.f32 %v6080, %v6152
  %6154 = vmatprep.mubr.bf16.mxu0 %v808
  %6155 = vmatmul.mubr.bf16.gmra.mrb[0].mxu0 %v807
  %v6156 = vpop.f32.mrb[0].mxu0
  %v6157 = vadd.f32 %v6084, %v6156
  %v6158 = vpop.f32.mrb[0].mxu0
  %v6159 = vadd.f32 %v6086, %v6158
  %v6160 = vpop.f32.mrb[0].mxu0
  %v6161 = vadd.f32 %v6088, %v6160
  %v6162 = vpop.f32.mrb[0].mxu0
  %v6163 = vadd.f32 %v6090, %v6162
  %6164 = vmatprep.mubr.bf16.mxu0 %v812
  %6165 = vmatmul.mubr.bf16.gmra.mrb[0].mxu0 %v811
  %v6166 = vpop.f32.mrb[0].mxu0
  %v6167 = vadd.f32 %v6094, %v6166
  %v6168 = vpop.f32.mrb[0].mxu0
  %v6169 = vadd.f32 %v6096, %v6168
  %v6170 = vpop.f32.mrb[0].mxu0
  %v6171 = vadd.f32 %v6098, %v6170
  %v6172 = vpop.f32.mrb[0].mxu0
  %v6173 = vadd.f32 %v6100, %v6172
  %6174 = vmatprep.mubr.bf16.mxu0 %v816
  %6175 = vmatmul.mubr.bf16.gmra.mrb[0].mxu0 %v815
  %v6176 = vpop.f32.mrb[0].mxu0
  %v6177 = vadd.f32 %v6104, %v6176
  %v6178 = vpop.f32.mrb[0].mxu0
  %v6179 = vadd.f32 %v6106, %v6178
  %v6180 = vpop.f32.mrb[0].mxu0
  %v6181 = vadd.f32 %v6108, %v6180
  %v6182 = vpop.f32.mrb[0].mxu0
  %v6183 = vadd.f32 %v6110, %v6182
  %6184 = vdwg.mxu0
  %v6185 = vadd.f32 %v5092, %v6001
  %v6186 = vadd.f32 %v5093, %v6003
  %v6187 = vadd.f32 %v5094, %v6147
  %v6188 = vadd.f32 %v5095, %v6149
  %v6189 = vadd.f32 %v5096, %v6005
  %v6190 = vadd.f32 %v5097, %v6007
  %v6191 = vadd.f32 %v5098, %v6151
  %v6192 = vadd.f32 %v5099, %v6153
  %v6193 = vadd.f32 %v5100, %v6011
  %v6194 = vadd.f32 %v5101, %v6013
  %v6195 = vadd.f32 %v5102, %v6157
  %v6196 = vadd.f32 %v5103, %v6159
  %v6197 = vadd.f32 %v5104, %v6015
  %v6198 = vadd.f32 %v5105, %v6017
  %v6199 = vadd.f32 %v5106, %v6161
  %v6200 = vadd.f32 %v5107, %v6163
  %v6201 = vadd.f32 %v5108, %v6021
  %v6202 = vadd.f32 %v5109, %v6023
  %v6203 = vadd.f32 %v5110, %v6167
  %v6204 = vadd.f32 %v5111, %v6169
  %v6205 = vadd.f32 %v5112, %v6025
  %v6206 = vadd.f32 %v5113, %v6027
  %v6207 = vadd.f32 %v5114, %v6171
  %v6208 = vadd.f32 %v5115, %v6173
  %v6209 = vadd.f32 %v5116, %v6031
  %v6210 = vadd.f32 %v5117, %v6033
  %v6211 = vadd.f32 %v5118, %v6177
  %v6212 = vadd.f32 %v5119, %v6179
  %v6213 = vadd.f32 %v5120, %v6035
  %v6214 = vadd.f32 %v5121, %v6037
  %v6215 = vadd.f32 %v5122, %v6181
  %v6216 = vadd.f32 %v5123, %v6183
  %s6217 = scalar_lea.vmem %s4, 1
  %v6218 = vld [vmem:[%s6217] ss:$4 sm:$0xf]
  %v6220 = vlaneseq
  %v6221 = vshrl.u32 %v6220, 7
  %v6222 = vsub.s32 0, %v6221
  %v6223 = vrot.slane %v6218, %v6222
  %v6224 = vlaneseq
  %v6225 = vshrl.u32 %v6224, 7
  %v6226 = vsub.s32 1, %v6225
  %v6227 = vrot.slane %v6218, %v6226
  %v6228 = vlaneseq
  %v6229 = vshrl.u32 %v6228, 7
  %v6230 = vsub.s32 2, %v6229
  %v6231 = vrot.slane %v6218, %v6230
  %v6232 = vlaneseq
  %v6233 = vshrl.u32 %v6232, 7
  %v6234 = vsub.s32 3, %v6233
  %v6235 = vrot.slane %v6218, %v6234
  %v6240 = vadd.f32 %v6185, %v6223
  %v6241 = vadd.f32 %v6186, %v6227
  %v6242 = vadd.f32 %v6187, %v6231
  %v6243 = vadd.f32 %v6188, %v6235
  %v6244 = vadd.f32 %v6189, %v6223
  %v6245 = vadd.f32 %v6190, %v6227
  %v6246 = vadd.f32 %v6191, %v6231
  %v6247 = vadd.f32 %v6192, %v6235
  %v6248 = vadd.f32 %v6193, %v6223
  %v6249 = vadd.f32 %v6194, %v6227
  %v6250 = vadd.f32 %v6195, %v6231
  %v6251 = vadd.f32 %v6196, %v6235
  %v6252 = vadd.f32 %v6197, %v6223
  %v6253 = vadd.f32 %v6198, %v6227
  %v6254 = vadd.f32 %v6199, %v6231
  %v6255 = vadd.f32 %v6200, %v6235
  %v6256 = vadd.f32 %v6201, %v6223
  %v6257 = vadd.f32 %v6202, %v6227
  %v6258 = vadd.f32 %v6203, %v6231
  %v6259 = vadd.f32 %v6204, %v6235
  %v6260 = vadd.f32 %v6205, %v6223
  %v6261 = vadd.f32 %v6206, %v6227
  %v6262 = vadd.f32 %v6207, %v6231
  %v6263 = vadd.f32 %v6208, %v6235
  %v6264 = vadd.f32 %v6209, %v6223
  %v6265 = vadd.f32 %v6210, %v6227
  %v6266 = vadd.f32 %v6211, %v6231
  %v6267 = vadd.f32 %v6212, %v6235
  %v6268 = vadd.f32 %v6213, %v6223
  %v6269 = vadd.f32 %v6214, %v6227
  %v6270 = vadd.f32 %v6215, %v6231
  %v6271 = vadd.f32 %v6216, %v6235
  %v6272 = vmax.f32 %v6240, 0.0
  %v6273 = vmax.f32 %v6241, 0.0
  %v6274 = vmax.f32 %v6242, 0.0
  %v6275 = vmax.f32 %v6243, 0.0
  %v6276 = vmax.f32 %v6244, 0.0
  %v6277 = vmax.f32 %v6245, 0.0
  %v6278 = vmax.f32 %v6246, 0.0
  %v6279 = vmax.f32 %v6247, 0.0
  %v6280 = vmax.f32 %v6248, 0.0
  %v6281 = vmax.f32 %v6249, 0.0
  %v6282 = vmax.f32 %v6250, 0.0
  %v6283 = vmax.f32 %v6251, 0.0
  %v6284 = vmax.f32 %v6252, 0.0
  %v6285 = vmax.f32 %v6253, 0.0
  %v6286 = vmax.f32 %v6254, 0.0
  %v6287 = vmax.f32 %v6255, 0.0
  %v6288 = vmax.f32 %v6256, 0.0
  %v6289 = vmax.f32 %v6257, 0.0
  %v6290 = vmax.f32 %v6258, 0.0
  %v6291 = vmax.f32 %v6259, 0.0
  %v6292 = vmax.f32 %v6260, 0.0
  %v6293 = vmax.f32 %v6261, 0.0
  %v6294 = vmax.f32 %v6262, 0.0
  %v6295 = vmax.f32 %v6263, 0.0
  %v6296 = vmax.f32 %v6264, 0.0
  %v6297 = vmax.f32 %v6265, 0.0
  %v6298 = vmax.f32 %v6266, 0.0
  %v6299 = vmax.f32 %v6267, 0.0
  %v6300 = vmax.f32 %v6268, 0.0
  %v6301 = vmax.f32 %v6269, 0.0
  %v6302 = vmax.f32 %v6270, 0.0
  %v6303 = vmax.f32 %v6271, 0.0
  %v6304 = vmul.f32 %v6272, 0.999995
  %v6305 = vmul.f32 %v6273, 0.999995
  %v6306 = vmul.f32 %v6274, 0.999995
  %v6307 = vmul.f32 %v6275, 0.999995
  %v6308 = vmul.f32 %v6276, 0.999995
  %v6309 = vmul.f32 %v6277, 0.999995
  %v6310 = vmul.f32 %v6278, 0.999995
  %v6311 = vmul.f32 %v6279, 0.999995
  %v6312 = vmul.f32 %v6280, 0.999995
  %v6313 = vmul.f32 %v6281, 0.999995
  %v6314 = vmul.f32 %v6282, 0.999995
  %v6315 = vmul.f32 %v6283, 0.999995
  %v6316 = vmul.f32 %v6284, 0.999995
  %v6317 = vmul.f32 %v6285, 0.999995
  %v6318 = vmul.f32 %v6286, 0.999995
  %v6319 = vmul.f32 %v6287, 0.999995
  %v6320 = vmul.f32 %v6288, 0.999995
  %v6321 = vmul.f32 %v6289, 0.999995
  %v6322 = vmul.f32 %v6290, 0.999995
  %v6323 = vmul.f32 %v6291, 0.999995
  %v6324 = vmul.f32 %v6292, 0.999995
  %v6325 = vmul.f32 %v6293, 0.999995
  %v6326 = vmul.f32 %v6294, 0.999995
  %v6327 = vmul.f32 %v6295, 0.999995
  %v6328 = vmul.f32 %v6296, 0.999995
  %v6329 = vmul.f32 %v6297, 0.999995
  %v6330 = vmul.f32 %v6298, 0.999995
  %v6331 = vmul.f32 %v6299, 0.999995
  %v6332 = vmul.f32 %v6300, 0.999995
  %v6333 = vmul.f32 %v6301, 0.999995
  %v6334 = vmul.f32 %v6302, 0.999995
  %v6335 = vmul.f32 %v6303, 0.999995
  %v6336 = vpack.c.bf16 %v6308, %v6304
  %v6337 = vpack.c.bf16 %v6309, %v6305
  %v6338 = vpack.c.bf16 %v6310, %v6306
  %v6339 = vpack.c.bf16 %v6311, %v6307
  %v6340 = vpack.c.bf16 %v6316, %v6312
  %v6341 = vpack.c.bf16 %v6317, %v6313
  %v6342 = vpack.c.bf16 %v6318, %v6314
  %v6343 = vpack.c.bf16 %v6319, %v6315
  %v6344 = vpack.c.bf16 %v6324, %v6320
  %v6345 = vpack.c.bf16 %v6325, %v6321
  %v6346 = vpack.c.bf16 %v6326, %v6322
  %v6347 = vpack.c.bf16 %v6327, %v6323
  %v6348 = vpack.c.bf16 %v6332, %v6328
  %v6349 = vpack.c.bf16 %v6333, %v6329
  %v6350 = vpack.c.bf16 %v6334, %v6330
  %v6351 = vpack.c.bf16 %v6335, %v6331
  %v6352 = vld [vmem:[%s3] sm:$0xff]
  %v6353 = vld [vmem:[%s3 + $0x8] sm:$0xff]
  %v6354 = vld [vmem:[%s3 + $0x10] sm:$0xff]
  %v6355 = vld [vmem:[%s3 + $0x18] sm:$0xff]
  %v6356 = vld [vmem:[%s3 + $0x20] sm:$0xff]
  %v6357 = vld [vmem:[%s3 + $0x28] sm:$0xff]
  %v6358 = vld [vmem:[%s3 + $0x30] sm:$0xff]
  %v6359 = vld [vmem:[%s3 + $0x38] sm:$0xff]
  %v6360 = vld [vmem:[%s3 + $0x40] sm:$0xff]
  %v6361 = vld [vmem:[%s3 + $0x48] sm:$0xff]
  %v6362 = vld [vmem:[%s3 + $0x50] sm:$0xff]
  %v6363 = vld [vmem:[%s3 + $0x58] sm:$0xff]
  %v6364 = vld [vmem:[%s3 + $0x60] sm:$0xff]
  %v6365 = vld [vmem:[%s3 + $0x68] sm:$0xff]
  %v6366 = vld [vmem:[%s3 + $0x70] sm:$0xff]
  %v6367 = vld [vmem:[%s3 + $0x78] sm:$0xff]
  %v6368 = vld [vmem:[%s3 + $0x80] sm:$0xff]
  %v6369 = vld [vmem:[%s3 + $0x88] sm:$0xff]
  %v6370 = vld [vmem:[%s3 + $0x90] sm:$0xff]
  %v6371 = vld [vmem:[%s3 + $0x98] sm:$0xff]
  %v6372 = vld [vmem:[%s3 + $0xa0] sm:$0xff]
  %v6373 = vld [vmem:[%s3 + $0xa8] sm:$0xff]
  %v6374 = vld [vmem:[%s3 + $0xb0] sm:$0xff]
  %v6375 = vld [vmem:[%s3 + $0xb8] sm:$0xff]
  %v6376 = vld [vmem:[%s3 + $0xc0] sm:$0xff]
  %v6377 = vld [vmem:[%s3 + $0xc8] sm:$0xff]
  %v6378 = vld [vmem:[%s3 + $0xd0] sm:$0xff]
  %v6379 = vld [vmem:[%s3 + $0xd8] sm:$0xff]
  %v6380 = vld [vmem:[%s3 + $0xe0] sm:$0xff]
  %v6381 = vld [vmem:[%s3 + $0xe8] sm:$0xff]
  %v6382 = vld [vmem:[%s3 + $0xf0] sm:$0xff]
  %v6383 = vld [vmem:[%s3 + $0xf8] sm:$0xff]
  %v6384 = vld [vmem:[%s3 + $0x100] sm:$0xff]
  %v6385 = vld [vmem:[%s3 + $0x108] sm:$0xff]
  %v6386 = vld [vmem:[%s3 + $0x110] sm:$0xff]
  %v6387 = vld [vmem:[%s3 + $0x118] sm:$0xff]
  %v6388 = vld [vmem:[%s3 + $0x120] sm:$0xff]
  %v6389 = vld [vmem:[%s3 + $0x128] sm:$0xff]
  %v6390 = vld [vmem:[%s3 + $0x130] sm:$0xff]
  %v6391 = vld [vmem:[%s3 + $0x138] sm:$0xff]
  %v6392 = vld [vmem:[%s3 + $0x140] sm:$0xff]
  %v6393 = vld [vmem:[%s3 + $0x148] sm:$0xff]
  %v6394 = vld [vmem:[%s3 + $0x150] sm:$0xff]
  %v6395 = vld [vmem:[%s3 + $0x158] sm:$0xff]
  %v6396 = vld [vmem:[%s3 + $0x160] sm:$0xff]
  %v6397 = vld [vmem:[%s3 + $0x168] sm:$0xff]
  %v6398 = vld [vmem:[%s3 + $0x170] sm:$0xff]
  %v6399 = vld [vmem:[%s3 + $0x178] sm:$0xff]
  %v6400 = vld [vmem:[%s3 + $0x180] sm:$0xff]
  %v6401 = vld [vmem:[%s3 + $0x188] sm:$0xff]
  %v6402 = vld [vmem:[%s3 + $0x190] sm:$0xff]
  %v6403 = vld [vmem:[%s3 + $0x198] sm:$0xff]
  %v6404 = vld [vmem:[%s3 + $0x1a0] sm:$0xff]
  %v6405 = vld [vmem:[%s3 + $0x1a8] sm:$0xff]
  %v6406 = vld [vmem:[%s3 + $0x1b0] sm:$0xff]
  %v6407 = vld [vmem:[%s3 + $0x1b8] sm:$0xff]
  %v6408 = vld [vmem:[%s3 + $0x1c0] sm:$0xff]
  %v6409 = vld [vmem:[%s3 + $0x1c8] sm:$0xff]
  %v6410 = vld [vmem:[%s3 + $0x1d0] sm:$0xff]
  %v6411 = vld [vmem:[%s3 + $0x1d8] sm:$0xff]
  %v6412 = vld [vmem:[%s3 + $0x1e0] sm:$0xff]
  %v6413 = vld [vmem:[%s3 + $0x1e8] sm:$0xff]
  %v6414 = vld [vmem:[%s3 + $0x1f0] sm:$0xff]
  %v6415 = vld [vmem:[%s3 + $0x1f8] sm:$0xff]
  %v6416 = vld [vmem:[%s3 + $0x200] sm:$0xff]
  %v6417 = vld [vmem:[%s3 + $0x208] sm:$0xff]
  %v6418 = vld [vmem:[%s3 + $0x210] sm:$0xff]
  %v6419 = vld [vmem:[%s3 + $0x218] sm:$0xff]
  %v6420 = vld [vmem:[%s3 + $0x220] sm:$0xff]
  %v6421 = vld [vmem:[%s3 + $0x228] sm:$0xff]
  %v6422 = vld [vmem:[%s3 + $0x230] sm:$0xff]
  %v6423 = vld [vmem:[%s3 + $0x238] sm:$0xff]
  %v6424 = vld [vmem:[%s3 + $0x240] sm:$0xff]
  %v6425 = vld [vmem:[%s3 + $0x248] sm:$0xff]
  %v6426 = vld [vmem:[%s3 + $0x250] sm:$0xff]
  %v6427 = vld [vmem:[%s3 + $0x258] sm:$0xff]
  %v6428 = vld [vmem:[%s3 + $0x260] sm:$0xff]
  %v6429 = vld [vmem:[%s3 + $0x268] sm:$0xff]
  %v6430 = vld [vmem:[%s3 + $0x270] sm:$0xff]
  %v6431 = vld [vmem:[%s3 + $0x278] sm:$0xff]
  %v6432 = vld [vmem:[%s3 + $0x280] sm:$0xff]
  %v6433 = vld [vmem:[%s3 + $0x288] sm:$0xff]
  %v6434 = vld [vmem:[%s3 + $0x290] sm:$0xff]
  %v6435 = vld [vmem:[%s3 + $0x298] sm:$0xff]
  %v6436 = vld [vmem:[%s3 + $0x2a0] sm:$0xff]
  %v6437 = vld [vmem:[%s3 + $0x2a8] sm:$0xff]
  %v6438 = vld [vmem:[%s3 + $0x2b0] sm:$0xff]
  %v6439 = vld [vmem:[%s3 + $0x2b8] sm:$0xff]
  %v6440 = vld [vmem:[%s3 + $0x2c0] sm:$0xff]
  %v6441 = vld [vmem:[%s3 + $0x2c8] sm:$0xff]
  %v6442 = vld [vmem:[%s3 + $0x2d0] sm:$0xff]
  %v6443 = vld [vmem:[%s3 + $0x2d8] sm:$0xff]
  %v6444 = vld [vmem:[%s3 + $0x2e0] sm:$0xff]
  %v6445 = vld [vmem:[%s3 + $0x2e8] sm:$0xff]
  %v6446 = vld [vmem:[%s3 + $0x2f0] sm:$0xff]
  %v6447 = vld [vmem:[%s3 + $0x2f8] sm:$0xff]
  %v6448 = vld [vmem:[%s3 + $0x300] sm:$0xff]
  %v6449 = vld [vmem:[%s3 + $0x308] sm:$0xff]
  %v6450 = vld [vmem:[%s3 + $0x310] sm:$0xff]
  %v6451 = vld [vmem:[%s3 + $0x318] sm:$0xff]
  %v6452 = vld [vmem:[%s3 + $0x320] sm:$0xff]
  %v6453 = vld [vmem:[%s3 + $0x328] sm:$0xff]
  %v6454 = vld [vmem:[%s3 + $0x330] sm:$0xff]
  %v6455 = vld [vmem:[%s3 + $0x338] sm:$0xff]
  %v6456 = vld [vmem:[%s3 + $0x340] sm:$0xff]
  %v6457 = vld [vmem:[%s3 + $0x348] sm:$0xff]
  %v6458 = vld [vmem:[%s3 + $0x350] sm:$0xff]
  %v6459 = vld [vmem:[%s3 + $0x358] sm:$0xff]
  %v6460 = vld [vmem:[%s3 + $0x360] sm:$0xff]
  %v6461 = vld [vmem:[%s3 + $0x368] sm:$0xff]
  %v6462 = vld [vmem:[%s3 + $0x370] sm:$0xff]
  %v6463 = vld [vmem:[%s3 + $0x378] sm:$0xff]
  %v6464 = vld [vmem:[%s3 + $0x380] sm:$0xff]
  %v6465 = vld [vmem:[%s3 + $0x388] sm:$0xff]
  %v6466 = vld [vmem:[%s3 + $0x390] sm:$0xff]
  %v6467 = vld [vmem:[%s3 + $0x398] sm:$0xff]
  %v6468 = vld [vmem:[%s3 + $0x3a0] sm:$0xff]
  %v6469 = vld [vmem:[%s3 + $0x3a8] sm:$0xff]
  %v6470 = vld [vmem:[%s3 + $0x3b0] sm:$0xff]
  %v6471 = vld [vmem:[%s3 + $0x3b8] sm:$0xff]
  %v6472 = vld [vmem:[%s3 + $0x3c0] sm:$0xff]
  %v6473 = vld [vmem:[%s3 + $0x3c8] sm:$0xff]
  %v6474 = vld [vmem:[%s3 + $0x3d0] sm:$0xff]
  %v6475 = vld [vmem:[%s3 + $0x3d8] sm:$0xff]
  %v6476 = vld [vmem:[%s3 + $0x3e0] sm:$0xff]
  %v6477 = vld [vmem:[%s3 + $0x3e8] sm:$0xff]
  %v6478 = vld [vmem:[%s3 + $0x3f0] sm:$0xff]
  %v6479 = vld [vmem:[%s3 + $0x3f8] sm:$0xff]
  %s6480 = scalar_lea.vmem %s4, 2
  %v6481 = vld [vmem:[%s6480] ss:$4 sm:$0xf]
  %v6483 = vlaneseq
  %v6484 = vshrl.u32 %v6483, 7
  %v6485 = vsub.s32 0, %v6484
  %v6486 = vrot.slane %v6481, %v6485
  %v6487 = vlaneseq
  %v6488 = vshrl.u32 %v6487, 7
  %v6489 = vsub.s32 1, %v6488
  %v6490 = vrot.slane %v6481, %v6489
  %v6491 = vlaneseq
  %v6492 = vshrl.u32 %v6491, 7
  %v6493 = vsub.s32 2, %v6492
  %v6494 = vrot.slane %v6481, %v6493
  %v6495 = vlaneseq
  %v6496 = vshrl.u32 %v6495, 7
  %v6497 = vsub.s32 3, %v6496
  %v6498 = vrot.slane %v6481, %v6497
  %v6631 = vunpack.c.l.b16 %v6352
  %v6632 = vunpack.c.h.b16 %v6352
  %v6633 = vunpack.c.l.b16 %v6353
  %v6634 = vunpack.c.h.b16 %v6353
  %v6635 = vunpack.c.l.b16 %v6354
  %v6636 = vunpack.c.h.b16 %v6354
  %v6637 = vunpack.c.l.b16 %v6355
  %v6638 = vunpack.c.h.b16 %v6355
  %v6639 = vunpack.c.l.b16 %v6356
  %v6640 = vunpack.c.h.b16 %v6356
  %v6641 = vunpack.c.l.b16 %v6357
  %v6642 = vunpack.c.h.b16 %v6357
  %v6643 = vunpack.c.l.b16 %v6358
  %v6644 = vunpack.c.h.b16 %v6358
  %v6645 = vunpack.c.l.b16 %v6359
  %v6646 = vunpack.c.h.b16 %v6359
  %v6647 = vunpack.c.l.b16 %v6360
  %v6648 = vunpack.c.h.b16 %v6360
  %v6649 = vunpack.c.l.b16 %v6361
  %v6650 = vunpack.c.h.b16 %v6361
  %v6651 = vunpack.c.l.b16 %v6362
  %v6652 = vunpack.c.h.b16 %v6362
  %v6653 = vunpack.c.l.b16 %v6363
  %v6654 = vunpack.c.h.b16 %v6363
  %v6655 = vunpack.c.l.b16 %v6364
  %v6656 = vunpack.c.h.b16 %v6364
  %v6657 = vunpack.c.l.b16 %v6365
  %v6658 = vunpack.c.h.b16 %v6365
  %v6659 = vunpack.c.l.b16 %v6366
  %v6660 = vunpack.c.h.b16 %v6366
  %v6661 = vunpack.c.l.b16 %v6367
  %v6662 = vunpack.c.h.b16 %v6367
  %v6663 = vunpack.c.l.b16 %v6368
  %v6664 = vunpack.c.h.b16 %v6368
  %v6665 = vunpack.c.l.b16 %v6369
  %v6666 = vunpack.c.h.b16 %v6369
  %v6667 = vunpack.c.l.b16 %v6370
  %v6668 = vunpack.c.h.b16 %v6370
  %v6669 = vunpack.c.l.b16 %v6371
  %v6670 = vunpack.c.h.b16 %v6371
  %v6671 = vunpack.c.l.b16 %v6372
  %v6672 = vunpack.c.h.b16 %v6372
  %v6673 = vunpack.c.l.b16 %v6373
  %v6674 = vunpack.c.h.b16 %v6373
  %v6675 = vunpack.c.l.b16 %v6374
  %v6676 = vunpack.c.h.b16 %v6374
  %v6677 = vunpack.c.l.b16 %v6375
  %v6678 = vunpack.c.h.b16 %v6375
  %v6679 = vunpack.c.l.b16 %v6376
  %v6680 = vunpack.c.h.b16 %v6376
  %v6681 = vunpack.c.l.b16 %v6377
  %v6682 = vunpack.c.h.b16 %v6377
  %v6683 = vunpack.c.l.b16 %v6378
  %v6684 = vunpack.c.h.b16 %v6378
  %v6685 = vunpack.c.l.b16 %v6379
  %v6686 = vunpack.c.h.b16 %v6379
  %v6687 = vunpack.c.l.b16 %v6380
  %v6688 = vunpack.c.h.b16 %v6380
  %v6689 = vunpack.c.l.b16 %v6381
  %v6690 = vunpack.c.h.b16 %v6381
  %v6691 = vunpack.c.l.b16 %v6382
  %v6692 = vunpack.c.h.b16 %v6382
  %v6693 = vunpack.c.l.b16 %v6383
  %v6694 = vunpack.c.h.b16 %v6383
  %v6695 = vunpack.c.l.b16 %v6384
  %v6696 = vunpack.c.h.b16 %v6384
  %v6697 = vunpack.c.l.b16 %v6385
  %v6698 = vunpack.c.h.b16 %v6385
  %v6699 = vunpack.c.l.b16 %v6386
  %v6700 = vunpack.c.h.b16 %v6386
  %v6701 = vunpack.c.l.b16 %v6387
  %v6702 = vunpack.c.h.b16 %v6387
  %v6703 = vunpack.c.l.b16 %v6388
  %v6704 = vunpack.c.h.b16 %v6388
  %v6705 = vunpack.c.l.b16 %v6389
  %v6706 = vunpack.c.h.b16 %v6389
  %v6707 = vunpack.c.l.b16 %v6390
  %v6708 = vunpack.c.h.b16 %v6390
  %v6709 = vunpack.c.l.b16 %v6391
  %v6710 = vunpack.c.h.b16 %v6391
  %v6711 = vunpack.c.l.b16 %v6392
  %v6712 = vunpack.c.h.b16 %v6392
  %v6713 = vunpack.c.l.b16 %v6393
  %v6714 = vunpack.c.h.b16 %v6393
  %v6715 = vunpack.c.l.b16 %v6394
  %v6716 = vunpack.c.h.b16 %v6394
  %v6717 = vunpack.c.l.b16 %v6395
  %v6718 = vunpack.c.h.b16 %v6395
  %v6719 = vunpack.c.l.b16 %v6396
  %v6720 = vunpack.c.h.b16 %v6396
  %v6721 = vunpack.c.l.b16 %v6397
  %v6722 = vunpack.c.h.b16 %v6397
  %v6723 = vunpack.c.l.b16 %v6398
  %v6724 = vunpack.c.h.b16 %v6398
  %v6725 = vunpack.c.l.b16 %v6399
  %v6726 = vunpack.c.h.b16 %v6399
  %v6727 = vunpack.c.l.b16 %v6400
  %v6728 = vunpack.c.h.b16 %v6400
  %v6729 = vunpack.c.l.b16 %v6401
  %v6730 = vunpack.c.h.b16 %v6401
  %v6731 = vunpack.c.l.b16 %v6402
  %v6732 = vunpack.c.h.b16 %v6402
  %v6733 = vunpack.c.l.b16 %v6403
  %v6734 = vunpack.c.h.b16 %v6403
  %v6735 = vunpack.c.l.b16 %v6404
  %v6736 = vunpack.c.h.b16 %v6404
  %v6737 = vunpack.c.l.b16 %v6405
  %v6738 = vunpack.c.h.b16 %v6405
  %v6739 = vunpack.c.l.b16 %v6406
  %v6740 = vunpack.c.h.b16 %v6406
  %v6741 = vunpack.c.l.b16 %v6407
  %v6742 = vunpack.c.h.b16 %v6407
  %v6743 = vunpack.c.l.b16 %v6408
  %v6744 = vunpack.c.h.b16 %v6408
  %v6745 = vunpack.c.l.b16 %v6409
  %v6746 = vunpack.c.h.b16 %v6409
  %v6747 = vunpack.c.l.b16 %v6410
  %v6748 = vunpack.c.h.b16 %v6410
  %v6749 = vunpack.c.l.b16 %v6411
  %v6750 = vunpack.c.h.b16 %v6411
  %v6751 = vunpack.c.l.b16 %v6412
  %v6752 = vunpack.c.h.b16 %v6412
  %v6753 = vunpack.c.l.b16 %v6413
  %v6754 = vunpack.c.h.b16 %v6413
  %v6755 = vunpack.c.l.b16 %v6414
  %v6756 = vunpack.c.h.b16 %v6414
  %v6757 = vunpack.c.l.b16 %v6415
  %v6758 = vunpack.c.h.b16 %v6415
  %v6759 = vunpack.c.l.b16 %v6416
  %v6760 = vunpack.c.h.b16 %v6416
  %v6761 = vunpack.c.l.b16 %v6417
  %v6762 = vunpack.c.h.b16 %v6417
  %v6763 = vunpack.c.l.b16 %v6418
  %v6764 = vunpack.c.h.b16 %v6418
  %v6765 = vunpack.c.l.b16 %v6419
  %v6766 = vunpack.c.h.b16 %v6419
  %v6767 = vunpack.c.l.b16 %v6420
  %v6768 = vunpack.c.h.b16 %v6420
  %v6769 = vunpack.c.l.b16 %v6421
  %v6770 = vunpack.c.h.b16 %v6421
  %v6771 = vunpack.c.l.b16 %v6422
  %v6772 = vunpack.c.h.b16 %v6422
  %v6773 = vunpack.c.l.b16 %v6423
  %v6774 = vunpack.c.h.b16 %v6423
  %v6775 = vunpack.c.l.b16 %v6424
  %v6776 = vunpack.c.h.b16 %v6424
  %v6777 = vunpack.c.l.b16 %v6425
  %v6778 = vunpack.c.h.b16 %v6425
  %v6779 = vunpack.c.l.b16 %v6426
  %v6780 = vunpack.c.h.b16 %v6426
  %v6781 = vunpack.c.l.b16 %v6427
  %v6782 = vunpack.c.h.b16 %v6427
  %v6783 = vunpack.c.l.b16 %v6428
  %v6784 = vunpack.c.h.b16 %v6428
  %v6785 = vunpack.c.l.b16 %v6429
  %v6786 = vunpack.c.h.b16 %v6429
  %v6787 = vunpack.c.l.b16 %v6430
  %v6788 = vunpack.c.h.b16 %v6430
  %v6789 = vunpack.c.l.b16 %v6431
  %v6790 = vunpack.c.h.b16 %v6431
  %v6791 = vunpack.c.l.b16 %v6432
  %v6792 = vunpack.c.h.b16 %v6432
  %v6793 = vunpack.c.l.b16 %v6433
  %v6794 = vunpack.c.h.b16 %v6433
  %v6795 = vunpack.c.l.b16 %v6434
  %v6796 = vunpack.c.h.b16 %v6434
  %v6797 = vunpack.c.l.b16 %v6435
  %v6798 = vunpack.c.h.b16 %v6435
  %v6799 = vunpack.c.l.b16 %v6436
  %v6800 = vunpack.c.h.b16 %v6436
  %v6801 = vunpack.c.l.b16 %v6437
  %v6802 = vunpack.c.h.b16 %v6437
  %v6803 = vunpack.c.l.b16 %v6438
  %v6804 = vunpack.c.h.b16 %v6438
  %v6805 = vunpack.c.l.b16 %v6439
  %v6806 = vunpack.c.h.b16 %v6439
  %v6807 = vunpack.c.l.b16 %v6440
  %v6808 = vunpack.c.h.b16 %v6440
  %v6809 = vunpack.c.l.b16 %v6441
  %v6810 = vunpack.c.h.b16 %v6441
  %v6811 = vunpack.c.l.b16 %v6442
  %v6812 = vunpack.c.h.b16 %v6442
  %v6813 = vunpack.c.l.b16 %v6443
  %v6814 = vunpack.c.h.b16 %v6443
  %v6815 = vunpack.c.l.b16 %v6444
  %v6816 = vunpack.c.h.b16 %v6444
  %v6817 = vunpack.c.l.b16 %v6445
  %v6818 = vunpack.c.h.b16 %v6445
  %v6819 = vunpack.c.l.b16 %v6446
  %v6820 = vunpack.c.h.b16 %v6446
  %v6821 = vunpack.c.l.b16 %v6447
  %v6822 = vunpack.c.h.b16 %v6447
  %v6823 = vunpack.c.l.b16 %v6448
  %v6824 = vunpack.c.h.b16 %v6448
  %v6825 = vunpack.c.l.b16 %v6449
  %v6826 = vunpack.c.h.b16 %v6449
  %v6827 = vunpack.c.l.b16 %v6450
  %v6828 = vunpack.c.h.b16 %v6450
  %v6829 = vunpack.c.l.b16 %v6451
  %v6830 = vunpack.c.h.b16 %v6451
  %v6831 = vunpack.c.l.b16 %v6452
  %v6832 = vunpack.c.h.b16 %v6452
  %v6833 = vunpack.c.l.b16 %v6453
  %v6834 = vunpack.c.h.b16 %v6453
  %v6835 = vunpack.c.l.b16 %v6454
  %v6836 = vunpack.c.h.b16 %v6454
  %v6837 = vunpack.c.l.b16 %v6455
  %v6838 = vunpack.c.h.b16 %v6455
  %v6839 = vunpack.c.l.b16 %v6456
  %v6840 = vunpack.c.h.b16 %v6456
  %v6841 = vunpack.c.l.b16 %v6457
  %v6842 = vunpack.c.h.b16 %v6457
  %v6843 = vunpack.c.l.b16 %v6458
  %v6844 = vunpack.c.h.b16 %v6458
  %v6845 = vunpack.c.l.b16 %v6459
  %v6846 = vunpack.c.h.b16 %v6459
  %v6847 = vunpack.c.l.b16 %v6460
  %v6848 = vunpack.c.h.b16 %v6460
  %v6849 = vunpack.c.l.b16 %v6461
  %v6850 = vunpack.c.h.b16 %v6461
  %v6851 = vunpack.c.l.b16 %v6462
  %v6852 = vunpack.c.h.b16 %v6462
  %v6853 = vunpack.c.l.b16 %v6463
  %v6854 = vunpack.c.h.b16 %v6463
  %v6855 = vunpack.c.l.b16 %v6464
  %v6856 = vunpack.c.h.b16 %v6464
  %v6857 = vunpack.c.l.b16 %v6465
  %v6858 = vunpack.c.h.b16 %v6465
  %v6859 = vunpack.c.l.b16 %v6466
  %v6860 = vunpack.c.h.b16 %v6466
  %v6861 = vunpack.c.l.b16 %v6467
  %v6862 = vunpack.c.h.b16 %v6467
  %v6863 = vunpack.c.l.b16 %v6468
  %v6864 = vunpack.c.h.b16 %v6468
  %v6865 = vunpack.c.l.b16 %v6469
  %v6866 = vunpack.c.h.b16 %v6469
  %v6867 = vunpack.c.l.b16 %v6470
  %v6868 = vunpack.c.h.b16 %v6470
  %v6869 = vunpack.c.l.b16 %v6471
  %v6870 = vunpack.c.h.b16 %v6471
  %v6871 = vunpack.c.l.b16 %v6472
  %v6872 = vunpack.c.h.b16 %v6472
  %v6873 = vunpack.c.l.b16 %v6473
  %v6874 = vunpack.c.h.b16 %v6473
  %v6875 = vunpack.c.l.b16 %v6474
  %v6876 = vunpack.c.h.b16 %v6474
  %v6877 = vunpack.c.l.b16 %v6475
  %v6878 = vunpack.c.h.b16 %v6475
  %v6879 = vunpack.c.l.b16 %v6476
  %v6880 = vunpack.c.h.b16 %v6476
  %v6881 = vunpack.c.l.b16 %v6477
  %v6882 = vunpack.c.h.b16 %v6477
  %v6883 = vunpack.c.l.b16 %v6478
  %v6884 = vunpack.c.h.b16 %v6478
  %v6885 = vunpack.c.l.b16 %v6479
  %v6886 = vunpack.c.h.b16 %v6479
  %v6887 = vpack.c.b16 %v6635, %v6631
  %v6888 = vpack.c.b16 %v6636, %v6632
  %v6889 = vpack.c.b16 %v6637, %v6633
  %v6890 = vpack.c.b16 %v6638, %v6634
  %v6891 = vpack.c.b16 %v6643, %v6639
  %v6892 = vpack.c.b16 %v6644, %v6640
  %v6893 = vpack.c.b16 %v6645, %v6641
  %v6894 = vpack.c.b16 %v6646, %v6642
  %v6895 = vpack.c.b16 %v6651, %v6647
  %v6896 = vpack.c.b16 %v6652, %v6648
  %v6897 = vpack.c.b16 %v6653, %v6649
  %v6898 = vpack.c.b16 %v6654, %v6650
  %v6899 = vpack.c.b16 %v6659, %v6655
  %v6900 = vpack.c.b16 %v6660, %v6656
  %v6901 = vpack.c.b16 %v6661, %v6657
  %v6902 = vpack.c.b16 %v6662, %v6658
  %v6903 = vpack.c.b16 %v6667, %v6663
  %v6904 = vpack.c.b16 %v6668, %v6664
  %v6905 = vpack.c.b16 %v6669, %v6665
  %v6906 = vpack.c.b16 %v6670, %v6666
  %v6907 = vpack.c.b16 %v6675, %v6671
  %v6908 = vpack.c.b16 %v6676, %v6672
  %v6909 = vpack.c.b16 %v6677, %v6673
  %v6910 = vpack.c.b16 %v6678, %v6674
  %v6911 = vpack.c.b16 %v6683, %v6679
  %v6912 = vpack.c.b16 %v6684, %v6680
  %v6913 = vpack.c.b16 %v6685, %v6681
  %v6914 = vpack.c.b16 %v6686, %v6682
  %v6915 = vpack.c.b16 %v6691, %v6687
  %v6916 = vpack.c.b16 %v6692, %v6688
  %v6917 = vpack.c.b16 %v6693, %v6689
  %v6918 = vpack.c.b16 %v6694, %v6690
  %v6919 = vpack.c.b16 %v6699, %v6695
  %v6920 = vpack.c.b16 %v6700, %v6696
  %v6921 = vpack.c.b16 %v6701, %v6697
  %v6922 = vpack.c.b16 %v6702, %v6698
  %v6923 = vpack.c.b16 %v6707, %v6703
  %v6924 = vpack.c.b16 %v6708, %v6704
  %v6925 = vpack.c.b16 %v6709, %v6705
  %v6926 = vpack.c.b16 %v6710, %v6706
  %v6927 = vpack.c.b16 %v6715, %v6711
  %v6928 = vpack.c.b16 %v6716, %v6712
  %v6929 = vpack.c.b16 %v6717, %v6713
  %v6930 = vpack.c.b16 %v6718, %v6714
  %v6931 = vpack.c.b16 %v6723, %v6719
  %v6932 = vpack.c.b16 %v6724, %v6720
  %v6933 = vpack.c.b16 %v6725, %v6721
  %v6934 = vpack.c.b16 %v6726, %v6722
  %v6935 = vpack.c.b16 %v6731, %v6727
  %v6936 = vpack.c.b16 %v6732, %v6728
  %v6937 = vpack.c.b16 %v6733, %v6729
  %v6938 = vpack.c.b16 %v6734, %v6730
  %v6939 = vpack.c.b16 %v6739, %v6735
  %v6940 = vpack.c.b16 %v6740, %v6736
  %v6941 = vpack.c.b16 %v6741, %v6737
  %v6942 = vpack.c.b16 %v6742, %v6738
  %v6943 = vpack.c.b16 %v6747, %v6743
  %v6944 = vpack.c.b16 %v6748, %v6744
  %v6945 = vpack.c.b16 %v6749, %v6745
  %v6946 = vpack.c.b16 %v6750, %v6746
  %v6947 = vpack.c.b16 %v6755, %v6751
  %v6948 = vpack.c.b16 %v6756, %v6752
  %v6949 = vpack.c.b16 %v6757, %v6753
  %v6950 = vpack.c.b16 %v6758, %v6754
  %v6951 = vpack.c.b16 %v6763, %v6759
  %v6952 = vpack.c.b16 %v6764, %v6760
  %v6953 = vpack.c.b16 %v6765, %v6761
  %v6954 = vpack.c.b16 %v6766, %v6762
  %v6955 = vpack.c.b16 %v6771, %v6767
  %v6956 = vpack.c.b16 %v6772, %v6768
  %v6957 = vpack.c.b16 %v6773, %v6769
  %v6958 = vpack.c.b16 %v6774, %v6770
  %v6959 = vpack.c.b16 %v6779, %v6775
  %v6960 = vpack.c.b16 %v6780, %v6776
  %v6961 = vpack.c.b16 %v6781, %v6777
  %v6962 = vpack.c.b16 %v6782, %v6778
  %v6963 = vpack.c.b16 %v6787, %v6783
  %v6964 = vpack.c.b16 %v6788, %v6784
  %v6965 = vpack.c.b16 %v6789, %v6785
  %v6966 = vpack.c.b16 %v6790, %v6786
  %v6967 = vpack.c.b16 %v6795, %v6791
  %v6968 = vpack.c.b16 %v6796, %v6792
  %v6969 = vpack.c.b16 %v6797, %v6793
  %v6970 = vpack.c.b16 %v6798, %v6794
  %v6971 = vpack.c.b16 %v6803, %v6799
  %v6972 = vpack.c.b16 %v6804, %v6800
  %v6973 = vpack.c.b16 %v6805, %v6801
  %v6974 = vpack.c.b16 %v6806, %v6802
  %v6975 = vpack.c.b16 %v6811, %v6807
  %v6976 = vpack.c.b16 %v6812, %v6808
  %v6977 = vpack.c.b16 %v6813, %v6809
  %v6978 = vpack.c.b16 %v6814, %v6810
  %v6979 = vpack.c.b16 %v6819, %v6815
  %v6980 = vpack.c.b16 %v6820, %v6816
  %v6981 = vpack.c.b16 %v6821, %v6817
  %v6982 = vpack.c.b16 %v6822, %v6818
  %v6983 = vpack.c.b16 %v6827, %v6823
  %v6984 = vpack.c.b16 %v6828, %v6824
  %v6985 = vpack.c.b16 %v6829, %v6825
  %v6986 = vpack.c.b16 %v6830, %v6826
  %v6987 = vpack.c.b16 %v6835, %v6831
  %v6988 = vpack.c.b16 %v6836, %v6832
  %v6989 = vpack.c.b16 %v6837, %v6833
  %v6990 = vpack.c.b16 %v6838, %v6834
  %v6991 = vpack.c.b16 %v6843, %v6839
  %v6992 = vpack.c.b16 %v6844, %v6840
  %v6993 = vpack.c.b16 %v6845, %v6841
  %v6994 = vpack.c.b16 %v6846, %v6842
  %v6995 = vpack.c.b16 %v6851, %v6847
  %v6996 = vpack.c.b16 %v6852, %v6848
  %v6997 = vpack.c.b16 %v6853, %v6849
  %v6998 = vpack.c.b16 %v6854, %v6850
  %v6999 = vpack.c.b16 %v6859, %v6855
  %v7000 = vpack.c.b16 %v6860, %v6856
  %v7001 = vpack.c.b16 %v6861, %v6857
  %v7002 = vpack.c.b16 %v6862, %v6858
  %v7003 = vpack.c.b16 %v6867, %v6863
  %v7004 = vpack.c.b16 %v6868, %v6864
  %v7005 = vpack.c.b16 %v6869, %v6865
  %v7006 = vpack.c.b16 %v6870, %v6866
  %v7007 = vpack.c.b16 %v6875, %v6871
  %v7008 = vpack.c.b16 %v6876, %v6872
  %v7009 = vpack.c.b16 %v6877, %v6873
  %v7010 = vpack.c.b16 %v6878, %v6874
  %v7011 = vpack.c.b16 %v6883, %v6879
  %v7012 = vpack.c.b16 %v6884, %v6880
  %v7013 = vpack.c.b16 %v6885, %v6881
  %v7014 = vpack.c.b16 %v6886, %v6882
  %7143 = vmatprep.subr.bf16.mxu0 %v6888
  %7144 = vmatpush1.bf16.msra.mxu0 %v6887
  %7145 = vmatprep.subr.bf16.mxu0 %v6892
  %7146 = vmatpush1.bf16.msra.mxu0 %v6891
  %7147 = vmatprep.subr.bf16.mxu0 %v6896
  %7148 = vmatpush1.bf16.msra.mxu0 %v6895
  %7149 = vmatprep.subr.bf16.mxu0 %v6900
  %7150 = vmatpush1.bf16.msra.mxu0 %v6899
  %7151 = vmatprep.subr.bf16.mxu0 %v6904
  %7152 = vmatpush1.bf16.msra.mxu0 %v6903
  %7153 = vmatprep.subr.bf16.mxu0 %v6908
  %7154 = vmatpush1.bf16.msra.mxu0 %v6907
  %7155 = vmatprep.subr.bf16.mxu0 %v6912
  %7156 = vmatpush1.bf16.msra.mxu0 %v6911
  %7157 = vmatprep.subr.bf16.mxu0 %v6916
  %7158 = vmatpush1.bf16.msra.mxu0 %v6915
  %7159 = vmatprep.subr.bf16.mxu0 %v6920
  %7160 = vmatpush1.bf16.msra.mxu0 %v6919
  %7161 = vmatprep.subr.bf16.mxu0 %v6924
  %7162 = vmatpush1.bf16.msra.mxu0 %v6923
  %7163 = vmatprep.subr.bf16.mxu0 %v6928
  %7164 = vmatpush1.bf16.msra.mxu0 %v6927
  %7165 = vmatprep.subr.bf16.mxu0 %v6932
  %7166 = vmatpush1.bf16.msra.mxu0 %v6931
  %7167 = vmatprep.subr.bf16.mxu0 %v6936
  %7168 = vmatpush1.bf16.msra.mxu0 %v6935
  %7169 = vmatprep.subr.bf16.mxu0 %v6940
  %7170 = vmatpush1.bf16.msra.mxu0 %v6939
  %7171 = vmatprep.subr.bf16.mxu0 %v6944
  %7172 = vmatpush1.bf16.msra.mxu0 %v6943
  %7173 = vmatprep.subr.bf16.mxu0 %v6948
  %7174 = vmatpush1.bf16.msra.mxu0 %v6947
  %7175 = vmatprep.mubr.bf16.mxu0 %v6337
  %7176 = vmatmul.mubr.bf16.gmra.mrb[0].mxu0 %v6336
  %v7177 = vpop.f32.mrb[0].mxu0
  %v7178 = vadd.f32 %v6486, %v7177
  %v7179 = vpop.f32.mrb[0].mxu0
  %v7180 = vadd.f32 %v6490, %v7179
  %v7181 = vpop.f32.mrb[0].mxu0
  %v7182 = vadd.f32 %v6486, %v7181
  %v7183 = vpop.f32.mrb[0].mxu0
  %v7184 = vadd.f32 %v6490, %v7183
  %7185 = vmatprep.mubr.bf16.mxu0 %v6341
  %7186 = vmatmul.mubr.bf16.gmra.mrb[0].mxu0 %v6340
  %v7187 = vpop.f32.mrb[0].mxu0
  %v7188 = vadd.f32 %v6486, %v7187
  %v7189 = vpop.f32.mrb[0].mxu0
  %v7190 = vadd.f32 %v6490, %v7189
  %v7191 = vpop.f32.mrb[0].mxu0
  %v7192 = vadd.f32 %v6486, %v7191
  %v7193 = vpop.f32.mrb[0].mxu0
  %v7194 = vadd.f32 %v6490, %v7193
  %7195 = vmatprep.mubr.bf16.mxu0 %v6345
  %7196 = vmatmul.mubr.bf16.gmra.mrb[0].mxu0 %v6344
  %v7197 = vpop.f32.mrb[0].mxu0
  %v7198 = vadd.f32 %v6486, %v7197
  %v7199 = vpop.f32.mrb[0].mxu0
  %v7200 = vadd.f32 %v6490, %v7199
  %v7201 = vpop.f32.mrb[0].mxu0
  %v7202 = vadd.f32 %v6486, %v7201
  %v7203 = vpop.f32.mrb[0].mxu0
  %v7204 = vadd.f32 %v6490, %v7203
  %7205 = vmatprep.mubr.bf16.mxu0 %v6349
  %7206 = vmatmul.mubr.bf16.gmra.mrb[0].mxu0 %v6348
  %v7207 = vpop.f32.mrb[0].mxu0
  %v7208 = vadd.f32 %v6486, %v7207
  %v7209 = vpop.f32.mrb[0].mxu0
  %v7210 = vadd.f32 %v6490, %v7209
  %v7211 = vpop.f32.mrb[0].mxu0
  %v7212 = vadd.f32 %v6486, %v7211
  %v7213 = vpop.f32.mrb[0].mxu0
  %v7214 = vadd.f32 %v6490, %v7213
  %7215 = vdwg.mxu0
  %7216 = vmatprep.subr.bf16.mxu0 %v6952
  %7217 = vmatpush1.bf16.msra.mxu0 %v6951
  %7218 = vmatprep.subr.bf16.mxu0 %v6956
  %7219 = vmatpush1.bf16.msra.mxu0 %v6955
  %7220 = vmatprep.subr.bf16.mxu0 %v6960
  %7221 = vmatpush1.bf16.msra.mxu0 %v6959
  %7222 = vmatprep.subr.bf16.mxu0 %v6964
  %7223 = vmatpush1.bf16.msra.mxu0 %v6963
  %7224 = vmatprep.subr.bf16.mxu0 %v6968
  %7225 = vmatpush1.bf16.msra.mxu0 %v6967
  %7226 = vmatprep.subr.bf16.mxu0 %v6972
  %7227 = vmatpush1.bf16.msra.mxu0 %v6971
  %7228 = vmatprep.subr.bf16.mxu0 %v6976
  %7229 = vmatpush1.bf16.msra.mxu0 %v6975
  %7230 = vmatprep.subr.bf16.mxu0 %v6980
  %7231 = vmatpush1.bf16.msra.mxu0 %v6979
  %7232 = vmatprep.subr.bf16.mxu0 %v6984
  %7233 = vmatpush1.bf16.msra.mxu0 %v6983
  %7234 = vmatprep.subr.bf16.mxu0 %v6988
  %7235 = vmatpush1.bf16.msra.mxu0 %v6987
  %7236 = vmatprep.subr.bf16.mxu0 %v6992
  %7237 = vmatpush1.bf16.msra.mxu0 %v6991
  %7238 = vmatprep.subr.bf16.mxu0 %v6996
  %7239 = vmatpush1.bf16.msra.mxu0 %v6995
  %7240 = vmatprep.subr.bf16.mxu0 %v7000
  %7241 = vmatpush1.bf16.msra.mxu0 %v6999
  %7242 = vmatprep.subr.bf16.mxu0 %v7004
  %7243 = vmatpush1.bf16.msra.mxu0 %v7003
  %7244 = vmatprep.subr.bf16.mxu0 %v7008
  %7245 = vmatpush1.bf16.msra.mxu0 %v7007
  %7246 = vmatprep.subr.bf16.mxu0 %v7012
  %7247 = vmatpush1.bf16.msra.mxu0 %v7011
  %7248 = vmatprep.mubr.bf16.mxu0 %v6339
  %7249 = vmatmul.mubr.bf16.gmra.mrb[0].mxu0 %v6338
  %v7250 = vpop.f32.mrb[0].mxu0
  %v7251 = vadd.f32 %v7178, %v7250
  %v7252 = vpop.f32.mrb[0].mxu0
  %v7253 = vadd.f32 %v7180, %v7252
  %v7254 = vpop.f32.mrb[0].mxu0
  %v7255 = vadd.f32 %v7182, %v7254
  %v7256 = vpop.f32.mrb[0].mxu0
  %v7257 = vadd.f32 %v7184, %v7256
  %7258 = vmatprep.mubr.bf16.mxu0 %v6343
  %7259 = vmatmul.mubr.bf16.gmra.mrb[0].mxu0 %v6342
  %v7260 = vpop.f32.mrb[0].mxu0
  %v7261 = vadd.f32 %v7188, %v7260
  %v7262 = vpop.f32.mrb[0].mxu0
  %v7263 = vadd.f32 %v7190, %v7262
  %v7264 = vpop.f32.mrb[0].mxu0
  %v7265 = vadd.f32 %v7192, %v7264
  %v7266 = vpop.f32.mrb[0].mxu0
  %v7267 = vadd.f32 %v7194, %v7266
  %7268 = vmatprep.mubr.bf16.mxu0 %v6347
  %7269 = vmatmul.mubr.bf16.gmra.mrb[0].mxu0 %v6346
  %v7270 = vpop.f32.mrb[0].mxu0
  %v7271 = vadd.f32 %v7198, %v7270
  %v7272 = vpop.f32.mrb[0].mxu0
  %v7273 = vadd.f32 %v7200, %v7272
  %v7274 = vpop.f32.mrb[0].mxu0
  %v7275 = vadd.f32 %v7202, %v7274
  %v7276 = vpop.f32.mrb[0].mxu0
  %v7277 = vadd.f32 %v7204, %v7276
  %7278 = vmatprep.mubr.bf16.mxu0 %v6351
  %7279 = vmatmul.mubr.bf16.gmra.mrb[0].mxu0 %v6350
  %v7280 = vpop.f32.mrb[0].mxu0
  %v7281 = vadd.f32 %v7208, %v7280
  %v7282 = vpop.f32.mrb[0].mxu0
  %v7283 = vadd.f32 %v7210, %v7282
  %v7284 = vpop.f32.mrb[0].mxu0
  %v7285 = vadd.f32 %v7212, %v7284
  %v7286 = vpop.f32.mrb[0].mxu0
  %v7287 = vadd.f32 %v7214, %v7286
  %7288 = vdwg.mxu0
  %7289 = vmatprep.subr.bf16.mxu0 %v6890
  %7290 = vmatpush1.bf16.msra.mxu0 %v6889
  %7291 = vmatprep.subr.bf16.mxu0 %v6894
  %7292 = vmatpush1.bf16.msra.mxu0 %v6893
  %7293 = vmatprep.subr.bf16.mxu0 %v6898
  %7294 = vmatpush1.bf16.msra.mxu0 %v6897
  %7295 = vmatprep.subr.bf16.mxu0 %v6902
  %7296 = vmatpush1.bf16.msra.mxu0 %v6901
  %7297 = vmatprep.subr.bf16.mxu0 %v6906
  %7298 = vmatpush1.bf16.msra.mxu0 %v6905
  %7299 = vmatprep.subr.bf16.mxu0 %v6910
  %7300 = vmatpush1.bf16.msra.mxu0 %v6909
  %7301 = vmatprep.subr.bf16.mxu0 %v6914
  %7302 = vmatpush1.bf16.msra.mxu0 %v6913
  %7303 = vmatprep.subr.bf16.mxu0 %v6918
  %7304 = vmatpush1.bf16.msra.mxu0 %v6917
  %7305 = vmatprep.subr.bf16.mxu0 %v6922
  %7306 = vmatpush1.bf16.msra.mxu0 %v6921
  %7307 = vmatprep.subr.bf16.mxu0 %v6926
  %7308 = vmatpush1.bf16.msra.mxu0 %v6925
  %7309 = vmatprep.subr.bf16.mxu0 %v6930
  %7310 = vmatpush1.bf16.msra.mxu0 %v6929
  %7311 = vmatprep.subr.bf16.mxu0 %v6934
  %7312 = vmatpush1.bf16.msra.mxu0 %v6933
  %7313 = vmatprep.subr.bf16.mxu0 %v6938
  %7314 = vmatpush1.bf16.msra.mxu0 %v6937
  %7315 = vmatprep.subr.bf16.mxu0 %v6942
  %7316 = vmatpush1.bf16.msra.mxu0 %v6941
  %7317 = vmatprep.subr.bf16.mxu0 %v6946
  %7318 = vmatpush1.bf16.msra.mxu0 %v6945
  %7319 = vmatprep.subr.bf16.mxu0 %v6950
  %7320 = vmatpush1.bf16.msra.mxu0 %v6949
  %7321 = vmatprep.mubr.bf16.mxu0 %v6337
  %7322 = vmatmul.mubr.bf16.gmra.mrb[0].mxu0 %v6336
  %v7323 = vpop.f32.mrb[0].mxu0
  %v7324 = vadd.f32 %v6494, %v7323
  %v7325 = vpop.f32.mrb[0].mxu0
  %v7326 = vadd.f32 %v6498, %v7325
  %v7327 = vpop.f32.mrb[0].mxu0
  %v7328 = vadd.f32 %v6494, %v7327
  %v7329 = vpop.f32.mrb[0].mxu0
  %v7330 = vadd.f32 %v6498, %v7329
  %7331 = vmatprep.mubr.bf16.mxu0 %v6341
  %7332 = vmatmul.mubr.bf16.gmra.mrb[0].mxu0 %v6340
  %v7333 = vpop.f32.mrb[0].mxu0
  %v7334 = vadd.f32 %v6494, %v7333
  %v7335 = vpop.f32.mrb[0].mxu0
  %v7336 = vadd.f32 %v6498, %v7335
  %v7337 = vpop.f32.mrb[0].mxu0
  %v7338 = vadd.f32 %v6494, %v7337
  %v7339 = vpop.f32.mrb[0].mxu0
  %v7340 = vadd.f32 %v6498, %v7339
  %7341 = vmatprep.mubr.bf16.mxu0 %v6345
  %7342 = vmatmul.mubr.bf16.gmra.mrb[0].mxu0 %v6344
  %v7343 = vpop.f32.mrb[0].mxu0
  %v7344 = vadd.f32 %v6494, %v7343
  %v7345 = vpop.f32.mrb[0].mxu0
  %v7346 = vadd.f32 %v6498, %v7345
  %v7347 = vpop.f32.mrb[0].mxu0
  %v7348 = vadd.f32 %v6494, %v7347
  %v7349 = vpop.f32.mrb[0].mxu0
  %v7350 = vadd.f32 %v6498, %v7349
  %7351 = vmatprep.mubr.bf16.mxu0 %v6349
  %7352 = vmatmul.mubr.bf16.gmra.mrb[0].mxu0 %v6348
  %v7353 = vpop.f32.mrb[0].mxu0
  %v7354 = vadd.f32 %v6494, %v7353
  %v7355 = vpop.f32.mrb[0].mxu0
  %v7356 = vadd.f32 %v6498, %v7355
  %v7357 = vpop.f32.mrb[0].mxu0
  %v7358 = vadd.f32 %v6494, %v7357
  %v7359 = vpop.f32.mrb[0].mxu0
  %v7360 = vadd.f32 %v6498, %v7359
  %7361 = vdwg.mxu0
  %7362 = vmatprep.subr.bf16.mxu0 %v6954
  %7363 = vmatpush1.bf16.msra.mxu0 %v6953
  %7364 = vmatprep.subr.bf16.mxu0 %v6958
  %7365 = vmatpush1.bf16.msra.mxu0 %v6957
  %7366 = vmatprep.subr.bf16.mxu0 %v6962
  %7367 = vmatpush1.bf16.msra.mxu0 %v6961
  %7368 = vmatprep.subr.bf16.mxu0 %v6966
  %7369 = vmatpush1.bf16.msra.mxu0 %v6965
  %7370 = vmatprep.subr.bf16.mxu0 %v6970
  %7371 = vmatpush1.bf16.msra.mxu0 %v6969
  %7372 = vmatprep.subr.bf16.mxu0 %v6974
  %7373 = vmatpush1.bf16.msra.mxu0 %v6973
  %7374 = vmatprep.subr.bf16.mxu0 %v6978
  %7375 = vmatpush1.bf16.msra.mxu0 %v6977
  %7376 = vmatprep.subr.bf16.mxu0 %v6982
  %7377 = vmatpush1.bf16.msra.mxu0 %v6981
  %7378 = vmatprep.subr.bf16.mxu0 %v6986
  %7379 = vmatpush1.bf16.msra.mxu0 %v6985
  %7380 = vmatprep.subr.bf16.mxu0 %v6990
  %7381 = vmatpush1.bf16.msra.mxu0 %v6989
  %7382 = vmatprep.subr.bf16.mxu0 %v6994
  %7383 = vmatpush1.bf16.msra.mxu0 %v6993
  %7384 = vmatprep.subr.bf16.mxu0 %v6998
  %7385 = vmatpush1.bf16.msra.mxu0 %v6997
  %7386 = vmatprep.subr.bf16.mxu0 %v7002
  %7387 = vmatpush1.bf16.msra.mxu0 %v7001
  %7388 = vmatprep.subr.bf16.mxu0 %v7006
  %7389 = vmatpush1.bf16.msra.mxu0 %v7005
  %7390 = vmatprep.subr.bf16.mxu0 %v7010
  %7391 = vmatpush1.bf16.msra.mxu0 %v7009
  %7392 = vmatprep.subr.bf16.mxu0 %v7014
  %7393 = vmatpush1.bf16.msra.mxu0 %v7013
  %7394 = vmatprep.mubr.bf16.mxu0 %v6339
  %7395 = vmatmul.mubr.bf16.gmra.mrb[0].mxu0 %v6338
  %v7396 = vpop.f32.mrb[0].mxu0
  %v7397 = vadd.f32 %v7324, %v7396
  %v7398 = vpop.f32.mrb[0].mxu0
  %v7399 = vadd.f32 %v7326, %v7398
  %v7400 = vpop.f32.mrb[0].mxu0
  %v7401 = vadd.f32 %v7328, %v7400
  %v7402 = vpop.f32.mrb[0].mxu0
  %v7403 = vadd.f32 %v7330, %v7402
  %7404 = vmatprep.mubr.bf16.mxu0 %v6343
  %7405 = vmatmul.mubr.bf16.gmra.mrb[0].mxu0 %v6342
  %v7406 = vpop.f32.mrb[0].mxu0
  %v7407 = vadd.f32 %v7334, %v7406
  %v7408 = vpop.f32.mrb[0].mxu0
  %v7409 = vadd.f32 %v7336, %v7408
  %v7410 = vpop.f32.mrb[0].mxu0
  %v7411 = vadd.f32 %v7338, %v7410
  %v7412 = vpop.f32.mrb[0].mxu0
  %v7413 = vadd.f32 %v7340, %v7412
  %7414 = vmatprep.mubr.bf16.mxu0 %v6347
  %7415 = vmatmul.mubr.bf16.gmra.mrb[0].mxu0 %v6346
  %v7416 = vpop.f32.mrb[0].mxu0
  %v7417 = vadd.f32 %v7344, %v7416
  %v7418 = vpop.f32.mrb[0].mxu0
  %v7419 = vadd.f32 %v7346, %v7418
  %v7420 = vpop.f32.mrb[0].mxu0
  %v7421 = vadd.f32 %v7348, %v7420
  %v7422 = vpop.f32.mrb[0].mxu0
  %v7423 = vadd.f32 %v7350, %v7422
  %7424 = vmatprep.mubr.bf16.mxu0 %v6351
  %7425 = vmatmul.mubr.bf16.gmra.mrb[0].mxu0 %v6350
  %v7426 = vpop.f32.mrb[0].mxu0
  %v7427 = vadd.f32 %v7354, %v7426
  %v7428 = vpop.f32.mrb[0].mxu0
  %v7429 = vadd.f32 %v7356, %v7428
  %v7430 = vpop.f32.mrb[0].mxu0
  %v7431 = vadd.f32 %v7358, %v7430
  %v7432 = vpop.f32.mrb[0].mxu0
  %v7433 = vadd.f32 %v7360, %v7432
  %7434 = vdwg.mxu0
  %v7435 = vmax.f32 %v7251, 0.0
  %v7436 = vmax.f32 %v7253, 0.0
  %v7437 = vmax.f32 %v7397, 0.0
  %v7438 = vmax.f32 %v7399, 0.0
  %v7439 = vmax.f32 %v7255, 0.0
  %v7440 = vmax.f32 %v7257, 0.0
  %v7441 = vmax.f32 %v7401, 0.0
  %v7442 = vmax.f32 %v7403, 0.0
  %v7443 = vmax.f32 %v7261, 0.0
  %v7444 = vmax.f32 %v7263, 0.0
  %v7445 = vmax.f32 %v7407, 0.0
  %v7446 = vmax.f32 %v7409, 0.0
  %v7447 = vmax.f32 %v7265, 0.0
  %v7448 = vmax.f32 %v7267, 0.0
  %v7449 = vmax.f32 %v7411, 0.0
  %v7450 = vmax.f32 %v7413, 0.0
  %v7451 = vmax.f32 %v7271, 0.0
  %v7452 = vmax.f32 %v7273, 0.0
  %v7453 = vmax.f32 %v7417, 0.0
  %v7454 = vmax.f32 %v7419, 0.0
  %v7455 = vmax.f32 %v7275, 0.0
  %v7456 = vmax.f32 %v7277, 0.0
  %v7457 = vmax.f32 %v7421, 0.0
  %v7458 = vmax.f32 %v7423, 0.0
  %v7459 = vmax.f32 %v7281, 0.0
  %v7460 = vmax.f32 %v7283, 0.0
  %v7461 = vmax.f32 %v7427, 0.0
  %v7462 = vmax.f32 %v7429, 0.0
  %v7463 = vmax.f32 %v7285, 0.0
  %v7464 = vmax.f32 %v7287, 0.0
  %v7465 = vmax.f32 %v7431, 0.0
  %v7466 = vmax.f32 %v7433, 0.0
  %v7467 = vmul.f32 %v7435, 0.999995
  %v7468 = vmul.f32 %v7436, 0.999995
  %v7469 = vmul.f32 %v7437, 0.999995
  %v7470 = vmul.f32 %v7438, 0.999995
  %v7471 = vmul.f32 %v7439, 0.999995
  %v7472 = vmul.f32 %v7440, 0.999995
  %v7473 = vmul.f32 %v7441, 0.999995
  %v7474 = vmul.f32 %v7442, 0.999995
  %v7475 = vmul.f32 %v7443, 0.999995
  %v7476 = vmul.f32 %v7444, 0.999995
  %v7477 = vmul.f32 %v7445, 0.999995
  %v7478 = vmul.f32 %v7446, 0.999995
  %v7479 = vmul.f32 %v7447, 0.999995
  %v7480 = vmul.f32 %v7448, 0.999995
  %v7481 = vmul.f32 %v7449, 0.999995
  %v7482 = vmul.f32 %v7450, 0.999995
  %v7483 = vmul.f32 %v7451, 0.999995
  %v7484 = vmul.f32 %v7452, 0.999995
  %v7485 = vmul.f32 %v7453, 0.999995
  %v7486 = vmul.f32 %v7454, 0.999995
  %v7487 = vmul.f32 %v7455, 0.999995
  %v7488 = vmul.f32 %v7456, 0.999995
  %v7489 = vmul.f32 %v7457, 0.999995
  %v7490 = vmul.f32 %v7458, 0.999995
  %v7491 = vmul.f32 %v7459, 0.999995
  %v7492 = vmul.f32 %v7460, 0.999995
  %v7493 = vmul.f32 %v7461, 0.999995
  %v7494 = vmul.f32 %v7462, 0.999995
  %v7495 = vmul.f32 %v7463, 0.999995
  %v7496 = vmul.f32 %v7464, 0.999995
  %v7497 = vmul.f32 %v7465, 0.999995
  %v7498 = vmul.f32 %v7466, 0.999995
  %7499 = vst [vmem:[%s5] sm:$0xff] %v7467
  %7500 = vst [vmem:[%s5 + $0x8] sm:$0xff] %v7468
  %7501 = vst [vmem:[%s5 + $0x10] sm:$0xff] %v7469
  %7502 = vst [vmem:[%s5 + $0x18] sm:$0xff] %v7470
  %7503 = vst [vmem:[%s5 + $0x20] sm:$0xff] %v7471
  %7504 = vst [vmem:[%s5 + $0x28] sm:$0xff] %v7472
  %7505 = vst [vmem:[%s5 + $0x30] sm:$0xff] %v7473
  %7506 = vst [vmem:[%s5 + $0x38] sm:$0xff] %v7474
  %7507 = vst [vmem:[%s5 + $0x40] sm:$0xff] %v7475
  %7508 = vst [vmem:[%s5 + $0x48] sm:$0xff] %v7476
  %7509 = vst [vmem:[%s5 + $0x50] sm:$0xff] %v7477
  %7510 = vst [vmem:[%s5 + $0x58] sm:$0xff] %v7478
  %7511 = vst [vmem:[%s5 + $0x60] sm:$0xff] %v7479
  %7512 = vst [vmem:[%s5 + $0x68] sm:$0xff] %v7480
  %7513 = vst [vmem:[%s5 + $0x70] sm:$0xff] %v7481
  %7514 = vst [vmem:[%s5 + $0x78] sm:$0xff] %v7482
  %7515 = vst [vmem:[%s5 + $0x80] sm:$0xff] %v7483
  %7516 = vst [vmem:[%s5 + $0x88] sm:$0xff] %v7484
  %7517 = vst [vmem:[%s5 + $0x90] sm:$0xff] %v7485
  %7518 = vst [vmem:[%s5 + $0x98] sm:$0xff] %v7486
  %7519 = vst [vmem:[%s5 + $0xa0] sm:$0xff] %v7487
  %7520 = vst [vmem:[%s5 + $0xa8] sm:$0xff] %v7488
  %7521 = vst [vmem:[%s5 + $0xb0] sm:$0xff] %v7489
  %7522 = vst [vmem:[%s5 + $0xb8] sm:$0xff] %v7490
  %7523 = vst [vmem:[%s5 + $0xc0] sm:$0xff] %v7491
  %7524 = vst [vmem:[%s5 + $0xc8] sm:$0xff] %v7492
  %7525 = vst [vmem:[%s5 + $0xd0] sm:$0xff] %v7493
  %7526 = vst [vmem:[%s5 + $0xd8] sm:$0xff] %v7494
  %7527 = vst [vmem:[%s5 + $0xe0] sm:$0xff] %v7495
  %7528 = vst [vmem:[%s5 + $0xe8] sm:$0xff] %v7496
  %7529 = vst [vmem:[%s5 + $0xf0] sm:$0xff] %v7497
  %7530 = vst [vmem:[%s5 + $0xf8] sm:$0xff] %v7498
  // Predicated region
  $region22: #{_lambda_.2} parent=0 // pred_check
    _
  $region23: #{_lambda_.2} parent=0 // pred_check_branch
    %7532 = sbr.rel (0) target = $region25
  $region24: #{_lambda_.2} parent=0 // pred_region
    _
  $region25: #{_lambda_.2} parent=0 // pred_fallthru
    _
  // Predicated region
  $region26: #{_lambda_.2} parent=0 // pred_check
    _
  $region27: #{_lambda_.2} parent=0 // pred_check_branch
    %7534 = sbr.rel (0) target = $region29
  $region28: #{_lambda_.2} parent=0 // pred_region
    _
  $region29: #{_lambda_.2} parent=0 // pred_fallthru
    _

</llo_original>
